<compile_context>
chip_gen: v7x
topology: tpu7x:2x2x1
jax: 0.10.0
libtpu: 0.0.40
codegen_flags: <defaults>
</compile_context>

<pallas_src>
import functools

import jax
import jax.numpy as jnp
from jax.experimental import pallas as pl
from jax.experimental.pallas import tpu as pltpu


N_CLASSES = 11
NPAD = 128                                      # lane-dense padded FC width
LAYER_CFG = [(8, 16, 12), (16, 32, 8), (32, 64, 4), (64, 128, 1)]  # (in, out, n_blocks)


# ----------------------------------------------------------------------------
# Register-level zero-filled time shifts (no VMEM scratch round trip)
# ----------------------------------------------------------------------------
def _shift_prev(h, d):
    # h[t - d] with zero fill at the start
    T, C = h.shape
    return jnp.concatenate([jnp.zeros((d, C), h.dtype), h[: T - d, :]], axis=0)


def _shift_next(h, d):
    # h[t + d] with zero fill at the end
    T, C = h.shape
    return jnp.concatenate([h[d:, :], jnp.zeros((d, C), h.dtype)], axis=0)


# ----------------------------------------------------------------------------
# Fused whole-network kernel: one batch element per grid step
# ----------------------------------------------------------------------------
def classifier_kernel(x_ref, *refs, cfgs):
    # refs = [per layer: pw_w, pw_b, wg, bg, w4, b4] * 4, fc_w, fc_b, o_ref
    #   pw_w (Cin, C) bf16, pw_b (1, C) f32                pointwise 1x1 conv
    #   wg   (n, 3C, 2C) bf16  rows = [prev; center; next] taps,
    #                          cols = [tanh branch | sigmoid branch]
    #   bg   (n, 1, 2C) f32
    #   w4   (n, C, C) bf16, b4 (n, 1, C) f32              residual 1x1 conv
    o_ref = refs[-1]
    w = refs[:-1]
    T = x_ref.shape[1]

    h = x_ref[0].astype(jnp.float32)            # (T, Cin), stays on-chip throughout
    wi = 0
    for C, dilations in cfgs:                   # static unroll over layers
        pw_w, pw_b, wg, bg, w4, b4 = w[wi:wi + 6]
        wi += 6

        # pointwise 1x1 conv: Cin -> C   (bf16 MXU operands, f32 accumulation)
        h = jnp.dot(h.astype(jnp.bfloat16), pw_w[...],
                    preferred_element_type=jnp.float32) + pw_b[...]

        for i, d in enumerate(dilations):       # static unroll over wave blocks
            wgi = wg[i]                         # (3C, 2C) bf16
            if d < T:
                # lane-pack the 3 taps -> one (T,3C)@(3C,2C) MXU contraction
                xcat = jnp.concatenate(
                    [_shift_prev(h, d), h, _shift_next(h, d)], axis=1)
                g = jnp.dot(xcat.astype(jnp.bfloat16), wgi,
                            preferred_element_type=jnp.float32) + bg[i]
            else:
                # d >= T: off-center taps see only zero padding -> center only
                g = jnp.dot(h.astype(jnp.bfloat16), wgi[C:2 * C, :],
                            preferred_element_type=jnp.float32) + bg[i]

            res = jnp.tanh(g[:, :C]) * jax.nn.sigmoid(g[:, C:])
            h = h + jnp.dot(res.astype(jnp.bfloat16), w4[i],
                            preferred_element_type=jnp.float32) + b4[i]

    # final Linear(128 -> 11), padded to a lane-dense 128-wide output
    fc_w, fc_b = w[-2], w[-1]
    out = jnp.dot(h.astype(jnp.bfloat16), fc_w[...],
                  preferred_element_type=jnp.float32) + fc_b[...]
    o_ref[0] = out.astype(o_ref.dtype)


def classifier_forward(x, params):
    """x: (B, T, 8) -> (B, T, N_CLASSES); whole network in one pallas_call."""
    B, T, Cin = x.shape

    weights = []
    cfgs = []
    for layer in params["layers"]:
        weights += [layer["pw_w"], layer["pw_b"], layer["wg"],
                    layer["bg"], layer["w4"], layer["b4"]]
        cfgs.append((int(layer["w4"].shape[-1]), tuple(layer["dilations"])))
    weights += [params["fc_w"], params["fc_b"]]

    kern = functools.partial(classifier_kernel, cfgs=tuple(cfgs))

    in_specs = [pl.BlockSpec((1, T, Cin), lambda b: (b, 0, 0))]
    for wgt in weights:                          # full-resident weight blocks
        in_specs.append(
            pl.BlockSpec(wgt.shape, lambda b, _n=wgt.ndim: (0,) * _n))

    out = pl.pallas_call(
        kern,
        out_shape=jax.ShapeDtypeStruct((B, T, NPAD), jnp.float32),
        grid=(B,),
        in_specs=in_specs,
        out_specs=pl.BlockSpec((1, T, NPAD), lambda b: (b, 0, 0)),
        compiler_params=pltpu.CompilerParams(
            dimension_semantics=("parallel",)),   # B=2 -> both v7x TensorCores
    )(x.astype(jnp.float32), *weights)
    return out[..., :N_CLASSES]


# ----------------------------------------------------------------------------
# Parameter construction (deterministic, synthetic)
# ----------------------------------------------------------------------------
def _normal(key, shape, scale=0.05):
    return scale * jax.random.normal(key, shape, dtype=jnp.float32)


def init_params(key):
    params = {"layers": []}
    for in_ch, out_ch, n in LAYER_CFG:
        key, kpw, kpb, kwg, kbg, kw4, kb4 = jax.random.split(key, 7)
        # taps (prev, center, next) stacked along the contraction axis -> (3C, 2C);
        # tanh-branch weights in cols [:C], sigmoid-branch in cols [C:]
        wg = _normal(kwg, (n, 3, out_ch, 2 * out_ch)).reshape(
            n, 3 * out_ch, 2 * out_ch)
        params["layers"].append({
            "pw_w": _normal(kpw, (in_ch, out_ch)).astype(jnp.bfloat16),
            "pw_b": _normal(kpb, (1, out_ch)),
            "wg": wg.astype(jnp.bfloat16),
            "bg": _normal(kbg, (n, 1, 2 * out_ch)),
            "w4": _normal(kw4, (n, out_ch, out_ch)).astype(jnp.bfloat16),
            "b4": _normal(kb4, (n, 1, out_ch)),
            "dilations": tuple(2 ** i for i in range(n)),
        })
    key, kfw, kfb = jax.random.split(key, 3)
    fc_w = jnp.pad(_normal(kfw, (128, N_CLASSES)), ((0, 0), (0, NPAD - N_CLASSES)))
    fc_b = jnp.pad(_normal(kfb, (1, N_CLASSES)), ((0, 0), (0, NPAD - N_CLASSES)))
    params["fc_w"] = fc_w.astype(jnp.bfloat16)
    params["fc_b"] = fc_b
    return params


# ----------------------------------------------------------------------------
# Pure-jnp reference of the same math (mirrors the bf16-operand dots)
# ----------------------------------------------------------------------------
def _ref_forward(x, params):
    def bdot(a, w):   # a f32, w bf16 -> f32 accumulation (same casts as kernel)
        return jnp.einsum("btc,cd->btd", a.astype(jnp.bfloat16), w,
                          preferred_element_type=jnp.float32)

    def sprev(a, d):
        B, T, C = a.shape
        if d >= T:
            return jnp.zeros_like(a)
        z = jnp.zeros((B, d, C), a.dtype)
        return jnp.concatenate([z, a[:, : T - d]], axis=1)

    def snext(a, d):
        B, T, C = a.shape
        if d >= T:
            return jnp.zeros_like(a)
        z = jnp.zeros((B, d, C), a.dtype)
        return jnp.concatenate([a[:, d:], z], axis=1)

    h = x.astype(jnp.float32)
    for layer in params["layers"]:
        C = layer["w4"].shape[-1]
        h = bdot(h, layer["pw_w"]) + layer["pw_b"][None]
        for i, d in enumerate(layer["dilations"]):
            wg = layer["wg"][i]
            g = (bdot(sprev(h, d), wg[:C])
                 + bdot(h, wg[C:2 * C])
                 + bdot(snext(h, d), wg[2 * C:])
                 + layer["bg"][i][None])
            res = jnp.tanh(g[..., :C]) * jax.nn.sigmoid(g[..., C:])
            h = h + bdot(res, layer["w4"][i]) + layer["b4"][i][None]
    out = bdot(h, params["fc_w"]) + params["fc_b"][None]
    return out[..., :N_CLASSES]


if __name__ == "__main__":
    key = jax.random.PRNGKey(0)
    k_param, k_x = jax.random.split(key)
    params = init_params(k_param)

    B, T, C_IN = 2, 16, 8
    x = jax.random.normal(k_x, (B, T, C_IN), dtype=jnp.float32)

    fwd = jax.jit(lambda xx: classifier_forward(xx, params))
    out = jax.block_until_ready(fwd(x))
    assert out.shape == (B, T, N_CLASSES), out.shape

    ref = jax.block_until_ready(_ref_forward(x, params))
    err = float(jnp.max(jnp.abs(out - ref)))
    assert jnp.allclose(out, ref, atol=1e-2, rtol=1e-2), err

    print("KERNEL_OK")
</pallas_src>

<mosaic_0001>
module attributes {stable_mosaic.version = 11 : i64} {
  func.func @classifier_kernel(%arg0: i32, %arg1: memref<1x16x8xf32, #tpu.memory_space<vmem>>, %arg2: memref<8x16xbf16, #tpu.memory_space<vmem>>, %arg3: memref<1x16xf32, #tpu.memory_space<vmem>>, %arg4: memref<12x48x32xbf16, #tpu.memory_space<vmem>>, %arg5: memref<12x1x32xf32, #tpu.memory_space<vmem>>, %arg6: memref<12x16x16xbf16, #tpu.memory_space<vmem>>, %arg7: memref<12x1x16xf32, #tpu.memory_space<vmem>>, %arg8: memref<16x32xbf16, #tpu.memory_space<vmem>>, %arg9: memref<1x32xf32, #tpu.memory_space<vmem>>, %arg10: memref<8x96x64xbf16, #tpu.memory_space<vmem>>, %arg11: memref<8x1x64xf32, #tpu.memory_space<vmem>>, %arg12: memref<8x32x32xbf16, #tpu.memory_space<vmem>>, %arg13: memref<8x1x32xf32, #tpu.memory_space<vmem>>, %arg14: memref<32x64xbf16, #tpu.memory_space<vmem>>, %arg15: memref<1x64xf32, #tpu.memory_space<vmem>>, %arg16: memref<4x192x128xbf16, #tpu.memory_space<vmem>>, %arg17: memref<4x1x128xf32, #tpu.memory_space<vmem>>, %arg18: memref<4x64x64xbf16, #tpu.memory_space<vmem>>, %arg19: memref<4x1x64xf32, #tpu.memory_space<vmem>>, %arg20: memref<64x128xbf16, #tpu.memory_space<vmem>>, %arg21: memref<1x128xf32, #tpu.memory_space<vmem>>, %arg22: memref<1x384x256xbf16, #tpu.memory_space<vmem>>, %arg23: memref<1x1x256xf32, #tpu.memory_space<vmem>>, %arg24: memref<1x128x128xbf16, #tpu.memory_space<vmem>>, %arg25: memref<1x1x128xf32, #tpu.memory_space<vmem>>, %arg26: memref<128x128xbf16, #tpu.memory_space<vmem>>, %arg27: memref<1x128xf32, #tpu.memory_space<vmem>>, %arg28: memref<1x16x128xf32, #tpu.memory_space<vmem>>) attributes {dimension_semantics = [#tpu.dimension_semantics<parallel>], iteration_bounds = array<i64: 2>, scalar_prefetch = 0 : i64, scratch_operands = 0 : i64, tpu.core_type = #tpu.core_type<tc>, window_params = [{transform_indices = @transform_0, window_bounds = array<i64: 1, 16, 8>}, {pipeline_mode = #tpu.pipeline_mode<synchronous>, transform_indices = @transform_1, window_bounds = array<i64: 8, 16>}, {pipeline_mode = #tpu.pipeline_mode<synchronous>, transform_indices = @transform_2, window_bounds = array<i64: 1, 16>}, {pipeline_mode = #tpu.pipeline_mode<synchronous>, transform_indices = @transform_3, window_bounds = array<i64: 12, 48, 32>}, {pipeline_mode = #tpu.pipeline_mode<synchronous>, transform_indices = @transform_4, window_bounds = array<i64: 12, 1, 32>}, {pipeline_mode = #tpu.pipeline_mode<synchronous>, transform_indices = @transform_5, window_bounds = array<i64: 12, 16, 16>}, {pipeline_mode = #tpu.pipeline_mode<synchronous>, transform_indices = @transform_6, window_bounds = array<i64: 12, 1, 16>}, {pipeline_mode = #tpu.pipeline_mode<synchronous>, transform_indices = @transform_7, window_bounds = array<i64: 16, 32>}, {pipeline_mode = #tpu.pipeline_mode<synchronous>, transform_indices = @transform_8, window_bounds = array<i64: 1, 32>}, {pipeline_mode = #tpu.pipeline_mode<synchronous>, transform_indices = @transform_9, window_bounds = array<i64: 8, 96, 64>}, {pipeline_mode = #tpu.pipeline_mode<synchronous>, transform_indices = @transform_10, window_bounds = array<i64: 8, 1, 64>}, {pipeline_mode = #tpu.pipeline_mode<synchronous>, transform_indices = @transform_11, window_bounds = array<i64: 8, 32, 32>}, {pipeline_mode = #tpu.pipeline_mode<synchronous>, transform_indices = @transform_12, window_bounds = array<i64: 8, 1, 32>}, {pipeline_mode = #tpu.pipeline_mode<synchronous>, transform_indices = @transform_13, window_bounds = array<i64: 32, 64>}, {pipeline_mode = #tpu.pipeline_mode<synchronous>, transform_indices = @transform_14, window_bounds = array<i64: 1, 64>}, {pipeline_mode = #tpu.pipeline_mode<synchronous>, transform_indices = @transform_15, window_bounds = array<i64: 4, 192, 128>}, {pipeline_mode = #tpu.pipeline_mode<synchronous>, transform_indices = @transform_16, window_bounds = array<i64: 4, 1, 128>}, {pipeline_mode = #tpu.pipeline_mode<synchronous>, transform_indices = @transform_17, window_bounds = array<i64: 4, 64, 64>}, {pipeline_mode = #tpu.pipeline_mode<synchronous>, transform_indices = @transform_18, window_bounds = array<i64: 4, 1, 64>}, {pipeline_mode = #tpu.pipeline_mode<synchronous>, transform_indices = @transform_19, window_bounds = array<i64: 64, 128>}, {pipeline_mode = #tpu.pipeline_mode<synchronous>, transform_indices = @transform_20, window_bounds = array<i64: 1, 128>}, {pipeline_mode = #tpu.pipeline_mode<synchronous>, transform_indices = @transform_21, window_bounds = array<i64: 1, 384, 256>}, {pipeline_mode = #tpu.pipeline_mode<synchronous>, transform_indices = @transform_22, window_bounds = array<i64: 1, 1, 256>}, {pipeline_mode = #tpu.pipeline_mode<synchronous>, transform_indices = @transform_23, window_bounds = array<i64: 1, 128, 128>}, {pipeline_mode = #tpu.pipeline_mode<synchronous>, transform_indices = @transform_24, window_bounds = array<i64: 1, 1, 128>}, {pipeline_mode = #tpu.pipeline_mode<synchronous>, transform_indices = @transform_25, window_bounds = array<i64: 128, 128>}, {pipeline_mode = #tpu.pipeline_mode<synchronous>, transform_indices = @transform_26, window_bounds = array<i64: 1, 128>}, {transform_indices = @transform_27, window_bounds = array<i64: 1, 16, 128>}]} {
    %c0 = arith.constant 0 : index
    %c0_0 = arith.constant 0 : index
    %c0_1 = arith.constant 0 : index
    %0 = vector.load %arg1[%c0, %c0_0, %c0_1] : memref<1x16x8xf32, #tpu.memory_space<vmem>>, vector<1x16x8xf32>
    %1 = vector.shape_cast %0 : vector<1x16x8xf32> to vector<16x8xf32>
    %2 = arith.truncf %1 : vector<16x8xf32> to vector<16x8xbf16>
    %c0_2 = arith.constant 0 : index
    %c0_3 = arith.constant 0 : index
    %3 = vector.load %arg2[%c0_2, %c0_3] : memref<8x16xbf16, #tpu.memory_space<vmem>>, vector<8x16xbf16>
    %cst = arith.constant dense<0.000000e+00> : vector<16x16xf32>
    %4 = tpu.matmul %2, %3, %cst {dimension_numbers = #tpu.dot_dimension_numbers<[1], [0], [0], [1], [0, 0, 1, 1], [], []>} : vector<16x8xbf16>, vector<8x16xbf16>, vector<16x16xf32> -> vector<16x16xf32>
    %c0_4 = arith.constant 0 : index
    %c0_5 = arith.constant 0 : index
    %5 = vector.load %arg3[%c0_4, %c0_5] : memref<1x16xf32, #tpu.memory_space<vmem>>, vector<1x16xf32>
    %6 = vector.broadcast %5 : vector<1x16xf32> to vector<16x16xf32>
    %7 = arith.addf %4, %6 : vector<16x16xf32>
    %c0_6 = arith.constant 0 : index
    %c0_7 = arith.constant 0 : index
    %c0_8 = arith.constant 0 : index
    %8 = vector.load %arg4[%c0_6, %c0_7, %c0_8] : memref<12x48x32xbf16, #tpu.memory_space<vmem>>, vector<1x48x32xbf16>
    %9 = vector.shape_cast %8 : vector<1x48x32xbf16> to vector<48x32xbf16>
    %cst_9 = arith.constant 0.000000e+00 : f32
    %10 = vector.broadcast %cst_9 : f32 to vector<1x16xf32>
    %11 = vector.extract_strided_slice %7 {offsets = [0, 0], sizes = [15, 16], strides = [1, 1]} : vector<16x16xf32> to vector<15x16xf32>
    %12 = tpu.concatenate %10, %11 in 0 : vector<1x16xf32>, vector<15x16xf32> -> vector<16x16xf32>
    %13 = vector.extract_strided_slice %7 {offsets = [1, 0], sizes = [15, 16], strides = [1, 1]} : vector<16x16xf32> to vector<15x16xf32>
    %cst_10 = arith.constant 0.000000e+00 : f32
    %14 = vector.broadcast %cst_10 : f32 to vector<1x16xf32>
    %15 = tpu.concatenate %13, %14 in 0 : vector<15x16xf32>, vector<1x16xf32> -> vector<16x16xf32>
    %16 = tpu.concatenate %12, %7, %15 in 1 : vector<16x16xf32>, vector<16x16xf32>, vector<16x16xf32> -> vector<16x48xf32>
    %17 = arith.truncf %16 : vector<16x48xf32> to vector<16x48xbf16>
    %cst_11 = arith.constant dense<0.000000e+00> : vector<16x32xf32>
    %18 = tpu.matmul %17, %9, %cst_11 {dimension_numbers = #tpu.dot_dimension_numbers<[1], [0], [0], [1], [0, 0, 1, 1], [], []>} : vector<16x48xbf16>, vector<48x32xbf16>, vector<16x32xf32> -> vector<16x32xf32>
    %c0_12 = arith.constant 0 : index
    %c0_13 = arith.constant 0 : index
    %c0_14 = arith.constant 0 : index
    %19 = vector.load %arg5[%c0_12, %c0_13, %c0_14] : memref<12x1x32xf32, #tpu.memory_space<vmem>>, vector<1x1x32xf32>
    %20 = vector.shape_cast %19 : vector<1x1x32xf32> to vector<1x32xf32>
    %21 = vector.broadcast %20 : vector<1x32xf32> to vector<16x32xf32>
    %22 = arith.addf %18, %21 : vector<16x32xf32>
    %23 = vector.extract_strided_slice %22 {offsets = [0, 0], sizes = [16, 16], strides = [1, 1]} : vector<16x32xf32> to vector<16x16xf32>
    %24 = math.tanh %23 : vector<16x16xf32>
    %25 = vector.extract_strided_slice %22 {offsets = [0, 16], sizes = [16, 16], strides = [1, 1]} : vector<16x32xf32> to vector<16x16xf32>
    %26 = arith.negf %25 : vector<16x16xf32>
    %27 = math.exp %26 : vector<16x16xf32>
    %cst_15 = arith.constant 1.000000e+00 : f32
    %28 = vector.broadcast %cst_15 : f32 to vector<16x16xf32>
    %29 = arith.addf %28, %27 : vector<16x16xf32>
    %30 = arith.divf %28, %29 : vector<16x16xf32>
    %31 = arith.mulf %24, %30 : vector<16x16xf32>
    %32 = arith.truncf %31 : vector<16x16xf32> to vector<16x16xbf16>
    %c0_16 = arith.constant 0 : index
    %c0_17 = arith.constant 0 : index
    %c0_18 = arith.constant 0 : index
    %33 = vector.load %arg6[%c0_16, %c0_17, %c0_18] : memref<12x16x16xbf16, #tpu.memory_space<vmem>>, vector<1x16x16xbf16>
    %34 = vector.shape_cast %33 : vector<1x16x16xbf16> to vector<16x16xbf16>
    %cst_19 = arith.constant dense<0.000000e+00> : vector<16x16xf32>
    %35 = tpu.matmul %32, %34, %cst_19 {dimension_numbers = #tpu.dot_dimension_numbers<[1], [0], [0], [1], [0, 0, 1, 1], [], []>} : vector<16x16xbf16>, vector<16x16xbf16>, vector<16x16xf32> -> vector<16x16xf32>
    %36 = arith.addf %7, %35 : vector<16x16xf32>
    %c0_20 = arith.constant 0 : index
    %c0_21 = arith.constant 0 : index
    %c0_22 = arith.constant 0 : index
    %37 = vector.load %arg7[%c0_20, %c0_21, %c0_22] : memref<12x1x16xf32, #tpu.memory_space<vmem>>, vector<1x1x16xf32>
    %38 = vector.shape_cast %37 : vector<1x1x16xf32> to vector<1x16xf32>
    %39 = vector.broadcast %38 : vector<1x16xf32> to vector<16x16xf32>
    %40 = arith.addf %36, %39 : vector<16x16xf32>
    %c1 = arith.constant 1 : index
    %c0_23 = arith.constant 0 : index
    %c0_24 = arith.constant 0 : index
    %41 = vector.load %arg4[%c1, %c0_23, %c0_24] : memref<12x48x32xbf16, #tpu.memory_space<vmem>>, vector<1x48x32xbf16>
    %42 = vector.shape_cast %41 : vector<1x48x32xbf16> to vector<48x32xbf16>
    %cst_25 = arith.constant 0.000000e+00 : f32
    %43 = vector.broadcast %cst_25 : f32 to vector<2x16xf32>
    %44 = vector.extract_strided_slice %40 {offsets = [0, 0], sizes = [14, 16], strides = [1, 1]} : vector<16x16xf32> to vector<14x16xf32>
    %45 = tpu.concatenate %43, %44 in 0 : vector<2x16xf32>, vector<14x16xf32> -> vector<16x16xf32>
    %46 = vector.extract_strided_slice %40 {offsets = [2, 0], sizes = [14, 16], strides = [1, 1]} : vector<16x16xf32> to vector<14x16xf32>
    %cst_26 = arith.constant 0.000000e+00 : f32
    %47 = vector.broadcast %cst_26 : f32 to vector<2x16xf32>
    %48 = tpu.concatenate %46, %47 in 0 : vector<14x16xf32>, vector<2x16xf32> -> vector<16x16xf32>
    %49 = tpu.concatenate %45, %40, %48 in 1 : vector<16x16xf32>, vector<16x16xf32>, vector<16x16xf32> -> vector<16x48xf32>
    %50 = arith.truncf %49 : vector<16x48xf32> to vector<16x48xbf16>
    %cst_27 = arith.constant dense<0.000000e+00> : vector<16x32xf32>
    %51 = tpu.matmul %50, %42, %cst_27 {dimension_numbers = #tpu.dot_dimension_numbers<[1], [0], [0], [1], [0, 0, 1, 1], [], []>} : vector<16x48xbf16>, vector<48x32xbf16>, vector<16x32xf32> -> vector<16x32xf32>
    %c1_28 = arith.constant 1 : index
    %c0_29 = arith.constant 0 : index
    %c0_30 = arith.constant 0 : index
    %52 = vector.load %arg5[%c1_28, %c0_29, %c0_30] : memref<12x1x32xf32, #tpu.memory_space<vmem>>, vector<1x1x32xf32>
    %53 = vector.shape_cast %52 : vector<1x1x32xf32> to vector<1x32xf32>
    %54 = vector.broadcast %53 : vector<1x32xf32> to vector<16x32xf32>
    %55 = arith.addf %51, %54 : vector<16x32xf32>
    %56 = vector.extract_strided_slice %55 {offsets = [0, 0], sizes = [16, 16], strides = [1, 1]} : vector<16x32xf32> to vector<16x16xf32>
    %57 = math.tanh %56 : vector<16x16xf32>
    %58 = vector.extract_strided_slice %55 {offsets = [0, 16], sizes = [16, 16], strides = [1, 1]} : vector<16x32xf32> to vector<16x16xf32>
    %59 = arith.negf %58 : vector<16x16xf32>
    %60 = math.exp %59 : vector<16x16xf32>
    %cst_31 = arith.constant 1.000000e+00 : f32
    %61 = vector.broadcast %cst_31 : f32 to vector<16x16xf32>
    %62 = arith.addf %61, %60 : vector<16x16xf32>
    %63 = arith.divf %61, %62 : vector<16x16xf32>
    %64 = arith.mulf %57, %63 : vector<16x16xf32>
    %65 = arith.truncf %64 : vector<16x16xf32> to vector<16x16xbf16>
    %c1_32 = arith.constant 1 : index
    %c0_33 = arith.constant 0 : index
    %c0_34 = arith.constant 0 : index
    %66 = vector.load %arg6[%c1_32, %c0_33, %c0_34] : memref<12x16x16xbf16, #tpu.memory_space<vmem>>, vector<1x16x16xbf16>
    %67 = vector.shape_cast %66 : vector<1x16x16xbf16> to vector<16x16xbf16>
    %cst_35 = arith.constant dense<0.000000e+00> : vector<16x16xf32>
    %68 = tpu.matmul %65, %67, %cst_35 {dimension_numbers = #tpu.dot_dimension_numbers<[1], [0], [0], [1], [0, 0, 1, 1], [], []>} : vector<16x16xbf16>, vector<16x16xbf16>, vector<16x16xf32> -> vector<16x16xf32>
    %69 = arith.addf %40, %68 : vector<16x16xf32>
    %c1_36 = arith.constant 1 : index
    %c0_37 = arith.constant 0 : index
    %c0_38 = arith.constant 0 : index
    %70 = vector.load %arg7[%c1_36, %c0_37, %c0_38] : memref<12x1x16xf32, #tpu.memory_space<vmem>>, vector<1x1x16xf32>
    %71 = vector.shape_cast %70 : vector<1x1x16xf32> to vector<1x16xf32>
    %72 = vector.broadcast %71 : vector<1x16xf32> to vector<16x16xf32>
    %73 = arith.addf %69, %72 : vector<16x16xf32>
    %c2 = arith.constant 2 : index
    %c0_39 = arith.constant 0 : index
    %c0_40 = arith.constant 0 : index
    %74 = vector.load %arg4[%c2, %c0_39, %c0_40] : memref<12x48x32xbf16, #tpu.memory_space<vmem>>, vector<1x48x32xbf16>
    %75 = vector.shape_cast %74 : vector<1x48x32xbf16> to vector<48x32xbf16>
    %cst_41 = arith.constant 0.000000e+00 : f32
    %76 = vector.broadcast %cst_41 : f32 to vector<4x16xf32>
    %77 = vector.extract_strided_slice %73 {offsets = [0, 0], sizes = [12, 16], strides = [1, 1]} : vector<16x16xf32> to vector<12x16xf32>
    %78 = tpu.concatenate %76, %77 in 0 : vector<4x16xf32>, vector<12x16xf32> -> vector<16x16xf32>
    %79 = vector.extract_strided_slice %73 {offsets = [4, 0], sizes = [12, 16], strides = [1, 1]} : vector<16x16xf32> to vector<12x16xf32>
    %cst_42 = arith.constant 0.000000e+00 : f32
    %80 = vector.broadcast %cst_42 : f32 to vector<4x16xf32>
    %81 = tpu.concatenate %79, %80 in 0 : vector<12x16xf32>, vector<4x16xf32> -> vector<16x16xf32>
    %82 = tpu.concatenate %78, %73, %81 in 1 : vector<16x16xf32>, vector<16x16xf32>, vector<16x16xf32> -> vector<16x48xf32>
    %83 = arith.truncf %82 : vector<16x48xf32> to vector<16x48xbf16>
    %cst_43 = arith.constant dense<0.000000e+00> : vector<16x32xf32>
    %84 = tpu.matmul %83, %75, %cst_43 {dimension_numbers = #tpu.dot_dimension_numbers<[1], [0], [0], [1], [0, 0, 1, 1], [], []>} : vector<16x48xbf16>, vector<48x32xbf16>, vector<16x32xf32> -> vector<16x32xf32>
    %c2_44 = arith.constant 2 : index
    %c0_45 = arith.constant 0 : index
    %c0_46 = arith.constant 0 : index
    %85 = vector.load %arg5[%c2_44, %c0_45, %c0_46] : memref<12x1x32xf32, #tpu.memory_space<vmem>>, vector<1x1x32xf32>
    %86 = vector.shape_cast %85 : vector<1x1x32xf32> to vector<1x32xf32>
    %87 = vector.broadcast %86 : vector<1x32xf32> to vector<16x32xf32>
    %88 = arith.addf %84, %87 : vector<16x32xf32>
    %89 = vector.extract_strided_slice %88 {offsets = [0, 0], sizes = [16, 16], strides = [1, 1]} : vector<16x32xf32> to vector<16x16xf32>
    %90 = math.tanh %89 : vector<16x16xf32>
    %91 = vector.extract_strided_slice %88 {offsets = [0, 16], sizes = [16, 16], strides = [1, 1]} : vector<16x32xf32> to vector<16x16xf32>
    %92 = arith.negf %91 : vector<16x16xf32>
    %93 = math.exp %92 : vector<16x16xf32>
    %cst_47 = arith.constant 1.000000e+00 : f32
    %94 = vector.broadcast %cst_47 : f32 to vector<16x16xf32>
    %95 = arith.addf %94, %93 : vector<16x16xf32>
    %96 = arith.divf %94, %95 : vector<16x16xf32>
    %97 = arith.mulf %90, %96 : vector<16x16xf32>
    %98 = arith.truncf %97 : vector<16x16xf32> to vector<16x16xbf16>
    %c2_48 = arith.constant 2 : index
    %c0_49 = arith.constant 0 : index
    %c0_50 = arith.constant 0 : index
    %99 = vector.load %arg6[%c2_48, %c0_49, %c0_50] : memref<12x16x16xbf16, #tpu.memory_space<vmem>>, vector<1x16x16xbf16>
    %100 = vector.shape_cast %99 : vector<1x16x16xbf16> to vector<16x16xbf16>
    %cst_51 = arith.constant dense<0.000000e+00> : vector<16x16xf32>
    %101 = tpu.matmul %98, %100, %cst_51 {dimension_numbers = #tpu.dot_dimension_numbers<[1], [0], [0], [1], [0, 0, 1, 1], [], []>} : vector<16x16xbf16>, vector<16x16xbf16>, vector<16x16xf32> -> vector<16x16xf32>
    %102 = arith.addf %73, %101 : vector<16x16xf32>
    %c2_52 = arith.constant 2 : index
    %c0_53 = arith.constant 0 : index
    %c0_54 = arith.constant 0 : index
    %103 = vector.load %arg7[%c2_52, %c0_53, %c0_54] : memref<12x1x16xf32, #tpu.memory_space<vmem>>, vector<1x1x16xf32>
    %104 = vector.shape_cast %103 : vector<1x1x16xf32> to vector<1x16xf32>
    %105 = vector.broadcast %104 : vector<1x16xf32> to vector<16x16xf32>
    %106 = arith.addf %102, %105 : vector<16x16xf32>
    %c3 = arith.constant 3 : index
    %c0_55 = arith.constant 0 : index
    %c0_56 = arith.constant 0 : index
    %107 = vector.load %arg4[%c3, %c0_55, %c0_56] : memref<12x48x32xbf16, #tpu.memory_space<vmem>>, vector<1x48x32xbf16>
    %108 = vector.shape_cast %107 : vector<1x48x32xbf16> to vector<48x32xbf16>
    %cst_57 = arith.constant 0.000000e+00 : f32
    %109 = vector.broadcast %cst_57 : f32 to vector<8x16xf32>
    %110 = vector.extract_strided_slice %106 {offsets = [0, 0], sizes = [8, 16], strides = [1, 1]} : vector<16x16xf32> to vector<8x16xf32>
    %111 = tpu.concatenate %109, %110 in 0 : vector<8x16xf32>, vector<8x16xf32> -> vector<16x16xf32>
    %112 = vector.extract_strided_slice %106 {offsets = [8, 0], sizes = [8, 16], strides = [1, 1]} : vector<16x16xf32> to vector<8x16xf32>
    %cst_58 = arith.constant 0.000000e+00 : f32
    %113 = vector.broadcast %cst_58 : f32 to vector<8x16xf32>
    %114 = tpu.concatenate %112, %113 in 0 : vector<8x16xf32>, vector<8x16xf32> -> vector<16x16xf32>
    %115 = tpu.concatenate %111, %106, %114 in 1 : vector<16x16xf32>, vector<16x16xf32>, vector<16x16xf32> -> vector<16x48xf32>
    %116 = arith.truncf %115 : vector<16x48xf32> to vector<16x48xbf16>
    %cst_59 = arith.constant dense<0.000000e+00> : vector<16x32xf32>
    %117 = tpu.matmul %116, %108, %cst_59 {dimension_numbers = #tpu.dot_dimension_numbers<[1], [0], [0], [1], [0, 0, 1, 1], [], []>} : vector<16x48xbf16>, vector<48x32xbf16>, vector<16x32xf32> -> vector<16x32xf32>
    %c3_60 = arith.constant 3 : index
    %c0_61 = arith.constant 0 : index
    %c0_62 = arith.constant 0 : index
    %118 = vector.load %arg5[%c3_60, %c0_61, %c0_62] : memref<12x1x32xf32, #tpu.memory_space<vmem>>, vector<1x1x32xf32>
    %119 = vector.shape_cast %118 : vector<1x1x32xf32> to vector<1x32xf32>
    %120 = vector.broadcast %119 : vector<1x32xf32> to vector<16x32xf32>
    %121 = arith.addf %117, %120 : vector<16x32xf32>
    %122 = vector.extract_strided_slice %121 {offsets = [0, 0], sizes = [16, 16], strides = [1, 1]} : vector<16x32xf32> to vector<16x16xf32>
    %123 = math.tanh %122 : vector<16x16xf32>
    %124 = vector.extract_strided_slice %121 {offsets = [0, 16], sizes = [16, 16], strides = [1, 1]} : vector<16x32xf32> to vector<16x16xf32>
    %125 = arith.negf %124 : vector<16x16xf32>
    %126 = math.exp %125 : vector<16x16xf32>
    %cst_63 = arith.constant 1.000000e+00 : f32
    %127 = vector.broadcast %cst_63 : f32 to vector<16x16xf32>
    %128 = arith.addf %127, %126 : vector<16x16xf32>
    %129 = arith.divf %127, %128 : vector<16x16xf32>
    %130 = arith.mulf %123, %129 : vector<16x16xf32>
    %131 = arith.truncf %130 : vector<16x16xf32> to vector<16x16xbf16>
    %c3_64 = arith.constant 3 : index
    %c0_65 = arith.constant 0 : index
    %c0_66 = arith.constant 0 : index
    %132 = vector.load %arg6[%c3_64, %c0_65, %c0_66] : memref<12x16x16xbf16, #tpu.memory_space<vmem>>, vector<1x16x16xbf16>
    %133 = vector.shape_cast %132 : vector<1x16x16xbf16> to vector<16x16xbf16>
    %cst_67 = arith.constant dense<0.000000e+00> : vector<16x16xf32>
    %134 = tpu.matmul %131, %133, %cst_67 {dimension_numbers = #tpu.dot_dimension_numbers<[1], [0], [0], [1], [0, 0, 1, 1], [], []>} : vector<16x16xbf16>, vector<16x16xbf16>, vector<16x16xf32> -> vector<16x16xf32>
    %135 = arith.addf %106, %134 : vector<16x16xf32>
    %c3_68 = arith.constant 3 : index
    %c0_69 = arith.constant 0 : index
    %c0_70 = arith.constant 0 : index
    %136 = vector.load %arg7[%c3_68, %c0_69, %c0_70] : memref<12x1x16xf32, #tpu.memory_space<vmem>>, vector<1x1x16xf32>
    %137 = vector.shape_cast %136 : vector<1x1x16xf32> to vector<1x16xf32>
    %138 = vector.broadcast %137 : vector<1x16xf32> to vector<16x16xf32>
    %139 = arith.addf %135, %138 : vector<16x16xf32>
    %c4 = arith.constant 4 : index
    %c0_71 = arith.constant 0 : index
    %c0_72 = arith.constant 0 : index
    %140 = vector.load %arg4[%c4, %c0_71, %c0_72] : memref<12x48x32xbf16, #tpu.memory_space<vmem>>, vector<1x48x32xbf16>
    %141 = vector.shape_cast %140 : vector<1x48x32xbf16> to vector<48x32xbf16>
    %142 = arith.truncf %139 : vector<16x16xf32> to vector<16x16xbf16>
    %143 = vector.extract_strided_slice %141 {offsets = [16, 0], sizes = [16, 32], strides = [1, 1]} : vector<48x32xbf16> to vector<16x32xbf16>
    %cst_73 = arith.constant dense<0.000000e+00> : vector<16x32xf32>
    %144 = tpu.matmul %142, %143, %cst_73 {dimension_numbers = #tpu.dot_dimension_numbers<[1], [0], [0], [1], [0, 0, 1, 1], [], []>} : vector<16x16xbf16>, vector<16x32xbf16>, vector<16x32xf32> -> vector<16x32xf32>
    %c4_74 = arith.constant 4 : index
    %c0_75 = arith.constant 0 : index
    %c0_76 = arith.constant 0 : index
    %145 = vector.load %arg5[%c4_74, %c0_75, %c0_76] : memref<12x1x32xf32, #tpu.memory_space<vmem>>, vector<1x1x32xf32>
    %146 = vector.shape_cast %145 : vector<1x1x32xf32> to vector<1x32xf32>
    %147 = vector.broadcast %146 : vector<1x32xf32> to vector<16x32xf32>
    %148 = arith.addf %144, %147 : vector<16x32xf32>
    %149 = vector.extract_strided_slice %148 {offsets = [0, 0], sizes = [16, 16], strides = [1, 1]} : vector<16x32xf32> to vector<16x16xf32>
    %150 = math.tanh %149 : vector<16x16xf32>
    %151 = vector.extract_strided_slice %148 {offsets = [0, 16], sizes = [16, 16], strides = [1, 1]} : vector<16x32xf32> to vector<16x16xf32>
    %152 = arith.negf %151 : vector<16x16xf32>
    %153 = math.exp %152 : vector<16x16xf32>
    %cst_77 = arith.constant 1.000000e+00 : f32
    %154 = vector.broadcast %cst_77 : f32 to vector<16x16xf32>
    %155 = arith.addf %154, %153 : vector<16x16xf32>
    %156 = arith.divf %154, %155 : vector<16x16xf32>
    %157 = arith.mulf %150, %156 : vector<16x16xf32>
    %158 = arith.truncf %157 : vector<16x16xf32> to vector<16x16xbf16>
    %c4_78 = arith.constant 4 : index
    %c0_79 = arith.constant 0 : index
    %c0_80 = arith.constant 0 : index
    %159 = vector.load %arg6[%c4_78, %c0_79, %c0_80] : memref<12x16x16xbf16, #tpu.memory_space<vmem>>, vector<1x16x16xbf16>
    %160 = vector.shape_cast %159 : vector<1x16x16xbf16> to vector<16x16xbf16>
    %cst_81 = arith.constant dense<0.000000e+00> : vector<16x16xf32>
    %161 = tpu.matmul %158, %160, %cst_81 {dimension_numbers = #tpu.dot_dimension_numbers<[1], [0], [0], [1], [0, 0, 1, 1], [], []>} : vector<16x16xbf16>, vector<16x16xbf16>, vector<16x16xf32> -> vector<16x16xf32>
    %162 = arith.addf %139, %161 : vector<16x16xf32>
    %c4_82 = arith.constant 4 : index
    %c0_83 = arith.constant 0 : index
    %c0_84 = arith.constant 0 : index
    %163 = vector.load %arg7[%c4_82, %c0_83, %c0_84] : memref<12x1x16xf32, #tpu.memory_space<vmem>>, vector<1x1x16xf32>
    %164 = vector.shape_cast %163 : vector<1x1x16xf32> to vector<1x16xf32>
    %165 = vector.broadcast %164 : vector<1x16xf32> to vector<16x16xf32>
    %166 = arith.addf %162, %165 : vector<16x16xf32>
    %c5 = arith.constant 5 : index
    %c0_85 = arith.constant 0 : index
    %c0_86 = arith.constant 0 : index
    %167 = vector.load %arg4[%c5, %c0_85, %c0_86] : memref<12x48x32xbf16, #tpu.memory_space<vmem>>, vector<1x48x32xbf16>
    %168 = vector.shape_cast %167 : vector<1x48x32xbf16> to vector<48x32xbf16>
    %169 = arith.truncf %166 : vector<16x16xf32> to vector<16x16xbf16>
    %170 = vector.extract_strided_slice %168 {offsets = [16, 0], sizes = [16, 32], strides = [1, 1]} : vector<48x32xbf16> to vector<16x32xbf16>
    %cst_87 = arith.constant dense<0.000000e+00> : vector<16x32xf32>
    %171 = tpu.matmul %169, %170, %cst_87 {dimension_numbers = #tpu.dot_dimension_numbers<[1], [0], [0], [1], [0, 0, 1, 1], [], []>} : vector<16x16xbf16>, vector<16x32xbf16>, vector<16x32xf32> -> vector<16x32xf32>
    %c5_88 = arith.constant 5 : index
    %c0_89 = arith.constant 0 : index
    %c0_90 = arith.constant 0 : index
    %172 = vector.load %arg5[%c5_88, %c0_89, %c0_90] : memref<12x1x32xf32, #tpu.memory_space<vmem>>, vector<1x1x32xf32>
    %173 = vector.shape_cast %172 : vector<1x1x32xf32> to vector<1x32xf32>
    %174 = vector.broadcast %173 : vector<1x32xf32> to vector<16x32xf32>
    %175 = arith.addf %171, %174 : vector<16x32xf32>
    %176 = vector.extract_strided_slice %175 {offsets = [0, 0], sizes = [16, 16], strides = [1, 1]} : vector<16x32xf32> to vector<16x16xf32>
    %177 = math.tanh %176 : vector<16x16xf32>
    %178 = vector.extract_strided_slice %175 {offsets = [0, 16], sizes = [16, 16], strides = [1, 1]} : vector<16x32xf32> to vector<16x16xf32>
    %179 = arith.negf %178 : vector<16x16xf32>
    %180 = math.exp %179 : vector<16x16xf32>
    %cst_91 = arith.constant 1.000000e+00 : f32
    %181 = vector.broadcast %cst_91 : f32 to vector<16x16xf32>
    %182 = arith.addf %181, %180 : vector<16x16xf32>
    %183 = arith.divf %181, %182 : vector<16x16xf32>
    %184 = arith.mulf %177, %183 : vector<16x16xf32>
    %185 = arith.truncf %184 : vector<16x16xf32> to vector<16x16xbf16>
    %c5_92 = arith.constant 5 : index
    %c0_93 = arith.constant 0 : index
    %c0_94 = arith.constant 0 : index
    %186 = vector.load %arg6[%c5_92, %c0_93, %c0_94] : memref<12x16x16xbf16, #tpu.memory_space<vmem>>, vector<1x16x16xbf16>
    %187 = vector.shape_cast %186 : vector<1x16x16xbf16> to vector<16x16xbf16>
    %cst_95 = arith.constant dense<0.000000e+00> : vector<16x16xf32>
    %188 = tpu.matmul %185, %187, %cst_95 {dimension_numbers = #tpu.dot_dimension_numbers<[1], [0], [0], [1], [0, 0, 1, 1], [], []>} : vector<16x16xbf16>, vector<16x16xbf16>, vector<16x16xf32> -> vector<16x16xf32>
    %189 = arith.addf %166, %188 : vector<16x16xf32>
    %c5_96 = arith.constant 5 : index
    %c0_97 = arith.constant 0 : index
    %c0_98 = arith.constant 0 : index
    %190 = vector.load %arg7[%c5_96, %c0_97, %c0_98] : memref<12x1x16xf32, #tpu.memory_space<vmem>>, vector<1x1x16xf32>
    %191 = vector.shape_cast %190 : vector<1x1x16xf32> to vector<1x16xf32>
    %192 = vector.broadcast %191 : vector<1x16xf32> to vector<16x16xf32>
    %193 = arith.addf %189, %192 : vector<16x16xf32>
    %c6 = arith.constant 6 : index
    %c0_99 = arith.constant 0 : index
    %c0_100 = arith.constant 0 : index
    %194 = vector.load %arg4[%c6, %c0_99, %c0_100] : memref<12x48x32xbf16, #tpu.memory_space<vmem>>, vector<1x48x32xbf16>
    %195 = vector.shape_cast %194 : vector<1x48x32xbf16> to vector<48x32xbf16>
    %196 = arith.truncf %193 : vector<16x16xf32> to vector<16x16xbf16>
    %197 = vector.extract_strided_slice %195 {offsets = [16, 0], sizes = [16, 32], strides = [1, 1]} : vector<48x32xbf16> to vector<16x32xbf16>
    %cst_101 = arith.constant dense<0.000000e+00> : vector<16x32xf32>
    %198 = tpu.matmul %196, %197, %cst_101 {dimension_numbers = #tpu.dot_dimension_numbers<[1], [0], [0], [1], [0, 0, 1, 1], [], []>} : vector<16x16xbf16>, vector<16x32xbf16>, vector<16x32xf32> -> vector<16x32xf32>
    %c6_102 = arith.constant 6 : index
    %c0_103 = arith.constant 0 : index
    %c0_104 = arith.constant 0 : index
    %199 = vector.load %arg5[%c6_102, %c0_103, %c0_104] : memref<12x1x32xf32, #tpu.memory_space<vmem>>, vector<1x1x32xf32>
    %200 = vector.shape_cast %199 : vector<1x1x32xf32> to vector<1x32xf32>
    %201 = vector.broadcast %200 : vector<1x32xf32> to vector<16x32xf32>
    %202 = arith.addf %198, %201 : vector<16x32xf32>
    %203 = vector.extract_strided_slice %202 {offsets = [0, 0], sizes = [16, 16], strides = [1, 1]} : vector<16x32xf32> to vector<16x16xf32>
    %204 = math.tanh %203 : vector<16x16xf32>
    %205 = vector.extract_strided_slice %202 {offsets = [0, 16], sizes = [16, 16], strides = [1, 1]} : vector<16x32xf32> to vector<16x16xf32>
    %206 = arith.negf %205 : vector<16x16xf32>
    %207 = math.exp %206 : vector<16x16xf32>
    %cst_105 = arith.constant 1.000000e+00 : f32
    %208 = vector.broadcast %cst_105 : f32 to vector<16x16xf32>
    %209 = arith.addf %208, %207 : vector<16x16xf32>
    %210 = arith.divf %208, %209 : vector<16x16xf32>
    %211 = arith.mulf %204, %210 : vector<16x16xf32>
    %212 = arith.truncf %211 : vector<16x16xf32> to vector<16x16xbf16>
    %c6_106 = arith.constant 6 : index
    %c0_107 = arith.constant 0 : index
    %c0_108 = arith.constant 0 : index
    %213 = vector.load %arg6[%c6_106, %c0_107, %c0_108] : memref<12x16x16xbf16, #tpu.memory_space<vmem>>, vector<1x16x16xbf16>
    %214 = vector.shape_cast %213 : vector<1x16x16xbf16> to vector<16x16xbf16>
    %cst_109 = arith.constant dense<0.000000e+00> : vector<16x16xf32>
    %215 = tpu.matmul %212, %214, %cst_109 {dimension_numbers = #tpu.dot_dimension_numbers<[1], [0], [0], [1], [0, 0, 1, 1], [], []>} : vector<16x16xbf16>, vector<16x16xbf16>, vector<16x16xf32> -> vector<16x16xf32>
    %216 = arith.addf %193, %215 : vector<16x16xf32>
    %c6_110 = arith.constant 6 : index
    %c0_111 = arith.constant 0 : index
    %c0_112 = arith.constant 0 : index
    %217 = vector.load %arg7[%c6_110, %c0_111, %c0_112] : memref<12x1x16xf32, #tpu.memory_space<vmem>>, vector<1x1x16xf32>
    %218 = vector.shape_cast %217 : vector<1x1x16xf32> to vector<1x16xf32>
    %219 = vector.broadcast %218 : vector<1x16xf32> to vector<16x16xf32>
    %220 = arith.addf %216, %219 : vector<16x16xf32>
    %c7 = arith.constant 7 : index
    %c0_113 = arith.constant 0 : index
    %c0_114 = arith.constant 0 : index
    %221 = vector.load %arg4[%c7, %c0_113, %c0_114] : memref<12x48x32xbf16, #tpu.memory_space<vmem>>, vector<1x48x32xbf16>
    %222 = vector.shape_cast %221 : vector<1x48x32xbf16> to vector<48x32xbf16>
    %223 = arith.truncf %220 : vector<16x16xf32> to vector<16x16xbf16>
    %224 = vector.extract_strided_slice %222 {offsets = [16, 0], sizes = [16, 32], strides = [1, 1]} : vector<48x32xbf16> to vector<16x32xbf16>
    %cst_115 = arith.constant dense<0.000000e+00> : vector<16x32xf32>
    %225 = tpu.matmul %223, %224, %cst_115 {dimension_numbers = #tpu.dot_dimension_numbers<[1], [0], [0], [1], [0, 0, 1, 1], [], []>} : vector<16x16xbf16>, vector<16x32xbf16>, vector<16x32xf32> -> vector<16x32xf32>
    %c7_116 = arith.constant 7 : index
    %c0_117 = arith.constant 0 : index
    %c0_118 = arith.constant 0 : index
    %226 = vector.load %arg5[%c7_116, %c0_117, %c0_118] : memref<12x1x32xf32, #tpu.memory_space<vmem>>, vector<1x1x32xf32>
    %227 = vector.shape_cast %226 : vector<1x1x32xf32> to vector<1x32xf32>
    %228 = vector.broadcast %227 : vector<1x32xf32> to vector<16x32xf32>
    %229 = arith.addf %225, %228 : vector<16x32xf32>
    %230 = vector.extract_strided_slice %229 {offsets = [0, 0], sizes = [16, 16], strides = [1, 1]} : vector<16x32xf32> to vector<16x16xf32>
    %231 = math.tanh %230 : vector<16x16xf32>
    %232 = vector.extract_strided_slice %229 {offsets = [0, 16], sizes = [16, 16], strides = [1, 1]} : vector<16x32xf32> to vector<16x16xf32>
    %233 = arith.negf %232 : vector<16x16xf32>
    %234 = math.exp %233 : vector<16x16xf32>
    %cst_119 = arith.constant 1.000000e+00 : f32
    %235 = vector.broadcast %cst_119 : f32 to vector<16x16xf32>
    %236 = arith.addf %235, %234 : vector<16x16xf32>
    %237 = arith.divf %235, %236 : vector<16x16xf32>
    %238 = arith.mulf %231, %237 : vector<16x16xf32>
    %239 = arith.truncf %238 : vector<16x16xf32> to vector<16x16xbf16>
    %c7_120 = arith.constant 7 : index
    %c0_121 = arith.constant 0 : index
    %c0_122 = arith.constant 0 : index
    %240 = vector.load %arg6[%c7_120, %c0_121, %c0_122] : memref<12x16x16xbf16, #tpu.memory_space<vmem>>, vector<1x16x16xbf16>
    %241 = vector.shape_cast %240 : vector<1x16x16xbf16> to vector<16x16xbf16>
    %cst_123 = arith.constant dense<0.000000e+00> : vector<16x16xf32>
    %242 = tpu.matmul %239, %241, %cst_123 {dimension_numbers = #tpu.dot_dimension_numbers<[1], [0], [0], [1], [0, 0, 1, 1], [], []>} : vector<16x16xbf16>, vector<16x16xbf16>, vector<16x16xf32> -> vector<16x16xf32>
    %243 = arith.addf %220, %242 : vector<16x16xf32>
    %c7_124 = arith.constant 7 : index
    %c0_125 = arith.constant 0 : index
    %c0_126 = arith.constant 0 : index
    %244 = vector.load %arg7[%c7_124, %c0_125, %c0_126] : memref<12x1x16xf32, #tpu.memory_space<vmem>>, vector<1x1x16xf32>
    %245 = vector.shape_cast %244 : vector<1x1x16xf32> to vector<1x16xf32>
    %246 = vector.broadcast %245 : vector<1x16xf32> to vector<16x16xf32>
    %247 = arith.addf %243, %246 : vector<16x16xf32>
    %c8 = arith.constant 8 : index
    %c0_127 = arith.constant 0 : index
    %c0_128 = arith.constant 0 : index
    %248 = vector.load %arg4[%c8, %c0_127, %c0_128] : memref<12x48x32xbf16, #tpu.memory_space<vmem>>, vector<1x48x32xbf16>
    %249 = vector.shape_cast %248 : vector<1x48x32xbf16> to vector<48x32xbf16>
    %250 = arith.truncf %247 : vector<16x16xf32> to vector<16x16xbf16>
    %251 = vector.extract_strided_slice %249 {offsets = [16, 0], sizes = [16, 32], strides = [1, 1]} : vector<48x32xbf16> to vector<16x32xbf16>
    %cst_129 = arith.constant dense<0.000000e+00> : vector<16x32xf32>
    %252 = tpu.matmul %250, %251, %cst_129 {dimension_numbers = #tpu.dot_dimension_numbers<[1], [0], [0], [1], [0, 0, 1, 1], [], []>} : vector<16x16xbf16>, vector<16x32xbf16>, vector<16x32xf32> -> vector<16x32xf32>
    %c8_130 = arith.constant 8 : index
    %c0_131 = arith.constant 0 : index
    %c0_132 = arith.constant 0 : index
    %253 = vector.load %arg5[%c8_130, %c0_131, %c0_132] : memref<12x1x32xf32, #tpu.memory_space<vmem>>, vector<1x1x32xf32>
    %254 = vector.shape_cast %253 : vector<1x1x32xf32> to vector<1x32xf32>
    %255 = vector.broadcast %254 : vector<1x32xf32> to vector<16x32xf32>
    %256 = arith.addf %252, %255 : vector<16x32xf32>
    %257 = vector.extract_strided_slice %256 {offsets = [0, 0], sizes = [16, 16], strides = [1, 1]} : vector<16x32xf32> to vector<16x16xf32>
    %258 = math.tanh %257 : vector<16x16xf32>
    %259 = vector.extract_strided_slice %256 {offsets = [0, 16], sizes = [16, 16], strides = [1, 1]} : vector<16x32xf32> to vector<16x16xf32>
    %260 = arith.negf %259 : vector<16x16xf32>
    %261 = math.exp %260 : vector<16x16xf32>
    %cst_133 = arith.constant 1.000000e+00 : f32
    %262 = vector.broadcast %cst_133 : f32 to vector<16x16xf32>
    %263 = arith.addf %262, %261 : vector<16x16xf32>
    %264 = arith.divf %262, %263 : vector<16x16xf32>
    %265 = arith.mulf %258, %264 : vector<16x16xf32>
    %266 = arith.truncf %265 : vector<16x16xf32> to vector<16x16xbf16>
    %c8_134 = arith.constant 8 : index
    %c0_135 = arith.constant 0 : index
    %c0_136 = arith.constant 0 : index
    %267 = vector.load %arg6[%c8_134, %c0_135, %c0_136] : memref<12x16x16xbf16, #tpu.memory_space<vmem>>, vector<1x16x16xbf16>
    %268 = vector.shape_cast %267 : vector<1x16x16xbf16> to vector<16x16xbf16>
    %cst_137 = arith.constant dense<0.000000e+00> : vector<16x16xf32>
    %269 = tpu.matmul %266, %268, %cst_137 {dimension_numbers = #tpu.dot_dimension_numbers<[1], [0], [0], [1], [0, 0, 1, 1], [], []>} : vector<16x16xbf16>, vector<16x16xbf16>, vector<16x16xf32> -> vector<16x16xf32>
    %270 = arith.addf %247, %269 : vector<16x16xf32>
    %c8_138 = arith.constant 8 : index
    %c0_139 = arith.constant 0 : index
    %c0_140 = arith.constant 0 : index
    %271 = vector.load %arg7[%c8_138, %c0_139, %c0_140] : memref<12x1x16xf32, #tpu.memory_space<vmem>>, vector<1x1x16xf32>
    %272 = vector.shape_cast %271 : vector<1x1x16xf32> to vector<1x16xf32>
    %273 = vector.broadcast %272 : vector<1x16xf32> to vector<16x16xf32>
    %274 = arith.addf %270, %273 : vector<16x16xf32>
    %c9 = arith.constant 9 : index
    %c0_141 = arith.constant 0 : index
    %c0_142 = arith.constant 0 : index
    %275 = vector.load %arg4[%c9, %c0_141, %c0_142] : memref<12x48x32xbf16, #tpu.memory_space<vmem>>, vector<1x48x32xbf16>
    %276 = vector.shape_cast %275 : vector<1x48x32xbf16> to vector<48x32xbf16>
    %277 = arith.truncf %274 : vector<16x16xf32> to vector<16x16xbf16>
    %278 = vector.extract_strided_slice %276 {offsets = [16, 0], sizes = [16, 32], strides = [1, 1]} : vector<48x32xbf16> to vector<16x32xbf16>
    %cst_143 = arith.constant dense<0.000000e+00> : vector<16x32xf32>
    %279 = tpu.matmul %277, %278, %cst_143 {dimension_numbers = #tpu.dot_dimension_numbers<[1], [0], [0], [1], [0, 0, 1, 1], [], []>} : vector<16x16xbf16>, vector<16x32xbf16>, vector<16x32xf32> -> vector<16x32xf32>
    %c9_144 = arith.constant 9 : index
    %c0_145 = arith.constant 0 : index
    %c0_146 = arith.constant 0 : index
    %280 = vector.load %arg5[%c9_144, %c0_145, %c0_146] : memref<12x1x32xf32, #tpu.memory_space<vmem>>, vector<1x1x32xf32>
    %281 = vector.shape_cast %280 : vector<1x1x32xf32> to vector<1x32xf32>
    %282 = vector.broadcast %281 : vector<1x32xf32> to vector<16x32xf32>
    %283 = arith.addf %279, %282 : vector<16x32xf32>
    %284 = vector.extract_strided_slice %283 {offsets = [0, 0], sizes = [16, 16], strides = [1, 1]} : vector<16x32xf32> to vector<16x16xf32>
    %285 = math.tanh %284 : vector<16x16xf32>
    %286 = vector.extract_strided_slice %283 {offsets = [0, 16], sizes = [16, 16], strides = [1, 1]} : vector<16x32xf32> to vector<16x16xf32>
    %287 = arith.negf %286 : vector<16x16xf32>
    %288 = math.exp %287 : vector<16x16xf32>
    %cst_147 = arith.constant 1.000000e+00 : f32
    %289 = vector.broadcast %cst_147 : f32 to vector<16x16xf32>
    %290 = arith.addf %289, %288 : vector<16x16xf32>
    %291 = arith.divf %289, %290 : vector<16x16xf32>
    %292 = arith.mulf %285, %291 : vector<16x16xf32>
    %293 = arith.truncf %292 : vector<16x16xf32> to vector<16x16xbf16>
    %c9_148 = arith.constant 9 : index
    %c0_149 = arith.constant 0 : index
    %c0_150 = arith.constant 0 : index
    %294 = vector.load %arg6[%c9_148, %c0_149, %c0_150] : memref<12x16x16xbf16, #tpu.memory_space<vmem>>, vector<1x16x16xbf16>
    %295 = vector.shape_cast %294 : vector<1x16x16xbf16> to vector<16x16xbf16>
    %cst_151 = arith.constant dense<0.000000e+00> : vector<16x16xf32>
    %296 = tpu.matmul %293, %295, %cst_151 {dimension_numbers = #tpu.dot_dimension_numbers<[1], [0], [0], [1], [0, 0, 1, 1], [], []>} : vector<16x16xbf16>, vector<16x16xbf16>, vector<16x16xf32> -> vector<16x16xf32>
    %297 = arith.addf %274, %296 : vector<16x16xf32>
    %c9_152 = arith.constant 9 : index
    %c0_153 = arith.constant 0 : index
    %c0_154 = arith.constant 0 : index
    %298 = vector.load %arg7[%c9_152, %c0_153, %c0_154] : memref<12x1x16xf32, #tpu.memory_space<vmem>>, vector<1x1x16xf32>
    %299 = vector.shape_cast %298 : vector<1x1x16xf32> to vector<1x16xf32>
    %300 = vector.broadcast %299 : vector<1x16xf32> to vector<16x16xf32>
    %301 = arith.addf %297, %300 : vector<16x16xf32>
    %c10 = arith.constant 10 : index
    %c0_155 = arith.constant 0 : index
    %c0_156 = arith.constant 0 : index
    %302 = vector.load %arg4[%c10, %c0_155, %c0_156] : memref<12x48x32xbf16, #tpu.memory_space<vmem>>, vector<1x48x32xbf16>
    %303 = vector.shape_cast %302 : vector<1x48x32xbf16> to vector<48x32xbf16>
    %304 = arith.truncf %301 : vector<16x16xf32> to vector<16x16xbf16>
    %305 = vector.extract_strided_slice %303 {offsets = [16, 0], sizes = [16, 32], strides = [1, 1]} : vector<48x32xbf16> to vector<16x32xbf16>
    %cst_157 = arith.constant dense<0.000000e+00> : vector<16x32xf32>
    %306 = tpu.matmul %304, %305, %cst_157 {dimension_numbers = #tpu.dot_dimension_numbers<[1], [0], [0], [1], [0, 0, 1, 1], [], []>} : vector<16x16xbf16>, vector<16x32xbf16>, vector<16x32xf32> -> vector<16x32xf32>
    %c10_158 = arith.constant 10 : index
    %c0_159 = arith.constant 0 : index
    %c0_160 = arith.constant 0 : index
    %307 = vector.load %arg5[%c10_158, %c0_159, %c0_160] : memref<12x1x32xf32, #tpu.memory_space<vmem>>, vector<1x1x32xf32>
    %308 = vector.shape_cast %307 : vector<1x1x32xf32> to vector<1x32xf32>
    %309 = vector.broadcast %308 : vector<1x32xf32> to vector<16x32xf32>
    %310 = arith.addf %306, %309 : vector<16x32xf32>
    %311 = vector.extract_strided_slice %310 {offsets = [0, 0], sizes = [16, 16], strides = [1, 1]} : vector<16x32xf32> to vector<16x16xf32>
    %312 = math.tanh %311 : vector<16x16xf32>
    %313 = vector.extract_strided_slice %310 {offsets = [0, 16], sizes = [16, 16], strides = [1, 1]} : vector<16x32xf32> to vector<16x16xf32>
    %314 = arith.negf %313 : vector<16x16xf32>
    %315 = math.exp %314 : vector<16x16xf32>
    %cst_161 = arith.constant 1.000000e+00 : f32
    %316 = vector.broadcast %cst_161 : f32 to vector<16x16xf32>
    %317 = arith.addf %316, %315 : vector<16x16xf32>
    %318 = arith.divf %316, %317 : vector<16x16xf32>
    %319 = arith.mulf %312, %318 : vector<16x16xf32>
    %320 = arith.truncf %319 : vector<16x16xf32> to vector<16x16xbf16>
    %c10_162 = arith.constant 10 : index
    %c0_163 = arith.constant 0 : index
    %c0_164 = arith.constant 0 : index
    %321 = vector.load %arg6[%c10_162, %c0_163, %c0_164] : memref<12x16x16xbf16, #tpu.memory_space<vmem>>, vector<1x16x16xbf16>
    %322 = vector.shape_cast %321 : vector<1x16x16xbf16> to vector<16x16xbf16>
    %cst_165 = arith.constant dense<0.000000e+00> : vector<16x16xf32>
    %323 = tpu.matmul %320, %322, %cst_165 {dimension_numbers = #tpu.dot_dimension_numbers<[1], [0], [0], [1], [0, 0, 1, 1], [], []>} : vector<16x16xbf16>, vector<16x16xbf16>, vector<16x16xf32> -> vector<16x16xf32>
    %324 = arith.addf %301, %323 : vector<16x16xf32>
    %c10_166 = arith.constant 10 : index
    %c0_167 = arith.constant 0 : index
    %c0_168 = arith.constant 0 : index
    %325 = vector.load %arg7[%c10_166, %c0_167, %c0_168] : memref<12x1x16xf32, #tpu.memory_space<vmem>>, vector<1x1x16xf32>
    %326 = vector.shape_cast %325 : vector<1x1x16xf32> to vector<1x16xf32>
    %327 = vector.broadcast %326 : vector<1x16xf32> to vector<16x16xf32>
    %328 = arith.addf %324, %327 : vector<16x16xf32>
    %c11 = arith.constant 11 : index
    %c0_169 = arith.constant 0 : index
    %c0_170 = arith.constant 0 : index
    %329 = vector.load %arg4[%c11, %c0_169, %c0_170] : memref<12x48x32xbf16, #tpu.memory_space<vmem>>, vector<1x48x32xbf16>
    %330 = vector.shape_cast %329 : vector<1x48x32xbf16> to vector<48x32xbf16>
    %331 = arith.truncf %328 : vector<16x16xf32> to vector<16x16xbf16>
    %332 = vector.extract_strided_slice %330 {offsets = [16, 0], sizes = [16, 32], strides = [1, 1]} : vector<48x32xbf16> to vector<16x32xbf16>
    %cst_171 = arith.constant dense<0.000000e+00> : vector<16x32xf32>
    %333 = tpu.matmul %331, %332, %cst_171 {dimension_numbers = #tpu.dot_dimension_numbers<[1], [0], [0], [1], [0, 0, 1, 1], [], []>} : vector<16x16xbf16>, vector<16x32xbf16>, vector<16x32xf32> -> vector<16x32xf32>
    %c11_172 = arith.constant 11 : index
    %c0_173 = arith.constant 0 : index
    %c0_174 = arith.constant 0 : index
    %334 = vector.load %arg5[%c11_172, %c0_173, %c0_174] : memref<12x1x32xf32, #tpu.memory_space<vmem>>, vector<1x1x32xf32>
    %335 = vector.shape_cast %334 : vector<1x1x32xf32> to vector<1x32xf32>
    %336 = vector.broadcast %335 : vector<1x32xf32> to vector<16x32xf32>
    %337 = arith.addf %333, %336 : vector<16x32xf32>
    %338 = vector.extract_strided_slice %337 {offsets = [0, 0], sizes = [16, 16], strides = [1, 1]} : vector<16x32xf32> to vector<16x16xf32>
    %339 = math.tanh %338 : vector<16x16xf32>
    %340 = vector.extract_strided_slice %337 {offsets = [0, 16], sizes = [16, 16], strides = [1, 1]} : vector<16x32xf32> to vector<16x16xf32>
    %341 = arith.negf %340 : vector<16x16xf32>
    %342 = math.exp %341 : vector<16x16xf32>
    %cst_175 = arith.constant 1.000000e+00 : f32
    %343 = vector.broadcast %cst_175 : f32 to vector<16x16xf32>
    %344 = arith.addf %343, %342 : vector<16x16xf32>
    %345 = arith.divf %343, %344 : vector<16x16xf32>
    %346 = arith.mulf %339, %345 : vector<16x16xf32>
    %347 = arith.truncf %346 : vector<16x16xf32> to vector<16x16xbf16>
    %c11_176 = arith.constant 11 : index
    %c0_177 = arith.constant 0 : index
    %c0_178 = arith.constant 0 : index
    %348 = vector.load %arg6[%c11_176, %c0_177, %c0_178] : memref<12x16x16xbf16, #tpu.memory_space<vmem>>, vector<1x16x16xbf16>
    %349 = vector.shape_cast %348 : vector<1x16x16xbf16> to vector<16x16xbf16>
    %cst_179 = arith.constant dense<0.000000e+00> : vector<16x16xf32>
    %350 = tpu.matmul %347, %349, %cst_179 {dimension_numbers = #tpu.dot_dimension_numbers<[1], [0], [0], [1], [0, 0, 1, 1], [], []>} : vector<16x16xbf16>, vector<16x16xbf16>, vector<16x16xf32> -> vector<16x16xf32>
    %351 = arith.addf %328, %350 : vector<16x16xf32>
    %c11_180 = arith.constant 11 : index
    %c0_181 = arith.constant 0 : index
    %c0_182 = arith.constant 0 : index
    %352 = vector.load %arg7[%c11_180, %c0_181, %c0_182] : memref<12x1x16xf32, #tpu.memory_space<vmem>>, vector<1x1x16xf32>
    %353 = vector.shape_cast %352 : vector<1x1x16xf32> to vector<1x16xf32>
    %354 = vector.broadcast %353 : vector<1x16xf32> to vector<16x16xf32>
    %355 = arith.addf %351, %354 : vector<16x16xf32>
    %356 = arith.truncf %355 : vector<16x16xf32> to vector<16x16xbf16>
    %c0_183 = arith.constant 0 : index
    %c0_184 = arith.constant 0 : index
    %357 = vector.load %arg8[%c0_183, %c0_184] : memref<16x32xbf16, #tpu.memory_space<vmem>>, vector<16x32xbf16>
    %cst_185 = arith.constant dense<0.000000e+00> : vector<16x32xf32>
    %358 = tpu.matmul %356, %357, %cst_185 {dimension_numbers = #tpu.dot_dimension_numbers<[1], [0], [0], [1], [0, 0, 1, 1], [], []>} : vector<16x16xbf16>, vector<16x32xbf16>, vector<16x32xf32> -> vector<16x32xf32>
    %c0_186 = arith.constant 0 : index
    %c0_187 = arith.constant 0 : index
    %359 = vector.load %arg9[%c0_186, %c0_187] : memref<1x32xf32, #tpu.memory_space<vmem>>, vector<1x32xf32>
    %360 = vector.broadcast %359 : vector<1x32xf32> to vector<16x32xf32>
    %361 = arith.addf %358, %360 : vector<16x32xf32>
    %c0_188 = arith.constant 0 : index
    %c0_189 = arith.constant 0 : index
    %c0_190 = arith.constant 0 : index
    %362 = vector.load %arg10[%c0_188, %c0_189, %c0_190] : memref<8x96x64xbf16, #tpu.memory_space<vmem>>, vector<1x96x64xbf16>
    %363 = vector.shape_cast %362 : vector<1x96x64xbf16> to vector<96x64xbf16>
    %cst_191 = arith.constant 0.000000e+00 : f32
    %364 = vector.broadcast %cst_191 : f32 to vector<1x32xf32>
    %365 = vector.extract_strided_slice %361 {offsets = [0, 0], sizes = [15, 32], strides = [1, 1]} : vector<16x32xf32> to vector<15x32xf32>
    %366 = tpu.concatenate %364, %365 in 0 : vector<1x32xf32>, vector<15x32xf32> -> vector<16x32xf32>
    %367 = vector.extract_strided_slice %361 {offsets = [1, 0], sizes = [15, 32], strides = [1, 1]} : vector<16x32xf32> to vector<15x32xf32>
    %cst_192 = arith.constant 0.000000e+00 : f32
    %368 = vector.broadcast %cst_192 : f32 to vector<1x32xf32>
    %369 = tpu.concatenate %367, %368 in 0 : vector<15x32xf32>, vector<1x32xf32> -> vector<16x32xf32>
    %370 = tpu.concatenate %366, %361, %369 in 1 : vector<16x32xf32>, vector<16x32xf32>, vector<16x32xf32> -> vector<16x96xf32>
    %371 = arith.truncf %370 : vector<16x96xf32> to vector<16x96xbf16>
    %cst_193 = arith.constant dense<0.000000e+00> : vector<16x64xf32>
    %372 = tpu.matmul %371, %363, %cst_193 {dimension_numbers = #tpu.dot_dimension_numbers<[1], [0], [0], [1], [0, 0, 1, 1], [], []>} : vector<16x96xbf16>, vector<96x64xbf16>, vector<16x64xf32> -> vector<16x64xf32>
    %c0_194 = arith.constant 0 : index
    %c0_195 = arith.constant 0 : index
    %c0_196 = arith.constant 0 : index
    %373 = vector.load %arg11[%c0_194, %c0_195, %c0_196] : memref<8x1x64xf32, #tpu.memory_space<vmem>>, vector<1x1x64xf32>
    %374 = vector.shape_cast %373 : vector<1x1x64xf32> to vector<1x64xf32>
    %375 = vector.broadcast %374 : vector<1x64xf32> to vector<16x64xf32>
    %376 = arith.addf %372, %375 : vector<16x64xf32>
    %377 = vector.extract_strided_slice %376 {offsets = [0, 0], sizes = [16, 32], strides = [1, 1]} : vector<16x64xf32> to vector<16x32xf32>
    %378 = math.tanh %377 : vector<16x32xf32>
    %379 = vector.extract_strided_slice %376 {offsets = [0, 32], sizes = [16, 32], strides = [1, 1]} : vector<16x64xf32> to vector<16x32xf32>
    %380 = arith.negf %379 : vector<16x32xf32>
    %381 = math.exp %380 : vector<16x32xf32>
    %cst_197 = arith.constant 1.000000e+00 : f32
    %382 = vector.broadcast %cst_197 : f32 to vector<16x32xf32>
    %383 = arith.addf %382, %381 : vector<16x32xf32>
    %384 = arith.divf %382, %383 : vector<16x32xf32>
    %385 = arith.mulf %378, %384 : vector<16x32xf32>
    %386 = arith.truncf %385 : vector<16x32xf32> to vector<16x32xbf16>
    %c0_198 = arith.constant 0 : index
    %c0_199 = arith.constant 0 : index
    %c0_200 = arith.constant 0 : index
    %387 = vector.load %arg12[%c0_198, %c0_199, %c0_200] : memref<8x32x32xbf16, #tpu.memory_space<vmem>>, vector<1x32x32xbf16>
    %388 = vector.shape_cast %387 : vector<1x32x32xbf16> to vector<32x32xbf16>
    %cst_201 = arith.constant dense<0.000000e+00> : vector<16x32xf32>
    %389 = tpu.matmul %386, %388, %cst_201 {dimension_numbers = #tpu.dot_dimension_numbers<[1], [0], [0], [1], [0, 0, 1, 1], [], []>} : vector<16x32xbf16>, vector<32x32xbf16>, vector<16x32xf32> -> vector<16x32xf32>
    %390 = arith.addf %361, %389 : vector<16x32xf32>
    %c0_202 = arith.constant 0 : index
    %c0_203 = arith.constant 0 : index
    %c0_204 = arith.constant 0 : index
    %391 = vector.load %arg13[%c0_202, %c0_203, %c0_204] : memref<8x1x32xf32, #tpu.memory_space<vmem>>, vector<1x1x32xf32>
    %392 = vector.shape_cast %391 : vector<1x1x32xf32> to vector<1x32xf32>
    %393 = vector.broadcast %392 : vector<1x32xf32> to vector<16x32xf32>
    %394 = arith.addf %390, %393 : vector<16x32xf32>
    %c1_205 = arith.constant 1 : index
    %c0_206 = arith.constant 0 : index
    %c0_207 = arith.constant 0 : index
    %395 = vector.load %arg10[%c1_205, %c0_206, %c0_207] : memref<8x96x64xbf16, #tpu.memory_space<vmem>>, vector<1x96x64xbf16>
    %396 = vector.shape_cast %395 : vector<1x96x64xbf16> to vector<96x64xbf16>
    %cst_208 = arith.constant 0.000000e+00 : f32
    %397 = vector.broadcast %cst_208 : f32 to vector<2x32xf32>
    %398 = vector.extract_strided_slice %394 {offsets = [0, 0], sizes = [14, 32], strides = [1, 1]} : vector<16x32xf32> to vector<14x32xf32>
    %399 = tpu.concatenate %397, %398 in 0 : vector<2x32xf32>, vector<14x32xf32> -> vector<16x32xf32>
    %400 = vector.extract_strided_slice %394 {offsets = [2, 0], sizes = [14, 32], strides = [1, 1]} : vector<16x32xf32> to vector<14x32xf32>
    %cst_209 = arith.constant 0.000000e+00 : f32
    %401 = vector.broadcast %cst_209 : f32 to vector<2x32xf32>
    %402 = tpu.concatenate %400, %401 in 0 : vector<14x32xf32>, vector<2x32xf32> -> vector<16x32xf32>
    %403 = tpu.concatenate %399, %394, %402 in 1 : vector<16x32xf32>, vector<16x32xf32>, vector<16x32xf32> -> vector<16x96xf32>
    %404 = arith.truncf %403 : vector<16x96xf32> to vector<16x96xbf16>
    %cst_210 = arith.constant dense<0.000000e+00> : vector<16x64xf32>
    %405 = tpu.matmul %404, %396, %cst_210 {dimension_numbers = #tpu.dot_dimension_numbers<[1], [0], [0], [1], [0, 0, 1, 1], [], []>} : vector<16x96xbf16>, vector<96x64xbf16>, vector<16x64xf32> -> vector<16x64xf32>
    %c1_211 = arith.constant 1 : index
    %c0_212 = arith.constant 0 : index
    %c0_213 = arith.constant 0 : index
    %406 = vector.load %arg11[%c1_211, %c0_212, %c0_213] : memref<8x1x64xf32, #tpu.memory_space<vmem>>, vector<1x1x64xf32>
    %407 = vector.shape_cast %406 : vector<1x1x64xf32> to vector<1x64xf32>
    %408 = vector.broadcast %407 : vector<1x64xf32> to vector<16x64xf32>
    %409 = arith.addf %405, %408 : vector<16x64xf32>
    %410 = vector.extract_strided_slice %409 {offsets = [0, 0], sizes = [16, 32], strides = [1, 1]} : vector<16x64xf32> to vector<16x32xf32>
    %411 = math.tanh %410 : vector<16x32xf32>
    %412 = vector.extract_strided_slice %409 {offsets = [0, 32], sizes = [16, 32], strides = [1, 1]} : vector<16x64xf32> to vector<16x32xf32>
    %413 = arith.negf %412 : vector<16x32xf32>
    %414 = math.exp %413 : vector<16x32xf32>
    %cst_214 = arith.constant 1.000000e+00 : f32
    %415 = vector.broadcast %cst_214 : f32 to vector<16x32xf32>
    %416 = arith.addf %415, %414 : vector<16x32xf32>
    %417 = arith.divf %415, %416 : vector<16x32xf32>
    %418 = arith.mulf %411, %417 : vector<16x32xf32>
    %419 = arith.truncf %418 : vector<16x32xf32> to vector<16x32xbf16>
    %c1_215 = arith.constant 1 : index
    %c0_216 = arith.constant 0 : index
    %c0_217 = arith.constant 0 : index
    %420 = vector.load %arg12[%c1_215, %c0_216, %c0_217] : memref<8x32x32xbf16, #tpu.memory_space<vmem>>, vector<1x32x32xbf16>
    %421 = vector.shape_cast %420 : vector<1x32x32xbf16> to vector<32x32xbf16>
    %cst_218 = arith.constant dense<0.000000e+00> : vector<16x32xf32>
    %422 = tpu.matmul %419, %421, %cst_218 {dimension_numbers = #tpu.dot_dimension_numbers<[1], [0], [0], [1], [0, 0, 1, 1], [], []>} : vector<16x32xbf16>, vector<32x32xbf16>, vector<16x32xf32> -> vector<16x32xf32>
    %423 = arith.addf %394, %422 : vector<16x32xf32>
    %c1_219 = arith.constant 1 : index
    %c0_220 = arith.constant 0 : index
    %c0_221 = arith.constant 0 : index
    %424 = vector.load %arg13[%c1_219, %c0_220, %c0_221] : memref<8x1x32xf32, #tpu.memory_space<vmem>>, vector<1x1x32xf32>
    %425 = vector.shape_cast %424 : vector<1x1x32xf32> to vector<1x32xf32>
    %426 = vector.broadcast %425 : vector<1x32xf32> to vector<16x32xf32>
    %427 = arith.addf %423, %426 : vector<16x32xf32>
    %c2_222 = arith.constant 2 : index
    %c0_223 = arith.constant 0 : index
    %c0_224 = arith.constant 0 : index
    %428 = vector.load %arg10[%c2_222, %c0_223, %c0_224] : memref<8x96x64xbf16, #tpu.memory_space<vmem>>, vector<1x96x64xbf16>
    %429 = vector.shape_cast %428 : vector<1x96x64xbf16> to vector<96x64xbf16>
    %cst_225 = arith.constant 0.000000e+00 : f32
    %430 = vector.broadcast %cst_225 : f32 to vector<4x32xf32>
    %431 = vector.extract_strided_slice %427 {offsets = [0, 0], sizes = [12, 32], strides = [1, 1]} : vector<16x32xf32> to vector<12x32xf32>
    %432 = tpu.concatenate %430, %431 in 0 : vector<4x32xf32>, vector<12x32xf32> -> vector<16x32xf32>
    %433 = vector.extract_strided_slice %427 {offsets = [4, 0], sizes = [12, 32], strides = [1, 1]} : vector<16x32xf32> to vector<12x32xf32>
    %cst_226 = arith.constant 0.000000e+00 : f32
    %434 = vector.broadcast %cst_226 : f32 to vector<4x32xf32>
    %435 = tpu.concatenate %433, %434 in 0 : vector<12x32xf32>, vector<4x32xf32> -> vector<16x32xf32>
    %436 = tpu.concatenate %432, %427, %435 in 1 : vector<16x32xf32>, vector<16x32xf32>, vector<16x32xf32> -> vector<16x96xf32>
    %437 = arith.truncf %436 : vector<16x96xf32> to vector<16x96xbf16>
    %cst_227 = arith.constant dense<0.000000e+00> : vector<16x64xf32>
    %438 = tpu.matmul %437, %429, %cst_227 {dimension_numbers = #tpu.dot_dimension_numbers<[1], [0], [0], [1], [0, 0, 1, 1], [], []>} : vector<16x96xbf16>, vector<96x64xbf16>, vector<16x64xf32> -> vector<16x64xf32>
    %c2_228 = arith.constant 2 : index
    %c0_229 = arith.constant 0 : index
    %c0_230 = arith.constant 0 : index
    %439 = vector.load %arg11[%c2_228, %c0_229, %c0_230] : memref<8x1x64xf32, #tpu.memory_space<vmem>>, vector<1x1x64xf32>
    %440 = vector.shape_cast %439 : vector<1x1x64xf32> to vector<1x64xf32>
    %441 = vector.broadcast %440 : vector<1x64xf32> to vector<16x64xf32>
    %442 = arith.addf %438, %441 : vector<16x64xf32>
    %443 = vector.extract_strided_slice %442 {offsets = [0, 0], sizes = [16, 32], strides = [1, 1]} : vector<16x64xf32> to vector<16x32xf32>
    %444 = math.tanh %443 : vector<16x32xf32>
    %445 = vector.extract_strided_slice %442 {offsets = [0, 32], sizes = [16, 32], strides = [1, 1]} : vector<16x64xf32> to vector<16x32xf32>
    %446 = arith.negf %445 : vector<16x32xf32>
    %447 = math.exp %446 : vector<16x32xf32>
    %cst_231 = arith.constant 1.000000e+00 : f32
    %448 = vector.broadcast %cst_231 : f32 to vector<16x32xf32>
    %449 = arith.addf %448, %447 : vector<16x32xf32>
    %450 = arith.divf %448, %449 : vector<16x32xf32>
    %451 = arith.mulf %444, %450 : vector<16x32xf32>
    %452 = arith.truncf %451 : vector<16x32xf32> to vector<16x32xbf16>
    %c2_232 = arith.constant 2 : index
    %c0_233 = arith.constant 0 : index
    %c0_234 = arith.constant 0 : index
    %453 = vector.load %arg12[%c2_232, %c0_233, %c0_234] : memref<8x32x32xbf16, #tpu.memory_space<vmem>>, vector<1x32x32xbf16>
    %454 = vector.shape_cast %453 : vector<1x32x32xbf16> to vector<32x32xbf16>
    %cst_235 = arith.constant dense<0.000000e+00> : vector<16x32xf32>
    %455 = tpu.matmul %452, %454, %cst_235 {dimension_numbers = #tpu.dot_dimension_numbers<[1], [0], [0], [1], [0, 0, 1, 1], [], []>} : vector<16x32xbf16>, vector<32x32xbf16>, vector<16x32xf32> -> vector<16x32xf32>
    %456 = arith.addf %427, %455 : vector<16x32xf32>
    %c2_236 = arith.constant 2 : index
    %c0_237 = arith.constant 0 : index
    %c0_238 = arith.constant 0 : index
    %457 = vector.load %arg13[%c2_236, %c0_237, %c0_238] : memref<8x1x32xf32, #tpu.memory_space<vmem>>, vector<1x1x32xf32>
    %458 = vector.shape_cast %457 : vector<1x1x32xf32> to vector<1x32xf32>
    %459 = vector.broadcast %458 : vector<1x32xf32> to vector<16x32xf32>
    %460 = arith.addf %456, %459 : vector<16x32xf32>
    %c3_239 = arith.constant 3 : index
    %c0_240 = arith.constant 0 : index
    %c0_241 = arith.constant 0 : index
    %461 = vector.load %arg10[%c3_239, %c0_240, %c0_241] : memref<8x96x64xbf16, #tpu.memory_space<vmem>>, vector<1x96x64xbf16>
    %462 = vector.shape_cast %461 : vector<1x96x64xbf16> to vector<96x64xbf16>
    %cst_242 = arith.constant 0.000000e+00 : f32
    %463 = vector.broadcast %cst_242 : f32 to vector<8x32xf32>
    %464 = vector.extract_strided_slice %460 {offsets = [0, 0], sizes = [8, 32], strides = [1, 1]} : vector<16x32xf32> to vector<8x32xf32>
    %465 = tpu.concatenate %463, %464 in 0 : vector<8x32xf32>, vector<8x32xf32> -> vector<16x32xf32>
    %466 = vector.extract_strided_slice %460 {offsets = [8, 0], sizes = [8, 32], strides = [1, 1]} : vector<16x32xf32> to vector<8x32xf32>
    %cst_243 = arith.constant 0.000000e+00 : f32
    %467 = vector.broadcast %cst_243 : f32 to vector<8x32xf32>
    %468 = tpu.concatenate %466, %467 in 0 : vector<8x32xf32>, vector<8x32xf32> -> vector<16x32xf32>
    %469 = tpu.concatenate %465, %460, %468 in 1 : vector<16x32xf32>, vector<16x32xf32>, vector<16x32xf32> -> vector<16x96xf32>
    %470 = arith.truncf %469 : vector<16x96xf32> to vector<16x96xbf16>
    %cst_244 = arith.constant dense<0.000000e+00> : vector<16x64xf32>
    %471 = tpu.matmul %470, %462, %cst_244 {dimension_numbers = #tpu.dot_dimension_numbers<[1], [0], [0], [1], [0, 0, 1, 1], [], []>} : vector<16x96xbf16>, vector<96x64xbf16>, vector<16x64xf32> -> vector<16x64xf32>
    %c3_245 = arith.constant 3 : index
    %c0_246 = arith.constant 0 : index
    %c0_247 = arith.constant 0 : index
    %472 = vector.load %arg11[%c3_245, %c0_246, %c0_247] : memref<8x1x64xf32, #tpu.memory_space<vmem>>, vector<1x1x64xf32>
    %473 = vector.shape_cast %472 : vector<1x1x64xf32> to vector<1x64xf32>
    %474 = vector.broadcast %473 : vector<1x64xf32> to vector<16x64xf32>
    %475 = arith.addf %471, %474 : vector<16x64xf32>
    %476 = vector.extract_strided_slice %475 {offsets = [0, 0], sizes = [16, 32], strides = [1, 1]} : vector<16x64xf32> to vector<16x32xf32>
    %477 = math.tanh %476 : vector<16x32xf32>
    %478 = vector.extract_strided_slice %475 {offsets = [0, 32], sizes = [16, 32], strides = [1, 1]} : vector<16x64xf32> to vector<16x32xf32>
    %479 = arith.negf %478 : vector<16x32xf32>
    %480 = math.exp %479 : vector<16x32xf32>
    %cst_248 = arith.constant 1.000000e+00 : f32
    %481 = vector.broadcast %cst_248 : f32 to vector<16x32xf32>
    %482 = arith.addf %481, %480 : vector<16x32xf32>
    %483 = arith.divf %481, %482 : vector<16x32xf32>
    %484 = arith.mulf %477, %483 : vector<16x32xf32>
    %485 = arith.truncf %484 : vector<16x32xf32> to vector<16x32xbf16>
    %c3_249 = arith.constant 3 : index
    %c0_250 = arith.constant 0 : index
    %c0_251 = arith.constant 0 : index
    %486 = vector.load %arg12[%c3_249, %c0_250, %c0_251] : memref<8x32x32xbf16, #tpu.memory_space<vmem>>, vector<1x32x32xbf16>
    %487 = vector.shape_cast %486 : vector<1x32x32xbf16> to vector<32x32xbf16>
    %cst_252 = arith.constant dense<0.000000e+00> : vector<16x32xf32>
    %488 = tpu.matmul %485, %487, %cst_252 {dimension_numbers = #tpu.dot_dimension_numbers<[1], [0], [0], [1], [0, 0, 1, 1], [], []>} : vector<16x32xbf16>, vector<32x32xbf16>, vector<16x32xf32> -> vector<16x32xf32>
    %489 = arith.addf %460, %488 : vector<16x32xf32>
    %c3_253 = arith.constant 3 : index
    %c0_254 = arith.constant 0 : index
    %c0_255 = arith.constant 0 : index
    %490 = vector.load %arg13[%c3_253, %c0_254, %c0_255] : memref<8x1x32xf32, #tpu.memory_space<vmem>>, vector<1x1x32xf32>
    %491 = vector.shape_cast %490 : vector<1x1x32xf32> to vector<1x32xf32>
    %492 = vector.broadcast %491 : vector<1x32xf32> to vector<16x32xf32>
    %493 = arith.addf %489, %492 : vector<16x32xf32>
    %c4_256 = arith.constant 4 : index
    %c0_257 = arith.constant 0 : index
    %c0_258 = arith.constant 0 : index
    %494 = vector.load %arg10[%c4_256, %c0_257, %c0_258] : memref<8x96x64xbf16, #tpu.memory_space<vmem>>, vector<1x96x64xbf16>
    %495 = vector.shape_cast %494 : vector<1x96x64xbf16> to vector<96x64xbf16>
    %496 = arith.truncf %493 : vector<16x32xf32> to vector<16x32xbf16>
    %497 = vector.extract_strided_slice %495 {offsets = [32, 0], sizes = [32, 64], strides = [1, 1]} : vector<96x64xbf16> to vector<32x64xbf16>
    %cst_259 = arith.constant dense<0.000000e+00> : vector<16x64xf32>
    %498 = tpu.matmul %496, %497, %cst_259 {dimension_numbers = #tpu.dot_dimension_numbers<[1], [0], [0], [1], [0, 0, 1, 1], [], []>} : vector<16x32xbf16>, vector<32x64xbf16>, vector<16x64xf32> -> vector<16x64xf32>
    %c4_260 = arith.constant 4 : index
    %c0_261 = arith.constant 0 : index
    %c0_262 = arith.constant 0 : index
    %499 = vector.load %arg11[%c4_260, %c0_261, %c0_262] : memref<8x1x64xf32, #tpu.memory_space<vmem>>, vector<1x1x64xf32>
    %500 = vector.shape_cast %499 : vector<1x1x64xf32> to vector<1x64xf32>
    %501 = vector.broadcast %500 : vector<1x64xf32> to vector<16x64xf32>
    %502 = arith.addf %498, %501 : vector<16x64xf32>
    %503 = vector.extract_strided_slice %502 {offsets = [0, 0], sizes = [16, 32], strides = [1, 1]} : vector<16x64xf32> to vector<16x32xf32>
    %504 = math.tanh %503 : vector<16x32xf32>
    %505 = vector.extract_strided_slice %502 {offsets = [0, 32], sizes = [16, 32], strides = [1, 1]} : vector<16x64xf32> to vector<16x32xf32>
    %506 = arith.negf %505 : vector<16x32xf32>
    %507 = math.exp %506 : vector<16x32xf32>
    %cst_263 = arith.constant 1.000000e+00 : f32
    %508 = vector.broadcast %cst_263 : f32 to vector<16x32xf32>
    %509 = arith.addf %508, %507 : vector<16x32xf32>
    %510 = arith.divf %508, %509 : vector<16x32xf32>
    %511 = arith.mulf %504, %510 : vector<16x32xf32>
    %512 = arith.truncf %511 : vector<16x32xf32> to vector<16x32xbf16>
    %c4_264 = arith.constant 4 : index
    %c0_265 = arith.constant 0 : index
    %c0_266 = arith.constant 0 : index
    %513 = vector.load %arg12[%c4_264, %c0_265, %c0_266] : memref<8x32x32xbf16, #tpu.memory_space<vmem>>, vector<1x32x32xbf16>
    %514 = vector.shape_cast %513 : vector<1x32x32xbf16> to vector<32x32xbf16>
    %cst_267 = arith.constant dense<0.000000e+00> : vector<16x32xf32>
    %515 = tpu.matmul %512, %514, %cst_267 {dimension_numbers = #tpu.dot_dimension_numbers<[1], [0], [0], [1], [0, 0, 1, 1], [], []>} : vector<16x32xbf16>, vector<32x32xbf16>, vector<16x32xf32> -> vector<16x32xf32>
    %516 = arith.addf %493, %515 : vector<16x32xf32>
    %c4_268 = arith.constant 4 : index
    %c0_269 = arith.constant 0 : index
    %c0_270 = arith.constant 0 : index
    %517 = vector.load %arg13[%c4_268, %c0_269, %c0_270] : memref<8x1x32xf32, #tpu.memory_space<vmem>>, vector<1x1x32xf32>
    %518 = vector.shape_cast %517 : vector<1x1x32xf32> to vector<1x32xf32>
    %519 = vector.broadcast %518 : vector<1x32xf32> to vector<16x32xf32>
    %520 = arith.addf %516, %519 : vector<16x32xf32>
    %c5_271 = arith.constant 5 : index
    %c0_272 = arith.constant 0 : index
    %c0_273 = arith.constant 0 : index
    %521 = vector.load %arg10[%c5_271, %c0_272, %c0_273] : memref<8x96x64xbf16, #tpu.memory_space<vmem>>, vector<1x96x64xbf16>
    %522 = vector.shape_cast %521 : vector<1x96x64xbf16> to vector<96x64xbf16>
    %523 = arith.truncf %520 : vector<16x32xf32> to vector<16x32xbf16>
    %524 = vector.extract_strided_slice %522 {offsets = [32, 0], sizes = [32, 64], strides = [1, 1]} : vector<96x64xbf16> to vector<32x64xbf16>
    %cst_274 = arith.constant dense<0.000000e+00> : vector<16x64xf32>
    %525 = tpu.matmul %523, %524, %cst_274 {dimension_numbers = #tpu.dot_dimension_numbers<[1], [0], [0], [1], [0, 0, 1, 1], [], []>} : vector<16x32xbf16>, vector<32x64xbf16>, vector<16x64xf32> -> vector<16x64xf32>
    %c5_275 = arith.constant 5 : index
    %c0_276 = arith.constant 0 : index
    %c0_277 = arith.constant 0 : index
    %526 = vector.load %arg11[%c5_275, %c0_276, %c0_277] : memref<8x1x64xf32, #tpu.memory_space<vmem>>, vector<1x1x64xf32>
    %527 = vector.shape_cast %526 : vector<1x1x64xf32> to vector<1x64xf32>
    %528 = vector.broadcast %527 : vector<1x64xf32> to vector<16x64xf32>
    %529 = arith.addf %525, %528 : vector<16x64xf32>
    %530 = vector.extract_strided_slice %529 {offsets = [0, 0], sizes = [16, 32], strides = [1, 1]} : vector<16x64xf32> to vector<16x32xf32>
    %531 = math.tanh %530 : vector<16x32xf32>
    %532 = vector.extract_strided_slice %529 {offsets = [0, 32], sizes = [16, 32], strides = [1, 1]} : vector<16x64xf32> to vector<16x32xf32>
    %533 = arith.negf %532 : vector<16x32xf32>
    %534 = math.exp %533 : vector<16x32xf32>
    %cst_278 = arith.constant 1.000000e+00 : f32
    %535 = vector.broadcast %cst_278 : f32 to vector<16x32xf32>
    %536 = arith.addf %535, %534 : vector<16x32xf32>
    %537 = arith.divf %535, %536 : vector<16x32xf32>
    %538 = arith.mulf %531, %537 : vector<16x32xf32>
    %539 = arith.truncf %538 : vector<16x32xf32> to vector<16x32xbf16>
    %c5_279 = arith.constant 5 : index
    %c0_280 = arith.constant 0 : index
    %c0_281 = arith.constant 0 : index
    %540 = vector.load %arg12[%c5_279, %c0_280, %c0_281] : memref<8x32x32xbf16, #tpu.memory_space<vmem>>, vector<1x32x32xbf16>
    %541 = vector.shape_cast %540 : vector<1x32x32xbf16> to vector<32x32xbf16>
    %cst_282 = arith.constant dense<0.000000e+00> : vector<16x32xf32>
    %542 = tpu.matmul %539, %541, %cst_282 {dimension_numbers = #tpu.dot_dimension_numbers<[1], [0], [0], [1], [0, 0, 1, 1], [], []>} : vector<16x32xbf16>, vector<32x32xbf16>, vector<16x32xf32> -> vector<16x32xf32>
    %543 = arith.addf %520, %542 : vector<16x32xf32>
    %c5_283 = arith.constant 5 : index
    %c0_284 = arith.constant 0 : index
    %c0_285 = arith.constant 0 : index
    %544 = vector.load %arg13[%c5_283, %c0_284, %c0_285] : memref<8x1x32xf32, #tpu.memory_space<vmem>>, vector<1x1x32xf32>
    %545 = vector.shape_cast %544 : vector<1x1x32xf32> to vector<1x32xf32>
    %546 = vector.broadcast %545 : vector<1x32xf32> to vector<16x32xf32>
    %547 = arith.addf %543, %546 : vector<16x32xf32>
    %c6_286 = arith.constant 6 : index
    %c0_287 = arith.constant 0 : index
    %c0_288 = arith.constant 0 : index
    %548 = vector.load %arg10[%c6_286, %c0_287, %c0_288] : memref<8x96x64xbf16, #tpu.memory_space<vmem>>, vector<1x96x64xbf16>
    %549 = vector.shape_cast %548 : vector<1x96x64xbf16> to vector<96x64xbf16>
    %550 = arith.truncf %547 : vector<16x32xf32> to vector<16x32xbf16>
    %551 = vector.extract_strided_slice %549 {offsets = [32, 0], sizes = [32, 64], strides = [1, 1]} : vector<96x64xbf16> to vector<32x64xbf16>
    %cst_289 = arith.constant dense<0.000000e+00> : vector<16x64xf32>
    %552 = tpu.matmul %550, %551, %cst_289 {dimension_numbers = #tpu.dot_dimension_numbers<[1], [0], [0], [1], [0, 0, 1, 1], [], []>} : vector<16x32xbf16>, vector<32x64xbf16>, vector<16x64xf32> -> vector<16x64xf32>
    %c6_290 = arith.constant 6 : index
    %c0_291 = arith.constant 0 : index
    %c0_292 = arith.constant 0 : index
    %553 = vector.load %arg11[%c6_290, %c0_291, %c0_292] : memref<8x1x64xf32, #tpu.memory_space<vmem>>, vector<1x1x64xf32>
    %554 = vector.shape_cast %553 : vector<1x1x64xf32> to vector<1x64xf32>
    %555 = vector.broadcast %554 : vector<1x64xf32> to vector<16x64xf32>
    %556 = arith.addf %552, %555 : vector<16x64xf32>
    %557 = vector.extract_strided_slice %556 {offsets = [0, 0], sizes = [16, 32], strides = [1, 1]} : vector<16x64xf32> to vector<16x32xf32>
    %558 = math.tanh %557 : vector<16x32xf32>
    %559 = vector.extract_strided_slice %556 {offsets = [0, 32], sizes = [16, 32], strides = [1, 1]} : vector<16x64xf32> to vector<16x32xf32>
    %560 = arith.negf %559 : vector<16x32xf32>
    %561 = math.exp %560 : vector<16x32xf32>
    %cst_293 = arith.constant 1.000000e+00 : f32
    %562 = vector.broadcast %cst_293 : f32 to vector<16x32xf32>
    %563 = arith.addf %562, %561 : vector<16x32xf32>
    %564 = arith.divf %562, %563 : vector<16x32xf32>
    %565 = arith.mulf %558, %564 : vector<16x32xf32>
    %566 = arith.truncf %565 : vector<16x32xf32> to vector<16x32xbf16>
    %c6_294 = arith.constant 6 : index
    %c0_295 = arith.constant 0 : index
    %c0_296 = arith.constant 0 : index
    %567 = vector.load %arg12[%c6_294, %c0_295, %c0_296] : memref<8x32x32xbf16, #tpu.memory_space<vmem>>, vector<1x32x32xbf16>
    %568 = vector.shape_cast %567 : vector<1x32x32xbf16> to vector<32x32xbf16>
    %cst_297 = arith.constant dense<0.000000e+00> : vector<16x32xf32>
    %569 = tpu.matmul %566, %568, %cst_297 {dimension_numbers = #tpu.dot_dimension_numbers<[1], [0], [0], [1], [0, 0, 1, 1], [], []>} : vector<16x32xbf16>, vector<32x32xbf16>, vector<16x32xf32> -> vector<16x32xf32>
    %570 = arith.addf %547, %569 : vector<16x32xf32>
    %c6_298 = arith.constant 6 : index
    %c0_299 = arith.constant 0 : index
    %c0_300 = arith.constant 0 : index
    %571 = vector.load %arg13[%c6_298, %c0_299, %c0_300] : memref<8x1x32xf32, #tpu.memory_space<vmem>>, vector<1x1x32xf32>
    %572 = vector.shape_cast %571 : vector<1x1x32xf32> to vector<1x32xf32>
    %573 = vector.broadcast %572 : vector<1x32xf32> to vector<16x32xf32>
    %574 = arith.addf %570, %573 : vector<16x32xf32>
    %c7_301 = arith.constant 7 : index
    %c0_302 = arith.constant 0 : index
    %c0_303 = arith.constant 0 : index
    %575 = vector.load %arg10[%c7_301, %c0_302, %c0_303] : memref<8x96x64xbf16, #tpu.memory_space<vmem>>, vector<1x96x64xbf16>
    %576 = vector.shape_cast %575 : vector<1x96x64xbf16> to vector<96x64xbf16>
    %577 = arith.truncf %574 : vector<16x32xf32> to vector<16x32xbf16>
    %578 = vector.extract_strided_slice %576 {offsets = [32, 0], sizes = [32, 64], strides = [1, 1]} : vector<96x64xbf16> to vector<32x64xbf16>
    %cst_304 = arith.constant dense<0.000000e+00> : vector<16x64xf32>
    %579 = tpu.matmul %577, %578, %cst_304 {dimension_numbers = #tpu.dot_dimension_numbers<[1], [0], [0], [1], [0, 0, 1, 1], [], []>} : vector<16x32xbf16>, vector<32x64xbf16>, vector<16x64xf32> -> vector<16x64xf32>
    %c7_305 = arith.constant 7 : index
    %c0_306 = arith.constant 0 : index
    %c0_307 = arith.constant 0 : index
    %580 = vector.load %arg11[%c7_305, %c0_306, %c0_307] : memref<8x1x64xf32, #tpu.memory_space<vmem>>, vector<1x1x64xf32>
    %581 = vector.shape_cast %580 : vector<1x1x64xf32> to vector<1x64xf32>
    %582 = vector.broadcast %581 : vector<1x64xf32> to vector<16x64xf32>
    %583 = arith.addf %579, %582 : vector<16x64xf32>
    %584 = vector.extract_strided_slice %583 {offsets = [0, 0], sizes = [16, 32], strides = [1, 1]} : vector<16x64xf32> to vector<16x32xf32>
    %585 = math.tanh %584 : vector<16x32xf32>
    %586 = vector.extract_strided_slice %583 {offsets = [0, 32], sizes = [16, 32], strides = [1, 1]} : vector<16x64xf32> to vector<16x32xf32>
    %587 = arith.negf %586 : vector<16x32xf32>
    %588 = math.exp %587 : vector<16x32xf32>
    %cst_308 = arith.constant 1.000000e+00 : f32
    %589 = vector.broadcast %cst_308 : f32 to vector<16x32xf32>
    %590 = arith.addf %589, %588 : vector<16x32xf32>
    %591 = arith.divf %589, %590 : vector<16x32xf32>
    %592 = arith.mulf %585, %591 : vector<16x32xf32>
    %593 = arith.truncf %592 : vector<16x32xf32> to vector<16x32xbf16>
    %c7_309 = arith.constant 7 : index
    %c0_310 = arith.constant 0 : index
    %c0_311 = arith.constant 0 : index
    %594 = vector.load %arg12[%c7_309, %c0_310, %c0_311] : memref<8x32x32xbf16, #tpu.memory_space<vmem>>, vector<1x32x32xbf16>
    %595 = vector.shape_cast %594 : vector<1x32x32xbf16> to vector<32x32xbf16>
    %cst_312 = arith.constant dense<0.000000e+00> : vector<16x32xf32>
    %596 = tpu.matmul %593, %595, %cst_312 {dimension_numbers = #tpu.dot_dimension_numbers<[1], [0], [0], [1], [0, 0, 1, 1], [], []>} : vector<16x32xbf16>, vector<32x32xbf16>, vector<16x32xf32> -> vector<16x32xf32>
    %597 = arith.addf %574, %596 : vector<16x32xf32>
    %c7_313 = arith.constant 7 : index
    %c0_314 = arith.constant 0 : index
    %c0_315 = arith.constant 0 : index
    %598 = vector.load %arg13[%c7_313, %c0_314, %c0_315] : memref<8x1x32xf32, #tpu.memory_space<vmem>>, vector<1x1x32xf32>
    %599 = vector.shape_cast %598 : vector<1x1x32xf32> to vector<1x32xf32>
    %600 = vector.broadcast %599 : vector<1x32xf32> to vector<16x32xf32>
    %601 = arith.addf %597, %600 : vector<16x32xf32>
    %602 = arith.truncf %601 : vector<16x32xf32> to vector<16x32xbf16>
    %c0_316 = arith.constant 0 : index
    %c0_317 = arith.constant 0 : index
    %603 = vector.load %arg14[%c0_316, %c0_317] : memref<32x64xbf16, #tpu.memory_space<vmem>>, vector<32x64xbf16>
    %cst_318 = arith.constant dense<0.000000e+00> : vector<16x64xf32>
    %604 = tpu.matmul %602, %603, %cst_318 {dimension_numbers = #tpu.dot_dimension_numbers<[1], [0], [0], [1], [0, 0, 1, 1], [], []>} : vector<16x32xbf16>, vector<32x64xbf16>, vector<16x64xf32> -> vector<16x64xf32>
    %c0_319 = arith.constant 0 : index
    %c0_320 = arith.constant 0 : index
    %605 = vector.load %arg15[%c0_319, %c0_320] : memref<1x64xf32, #tpu.memory_space<vmem>>, vector<1x64xf32>
    %606 = vector.broadcast %605 : vector<1x64xf32> to vector<16x64xf32>
    %607 = arith.addf %604, %606 : vector<16x64xf32>
    %c0_321 = arith.constant 0 : index
    %c0_322 = arith.constant 0 : index
    %c0_323 = arith.constant 0 : index
    %608 = vector.load %arg16[%c0_321, %c0_322, %c0_323] : memref<4x192x128xbf16, #tpu.memory_space<vmem>>, vector<1x192x128xbf16>
    %609 = vector.shape_cast %608 : vector<1x192x128xbf16> to vector<192x128xbf16>
    %cst_324 = arith.constant 0.000000e+00 : f32
    %610 = vector.broadcast %cst_324 : f32 to vector<1x64xf32>
    %611 = vector.extract_strided_slice %607 {offsets = [0, 0], sizes = [15, 64], strides = [1, 1]} : vector<16x64xf32> to vector<15x64xf32>
    %612 = tpu.concatenate %610, %611 in 0 : vector<1x64xf32>, vector<15x64xf32> -> vector<16x64xf32>
    %613 = vector.extract_strided_slice %607 {offsets = [1, 0], sizes = [15, 64], strides = [1, 1]} : vector<16x64xf32> to vector<15x64xf32>
    %cst_325 = arith.constant 0.000000e+00 : f32
    %614 = vector.broadcast %cst_325 : f32 to vector<1x64xf32>
    %615 = tpu.concatenate %613, %614 in 0 : vector<15x64xf32>, vector<1x64xf32> -> vector<16x64xf32>
    %616 = tpu.concatenate %612, %607, %615 in 1 : vector<16x64xf32>, vector<16x64xf32>, vector<16x64xf32> -> vector<16x192xf32>
    %617 = arith.truncf %616 : vector<16x192xf32> to vector<16x192xbf16>
    %cst_326 = arith.constant dense<0.000000e+00> : vector<16x128xf32>
    %618 = tpu.matmul %617, %609, %cst_326 {dimension_numbers = #tpu.dot_dimension_numbers<[1], [0], [0], [1], [0, 0, 1, 1], [], []>} : vector<16x192xbf16>, vector<192x128xbf16>, vector<16x128xf32> -> vector<16x128xf32>
    %c0_327 = arith.constant 0 : index
    %c0_328 = arith.constant 0 : index
    %c0_329 = arith.constant 0 : index
    %619 = vector.load %arg17[%c0_327, %c0_328, %c0_329] : memref<4x1x128xf32, #tpu.memory_space<vmem>>, vector<1x1x128xf32>
    %620 = vector.shape_cast %619 : vector<1x1x128xf32> to vector<1x128xf32>
    %621 = vector.broadcast %620 : vector<1x128xf32> to vector<16x128xf32>
    %622 = arith.addf %618, %621 : vector<16x128xf32>
    %623 = vector.extract_strided_slice %622 {offsets = [0, 0], sizes = [16, 64], strides = [1, 1]} : vector<16x128xf32> to vector<16x64xf32>
    %624 = math.tanh %623 : vector<16x64xf32>
    %625 = vector.extract_strided_slice %622 {offsets = [0, 64], sizes = [16, 64], strides = [1, 1]} : vector<16x128xf32> to vector<16x64xf32>
    %626 = arith.negf %625 : vector<16x64xf32>
    %627 = math.exp %626 : vector<16x64xf32>
    %cst_330 = arith.constant 1.000000e+00 : f32
    %628 = vector.broadcast %cst_330 : f32 to vector<16x64xf32>
    %629 = arith.addf %628, %627 : vector<16x64xf32>
    %630 = arith.divf %628, %629 : vector<16x64xf32>
    %631 = arith.mulf %624, %630 : vector<16x64xf32>
    %632 = arith.truncf %631 : vector<16x64xf32> to vector<16x64xbf16>
    %c0_331 = arith.constant 0 : index
    %c0_332 = arith.constant 0 : index
    %c0_333 = arith.constant 0 : index
    %633 = vector.load %arg18[%c0_331, %c0_332, %c0_333] : memref<4x64x64xbf16, #tpu.memory_space<vmem>>, vector<1x64x64xbf16>
    %634 = vector.shape_cast %633 : vector<1x64x64xbf16> to vector<64x64xbf16>
    %cst_334 = arith.constant dense<0.000000e+00> : vector<16x64xf32>
    %635 = tpu.matmul %632, %634, %cst_334 {dimension_numbers = #tpu.dot_dimension_numbers<[1], [0], [0], [1], [0, 0, 1, 1], [], []>} : vector<16x64xbf16>, vector<64x64xbf16>, vector<16x64xf32> -> vector<16x64xf32>
    %636 = arith.addf %607, %635 : vector<16x64xf32>
    %c0_335 = arith.constant 0 : index
    %c0_336 = arith.constant 0 : index
    %c0_337 = arith.constant 0 : index
    %637 = vector.load %arg19[%c0_335, %c0_336, %c0_337] : memref<4x1x64xf32, #tpu.memory_space<vmem>>, vector<1x1x64xf32>
    %638 = vector.shape_cast %637 : vector<1x1x64xf32> to vector<1x64xf32>
    %639 = vector.broadcast %638 : vector<1x64xf32> to vector<16x64xf32>
    %640 = arith.addf %636, %639 : vector<16x64xf32>
    %c1_338 = arith.constant 1 : index
    %c0_339 = arith.constant 0 : index
    %c0_340 = arith.constant 0 : index
    %641 = vector.load %arg16[%c1_338, %c0_339, %c0_340] : memref<4x192x128xbf16, #tpu.memory_space<vmem>>, vector<1x192x128xbf16>
    %642 = vector.shape_cast %641 : vector<1x192x128xbf16> to vector<192x128xbf16>
    %cst_341 = arith.constant 0.000000e+00 : f32
    %643 = vector.broadcast %cst_341 : f32 to vector<2x64xf32>
    %644 = vector.extract_strided_slice %640 {offsets = [0, 0], sizes = [14, 64], strides = [1, 1]} : vector<16x64xf32> to vector<14x64xf32>
    %645 = tpu.concatenate %643, %644 in 0 : vector<2x64xf32>, vector<14x64xf32> -> vector<16x64xf32>
    %646 = vector.extract_strided_slice %640 {offsets = [2, 0], sizes = [14, 64], strides = [1, 1]} : vector<16x64xf32> to vector<14x64xf32>
    %cst_342 = arith.constant 0.000000e+00 : f32
    %647 = vector.broadcast %cst_342 : f32 to vector<2x64xf32>
    %648 = tpu.concatenate %646, %647 in 0 : vector<14x64xf32>, vector<2x64xf32> -> vector<16x64xf32>
    %649 = tpu.concatenate %645, %640, %648 in 1 : vector<16x64xf32>, vector<16x64xf32>, vector<16x64xf32> -> vector<16x192xf32>
    %650 = arith.truncf %649 : vector<16x192xf32> to vector<16x192xbf16>
    %cst_343 = arith.constant dense<0.000000e+00> : vector<16x128xf32>
    %651 = tpu.matmul %650, %642, %cst_343 {dimension_numbers = #tpu.dot_dimension_numbers<[1], [0], [0], [1], [0, 0, 1, 1], [], []>} : vector<16x192xbf16>, vector<192x128xbf16>, vector<16x128xf32> -> vector<16x128xf32>
    %c1_344 = arith.constant 1 : index
    %c0_345 = arith.constant 0 : index
    %c0_346 = arith.constant 0 : index
    %652 = vector.load %arg17[%c1_344, %c0_345, %c0_346] : memref<4x1x128xf32, #tpu.memory_space<vmem>>, vector<1x1x128xf32>
    %653 = vector.shape_cast %652 : vector<1x1x128xf32> to vector<1x128xf32>
    %654 = vector.broadcast %653 : vector<1x128xf32> to vector<16x128xf32>
    %655 = arith.addf %651, %654 : vector<16x128xf32>
    %656 = vector.extract_strided_slice %655 {offsets = [0, 0], sizes = [16, 64], strides = [1, 1]} : vector<16x128xf32> to vector<16x64xf32>
    %657 = math.tanh %656 : vector<16x64xf32>
    %658 = vector.extract_strided_slice %655 {offsets = [0, 64], sizes = [16, 64], strides = [1, 1]} : vector<16x128xf32> to vector<16x64xf32>
    %659 = arith.negf %658 : vector<16x64xf32>
    %660 = math.exp %659 : vector<16x64xf32>
    %cst_347 = arith.constant 1.000000e+00 : f32
    %661 = vector.broadcast %cst_347 : f32 to vector<16x64xf32>
    %662 = arith.addf %661, %660 : vector<16x64xf32>
    %663 = arith.divf %661, %662 : vector<16x64xf32>
    %664 = arith.mulf %657, %663 : vector<16x64xf32>
    %665 = arith.truncf %664 : vector<16x64xf32> to vector<16x64xbf16>
    %c1_348 = arith.constant 1 : index
    %c0_349 = arith.constant 0 : index
    %c0_350 = arith.constant 0 : index
    %666 = vector.load %arg18[%c1_348, %c0_349, %c0_350] : memref<4x64x64xbf16, #tpu.memory_space<vmem>>, vector<1x64x64xbf16>
    %667 = vector.shape_cast %666 : vector<1x64x64xbf16> to vector<64x64xbf16>
    %cst_351 = arith.constant dense<0.000000e+00> : vector<16x64xf32>
    %668 = tpu.matmul %665, %667, %cst_351 {dimension_numbers = #tpu.dot_dimension_numbers<[1], [0], [0], [1], [0, 0, 1, 1], [], []>} : vector<16x64xbf16>, vector<64x64xbf16>, vector<16x64xf32> -> vector<16x64xf32>
    %669 = arith.addf %640, %668 : vector<16x64xf32>
    %c1_352 = arith.constant 1 : index
    %c0_353 = arith.constant 0 : index
    %c0_354 = arith.constant 0 : index
    %670 = vector.load %arg19[%c1_352, %c0_353, %c0_354] : memref<4x1x64xf32, #tpu.memory_space<vmem>>, vector<1x1x64xf32>
    %671 = vector.shape_cast %670 : vector<1x1x64xf32> to vector<1x64xf32>
    %672 = vector.broadcast %671 : vector<1x64xf32> to vector<16x64xf32>
    %673 = arith.addf %669, %672 : vector<16x64xf32>
    %c2_355 = arith.constant 2 : index
    %c0_356 = arith.constant 0 : index
    %c0_357 = arith.constant 0 : index
    %674 = vector.load %arg16[%c2_355, %c0_356, %c0_357] : memref<4x192x128xbf16, #tpu.memory_space<vmem>>, vector<1x192x128xbf16>
    %675 = vector.shape_cast %674 : vector<1x192x128xbf16> to vector<192x128xbf16>
    %cst_358 = arith.constant 0.000000e+00 : f32
    %676 = vector.broadcast %cst_358 : f32 to vector<4x64xf32>
    %677 = vector.extract_strided_slice %673 {offsets = [0, 0], sizes = [12, 64], strides = [1, 1]} : vector<16x64xf32> to vector<12x64xf32>
    %678 = tpu.concatenate %676, %677 in 0 : vector<4x64xf32>, vector<12x64xf32> -> vector<16x64xf32>
    %679 = vector.extract_strided_slice %673 {offsets = [4, 0], sizes = [12, 64], strides = [1, 1]} : vector<16x64xf32> to vector<12x64xf32>
    %cst_359 = arith.constant 0.000000e+00 : f32
    %680 = vector.broadcast %cst_359 : f32 to vector<4x64xf32>
    %681 = tpu.concatenate %679, %680 in 0 : vector<12x64xf32>, vector<4x64xf32> -> vector<16x64xf32>
    %682 = tpu.concatenate %678, %673, %681 in 1 : vector<16x64xf32>, vector<16x64xf32>, vector<16x64xf32> -> vector<16x192xf32>
    %683 = arith.truncf %682 : vector<16x192xf32> to vector<16x192xbf16>
    %cst_360 = arith.constant dense<0.000000e+00> : vector<16x128xf32>
    %684 = tpu.matmul %683, %675, %cst_360 {dimension_numbers = #tpu.dot_dimension_numbers<[1], [0], [0], [1], [0, 0, 1, 1], [], []>} : vector<16x192xbf16>, vector<192x128xbf16>, vector<16x128xf32> -> vector<16x128xf32>
    %c2_361 = arith.constant 2 : index
    %c0_362 = arith.constant 0 : index
    %c0_363 = arith.constant 0 : index
    %685 = vector.load %arg17[%c2_361, %c0_362, %c0_363] : memref<4x1x128xf32, #tpu.memory_space<vmem>>, vector<1x1x128xf32>
    %686 = vector.shape_cast %685 : vector<1x1x128xf32> to vector<1x128xf32>
    %687 = vector.broadcast %686 : vector<1x128xf32> to vector<16x128xf32>
    %688 = arith.addf %684, %687 : vector<16x128xf32>
    %689 = vector.extract_strided_slice %688 {offsets = [0, 0], sizes = [16, 64], strides = [1, 1]} : vector<16x128xf32> to vector<16x64xf32>
    %690 = math.tanh %689 : vector<16x64xf32>
    %691 = vector.extract_strided_slice %688 {offsets = [0, 64], sizes = [16, 64], strides = [1, 1]} : vector<16x128xf32> to vector<16x64xf32>
    %692 = arith.negf %691 : vector<16x64xf32>
    %693 = math.exp %692 : vector<16x64xf32>
    %cst_364 = arith.constant 1.000000e+00 : f32
    %694 = vector.broadcast %cst_364 : f32 to vector<16x64xf32>
    %695 = arith.addf %694, %693 : vector<16x64xf32>
    %696 = arith.divf %694, %695 : vector<16x64xf32>
    %697 = arith.mulf %690, %696 : vector<16x64xf32>
    %698 = arith.truncf %697 : vector<16x64xf32> to vector<16x64xbf16>
    %c2_365 = arith.constant 2 : index
    %c0_366 = arith.constant 0 : index
    %c0_367 = arith.constant 0 : index
    %699 = vector.load %arg18[%c2_365, %c0_366, %c0_367] : memref<4x64x64xbf16, #tpu.memory_space<vmem>>, vector<1x64x64xbf16>
    %700 = vector.shape_cast %699 : vector<1x64x64xbf16> to vector<64x64xbf16>
    %cst_368 = arith.constant dense<0.000000e+00> : vector<16x64xf32>
    %701 = tpu.matmul %698, %700, %cst_368 {dimension_numbers = #tpu.dot_dimension_numbers<[1], [0], [0], [1], [0, 0, 1, 1], [], []>} : vector<16x64xbf16>, vector<64x64xbf16>, vector<16x64xf32> -> vector<16x64xf32>
    %702 = arith.addf %673, %701 : vector<16x64xf32>
    %c2_369 = arith.constant 2 : index
    %c0_370 = arith.constant 0 : index
    %c0_371 = arith.constant 0 : index
    %703 = vector.load %arg19[%c2_369, %c0_370, %c0_371] : memref<4x1x64xf32, #tpu.memory_space<vmem>>, vector<1x1x64xf32>
    %704 = vector.shape_cast %703 : vector<1x1x64xf32> to vector<1x64xf32>
    %705 = vector.broadcast %704 : vector<1x64xf32> to vector<16x64xf32>
    %706 = arith.addf %702, %705 : vector<16x64xf32>
    %c3_372 = arith.constant 3 : index
    %c0_373 = arith.constant 0 : index
    %c0_374 = arith.constant 0 : index
    %707 = vector.load %arg16[%c3_372, %c0_373, %c0_374] : memref<4x192x128xbf16, #tpu.memory_space<vmem>>, vector<1x192x128xbf16>
    %708 = vector.shape_cast %707 : vector<1x192x128xbf16> to vector<192x128xbf16>
    %cst_375 = arith.constant 0.000000e+00 : f32
    %709 = vector.broadcast %cst_375 : f32 to vector<8x64xf32>
    %710 = vector.extract_strided_slice %706 {offsets = [0, 0], sizes = [8, 64], strides = [1, 1]} : vector<16x64xf32> to vector<8x64xf32>
    %711 = tpu.concatenate %709, %710 in 0 : vector<8x64xf32>, vector<8x64xf32> -> vector<16x64xf32>
    %712 = vector.extract_strided_slice %706 {offsets = [8, 0], sizes = [8, 64], strides = [1, 1]} : vector<16x64xf32> to vector<8x64xf32>
    %cst_376 = arith.constant 0.000000e+00 : f32
    %713 = vector.broadcast %cst_376 : f32 to vector<8x64xf32>
    %714 = tpu.concatenate %712, %713 in 0 : vector<8x64xf32>, vector<8x64xf32> -> vector<16x64xf32>
    %715 = tpu.concatenate %711, %706, %714 in 1 : vector<16x64xf32>, vector<16x64xf32>, vector<16x64xf32> -> vector<16x192xf32>
    %716 = arith.truncf %715 : vector<16x192xf32> to vector<16x192xbf16>
    %cst_377 = arith.constant dense<0.000000e+00> : vector<16x128xf32>
    %717 = tpu.matmul %716, %708, %cst_377 {dimension_numbers = #tpu.dot_dimension_numbers<[1], [0], [0], [1], [0, 0, 1, 1], [], []>} : vector<16x192xbf16>, vector<192x128xbf16>, vector<16x128xf32> -> vector<16x128xf32>
    %c3_378 = arith.constant 3 : index
    %c0_379 = arith.constant 0 : index
    %c0_380 = arith.constant 0 : index
    %718 = vector.load %arg17[%c3_378, %c0_379, %c0_380] : memref<4x1x128xf32, #tpu.memory_space<vmem>>, vector<1x1x128xf32>
    %719 = vector.shape_cast %718 : vector<1x1x128xf32> to vector<1x128xf32>
    %720 = vector.broadcast %719 : vector<1x128xf32> to vector<16x128xf32>
    %721 = arith.addf %717, %720 : vector<16x128xf32>
    %722 = vector.extract_strided_slice %721 {offsets = [0, 0], sizes = [16, 64], strides = [1, 1]} : vector<16x128xf32> to vector<16x64xf32>
    %723 = math.tanh %722 : vector<16x64xf32>
    %724 = vector.extract_strided_slice %721 {offsets = [0, 64], sizes = [16, 64], strides = [1, 1]} : vector<16x128xf32> to vector<16x64xf32>
    %725 = arith.negf %724 : vector<16x64xf32>
    %726 = math.exp %725 : vector<16x64xf32>
    %cst_381 = arith.constant 1.000000e+00 : f32
    %727 = vector.broadcast %cst_381 : f32 to vector<16x64xf32>
    %728 = arith.addf %727, %726 : vector<16x64xf32>
    %729 = arith.divf %727, %728 : vector<16x64xf32>
    %730 = arith.mulf %723, %729 : vector<16x64xf32>
    %731 = arith.truncf %730 : vector<16x64xf32> to vector<16x64xbf16>
    %c3_382 = arith.constant 3 : index
    %c0_383 = arith.constant 0 : index
    %c0_384 = arith.constant 0 : index
    %732 = vector.load %arg18[%c3_382, %c0_383, %c0_384] : memref<4x64x64xbf16, #tpu.memory_space<vmem>>, vector<1x64x64xbf16>
    %733 = vector.shape_cast %732 : vector<1x64x64xbf16> to vector<64x64xbf16>
    %cst_385 = arith.constant dense<0.000000e+00> : vector<16x64xf32>
    %734 = tpu.matmul %731, %733, %cst_385 {dimension_numbers = #tpu.dot_dimension_numbers<[1], [0], [0], [1], [0, 0, 1, 1], [], []>} : vector<16x64xbf16>, vector<64x64xbf16>, vector<16x64xf32> -> vector<16x64xf32>
    %735 = arith.addf %706, %734 : vector<16x64xf32>
    %c3_386 = arith.constant 3 : index
    %c0_387 = arith.constant 0 : index
    %c0_388 = arith.constant 0 : index
    %736 = vector.load %arg19[%c3_386, %c0_387, %c0_388] : memref<4x1x64xf32, #tpu.memory_space<vmem>>, vector<1x1x64xf32>
    %737 = vector.shape_cast %736 : vector<1x1x64xf32> to vector<1x64xf32>
    %738 = vector.broadcast %737 : vector<1x64xf32> to vector<16x64xf32>
    %739 = arith.addf %735, %738 : vector<16x64xf32>
    %740 = arith.truncf %739 : vector<16x64xf32> to vector<16x64xbf16>
    %c0_389 = arith.constant 0 : index
    %c0_390 = arith.constant 0 : index
    %741 = vector.load %arg20[%c0_389, %c0_390] : memref<64x128xbf16, #tpu.memory_space<vmem>>, vector<64x128xbf16>
    %cst_391 = arith.constant dense<0.000000e+00> : vector<16x128xf32>
    %742 = tpu.matmul %740, %741, %cst_391 {dimension_numbers = #tpu.dot_dimension_numbers<[1], [0], [0], [1], [0, 0, 1, 1], [], []>} : vector<16x64xbf16>, vector<64x128xbf16>, vector<16x128xf32> -> vector<16x128xf32>
    %c0_392 = arith.constant 0 : index
    %c0_393 = arith.constant 0 : index
    %743 = vector.load %arg21[%c0_392, %c0_393] : memref<1x128xf32, #tpu.memory_space<vmem>>, vector<1x128xf32>
    %744 = vector.broadcast %743 : vector<1x128xf32> to vector<16x128xf32>
    %745 = arith.addf %742, %744 : vector<16x128xf32>
    %c0_394 = arith.constant 0 : index
    %c0_395 = arith.constant 0 : index
    %c0_396 = arith.constant 0 : index
    %746 = vector.load %arg22[%c0_394, %c0_395, %c0_396] : memref<1x384x256xbf16, #tpu.memory_space<vmem>>, vector<1x384x256xbf16>
    %747 = vector.shape_cast %746 : vector<1x384x256xbf16> to vector<384x256xbf16>
    %cst_397 = arith.constant 0.000000e+00 : f32
    %748 = vector.broadcast %cst_397 : f32 to vector<1x128xf32>
    %749 = vector.extract_strided_slice %745 {offsets = [0, 0], sizes = [15, 128], strides = [1, 1]} : vector<16x128xf32> to vector<15x128xf32>
    %750 = tpu.concatenate %748, %749 in 0 : vector<1x128xf32>, vector<15x128xf32> -> vector<16x128xf32>
    %751 = vector.extract_strided_slice %745 {offsets = [1, 0], sizes = [15, 128], strides = [1, 1]} : vector<16x128xf32> to vector<15x128xf32>
    %cst_398 = arith.constant 0.000000e+00 : f32
    %752 = vector.broadcast %cst_398 : f32 to vector<1x128xf32>
    %753 = tpu.concatenate %751, %752 in 0 : vector<15x128xf32>, vector<1x128xf32> -> vector<16x128xf32>
    %754 = tpu.concatenate %750, %745, %753 in 1 : vector<16x128xf32>, vector<16x128xf32>, vector<16x128xf32> -> vector<16x384xf32>
    %755 = arith.truncf %754 : vector<16x384xf32> to vector<16x384xbf16>
    %cst_399 = arith.constant dense<0.000000e+00> : vector<16x256xf32>
    %756 = tpu.matmul %755, %747, %cst_399 {dimension_numbers = #tpu.dot_dimension_numbers<[1], [0], [0], [1], [0, 0, 1, 1], [], []>} : vector<16x384xbf16>, vector<384x256xbf16>, vector<16x256xf32> -> vector<16x256xf32>
    %c0_400 = arith.constant 0 : index
    %c0_401 = arith.constant 0 : index
    %c0_402 = arith.constant 0 : index
    %757 = vector.load %arg23[%c0_400, %c0_401, %c0_402] : memref<1x1x256xf32, #tpu.memory_space<vmem>>, vector<1x1x256xf32>
    %758 = vector.shape_cast %757 : vector<1x1x256xf32> to vector<1x256xf32>
    %759 = vector.broadcast %758 : vector<1x256xf32> to vector<16x256xf32>
    %760 = arith.addf %756, %759 : vector<16x256xf32>
    %761 = vector.extract_strided_slice %760 {offsets = [0, 0], sizes = [16, 128], strides = [1, 1]} : vector<16x256xf32> to vector<16x128xf32>
    %762 = math.tanh %761 : vector<16x128xf32>
    %763 = vector.extract_strided_slice %760 {offsets = [0, 128], sizes = [16, 128], strides = [1, 1]} : vector<16x256xf32> to vector<16x128xf32>
    %764 = arith.negf %763 : vector<16x128xf32>
    %765 = math.exp %764 : vector<16x128xf32>
    %cst_403 = arith.constant 1.000000e+00 : f32
    %766 = vector.broadcast %cst_403 : f32 to vector<16x128xf32>
    %767 = arith.addf %766, %765 : vector<16x128xf32>
    %768 = arith.divf %766, %767 : vector<16x128xf32>
    %769 = arith.mulf %762, %768 : vector<16x128xf32>
    %770 = arith.truncf %769 : vector<16x128xf32> to vector<16x128xbf16>
    %c0_404 = arith.constant 0 : index
    %c0_405 = arith.constant 0 : index
    %c0_406 = arith.constant 0 : index
    %771 = vector.load %arg24[%c0_404, %c0_405, %c0_406] : memref<1x128x128xbf16, #tpu.memory_space<vmem>>, vector<1x128x128xbf16>
    %772 = vector.shape_cast %771 : vector<1x128x128xbf16> to vector<128x128xbf16>
    %cst_407 = arith.constant dense<0.000000e+00> : vector<16x128xf32>
    %773 = tpu.matmul %770, %772, %cst_407 {dimension_numbers = #tpu.dot_dimension_numbers<[1], [0], [0], [1], [0, 0, 1, 1], [], []>} : vector<16x128xbf16>, vector<128x128xbf16>, vector<16x128xf32> -> vector<16x128xf32>
    %774 = arith.addf %745, %773 : vector<16x128xf32>
    %c0_408 = arith.constant 0 : index
    %c0_409 = arith.constant 0 : index
    %c0_410 = arith.constant 0 : index
    %775 = vector.load %arg25[%c0_408, %c0_409, %c0_410] : memref<1x1x128xf32, #tpu.memory_space<vmem>>, vector<1x1x128xf32>
    %776 = vector.shape_cast %775 : vector<1x1x128xf32> to vector<1x128xf32>
    %777 = vector.broadcast %776 : vector<1x128xf32> to vector<16x128xf32>
    %778 = arith.addf %774, %777 : vector<16x128xf32>
    %779 = arith.truncf %778 : vector<16x128xf32> to vector<16x128xbf16>
    %c0_411 = arith.constant 0 : index
    %c0_412 = arith.constant 0 : index
    %780 = vector.load %arg26[%c0_411, %c0_412] : memref<128x128xbf16, #tpu.memory_space<vmem>>, vector<128x128xbf16>
    %cst_413 = arith.constant dense<0.000000e+00> : vector<16x128xf32>
    %781 = tpu.matmul %779, %780, %cst_413 {dimension_numbers = #tpu.dot_dimension_numbers<[1], [0], [0], [1], [0, 0, 1, 1], [], []>} : vector<16x128xbf16>, vector<128x128xbf16>, vector<16x128xf32> -> vector<16x128xf32>
    %c0_414 = arith.constant 0 : index
    %c0_415 = arith.constant 0 : index
    %782 = vector.load %arg27[%c0_414, %c0_415] : memref<1x128xf32, #tpu.memory_space<vmem>>, vector<1x128xf32>
    %783 = vector.broadcast %782 : vector<1x128xf32> to vector<16x128xf32>
    %784 = arith.addf %781, %783 : vector<16x128xf32>
    %c0_416 = arith.constant 0 : index
    %c0_417 = arith.constant 0 : index
    %c0_418 = arith.constant 0 : index
    %785 = vector.load %arg28[%c0_416, %c0_417, %c0_418] : memref<1x16x128xf32, #tpu.memory_space<vmem>>, vector<1x16x128xf32>
    %786 = vector.shape_cast %785 : vector<1x16x128xf32> to vector<16x128xf32>
    %787 = vector.shape_cast %784 : vector<16x128xf32> to vector<1x16x128xf32>
    tpu.vector_store %arg28[%c0_416, %c0_417, %c0_418], %787 {strides = array<i32>} : memref<1x16x128xf32, #tpu.memory_space<vmem>>, vector<1x16x128xf32>,
    return
  }
  func.func @transform_0(%arg0: i32) -> (i32, i32, i32) {
    %c0_i32 = arith.constant 0 : i32
    %c0_i32_0 = arith.constant 0 : i32
    %c0_i32_1 = arith.constant 0 : i32
    return %arg0, %c0_i32, %c0_i32_0 : i32, i32, i32
  }
  func.func @transform_1(%arg0: i32) -> (i32, i32) {
    %c0_i32 = arith.constant 0 : i32
    %c0_i32_0 = arith.constant 0 : i32
    %c0_i32_1 = arith.constant 0 : i32
    return %c0_i32, %c0_i32_0 : i32, i32
  }
  func.func @transform_2(%arg0: i32) -> (i32, i32) {
    %c0_i32 = arith.constant 0 : i32
    %c0_i32_0 = arith.constant 0 : i32
    %c0_i32_1 = arith.constant 0 : i32
    return %c0_i32, %c0_i32_0 : i32, i32
  }
  func.func @transform_3(%arg0: i32) -> (i32, i32, i32) {
    %c0_i32 = arith.constant 0 : i32
    %c0_i32_0 = arith.constant 0 : i32
    %c0_i32_1 = arith.constant 0 : i32
    %c0_i32_2 = arith.constant 0 : i32
    return %c0_i32, %c0_i32_0, %c0_i32_1 : i32, i32, i32
  }
  func.func @transform_4(%arg0: i32) -> (i32, i32, i32) {
    %c0_i32 = arith.constant 0 : i32
    %c0_i32_0 = arith.constant 0 : i32
    %c0_i32_1 = arith.constant 0 : i32
    %c0_i32_2 = arith.constant 0 : i32
    return %c0_i32, %c0_i32_0, %c0_i32_1 : i32, i32, i32
  }
  func.func @transform_5(%arg0: i32) -> (i32, i32, i32) {
    %c0_i32 = arith.constant 0 : i32
    %c0_i32_0 = arith.constant 0 : i32
    %c0_i32_1 = arith.constant 0 : i32
    %c0_i32_2 = arith.constant 0 : i32
    return %c0_i32, %c0_i32_0, %c0_i32_1 : i32, i32, i32
  }
  func.func @transform_6(%arg0: i32) -> (i32, i32, i32) {
    %c0_i32 = arith.constant 0 : i32
    %c0_i32_0 = arith.constant 0 : i32
    %c0_i32_1 = arith.constant 0 : i32
    %c0_i32_2 = arith.constant 0 : i32
    return %c0_i32, %c0_i32_0, %c0_i32_1 : i32, i32, i32
  }
  func.func @transform_7(%arg0: i32) -> (i32, i32) {
    %c0_i32 = arith.constant 0 : i32
    %c0_i32_0 = arith.constant 0 : i32
    %c0_i32_1 = arith.constant 0 : i32
    return %c0_i32, %c0_i32_0 : i32, i32
  }
  func.func @transform_8(%arg0: i32) -> (i32, i32) {
    %c0_i32 = arith.constant 0 : i32
    %c0_i32_0 = arith.constant 0 : i32
    %c0_i32_1 = arith.constant 0 : i32
    return %c0_i32, %c0_i32_0 : i32, i32
  }
  func.func @transform_9(%arg0: i32) -> (i32, i32, i32) {
    %c0_i32 = arith.constant 0 : i32
    %c0_i32_0 = arith.constant 0 : i32
    %c0_i32_1 = arith.constant 0 : i32
    %c0_i32_2 = arith.constant 0 : i32
    return %c0_i32, %c0_i32_0, %c0_i32_1 : i32, i32, i32
  }
  func.func @transform_10(%arg0: i32) -> (i32, i32, i32) {
    %c0_i32 = arith.constant 0 : i32
    %c0_i32_0 = arith.constant 0 : i32
    %c0_i32_1 = arith.constant 0 : i32
    %c0_i32_2 = arith.constant 0 : i32
    return %c0_i32, %c0_i32_0, %c0_i32_1 : i32, i32, i32
  }
  func.func @transform_11(%arg0: i32) -> (i32, i32, i32) {
    %c0_i32 = arith.constant 0 : i32
    %c0_i32_0 = arith.constant 0 : i32
    %c0_i32_1 = arith.constant 0 : i32
    %c0_i32_2 = arith.constant 0 : i32
    return %c0_i32, %c0_i32_0, %c0_i32_1 : i32, i32, i32
  }
  func.func @transform_12(%arg0: i32) -> (i32, i32, i32) {
    %c0_i32 = arith.constant 0 : i32
    %c0_i32_0 = arith.constant 0 : i32
    %c0_i32_1 = arith.constant 0 : i32
    %c0_i32_2 = arith.constant 0 : i32
    return %c0_i32, %c0_i32_0, %c0_i32_1 : i32, i32, i32
  }
  func.func @transform_13(%arg0: i32) -> (i32, i32) {
    %c0_i32 = arith.constant 0 : i32
    %c0_i32_0 = arith.constant 0 : i32
    %c0_i32_1 = arith.constant 0 : i32
    return %c0_i32, %c0_i32_0 : i32, i32
  }
  func.func @transform_14(%arg0: i32) -> (i32, i32) {
    %c0_i32 = arith.constant 0 : i32
    %c0_i32_0 = arith.constant 0 : i32
    %c0_i32_1 = arith.constant 0 : i32
    return %c0_i32, %c0_i32_0 : i32, i32
  }
  func.func @transform_15(%arg0: i32) -> (i32, i32, i32) {
    %c0_i32 = arith.constant 0 : i32
    %c0_i32_0 = arith.constant 0 : i32
    %c0_i32_1 = arith.constant 0 : i32
    %c0_i32_2 = arith.constant 0 : i32
    return %c0_i32, %c0_i32_0, %c0_i32_1 : i32, i32, i32
  }
  func.func @transform_16(%arg0: i32) -> (i32, i32, i32) {
    %c0_i32 = arith.constant 0 : i32
    %c0_i32_0 = arith.constant 0 : i32
    %c0_i32_1 = arith.constant 0 : i32
    %c0_i32_2 = arith.constant 0 : i32
    return %c0_i32, %c0_i32_0, %c0_i32_1 : i32, i32, i32
  }
  func.func @transform_17(%arg0: i32) -> (i32, i32, i32) {
    %c0_i32 = arith.constant 0 : i32
    %c0_i32_0 = arith.constant 0 : i32
    %c0_i32_1 = arith.constant 0 : i32
    %c0_i32_2 = arith.constant 0 : i32
    return %c0_i32, %c0_i32_0, %c0_i32_1 : i32, i32, i32
  }
  func.func @transform_18(%arg0: i32) -> (i32, i32, i32) {
    %c0_i32 = arith.constant 0 : i32
    %c0_i32_0 = arith.constant 0 : i32
    %c0_i32_1 = arith.constant 0 : i32
    %c0_i32_2 = arith.constant 0 : i32
    return %c0_i32, %c0_i32_0, %c0_i32_1 : i32, i32, i32
  }
  func.func @transform_19(%arg0: i32) -> (i32, i32) {
    %c0_i32 = arith.constant 0 : i32
    %c0_i32_0 = arith.constant 0 : i32
    %c0_i32_1 = arith.constant 0 : i32
    return %c0_i32, %c0_i32_0 : i32, i32
  }
  func.func @transform_20(%arg0: i32) -> (i32, i32) {
    %c0_i32 = arith.constant 0 : i32
    %c0_i32_0 = arith.constant 0 : i32
    %c0_i32_1 = arith.constant 0 : i32
    return %c0_i32, %c0_i32_0 : i32, i32
  }
  func.func @transform_21(%arg0: i32) -> (i32, i32, i32) {
    %c0_i32 = arith.constant 0 : i32
    %c0_i32_0 = arith.constant 0 : i32
    %c0_i32_1 = arith.constant 0 : i32
    %c0_i32_2 = arith.constant 0 : i32
    return %c0_i32, %c0_i32_0, %c0_i32_1 : i32, i32, i32
  }
  func.func @transform_22(%arg0: i32) -> (i32, i32, i32) {
    %c0_i32 = arith.constant 0 : i32
    %c0_i32_0 = arith.constant 0 : i32
    %c0_i32_1 = arith.constant 0 : i32
    %c0_i32_2 = arith.constant 0 : i32
    return %c0_i32, %c0_i32_0, %c0_i32_1 : i32, i32, i32
  }
  func.func @transform_23(%arg0: i32) -> (i32, i32, i32) {
    %c0_i32 = arith.constant 0 : i32
    %c0_i32_0 = arith.constant 0 : i32
    %c0_i32_1 = arith.constant 0 : i32
    %c0_i32_2 = arith.constant 0 : i32
    return %c0_i32, %c0_i32_0, %c0_i32_1 : i32, i32, i32
  }
  func.func @transform_24(%arg0: i32) -> (i32, i32, i32) {
    %c0_i32 = arith.constant 0 : i32
    %c0_i32_0 = arith.constant 0 : i32
    %c0_i32_1 = arith.constant 0 : i32
    %c0_i32_2 = arith.constant 0 : i32
    return %c0_i32, %c0_i32_0, %c0_i32_1 : i32, i32, i32
  }
  func.func @transform_25(%arg0: i32) -> (i32, i32) {
    %c0_i32 = arith.constant 0 : i32
    %c0_i32_0 = arith.constant 0 : i32
    %c0_i32_1 = arith.constant 0 : i32
    return %c0_i32, %c0_i32_0 : i32, i32
  }
  func.func @transform_26(%arg0: i32) -> (i32, i32) {
    %c0_i32 = arith.constant 0 : i32
    %c0_i32_0 = arith.constant 0 : i32
    %c0_i32_1 = arith.constant 0 : i32
    return %c0_i32, %c0_i32_0 : i32, i32
  }
  func.func @transform_27(%arg0: i32) -> (i32, i32, i32) {
    %c0_i32 = arith.constant 0 : i32
    %c0_i32_0 = arith.constant 0 : i32
    %c0_i32_1 = arith.constant 0 : i32
    return %arg0, %c0_i32, %c0_i32_0 : i32, i32, i32
  }
}

</mosaic_0001>

<llo_original>
// kernel: _lambda_.1
$region0: #{_lambda_.1}
  #allocation0 [shape = 'u32[]', space=smem, size = 0x4, offset = 0x4, fixed_abs, tag = 'smem constant byte address 0x4 - core index']
  #allocation1 [shape = 'u32[144,128]{1,0:T(1,128)}', space=vmem, size = 0x12000, scoped, tag = 'internal scratch']
  %s0 = inlined_call_operand.vmem [shape: f32[2,16,8], index: 0, kind: input, shape index: {}]
  %s1 = inlined_call_operand.hbm [shape: bf16[8,16], index: 1, kind: input, shape index: {}]
  %s2 = inlined_call_operand.hbm [shape: f32[1,16], index: 2, kind: input, shape index: {}]
  %s3 = inlined_call_operand.hbm [shape: bf16[12,48,32], index: 3, kind: input, shape index: {}]
  %s4 = inlined_call_operand.hbm [shape: f32[12,1,32], index: 4, kind: input, shape index: {}]
  %s5 = inlined_call_operand.hbm [shape: bf16[12,16,16], index: 5, kind: input, shape index: {}]
  %s6 = inlined_call_operand.hbm [shape: f32[12,1,16], index: 6, kind: input, shape index: {}]
  %s7 = inlined_call_operand.hbm [shape: bf16[16,32], index: 7, kind: input, shape index: {}]
  %s8 = inlined_call_operand.hbm [shape: f32[1,32], index: 8, kind: input, shape index: {}]
  %s9 = inlined_call_operand.vmem [shape: bf16[8,96,64], index: 9, kind: input, shape index: {}]
  %s10 = inlined_call_operand.hbm [shape: f32[8,1,64], index: 10, kind: input, shape index: {}]
  %s11 = inlined_call_operand.hbm [shape: bf16[8,32,32], index: 11, kind: input, shape index: {}]
  %s12 = inlined_call_operand.hbm [shape: f32[8,1,32], index: 12, kind: input, shape index: {}]
  %s13 = inlined_call_operand.hbm [shape: bf16[32,64], index: 13, kind: input, shape index: {}]
  %s14 = inlined_call_operand.hbm [shape: f32[1,64], index: 14, kind: input, shape index: {}]
  %s15 = inlined_call_operand.vmem [shape: bf16[4,192,128], index: 15, kind: input, shape index: {}]
  %s16 = inlined_call_operand.hbm [shape: f32[4,1,128], index: 16, kind: input, shape index: {}]
  %s17 = inlined_call_operand.vmem [shape: bf16[4,64,64], index: 17, kind: input, shape index: {}]
  %s18 = inlined_call_operand.hbm [shape: f32[4,1,64], index: 18, kind: input, shape index: {}]
  %s19 = inlined_call_operand.vmem [shape: bf16[64,128], index: 19, kind: input, shape index: {}]
  %s20 = inlined_call_operand.hbm [shape: f32[1,128], index: 20, kind: input, shape index: {}]
  %s21 = inlined_call_operand.vmem [shape: bf16[1,384,256], index: 21, kind: input, shape index: {}]
  %s22 = inlined_call_operand.hbm [shape: f32[1,1,256], index: 22, kind: input, shape index: {}]
  %s23 = inlined_call_operand.hbm [shape: bf16[1,128,128], index: 23, kind: input, shape index: {}]
  %s24 = inlined_call_operand.hbm [shape: f32[1,1,128], index: 24, kind: input, shape index: {}]
  %s25 = inlined_call_operand.hbm [shape: bf16[128,128], index: 25, kind: input, shape index: {}]
  %s26 = inlined_call_operand.vmem [shape: f32[1,128], index: 26, kind: input, shape index: {}]
  %s27 = inlined_call_operand.vmem [shape: f32[2,16,128], index: 27, kind: output, shape index: {}]
  %s28 = sld [smem:[#allocation0]]
  $region221: #{_lambda_.1} parent=0
    _
  %s30 = ssub.s32 1, %s28
  %s31 = scalar_select 0, %s30, %s28
  $region1: #{_lambda_.1} parent=0
    #allocation2 [shape = 'u8[2048]{0}', space=vmem, size = 0x800, scoped, tag = 'input window, operand 1, single buffered']
    #allocation3 [shape = 's32[2]{0}', space=sflag, size = 0x8, scoped, tag = 'scoped memory for _lambda_.1']
    #allocation4 [shape = 'u8[512]{0}', space=vmem, size = 0x400, scoped, tag = 'input window, operand 2, single buffered']
    #allocation5 [shape = 's32[1]{0}', space=sflag, size = 0x4, scoped, tag = 'scoped memory for _lambda_.1']
    #allocation6 [shape = 'u8[147456]{0}', space=vmem, size = 0x24000, scoped, tag = 'input window, operand 3, single buffered']
    #allocation7 [shape = 'u8[6144]{0}', space=vmem, size = 0x1800, scoped, tag = 'input window, operand 4, single buffered']
    #allocation8 [shape = 's32[1]{0}', space=sflag, size = 0x4, scoped, tag = 'scoped memory for _lambda_.1']
    #allocation9 [shape = 'u8[49152]{0}', space=vmem, size = 0xc000, scoped, tag = 'input window, operand 5, single buffered']
    #allocation10 [shape = 'u8[6144]{0}', space=vmem, size = 0x1800, scoped, tag = 'input window, operand 6, single buffered']
    #allocation11 [shape = 's32[1]{0}', space=sflag, size = 0x4, scoped, tag = 'scoped memory for _lambda_.1']
    #allocation12 [shape = 'u8[4096]{0}', space=vmem, size = 0x1000, scoped, tag = 'input window, operand 7, single buffered']
    #allocation13 [shape = 'u8[512]{0}', space=vmem, size = 0x400, scoped, tag = 'input window, operand 8, single buffered']
    #allocation14 [shape = 's32[1]{0}', space=sflag, size = 0x4, scoped, tag = 'scoped memory for _lambda_.1']
    #allocation15 [shape = 'u8[4096]{0}', space=vmem, size = 0x1000, scoped, tag = 'input window, operand 10, single buffered']
    #allocation16 [shape = 'u8[65536]{0}', space=vmem, size = 0x10000, scoped, tag = 'input window, operand 11, single buffered']
    #allocation17 [shape = 's32[1]{0}', space=sflag, size = 0x4, scoped, tag = 'scoped memory for _lambda_.1']
    #allocation18 [shape = 'u8[4096]{0}', space=vmem, size = 0x1000, scoped, tag = 'input window, operand 12, single buffered']
    #allocation19 [shape = 'u8[8192]{0}', space=vmem, size = 0x2000, scoped, tag = 'input window, operand 13, single buffered']
    #allocation20 [shape = 's32[1]{0}', space=sflag, size = 0x4, scoped, tag = 'scoped memory for _lambda_.1']
    #allocation21 [shape = 'u8[512]{0}', space=vmem, size = 0x400, scoped, tag = 'input window, operand 14, single buffered']
    #allocation22 [shape = 'u8[2048]{0}', space=vmem, size = 0x800, scoped, tag = 'input window, operand 16, single buffered']
    #allocation23 [shape = 's32[1]{0}', space=sflag, size = 0x4, scoped, tag = 'scoped memory for _lambda_.1']
    #allocation24 [shape = 'u8[2048]{0}', space=vmem, size = 0x800, scoped, tag = 'input window, operand 18, single buffered']
    #allocation25 [shape = 'u8[512]{0}', space=vmem, size = 0x400, scoped, tag = 'input window, operand 20, single buffered']
    #allocation26 [shape = 's32[1]{0}', space=sflag, size = 0x4, scoped, tag = 'scoped memory for _lambda_.1']
    #allocation27 [shape = 'u8[1024]{0}', space=vmem, size = 0x400, scoped, tag = 'input window, operand 22, single buffered']
    #allocation28 [shape = 'u8[32768]{0}', space=vmem, size = 0x8000, scoped, tag = 'input window, operand 23, single buffered']
    #allocation29 [shape = 's32[1]{0}', space=sflag, size = 0x4, scoped, tag = 'scoped memory for _lambda_.1']
    #allocation30 [shape = 'u8[512]{0}', space=vmem, size = 0x400, scoped, tag = 'input window, operand 24, single buffered']
    #allocation31 [shape = 'u8[32768]{0}', space=vmem, size = 0x8000, scoped, tag = 'input window, operand 25, single buffered']
    #allocation32 [shape = 's32[1]{0}', space=sflag, size = 0x4, scoped, tag = 'scoped memory for _lambda_.1']
    %32 = vsyncpa [#allocation3], 0
    %33 = vsyncpa [#allocation5], 0
    %34 = vsyncpa [#allocation8], 0
    %35 = vsyncpa [#allocation11], 0
    %36 = vsyncpa [#allocation14], 0
    %37 = vsyncpa [#allocation17], 0
    %38 = vsyncpa [#allocation20], 0
    %39 = vsyncpa [#allocation23], 0
    %40 = vsyncpa [#allocation26], 0
    %41 = vsyncpa [#allocation29], 0
    %42 = vsyncpa [#allocation32], 0
    loop: start=0, step=1, limit=4
    $region2: #{_lambda_.1} parent=1 // loop_pre_header
      _
    $region3: #{_lambda_.1} parent=1 // loop_header
      %s44 = sphi 0, %s48
      %p45 = scmp.ge.s32.totalorder %s44, 4
      %s54 = sphi 0, %s56
      %s57 = sphi 0, %s54
      %s58 = sphi 0, %s57
      %s74 = sphi 0, %s58
      %s78 = sphi 0, %s78
      %s80 = sphi 0, %s78
      %s81 = sphi 0, %s80
      %s95 = sphi 0, %s81
      %s99 = sphi 0, %s99
      %s101 = sphi 0, %s99
      %s102 = sphi 0, %s101
      %s116 = sphi 0, %s102
      %s120 = sphi 0, %s120
      %s122 = sphi 0, %s120
      %s123 = sphi 0, %s122
      %s137 = sphi 0, %s123
      %s141 = sphi 0, %s141
      %s143 = sphi 0, %s141
      %s144 = sphi 0, %s143
      %s158 = sphi 0, %s144
      %s162 = sphi 0, %s162
      %s164 = sphi 0, %s162
      %s165 = sphi 0, %s164
      %s179 = sphi 0, %s165
      %s183 = sphi 0, %s183
      %s185 = sphi 0, %s183
      %s186 = sphi 0, %s185
      %s200 = sphi 0, %s186
      %s204 = sphi 0, %s204
      %s206 = sphi 0, %s204
      %s207 = sphi 0, %s206
      %s221 = sphi 0, %s207
      %s225 = sphi 0, %s225
      %s227 = sphi 0, %s225
      %s228 = sphi 0, %s227
      %s242 = sphi 0, %s228
      %s246 = sphi 0, %s246
      %s248 = sphi 0, %s246
      %s249 = sphi 0, %s248
      %s263 = sphi 0, %s249
      %s267 = sphi 0, %s267
      %s269 = sphi 0, %s267
      %s270 = sphi 0, %s269
      %s284 = sphi 0, %s270
      %s288 = sphi 0, %s288
      %s290 = sphi 0, %s288
      %s291 = sphi 0, %s290
      %s305 = sphi 0, %s291
      %s309 = sphi 0, %s309
      %s311 = sphi 0, %s309
      %s312 = sphi 0, %s311
      %s326 = sphi 0, %s312
      %s330 = sphi 0, %s330
      %s332 = sphi 0, %s330
      %s333 = sphi 0, %s332
      %s347 = sphi 0, %s333
      %s351 = sphi 0, %s351
      %s353 = sphi 0, %s351
      %s354 = sphi 0, %s353
      %s368 = sphi 0, %s354
      %s372 = sphi 0, %s372
      %s374 = sphi 0, %s372
      %s375 = sphi 0, %s374
      %s389 = sphi 0, %s375
      %s393 = sphi 0, %s393
      %s395 = sphi 0, %s393
      %s396 = sphi 0, %s395
      %s410 = sphi 0, %s396
      %s414 = sphi 0, %s414
      %s416 = sphi 0, %s414
      %s417 = sphi 0, %s416
      %s431 = sphi 0, %s417
      %s435 = sphi 0, %s435
      %s437 = sphi 0, %s435
      %s438 = sphi 0, %s437
      %s452 = sphi 0, %s438
      %s456 = sphi 0, %s456
      %s458 = sphi 0, %s456
      %s459 = sphi 0, %s458
      %s473 = sphi 0, %s459
      %s477 = sphi 0, %s477
      %s479 = sphi 0, %s477
      %s480 = sphi 0, %s479
      %s494 = sphi 0, %s480
      %s498 = sphi 0, %s498
      %s500 = sphi 0, %s498
      %s501 = sphi 0, %s500
      %s515 = sphi 0, %s501
      %s519 = sphi 0, %s519
      %s521 = sphi 0, %s519
      %s522 = sphi 0, %s521
      %s536 = sphi 0, %s522
      %s540 = sphi 0, %s540
      %s542 = sphi 0, %s540
      %s543 = sphi 0, %s542
      %s557 = sphi 0, %s543
      %s561 = sphi 0, %s561
      %s563 = sphi 0, %s561
      %s564 = sphi 0, %s563
      %s578 = sphi 0, %s564
      %s582 = sphi 0, %s582
      %s584 = sphi 0, %s582
      %s585 = sphi 0, %s584
      %s599 = sphi 0, %s585
      %s603 = sphi 0, %s603
      %s605 = sphi 0, %s603
      %s606 = sphi 0, %s605
      %s620 = sphi 0, %s606
      %s626 = sphi 0, %s628
      %s629 = sphi 0, %s626
      %s630 = sphi 0, %s629
      %s646 = sphi 0, %s630
    $region4: #{_lambda_.1} parent=1 // loop_header_branch
      %47 = sbr.rel (%p45) target = $region8
    $region5: #{_lambda_.1} parent=1 // loop_body
      %s49 = ssub.s32 %s44, 1
      %s50 = ssub.s32 %s44, 2
      %s51 = sadd.s32 %s44, 1
      %s52 = ssub.s32 %s44, %s51
      %p53 = scmp.eq.s32.totalorder %s52, 0
      %s55 = sadd.s32 %s54, 1
      %s56 = scalar_select %p53, %s54, %s55
      %p59 = pneg %p53
      %p60 = scmp.eq.s32.totalorder %s44, 1
      %p61 = por %p59, %p60
      %p62 = scmp.ne.s32.totalorder %s54, %s57
      %p63 = scmp.eq.s32.totalorder %s44, 0
      %p64 = por %p62, %p63
      %p65 = scmp.ne.s32.totalorder %s54, %s57
      %p66 = scmp.eq.s32.totalorder %s49, 1
      %p67 = por %p65, %p66
      %p68 = scmp.ne.s32.totalorder %s57, %s58
      %p69 = scmp.eq.s32.totalorder %s49, 0
      %p70 = por %p68, %p69
      %p71 = scmp.ne.s32.totalorder %s57, %s58
      %p72 = scmp.eq.s32.totalorder %s50, 1
      %p73 = por %p71, %p72
      %p75 = scmp.ne.s32.totalorder %s58, %s74
      %p76 = scmp.eq.s32.totalorder %s50, 0
      %p77 = por %p75, %p76
      %s79 = sadd.s32 %s78, 1
      %p82 = scmp.eq.s32.totalorder %s44, 1
      %p83 = scmp.ne.s32.totalorder %s78, %s80
      %p84 = scmp.eq.s32.totalorder %s44, 0
      %p85 = por %p83, %p84
      %p86 = scmp.ne.s32.totalorder %s78, %s80
      %p87 = scmp.eq.s32.totalorder %s49, 1
      %p88 = por %p86, %p87
      %p89 = scmp.ne.s32.totalorder %s80, %s81
      %p90 = scmp.eq.s32.totalorder %s49, 0
      %p91 = por %p89, %p90
      %p92 = scmp.ne.s32.totalorder %s80, %s81
      %p93 = scmp.eq.s32.totalorder %s50, 1
      %p94 = por %p92, %p93
      %p96 = scmp.ne.s32.totalorder %s81, %s95
      %p97 = scmp.eq.s32.totalorder %s50, 0
      %p98 = por %p96, %p97
      %s100 = sadd.s32 %s99, 1
      %p103 = scmp.eq.s32.totalorder %s44, 1
      %p104 = scmp.ne.s32.totalorder %s99, %s101
      %p105 = scmp.eq.s32.totalorder %s44, 0
      %p106 = por %p104, %p105
      %p107 = scmp.ne.s32.totalorder %s99, %s101
      %p108 = scmp.eq.s32.totalorder %s49, 1
      %p109 = por %p107, %p108
      %p110 = scmp.ne.s32.totalorder %s101, %s102
      %p111 = scmp.eq.s32.totalorder %s49, 0
      %p112 = por %p110, %p111
      %p113 = scmp.ne.s32.totalorder %s101, %s102
      %p114 = scmp.eq.s32.totalorder %s50, 1
      %p115 = por %p113, %p114
      %p117 = scmp.ne.s32.totalorder %s102, %s116
      %p118 = scmp.eq.s32.totalorder %s50, 0
      %p119 = por %p117, %p118
      %s121 = sadd.s32 %s120, 1
      %p124 = scmp.eq.s32.totalorder %s44, 1
      %p125 = scmp.ne.s32.totalorder %s120, %s122
      %p126 = scmp.eq.s32.totalorder %s44, 0
      %p127 = por %p125, %p126
      %p128 = scmp.ne.s32.totalorder %s120, %s122
      %p129 = scmp.eq.s32.totalorder %s49, 1
      %p130 = por %p128, %p129
      %p131 = scmp.ne.s32.totalorder %s122, %s123
      %p132 = scmp.eq.s32.totalorder %s49, 0
      %p133 = por %p131, %p132
      %p134 = scmp.ne.s32.totalorder %s122, %s123
      %p135 = scmp.eq.s32.totalorder %s50, 1
      %p136 = por %p134, %p135
      %p138 = scmp.ne.s32.totalorder %s123, %s137
      %p139 = scmp.eq.s32.totalorder %s50, 0
      %p140 = por %p138, %p139
      %s142 = sadd.s32 %s141, 1
      %p145 = scmp.eq.s32.totalorder %s44, 1
      %p146 = scmp.ne.s32.totalorder %s141, %s143
      %p147 = scmp.eq.s32.totalorder %s44, 0
      %p148 = por %p146, %p147
      %p149 = scmp.ne.s32.totalorder %s141, %s143
      %p150 = scmp.eq.s32.totalorder %s49, 1
      %p151 = por %p149, %p150
      %p152 = scmp.ne.s32.totalorder %s143, %s144
      %p153 = scmp.eq.s32.totalorder %s49, 0
      %p154 = por %p152, %p153
      %p155 = scmp.ne.s32.totalorder %s143, %s144
      %p156 = scmp.eq.s32.totalorder %s50, 1
      %p157 = por %p155, %p156
      %p159 = scmp.ne.s32.totalorder %s144, %s158
      %p160 = scmp.eq.s32.totalorder %s50, 0
      %p161 = por %p159, %p160
      %s163 = sadd.s32 %s162, 1
      %p166 = scmp.eq.s32.totalorder %s44, 1
      %p167 = scmp.ne.s32.totalorder %s162, %s164
      %p168 = scmp.eq.s32.totalorder %s44, 0
      %p169 = por %p167, %p168
      %p170 = scmp.ne.s32.totalorder %s162, %s164
      %p171 = scmp.eq.s32.totalorder %s49, 1
      %p172 = por %p170, %p171
      %p173 = scmp.ne.s32.totalorder %s164, %s165
      %p174 = scmp.eq.s32.totalorder %s49, 0
      %p175 = por %p173, %p174
      %p176 = scmp.ne.s32.totalorder %s164, %s165
      %p177 = scmp.eq.s32.totalorder %s50, 1
      %p178 = por %p176, %p177
      %p180 = scmp.ne.s32.totalorder %s165, %s179
      %p181 = scmp.eq.s32.totalorder %s50, 0
      %p182 = por %p180, %p181
      %s184 = sadd.s32 %s183, 1
      %p187 = scmp.eq.s32.totalorder %s44, 1
      %p188 = scmp.ne.s32.totalorder %s183, %s185
      %p189 = scmp.eq.s32.totalorder %s44, 0
      %p190 = por %p188, %p189
      %p191 = scmp.ne.s32.totalorder %s183, %s185
      %p192 = scmp.eq.s32.totalorder %s49, 1
      %p193 = por %p191, %p192
      %p194 = scmp.ne.s32.totalorder %s185, %s186
      %p195 = scmp.eq.s32.totalorder %s49, 0
      %p196 = por %p194, %p195
      %p197 = scmp.ne.s32.totalorder %s185, %s186
      %p198 = scmp.eq.s32.totalorder %s50, 1
      %p199 = por %p197, %p198
      %p201 = scmp.ne.s32.totalorder %s186, %s200
      %p202 = scmp.eq.s32.totalorder %s50, 0
      %p203 = por %p201, %p202
      %s205 = sadd.s32 %s204, 1
      %p208 = scmp.eq.s32.totalorder %s44, 1
      %p209 = scmp.ne.s32.totalorder %s204, %s206
      %p210 = scmp.eq.s32.totalorder %s44, 0
      %p211 = por %p209, %p210
      %p212 = scmp.ne.s32.totalorder %s204, %s206
      %p213 = scmp.eq.s32.totalorder %s49, 1
      %p214 = por %p212, %p213
      %p215 = scmp.ne.s32.totalorder %s206, %s207
      %p216 = scmp.eq.s32.totalorder %s49, 0
      %p217 = por %p215, %p216
      %p218 = scmp.ne.s32.totalorder %s206, %s207
      %p219 = scmp.eq.s32.totalorder %s50, 1
      %p220 = por %p218, %p219
      %p222 = scmp.ne.s32.totalorder %s207, %s221
      %p223 = scmp.eq.s32.totalorder %s50, 0
      %p224 = por %p222, %p223
      %s226 = sadd.s32 %s225, 1
      %p229 = scmp.eq.s32.totalorder %s44, 1
      %p230 = scmp.ne.s32.totalorder %s225, %s227
      %p231 = scmp.eq.s32.totalorder %s44, 0
      %p232 = por %p230, %p231
      %p233 = scmp.ne.s32.totalorder %s225, %s227
      %p234 = scmp.eq.s32.totalorder %s49, 1
      %p235 = por %p233, %p234
      %p236 = scmp.ne.s32.totalorder %s227, %s228
      %p237 = scmp.eq.s32.totalorder %s49, 0
      %p238 = por %p236, %p237
      %p239 = scmp.ne.s32.totalorder %s227, %s228
      %p240 = scmp.eq.s32.totalorder %s50, 1
      %p241 = por %p239, %p240
      %p243 = scmp.ne.s32.totalorder %s228, %s242
      %p244 = scmp.eq.s32.totalorder %s50, 0
      %p245 = por %p243, %p244
      %s247 = sadd.s32 %s246, 1
      %p250 = scmp.eq.s32.totalorder %s44, 1
      %p251 = scmp.ne.s32.totalorder %s246, %s248
      %p252 = scmp.eq.s32.totalorder %s44, 0
      %p253 = por %p251, %p252
      %p254 = scmp.ne.s32.totalorder %s246, %s248
      %p255 = scmp.eq.s32.totalorder %s49, 1
      %p256 = por %p254, %p255
      %p257 = scmp.ne.s32.totalorder %s248, %s249
      %p258 = scmp.eq.s32.totalorder %s49, 0
      %p259 = por %p257, %p258
      %p260 = scmp.ne.s32.totalorder %s248, %s249
      %p261 = scmp.eq.s32.totalorder %s50, 1
      %p262 = por %p260, %p261
      %p264 = scmp.ne.s32.totalorder %s249, %s263
      %p265 = scmp.eq.s32.totalorder %s50, 0
      %p266 = por %p264, %p265
      %s268 = sadd.s32 %s267, 1
      %p271 = scmp.eq.s32.totalorder %s44, 1
      %p272 = scmp.ne.s32.totalorder %s267, %s269
      %p273 = scmp.eq.s32.totalorder %s44, 0
      %p274 = por %p272, %p273
      %p275 = scmp.ne.s32.totalorder %s267, %s269
      %p276 = scmp.eq.s32.totalorder %s49, 1
      %p277 = por %p275, %p276
      %p278 = scmp.ne.s32.totalorder %s269, %s270
      %p279 = scmp.eq.s32.totalorder %s49, 0
      %p280 = por %p278, %p279
      %p281 = scmp.ne.s32.totalorder %s269, %s270
      %p282 = scmp.eq.s32.totalorder %s50, 1
      %p283 = por %p281, %p282
      %p285 = scmp.ne.s32.totalorder %s270, %s284
      %p286 = scmp.eq.s32.totalorder %s50, 0
      %p287 = por %p285, %p286
      %s289 = sadd.s32 %s288, 1
      %p292 = scmp.eq.s32.totalorder %s44, 1
      %p293 = scmp.ne.s32.totalorder %s288, %s290
      %p294 = scmp.eq.s32.totalorder %s44, 0
      %p295 = por %p293, %p294
      %p296 = scmp.ne.s32.totalorder %s288, %s290
      %p297 = scmp.eq.s32.totalorder %s49, 1
      %p298 = por %p296, %p297
      %p299 = scmp.ne.s32.totalorder %s290, %s291
      %p300 = scmp.eq.s32.totalorder %s49, 0
      %p301 = por %p299, %p300
      %p302 = scmp.ne.s32.totalorder %s290, %s291
      %p303 = scmp.eq.s32.totalorder %s50, 1
      %p304 = por %p302, %p303
      %p306 = scmp.ne.s32.totalorder %s291, %s305
      %p307 = scmp.eq.s32.totalorder %s50, 0
      %p308 = por %p306, %p307
      %s310 = sadd.s32 %s309, 1
      %p313 = scmp.eq.s32.totalorder %s44, 1
      %p314 = scmp.ne.s32.totalorder %s309, %s311
      %p315 = scmp.eq.s32.totalorder %s44, 0
      %p316 = por %p314, %p315
      %p317 = scmp.ne.s32.totalorder %s309, %s311
      %p318 = scmp.eq.s32.totalorder %s49, 1
      %p319 = por %p317, %p318
      %p320 = scmp.ne.s32.totalorder %s311, %s312
      %p321 = scmp.eq.s32.totalorder %s49, 0
      %p322 = por %p320, %p321
      %p323 = scmp.ne.s32.totalorder %s311, %s312
      %p324 = scmp.eq.s32.totalorder %s50, 1
      %p325 = por %p323, %p324
      %p327 = scmp.ne.s32.totalorder %s312, %s326
      %p328 = scmp.eq.s32.totalorder %s50, 0
      %p329 = por %p327, %p328
      %s331 = sadd.s32 %s330, 1
      %p334 = scmp.eq.s32.totalorder %s44, 1
      %p335 = scmp.ne.s32.totalorder %s330, %s332
      %p336 = scmp.eq.s32.totalorder %s44, 0
      %p337 = por %p335, %p336
      %p338 = scmp.ne.s32.totalorder %s330, %s332
      %p339 = scmp.eq.s32.totalorder %s49, 1
      %p340 = por %p338, %p339
      %p341 = scmp.ne.s32.totalorder %s332, %s333
      %p342 = scmp.eq.s32.totalorder %s49, 0
      %p343 = por %p341, %p342
      %p344 = scmp.ne.s32.totalorder %s332, %s333
      %p345 = scmp.eq.s32.totalorder %s50, 1
      %p346 = por %p344, %p345
      %p348 = scmp.ne.s32.totalorder %s333, %s347
      %p349 = scmp.eq.s32.totalorder %s50, 0
      %p350 = por %p348, %p349
      %s352 = sadd.s32 %s351, 1
      %p355 = scmp.eq.s32.totalorder %s44, 1
      %p356 = scmp.ne.s32.totalorder %s351, %s353
      %p357 = scmp.eq.s32.totalorder %s44, 0
      %p358 = por %p356, %p357
      %p359 = scmp.ne.s32.totalorder %s351, %s353
      %p360 = scmp.eq.s32.totalorder %s49, 1
      %p361 = por %p359, %p360
      %p362 = scmp.ne.s32.totalorder %s353, %s354
      %p363 = scmp.eq.s32.totalorder %s49, 0
      %p364 = por %p362, %p363
      %p365 = scmp.ne.s32.totalorder %s353, %s354
      %p366 = scmp.eq.s32.totalorder %s50, 1
      %p367 = por %p365, %p366
      %p369 = scmp.ne.s32.totalorder %s354, %s368
      %p370 = scmp.eq.s32.totalorder %s50, 0
      %p371 = por %p369, %p370
      %s373 = sadd.s32 %s372, 1
      %p376 = scmp.eq.s32.totalorder %s44, 1
      %p377 = scmp.ne.s32.totalorder %s372, %s374
      %p378 = scmp.eq.s32.totalorder %s44, 0
      %p379 = por %p377, %p378
      %p380 = scmp.ne.s32.totalorder %s372, %s374
      %p381 = scmp.eq.s32.totalorder %s49, 1
      %p382 = por %p380, %p381
      %p383 = scmp.ne.s32.totalorder %s374, %s375
      %p384 = scmp.eq.s32.totalorder %s49, 0
      %p385 = por %p383, %p384
      %p386 = scmp.ne.s32.totalorder %s374, %s375
      %p387 = scmp.eq.s32.totalorder %s50, 1
      %p388 = por %p386, %p387
      %p390 = scmp.ne.s32.totalorder %s375, %s389
      %p391 = scmp.eq.s32.totalorder %s50, 0
      %p392 = por %p390, %p391
      %s394 = sadd.s32 %s393, 1
      %p397 = scmp.eq.s32.totalorder %s44, 1
      %p398 = scmp.ne.s32.totalorder %s393, %s395
      %p399 = scmp.eq.s32.totalorder %s44, 0
      %p400 = por %p398, %p399
      %p401 = scmp.ne.s32.totalorder %s393, %s395
      %p402 = scmp.eq.s32.totalorder %s49, 1
      %p403 = por %p401, %p402
      %p404 = scmp.ne.s32.totalorder %s395, %s396
      %p405 = scmp.eq.s32.totalorder %s49, 0
      %p406 = por %p404, %p405
      %p407 = scmp.ne.s32.totalorder %s395, %s396
      %p408 = scmp.eq.s32.totalorder %s50, 1
      %p409 = por %p407, %p408
      %p411 = scmp.ne.s32.totalorder %s396, %s410
      %p412 = scmp.eq.s32.totalorder %s50, 0
      %p413 = por %p411, %p412
      %s415 = sadd.s32 %s414, 1
      %p418 = scmp.eq.s32.totalorder %s44, 1
      %p419 = scmp.ne.s32.totalorder %s414, %s416
      %p420 = scmp.eq.s32.totalorder %s44, 0
      %p421 = por %p419, %p420
      %p422 = scmp.ne.s32.totalorder %s414, %s416
      %p423 = scmp.eq.s32.totalorder %s49, 1
      %p424 = por %p422, %p423
      %p425 = scmp.ne.s32.totalorder %s416, %s417
      %p426 = scmp.eq.s32.totalorder %s49, 0
      %p427 = por %p425, %p426
      %p428 = scmp.ne.s32.totalorder %s416, %s417
      %p429 = scmp.eq.s32.totalorder %s50, 1
      %p430 = por %p428, %p429
      %p432 = scmp.ne.s32.totalorder %s417, %s431
      %p433 = scmp.eq.s32.totalorder %s50, 0
      %p434 = por %p432, %p433
      %s436 = sadd.s32 %s435, 1
      %p439 = scmp.eq.s32.totalorder %s44, 1
      %p440 = scmp.ne.s32.totalorder %s435, %s437
      %p441 = scmp.eq.s32.totalorder %s44, 0
      %p442 = por %p440, %p441
      %p443 = scmp.ne.s32.totalorder %s435, %s437
      %p444 = scmp.eq.s32.totalorder %s49, 1
      %p445 = por %p443, %p444
      %p446 = scmp.ne.s32.totalorder %s437, %s438
      %p447 = scmp.eq.s32.totalorder %s49, 0
      %p448 = por %p446, %p447
      %p449 = scmp.ne.s32.totalorder %s437, %s438
      %p450 = scmp.eq.s32.totalorder %s50, 1
      %p451 = por %p449, %p450
      %p453 = scmp.ne.s32.totalorder %s438, %s452
      %p454 = scmp.eq.s32.totalorder %s50, 0
      %p455 = por %p453, %p454
      %s457 = sadd.s32 %s456, 1
      %p460 = scmp.eq.s32.totalorder %s44, 1
      %p461 = scmp.ne.s32.totalorder %s456, %s458
      %p462 = scmp.eq.s32.totalorder %s44, 0
      %p463 = por %p461, %p462
      %p464 = scmp.ne.s32.totalorder %s456, %s458
      %p465 = scmp.eq.s32.totalorder %s49, 1
      %p466 = por %p464, %p465
      %p467 = scmp.ne.s32.totalorder %s458, %s459
      %p468 = scmp.eq.s32.totalorder %s49, 0
      %p469 = por %p467, %p468
      %p470 = scmp.ne.s32.totalorder %s458, %s459
      %p471 = scmp.eq.s32.totalorder %s50, 1
      %p472 = por %p470, %p471
      %p474 = scmp.ne.s32.totalorder %s459, %s473
      %p475 = scmp.eq.s32.totalorder %s50, 0
      %p476 = por %p474, %p475
      %s478 = sadd.s32 %s477, 1
      %p481 = scmp.eq.s32.totalorder %s44, 1
      %p482 = scmp.ne.s32.totalorder %s477, %s479
      %p483 = scmp.eq.s32.totalorder %s44, 0
      %p484 = por %p482, %p483
      %p485 = scmp.ne.s32.totalorder %s477, %s479
      %p486 = scmp.eq.s32.totalorder %s49, 1
      %p487 = por %p485, %p486
      %p488 = scmp.ne.s32.totalorder %s479, %s480
      %p489 = scmp.eq.s32.totalorder %s49, 0
      %p490 = por %p488, %p489
      %p491 = scmp.ne.s32.totalorder %s479, %s480
      %p492 = scmp.eq.s32.totalorder %s50, 1
      %p493 = por %p491, %p492
      %p495 = scmp.ne.s32.totalorder %s480, %s494
      %p496 = scmp.eq.s32.totalorder %s50, 0
      %p497 = por %p495, %p496
      %s499 = sadd.s32 %s498, 1
      %p502 = scmp.eq.s32.totalorder %s44, 1
      %p503 = scmp.ne.s32.totalorder %s498, %s500
      %p504 = scmp.eq.s32.totalorder %s44, 0
      %p505 = por %p503, %p504
      %p506 = scmp.ne.s32.totalorder %s498, %s500
      %p507 = scmp.eq.s32.totalorder %s49, 1
      %p508 = por %p506, %p507
      %p509 = scmp.ne.s32.totalorder %s500, %s501
      %p510 = scmp.eq.s32.totalorder %s49, 0
      %p511 = por %p509, %p510
      %p512 = scmp.ne.s32.totalorder %s500, %s501
      %p513 = scmp.eq.s32.totalorder %s50, 1
      %p514 = por %p512, %p513
      %p516 = scmp.ne.s32.totalorder %s501, %s515
      %p517 = scmp.eq.s32.totalorder %s50, 0
      %p518 = por %p516, %p517
      %s520 = sadd.s32 %s519, 1
      %p523 = scmp.eq.s32.totalorder %s44, 1
      %p524 = scmp.ne.s32.totalorder %s519, %s521
      %p525 = scmp.eq.s32.totalorder %s44, 0
      %p526 = por %p524, %p525
      %p527 = scmp.ne.s32.totalorder %s519, %s521
      %p528 = scmp.eq.s32.totalorder %s49, 1
      %p529 = por %p527, %p528
      %p530 = scmp.ne.s32.totalorder %s521, %s522
      %p531 = scmp.eq.s32.totalorder %s49, 0
      %p532 = por %p530, %p531
      %p533 = scmp.ne.s32.totalorder %s521, %s522
      %p534 = scmp.eq.s32.totalorder %s50, 1
      %p535 = por %p533, %p534
      %p537 = scmp.ne.s32.totalorder %s522, %s536
      %p538 = scmp.eq.s32.totalorder %s50, 0
      %p539 = por %p537, %p538
      %s541 = sadd.s32 %s540, 1
      %p544 = scmp.eq.s32.totalorder %s44, 1
      %p545 = scmp.ne.s32.totalorder %s540, %s542
      %p546 = scmp.eq.s32.totalorder %s44, 0
      %p547 = por %p545, %p546
      %p548 = scmp.ne.s32.totalorder %s540, %s542
      %p549 = scmp.eq.s32.totalorder %s49, 1
      %p550 = por %p548, %p549
      %p551 = scmp.ne.s32.totalorder %s542, %s543
      %p552 = scmp.eq.s32.totalorder %s49, 0
      %p553 = por %p551, %p552
      %p554 = scmp.ne.s32.totalorder %s542, %s543
      %p555 = scmp.eq.s32.totalorder %s50, 1
      %p556 = por %p554, %p555
      %p558 = scmp.ne.s32.totalorder %s543, %s557
      %p559 = scmp.eq.s32.totalorder %s50, 0
      %p560 = por %p558, %p559
      %s562 = sadd.s32 %s561, 1
      %p565 = scmp.eq.s32.totalorder %s44, 1
      %p566 = scmp.ne.s32.totalorder %s561, %s563
      %p567 = scmp.eq.s32.totalorder %s44, 0
      %p568 = por %p566, %p567
      %p569 = scmp.ne.s32.totalorder %s561, %s563
      %p570 = scmp.eq.s32.totalorder %s49, 1
      %p571 = por %p569, %p570
      %p572 = scmp.ne.s32.totalorder %s563, %s564
      %p573 = scmp.eq.s32.totalorder %s49, 0
      %p574 = por %p572, %p573
      %p575 = scmp.ne.s32.totalorder %s563, %s564
      %p576 = scmp.eq.s32.totalorder %s50, 1
      %p577 = por %p575, %p576
      %p579 = scmp.ne.s32.totalorder %s564, %s578
      %p580 = scmp.eq.s32.totalorder %s50, 0
      %p581 = por %p579, %p580
      %s583 = sadd.s32 %s582, 1
      %p586 = scmp.eq.s32.totalorder %s44, 1
      %p587 = scmp.ne.s32.totalorder %s582, %s584
      %p588 = scmp.eq.s32.totalorder %s44, 0
      %p589 = por %p587, %p588
      %p590 = scmp.ne.s32.totalorder %s582, %s584
      %p591 = scmp.eq.s32.totalorder %s49, 1
      %p592 = por %p590, %p591
      %p593 = scmp.ne.s32.totalorder %s584, %s585
      %p594 = scmp.eq.s32.totalorder %s49, 0
      %p595 = por %p593, %p594
      %p596 = scmp.ne.s32.totalorder %s584, %s585
      %p597 = scmp.eq.s32.totalorder %s50, 1
      %p598 = por %p596, %p597
      %p600 = scmp.ne.s32.totalorder %s585, %s599
      %p601 = scmp.eq.s32.totalorder %s50, 0
      %p602 = por %p600, %p601
      %s604 = sadd.s32 %s603, 1
      %p607 = scmp.eq.s32.totalorder %s44, 1
      %p608 = scmp.ne.s32.totalorder %s603, %s605
      %p609 = scmp.eq.s32.totalorder %s44, 0
      %p610 = por %p608, %p609
      %p611 = scmp.ne.s32.totalorder %s603, %s605
      %p612 = scmp.eq.s32.totalorder %s49, 1
      %p613 = por %p611, %p612
      %p614 = scmp.ne.s32.totalorder %s605, %s606
      %p615 = scmp.eq.s32.totalorder %s49, 0
      %p616 = por %p614, %p615
      %p617 = scmp.ne.s32.totalorder %s605, %s606
      %p618 = scmp.eq.s32.totalorder %s50, 1
      %p619 = por %p617, %p618
      %p621 = scmp.ne.s32.totalorder %s606, %s620
      %p622 = scmp.eq.s32.totalorder %s50, 0
      %p623 = por %p621, %p622
      %s624 = ssub.s32 %s44, %s51
      %p625 = scmp.eq.s32.totalorder %s624, 0
      %s627 = sadd.s32 %s626, 1
      %s628 = scalar_select %p625, %s626, %s627
      %p631 = pneg %p625
      %p632 = scmp.eq.s32.totalorder %s44, 1
      %p633 = por %p631, %p632
      %p634 = scmp.ne.s32.totalorder %s626, %s629
      %p635 = scmp.eq.s32.totalorder %s44, 0
      %p636 = por %p634, %p635
      %p637 = scmp.ne.s32.totalorder %s626, %s629
      %p638 = scmp.eq.s32.totalorder %s49, 1
      %p639 = por %p637, %p638
      %p640 = scmp.ne.s32.totalorder %s629, %s630
      %p641 = scmp.eq.s32.totalorder %s49, 0
      %p642 = por %p640, %p641
      %p643 = scmp.ne.s32.totalorder %s629, %s630
      %p644 = scmp.eq.s32.totalorder %s50, 1
      %p645 = por %p643, %p644
      %p647 = scmp.ne.s32.totalorder %s630, %s646
      %p648 = scmp.eq.s32.totalorder %s50, 0
      %p649 = por %p647, %p648
      %p650 = scmp.le.s32.totalorder 1, %s44
      %p651 = scmp.lt.s32.totalorder %s44, 3
      %p652 = pnand %p650, %p651
      %p653 = pneg %p652
      // Predicated region
      $region9: #{_lambda_.1} parent=5 // pred_check
        _
      $region10: #{_lambda_.1} parent=5 // pred_check_branch
        %655 = sbr.rel (%p652) target = $region12
      $region11: #{_lambda_.1} parent=5 // pred_region
        %s656 = ssub.s32 %s44, 1
        // Predicated region
        $region13: #{_lambda_.1} parent=11 // pred_check
          %p657 = pneg %p91
        $region14: #{_lambda_.1} parent=11 // pred_check_branch
          %659 = sbr.rel (%p657) target = $region16
        $region15: #{_lambda_.1} parent=11 // pred_region
          %s661 = ssub.s32 64, 64
          %662 = vsyncadd [#allocation3], %s661
          %s664 = sshll.u32 [#allocation2], 4
          %s665 = int_to_ptr.vmem [resolvable:$true] %s664
          %667 = dma.hbm_to_vmem [thread:$0]  %s1, 64, %s665, [#allocation3]
        $region16: #{_lambda_.1} parent=11 // pred_fallthru
          _
        // Predicated region
        $region17: #{_lambda_.1} parent=11 // pred_check
          %p668 = pneg %p112
        $region18: #{_lambda_.1} parent=11 // pred_check_branch
          %670 = sbr.rel (%p668) target = $region20
        $region19: #{_lambda_.1} parent=11 // pred_region
          %s672 = ssub.s32 16, 16
          %673 = vsyncadd [#allocation5], %s672
          %s675 = sshll.u32 [#allocation4], 4
          %s676 = int_to_ptr.vmem [resolvable:$true] %s675
          %678 = dma.hbm_to_vmem [thread:$0]  %s2, 16, %s676, [#allocation5]
        $region20: #{_lambda_.1} parent=11 // pred_fallthru
          _
        // Predicated region
        $region21: #{_lambda_.1} parent=11 // pred_check
          %p679 = pneg %p133
        $region22: #{_lambda_.1} parent=11 // pred_check_branch
          %681 = sbr.rel (%p679) target = $region24
        $region23: #{_lambda_.1} parent=11 // pred_region
          %s683 = ssub.s32 4608, 4608
          %684 = vsyncadd [#allocation5], %s683
          %s685 = sshll.u32 [#allocation6], 4
          %s686 = int_to_ptr.vmem [resolvable:$true] %s685
          %691 = dma.hbm_to_vmem [thread:$0]  %s3, 4608, %s686, [#allocation5], 64, 64, 4
        $region24: #{_lambda_.1} parent=11 // pred_fallthru
          _
        // Predicated region
        $region25: #{_lambda_.1} parent=11 // pred_check
          %p692 = pneg %p154
        $region26: #{_lambda_.1} parent=11 // pred_check_branch
          %694 = sbr.rel (%p692) target = $region28
        $region27: #{_lambda_.1} parent=11 // pred_region
          %s696 = ssub.s32 192, 192
          %697 = vsyncadd [#allocation8], %s696
          %s698 = sshll.u32 [#allocation7], 4
          %s699 = int_to_ptr.vmem [resolvable:$true] %s698
          %704 = dma.hbm_to_vmem [thread:$0]  %s4, 192, %s699, [#allocation8], 16, 16, 1
        $region28: #{_lambda_.1} parent=11 // pred_fallthru
          _
        // Predicated region
        $region29: #{_lambda_.1} parent=11 // pred_check
          %p705 = pneg %p175
        $region30: #{_lambda_.1} parent=11 // pred_check_branch
          %707 = sbr.rel (%p705) target = $region32
        $region31: #{_lambda_.1} parent=11 // pred_region
          %s709 = ssub.s32 1536, 1536
          %710 = vsyncadd [#allocation8], %s709
          %s711 = sshll.u32 [#allocation9], 4
          %s712 = int_to_ptr.vmem [resolvable:$true] %s711
          %717 = dma.hbm_to_vmem [thread:$0]  %s5, 1536, %s712, [#allocation8], 64, 64, 4
        $region32: #{_lambda_.1} parent=11 // pred_fallthru
          _
        // Predicated region
        $region33: #{_lambda_.1} parent=11 // pred_check
          %p718 = pneg %p196
        $region34: #{_lambda_.1} parent=11 // pred_check_branch
          %720 = sbr.rel (%p718) target = $region36
        $region35: #{_lambda_.1} parent=11 // pred_region
          %s722 = ssub.s32 192, 192
          %723 = vsyncadd [#allocation11], %s722
          %s724 = sshll.u32 [#allocation10], 4
          %s725 = int_to_ptr.vmem [resolvable:$true] %s724
          %730 = dma.hbm_to_vmem [thread:$0]  %s6, 192, %s725, [#allocation11], 16, 16, 1
        $region36: #{_lambda_.1} parent=11 // pred_fallthru
          _
        // Predicated region
        $region37: #{_lambda_.1} parent=11 // pred_check
          %p731 = pneg %p217
        $region38: #{_lambda_.1} parent=11 // pred_check_branch
          %733 = sbr.rel (%p731) target = $region40
        $region39: #{_lambda_.1} parent=11 // pred_region
          %s735 = ssub.s32 128, 128
          %736 = vsyncadd [#allocation11], %s735
          %s737 = sshll.u32 [#allocation12], 4
          %s738 = int_to_ptr.vmem [resolvable:$true] %s737
          %743 = dma.hbm_to_vmem [thread:$0]  %s7, 128, %s738, [#allocation11], 64, 64, 4
        $region40: #{_lambda_.1} parent=11 // pred_fallthru
          _
        // Predicated region
        $region41: #{_lambda_.1} parent=11 // pred_check
          %p744 = pneg %p238
        $region42: #{_lambda_.1} parent=11 // pred_check_branch
          %746 = sbr.rel (%p744) target = $region44
        $region43: #{_lambda_.1} parent=11 // pred_region
          %s748 = ssub.s32 16, 16
          %749 = vsyncadd [#allocation14], %s748
          %s751 = sshll.u32 [#allocation13], 4
          %s752 = int_to_ptr.vmem [resolvable:$true] %s751
          %754 = dma.hbm_to_vmem [thread:$0]  %s8, 16, %s752, [#allocation14]
        $region44: #{_lambda_.1} parent=11 // pred_fallthru
          _
        // Predicated region
        $region45: #{_lambda_.1} parent=11 // pred_check
          %p755 = pneg %p259
        $region46: #{_lambda_.1} parent=11 // pred_check_branch
          %757 = sbr.rel (%p755) target = $region48
        $region47: #{_lambda_.1} parent=11 // pred_region
          _
        $region48: #{_lambda_.1} parent=11 // pred_fallthru
          _
        // Predicated region
        $region49: #{_lambda_.1} parent=11 // pred_check
          %p758 = pneg %p280
        $region50: #{_lambda_.1} parent=11 // pred_check_branch
          %760 = sbr.rel (%p758) target = $region52
        $region51: #{_lambda_.1} parent=11 // pred_region
          %s762 = ssub.s32 128, 128
          %763 = vsyncadd [#allocation14], %s762
          %s764 = sshll.u32 [#allocation15], 4
          %s765 = int_to_ptr.vmem [resolvable:$true] %s764
          %770 = dma.hbm_to_vmem [thread:$0]  %s10, 128, %s765, [#allocation14], 16, 16, 1
        $region52: #{_lambda_.1} parent=11 // pred_fallthru
          _
        // Predicated region
        $region53: #{_lambda_.1} parent=11 // pred_check
          %p771 = pneg %p301
        $region54: #{_lambda_.1} parent=11 // pred_check_branch
          %773 = sbr.rel (%p771) target = $region56
        $region55: #{_lambda_.1} parent=11 // pred_region
          %s775 = ssub.s32 2048, 2048
          %776 = vsyncadd [#allocation17], %s775
          %s777 = sshll.u32 [#allocation16], 4
          %s778 = int_to_ptr.vmem [resolvable:$true] %s777
          %783 = dma.hbm_to_vmem [thread:$0]  %s11, 2048, %s778, [#allocation17], 64, 64, 4
        $region56: #{_lambda_.1} parent=11 // pred_fallthru
          _
        // Predicated region
        $region57: #{_lambda_.1} parent=11 // pred_check
          %p784 = pneg %p322
        $region58: #{_lambda_.1} parent=11 // pred_check_branch
          %786 = sbr.rel (%p784) target = $region60
        $region59: #{_lambda_.1} parent=11 // pred_region
          %s788 = ssub.s32 128, 128
          %789 = vsyncadd [#allocation17], %s788
          %s790 = sshll.u32 [#allocation18], 4
          %s791 = int_to_ptr.vmem [resolvable:$true] %s790
          %796 = dma.hbm_to_vmem [thread:$0]  %s12, 128, %s791, [#allocation17], 16, 16, 1
        $region60: #{_lambda_.1} parent=11 // pred_fallthru
          _
        // Predicated region
        $region61: #{_lambda_.1} parent=11 // pred_check
          %p797 = pneg %p343
        $region62: #{_lambda_.1} parent=11 // pred_check_branch
          %799 = sbr.rel (%p797) target = $region64
        $region63: #{_lambda_.1} parent=11 // pred_region
          %s801 = ssub.s32 256, 256
          %802 = vsyncadd [#allocation20], %s801
          %s803 = sshll.u32 [#allocation19], 4
          %s804 = int_to_ptr.vmem [resolvable:$true] %s803
          %809 = dma.hbm_to_vmem [thread:$0]  %s13, 256, %s804, [#allocation20], 64, 64, 4
        $region64: #{_lambda_.1} parent=11 // pred_fallthru
          _
        // Predicated region
        $region65: #{_lambda_.1} parent=11 // pred_check
          %p810 = pneg %p364
        $region66: #{_lambda_.1} parent=11 // pred_check_branch
          %812 = sbr.rel (%p810) target = $region68
        $region67: #{_lambda_.1} parent=11 // pred_region
          %s814 = ssub.s32 16, 16
          %815 = vsyncadd [#allocation20], %s814
          %s817 = sshll.u32 [#allocation21], 4
          %s818 = int_to_ptr.vmem [resolvable:$true] %s817
          %820 = dma.hbm_to_vmem [thread:$0]  %s14, 16, %s818, [#allocation20]
        $region68: #{_lambda_.1} parent=11 // pred_fallthru
          _
        // Predicated region
        $region69: #{_lambda_.1} parent=11 // pred_check
          %p821 = pneg %p385
        $region70: #{_lambda_.1} parent=11 // pred_check_branch
          %823 = sbr.rel (%p821) target = $region72
        $region71: #{_lambda_.1} parent=11 // pred_region
          _
        $region72: #{_lambda_.1} parent=11 // pred_fallthru
          _
        // Predicated region
        $region73: #{_lambda_.1} parent=11 // pred_check
          %p824 = pneg %p406
        $region74: #{_lambda_.1} parent=11 // pred_check_branch
          %826 = sbr.rel (%p824) target = $region76
        $region75: #{_lambda_.1} parent=11 // pred_region
          %s828 = ssub.s32 64, 64
          %829 = vsyncadd [#allocation23], %s828
          %s830 = sshll.u32 [#allocation22], 4
          %s831 = int_to_ptr.vmem [resolvable:$true] %s830
          %836 = dma.hbm_to_vmem [thread:$0]  %s16, 64, %s831, [#allocation23], 16, 16, 1
        $region76: #{_lambda_.1} parent=11 // pred_fallthru
          _
        // Predicated region
        $region77: #{_lambda_.1} parent=11 // pred_check
          %p837 = pneg %p427
        $region78: #{_lambda_.1} parent=11 // pred_check_branch
          %839 = sbr.rel (%p837) target = $region80
        $region79: #{_lambda_.1} parent=11 // pred_region
          _
        $region80: #{_lambda_.1} parent=11 // pred_fallthru
          _
        // Predicated region
        $region81: #{_lambda_.1} parent=11 // pred_check
          %p840 = pneg %p448
        $region82: #{_lambda_.1} parent=11 // pred_check_branch
          %842 = sbr.rel (%p840) target = $region84
        $region83: #{_lambda_.1} parent=11 // pred_region
          %s844 = ssub.s32 64, 64
          %845 = vsyncadd [#allocation23], %s844
          %s846 = sshll.u32 [#allocation24], 4
          %s847 = int_to_ptr.vmem [resolvable:$true] %s846
          %852 = dma.hbm_to_vmem [thread:$0]  %s18, 64, %s847, [#allocation23], 16, 16, 1
        $region84: #{_lambda_.1} parent=11 // pred_fallthru
          _
        // Predicated region
        $region85: #{_lambda_.1} parent=11 // pred_check
          %p853 = pneg %p469
        $region86: #{_lambda_.1} parent=11 // pred_check_branch
          %855 = sbr.rel (%p853) target = $region88
        $region87: #{_lambda_.1} parent=11 // pred_region
          _
        $region88: #{_lambda_.1} parent=11 // pred_fallthru
          _
        // Predicated region
        $region89: #{_lambda_.1} parent=11 // pred_check
          %p856 = pneg %p490
        $region90: #{_lambda_.1} parent=11 // pred_check_branch
          %858 = sbr.rel (%p856) target = $region92
        $region91: #{_lambda_.1} parent=11 // pred_region
          %s860 = ssub.s32 16, 16
          %861 = vsyncadd [#allocation26], %s860
          %s863 = sshll.u32 [#allocation25], 4
          %s864 = int_to_ptr.vmem [resolvable:$true] %s863
          %866 = dma.hbm_to_vmem [thread:$0]  %s20, 16, %s864, [#allocation26]
        $region92: #{_lambda_.1} parent=11 // pred_fallthru
          _
        // Predicated region
        $region93: #{_lambda_.1} parent=11 // pred_check
          %p867 = pneg %p511
        $region94: #{_lambda_.1} parent=11 // pred_check_branch
          %869 = sbr.rel (%p867) target = $region96
        $region95: #{_lambda_.1} parent=11 // pred_region
          _
        $region96: #{_lambda_.1} parent=11 // pred_fallthru
          _
        // Predicated region
        $region97: #{_lambda_.1} parent=11 // pred_check
          %p870 = pneg %p532
        $region98: #{_lambda_.1} parent=11 // pred_check_branch
          %872 = sbr.rel (%p870) target = $region100
        $region99: #{_lambda_.1} parent=11 // pred_region
          %s874 = ssub.s32 32, 32
          %875 = vsyncadd [#allocation26], %s874
          %s877 = sshll.u32 [#allocation27], 4
          %s878 = int_to_ptr.vmem [resolvable:$true] %s877
          %880 = dma.hbm_to_vmem [thread:$0]  %s22, 32, %s878, [#allocation26]
        $region100: #{_lambda_.1} parent=11 // pred_fallthru
          _
        // Predicated region
        $region101: #{_lambda_.1} parent=11 // pred_check
          %p881 = pneg %p553
        $region102: #{_lambda_.1} parent=11 // pred_check_branch
          %883 = sbr.rel (%p881) target = $region104
        $region103: #{_lambda_.1} parent=11 // pred_region
          %s885 = ssub.s32 1024, 1024
          %886 = vsyncadd [#allocation29], %s885
          %s887 = sshll.u32 [#allocation28], 4
          %s888 = int_to_ptr.vmem [resolvable:$true] %s887
          %893 = dma.hbm_to_vmem [thread:$0]  %s23, 1024, %s888, [#allocation29], 64, 64, 4
        $region104: #{_lambda_.1} parent=11 // pred_fallthru
          _
        // Predicated region
        $region105: #{_lambda_.1} parent=11 // pred_check
          %p894 = pneg %p574
        $region106: #{_lambda_.1} parent=11 // pred_check_branch
          %896 = sbr.rel (%p894) target = $region108
        $region107: #{_lambda_.1} parent=11 // pred_region
          %s898 = ssub.s32 16, 16
          %899 = vsyncadd [#allocation29], %s898
          %s901 = sshll.u32 [#allocation30], 4
          %s902 = int_to_ptr.vmem [resolvable:$true] %s901
          %904 = dma.hbm_to_vmem [thread:$0]  %s24, 16, %s902, [#allocation29]
        $region108: #{_lambda_.1} parent=11 // pred_fallthru
          _
        // Predicated region
        $region109: #{_lambda_.1} parent=11 // pred_check
          %p905 = pneg %p595
        $region110: #{_lambda_.1} parent=11 // pred_check_branch
          %907 = sbr.rel (%p905) target = $region112
        $region111: #{_lambda_.1} parent=11 // pred_region
          %s909 = ssub.s32 1024, 1024
          %910 = vsyncadd [#allocation32], %s909
          %s911 = sshll.u32 [#allocation31], 4
          %s912 = int_to_ptr.vmem [resolvable:$true] %s911
          %917 = dma.hbm_to_vmem [thread:$0]  %s25, 1024, %s912, [#allocation32], 64, 64, 4
        $region112: #{_lambda_.1} parent=11 // pred_fallthru
          _
        // Predicated region
        $region113: #{_lambda_.1} parent=11 // pred_check
          %p918 = pneg %p616
        $region114: #{_lambda_.1} parent=11 // pred_check_branch
          %920 = sbr.rel (%p918) target = $region116
        $region115: #{_lambda_.1} parent=11 // pred_region
          _
        $region116: #{_lambda_.1} parent=11 // pred_fallthru
          _
      $region12: #{_lambda_.1} parent=5 // pred_fallthru
        _
      %p921 = scmp.lt.s32.totalorder %s44, 2
      // Predicated region
      $region117: #{_lambda_.1} parent=5 // pred_check
        %p922 = pneg %p921
      $region118: #{_lambda_.1} parent=5 // pred_check_branch
        %924 = sbr.rel (%p922) target = $region120
      $region119: #{_lambda_.1} parent=5 // pred_region
        // Predicated region
        $region121: #{_lambda_.1} parent=119 // pred_check
          %p925 = pneg %p64
        $region122: #{_lambda_.1} parent=119 // pred_check_branch
          %927 = sbr.rel (%p925) target = $region124
        $region123: #{_lambda_.1} parent=119 // pred_region
          %p928 = scmp.lt.s32.totalorder %s44, 1
          %s929 = scalar_select %p928, %s44, 1
          %s930 = smul.addr %s929, 2
          %s931 = smul.addr %s930, 8
          %s932 = scalar_lea.vmem %s0, %s931
        $region124: #{_lambda_.1} parent=119 // pred_fallthru
          _
      $region120: #{_lambda_.1} parent=5 // pred_fallthru
        _
      %p933 = scmp.le.s32.totalorder 1, %s44
      %p934 = scmp.lt.s32.totalorder %s44, 3
      %p935 = pnand %p933, %p934
      %p936 = pneg %p935
      // Predicated region
      $region125: #{_lambda_.1} parent=5 // pred_check
        _
      $region126: #{_lambda_.1} parent=5 // pred_check_branch
        %938 = sbr.rel (%p935) target = $region128
      $region127: #{_lambda_.1} parent=5 // pred_region
        %s939 = ssub.s32 %s44, 1
        // Predicated region
        $region129: #{_lambda_.1} parent=127 // pred_check
          %p940 = pneg %p91
        $region130: #{_lambda_.1} parent=127 // pred_check_branch
          %942 = sbr.rel (%p940) target = $region132
        $region131: #{_lambda_.1} parent=127 // pred_region
          %943 = dma.done [#allocation3], 64
        $region132: #{_lambda_.1} parent=127 // pred_fallthru
          _
        // Predicated region
        $region133: #{_lambda_.1} parent=127 // pred_check
          %p944 = pneg %p112
        $region134: #{_lambda_.1} parent=127 // pred_check_branch
          %946 = sbr.rel (%p944) target = $region136
        $region135: #{_lambda_.1} parent=127 // pred_region
          %947 = dma.done [#allocation5], 16
        $region136: #{_lambda_.1} parent=127 // pred_fallthru
          _
        // Predicated region
        $region137: #{_lambda_.1} parent=127 // pred_check
          %p948 = pneg %p133
        $region138: #{_lambda_.1} parent=127 // pred_check_branch
          %950 = sbr.rel (%p948) target = $region140
        $region139: #{_lambda_.1} parent=127 // pred_region
          %951 = dma.done [#allocation5], 4608
        $region140: #{_lambda_.1} parent=127 // pred_fallthru
          _
        // Predicated region
        $region141: #{_lambda_.1} parent=127 // pred_check
          %p952 = pneg %p154
        $region142: #{_lambda_.1} parent=127 // pred_check_branch
          %954 = sbr.rel (%p952) target = $region144
        $region143: #{_lambda_.1} parent=127 // pred_region
          %955 = dma.done [#allocation8], 192
        $region144: #{_lambda_.1} parent=127 // pred_fallthru
          _
        // Predicated region
        $region145: #{_lambda_.1} parent=127 // pred_check
          %p956 = pneg %p175
        $region146: #{_lambda_.1} parent=127 // pred_check_branch
          %958 = sbr.rel (%p956) target = $region148
        $region147: #{_lambda_.1} parent=127 // pred_region
          %959 = dma.done [#allocation8], 1536
        $region148: #{_lambda_.1} parent=127 // pred_fallthru
          _
        // Predicated region
        $region149: #{_lambda_.1} parent=127 // pred_check
          %p960 = pneg %p196
        $region150: #{_lambda_.1} parent=127 // pred_check_branch
          %962 = sbr.rel (%p960) target = $region152
        $region151: #{_lambda_.1} parent=127 // pred_region
          %963 = dma.done [#allocation11], 192
        $region152: #{_lambda_.1} parent=127 // pred_fallthru
          _
        // Predicated region
        $region153: #{_lambda_.1} parent=127 // pred_check
          %p964 = pneg %p217
        $region154: #{_lambda_.1} parent=127 // pred_check_branch
          %966 = sbr.rel (%p964) target = $region156
        $region155: #{_lambda_.1} parent=127 // pred_region
          %967 = dma.done [#allocation11], 128
        $region156: #{_lambda_.1} parent=127 // pred_fallthru
          _
        // Predicated region
        $region157: #{_lambda_.1} parent=127 // pred_check
          %p968 = pneg %p238
        $region158: #{_lambda_.1} parent=127 // pred_check_branch
          %970 = sbr.rel (%p968) target = $region160
        $region159: #{_lambda_.1} parent=127 // pred_region
          %971 = dma.done [#allocation14], 16
        $region160: #{_lambda_.1} parent=127 // pred_fallthru
          _
        // Predicated region
        $region161: #{_lambda_.1} parent=127 // pred_check
          %p972 = pneg %p280
        $region162: #{_lambda_.1} parent=127 // pred_check_branch
          %974 = sbr.rel (%p972) target = $region164
        $region163: #{_lambda_.1} parent=127 // pred_region
          %975 = dma.done [#allocation14], 128
        $region164: #{_lambda_.1} parent=127 // pred_fallthru
          _
        // Predicated region
        $region165: #{_lambda_.1} parent=127 // pred_check
          %p976 = pneg %p301
        $region166: #{_lambda_.1} parent=127 // pred_check_branch
          %978 = sbr.rel (%p976) target = $region168
        $region167: #{_lambda_.1} parent=127 // pred_region
          %979 = dma.done [#allocation17], 2048
        $region168: #{_lambda_.1} parent=127 // pred_fallthru
          _
        // Predicated region
        $region169: #{_lambda_.1} parent=127 // pred_check
          %p980 = pneg %p322
        $region170: #{_lambda_.1} parent=127 // pred_check_branch
          %982 = sbr.rel (%p980) target = $region172
        $region171: #{_lambda_.1} parent=127 // pred_region
          %983 = dma.done [#allocation17], 128
        $region172: #{_lambda_.1} parent=127 // pred_fallthru
          _
        // Predicated region
        $region173: #{_lambda_.1} parent=127 // pred_check
          %p984 = pneg %p343
        $region174: #{_lambda_.1} parent=127 // pred_check_branch
          %986 = sbr.rel (%p984) target = $region176
        $region175: #{_lambda_.1} parent=127 // pred_region
          %987 = dma.done [#allocation20], 256
        $region176: #{_lambda_.1} parent=127 // pred_fallthru
          _
        // Predicated region
        $region177: #{_lambda_.1} parent=127 // pred_check
          %p988 = pneg %p364
        $region178: #{_lambda_.1} parent=127 // pred_check_branch
          %990 = sbr.rel (%p988) target = $region180
        $region179: #{_lambda_.1} parent=127 // pred_region
          %991 = dma.done [#allocation20], 16
        $region180: #{_lambda_.1} parent=127 // pred_fallthru
          _
        // Predicated region
        $region181: #{_lambda_.1} parent=127 // pred_check
          %p992 = pneg %p406
        $region182: #{_lambda_.1} parent=127 // pred_check_branch
          %994 = sbr.rel (%p992) target = $region184
        $region183: #{_lambda_.1} parent=127 // pred_region
          %995 = dma.done [#allocation23], 64
        $region184: #{_lambda_.1} parent=127 // pred_fallthru
          _
        // Predicated region
        $region185: #{_lambda_.1} parent=127 // pred_check
          %p996 = pneg %p448
        $region186: #{_lambda_.1} parent=127 // pred_check_branch
          %998 = sbr.rel (%p996) target = $region188
        $region187: #{_lambda_.1} parent=127 // pred_region
          %999 = dma.done [#allocation23], 64
        $region188: #{_lambda_.1} parent=127 // pred_fallthru
          _
        // Predicated region
        $region189: #{_lambda_.1} parent=127 // pred_check
          %p1000 = pneg %p490
        $region190: #{_lambda_.1} parent=127 // pred_check_branch
          %1002 = sbr.rel (%p1000) target = $region192
        $region191: #{_lambda_.1} parent=127 // pred_region
          %1003 = dma.done [#allocation26], 16
        $region192: #{_lambda_.1} parent=127 // pred_fallthru
          _
        // Predicated region
        $region193: #{_lambda_.1} parent=127 // pred_check
          %p1004 = pneg %p532
        $region194: #{_lambda_.1} parent=127 // pred_check_branch
          %1006 = sbr.rel (%p1004) target = $region196
        $region195: #{_lambda_.1} parent=127 // pred_region
          %1007 = dma.done [#allocation26], 32
        $region196: #{_lambda_.1} parent=127 // pred_fallthru
          _
        // Predicated region
        $region197: #{_lambda_.1} parent=127 // pred_check
          %p1008 = pneg %p553
        $region198: #{_lambda_.1} parent=127 // pred_check_branch
          %1010 = sbr.rel (%p1008) target = $region200
        $region199: #{_lambda_.1} parent=127 // pred_region
          %1011 = dma.done [#allocation29], 1024
        $region200: #{_lambda_.1} parent=127 // pred_fallthru
          _
        // Predicated region
        $region201: #{_lambda_.1} parent=127 // pred_check
          %p1012 = pneg %p574
        $region202: #{_lambda_.1} parent=127 // pred_check_branch
          %1014 = sbr.rel (%p1012) target = $region204
        $region203: #{_lambda_.1} parent=127 // pred_region
          %1015 = dma.done [#allocation29], 16
        $region204: #{_lambda_.1} parent=127 // pred_fallthru
          _
        // Predicated region
        $region205: #{_lambda_.1} parent=127 // pred_check
          %p1016 = pneg %p595
        $region206: #{_lambda_.1} parent=127 // pred_check_branch
          %1018 = sbr.rel (%p1016) target = $region208
        $region207: #{_lambda_.1} parent=127 // pred_region
          %1019 = dma.done [#allocation32], 1024
        $region208: #{_lambda_.1} parent=127 // pred_fallthru
          _
        %p1020 = scmp.lt.s32.totalorder %s49, 1
        %s1021 = scalar_select %p1020, %s49, 1
        %s1022 = smul.addr %s1021, 2
        %s1023 = smul.addr %s1022, 8
        %s1024 = scalar_lea.vmem %s0, %s1023
        %p1025 = pneg %p70
        %p1026 = pneg %p67
        %p1027 = pneg %p91
        %p1028 = pneg %p88
        %p1029 = pneg %p112
        %p1030 = pneg %p109
        %p1031 = pneg %p133
        %p1032 = pneg %p130
        %p1033 = pneg %p154
        %p1034 = pneg %p151
        %p1035 = pneg %p175
        %p1036 = pneg %p172
        %p1037 = pneg %p196
        %p1038 = pneg %p193
        %p1039 = pneg %p217
        %p1040 = pneg %p214
        %p1041 = pneg %p238
        %p1042 = pneg %p235
        %p1043 = pneg %p259
        %p1044 = pneg %p256
        %p1045 = pneg %p280
        %p1046 = pneg %p277
        %p1047 = pneg %p301
        %p1048 = pneg %p298
        %p1049 = pneg %p322
        %p1050 = pneg %p319
        %p1051 = pneg %p343
        %p1052 = pneg %p340
        %p1053 = pneg %p364
        %p1054 = pneg %p361
        %p1055 = pneg %p385
        %p1056 = pneg %p382
        %p1057 = pneg %p406
        %p1058 = pneg %p403
        %p1059 = pneg %p427
        %p1060 = pneg %p424
        %p1061 = pneg %p448
        %p1062 = pneg %p445
        %p1063 = pneg %p469
        %p1064 = pneg %p466
        %p1065 = pneg %p490
        %p1066 = pneg %p487
        %p1067 = pneg %p511
        %p1068 = pneg %p508
        %p1069 = pneg %p532
        %p1070 = pneg %p529
        %p1071 = pneg %p553
        %p1072 = pneg %p550
        %p1073 = pneg %p574
        %p1074 = pneg %p571
        %p1075 = pneg %p595
        %p1076 = pneg %p592
        %p1077 = pneg %p616
        %p1078 = pneg %p613
        %p1079 = pneg %p642
        %p1080 = pneg %p639
        %p1081 = scmp.lt.s32.totalorder %s49, 1
        %s1082 = scalar_select %p1081, %s49, 1
        %s1083 = smul.addr %s1082, 2
        %s1084 = smul.addr %s1083, 8
        %s1085 = scalar_lea.vmem %s27, %s1084
        %p1086 = scmp.lt.s32.totalorder %s49, 1
        %s1087 = scalar_select %p1086, %s49, 1
        %s1088 = smul.addr %s1087, 2
        %s1089 = smul.addr %s1088, 8
        %s1090 = scalar_lea.vmem %s0, %s1089
        %p1091 = scmp.lt.s32.totalorder %s49, 1
        %s1092 = scalar_select %p1091, %s49, 1
        %s1093 = smul.addr %s1092, 2
        %s1094 = smul.addr %s1093, 8
        %s1095 = scalar_lea.vmem %s27, %s1094
        %v1097 = vld [vmem:[%s1090] sm:$0xff]
        %v1098 = vld [vmem:[%s1090 + $0x8] sm:$0xff]
        %v1099 = vpack.c.bf16 %v1098, %v1097
        %v1100 = vld [vmem:[#allocation2] sm:$0xf]
        %v1101 = vld [vmem:[#allocation4] sm:$0x1]
        %v1103 = vlaneseq
        %v1104 = vshrl.u32 %v1103, 7
        %v1105 = vsub.s32 0, %v1104
        %v1106 = vrot.slane %v1101, %v1105
        %vm1108 = vcmask 64512
        %v1110 = vsel %vm1108, %v1099, 0
        %vm1112 = vcmask 1043456
        %v1114 = vsel %vm1112, %v1100, 0
        %1116 = vmatprep.subr.bf16.mxu0 0
        %1117 = vmatpush1.bf16.msra.mxu0 %v1114
        %1118 = vmatprep.subr.bf16.mxu0 0
        %1119 = vmatpush1.bf16.msra.mxu0 0
        %1120 = vmatprep.subr.bf16.mxu0 0
        %1121 = vmatpush1.bf16.msra.mxu0 0
        %1122 = vmatprep.subr.bf16.mxu0 0
        %1123 = vmatpush1.bf16.msra.mxu0 0
        %1124 = vmatprep.subr.bf16.mxu0 0
        %1125 = vmatpush1.bf16.msra.mxu0 0
        %1126 = vmatprep.subr.bf16.mxu0 0
        %1127 = vmatpush1.bf16.msra.mxu0 0
        %1128 = vmatprep.subr.bf16.mxu0 0
        %1129 = vmatpush1.bf16.msra.mxu0 0
        %1130 = vmatprep.subr.bf16.mxu0 0
        %1131 = vmatpush1.bf16.msra.mxu0 0
        %1132 = vmatprep.subr.bf16.mxu0 0
        %1133 = vmatpush1.bf16.msra.mxu0 0
        %1134 = vmatprep.subr.bf16.mxu0 0
        %1135 = vmatpush1.bf16.msra.mxu0 0
        %1136 = vmatprep.subr.bf16.mxu0 0
        %1137 = vmatpush1.bf16.msra.mxu0 0
        %1138 = vmatprep.subr.bf16.mxu0 0
        %1139 = vmatpush1.bf16.msra.mxu0 0
        %1140 = vmatprep.subr.bf16.mxu0 0
        %1141 = vmatpush1.bf16.msra.mxu0 0
        %1142 = vmatprep.subr.bf16.mxu0 0
        %1143 = vmatpush1.bf16.msra.mxu0 0
        %1144 = vmatprep.subr.bf16.mxu0 0
        %1145 = vmatpush1.bf16.msra.mxu0 0
        %1146 = vmatprep.subr.bf16.mxu0 0
        %1147 = vmatpush1.bf16.msra.mxu0 0
        %1148 = vmatprep.mubr.bf16.mxu0 0
        %1149 = vmatmul.mubr.bf16.gmra.mrb[0].mxu0 %v1110
        %v1150 = vpop.f32.mrb[0].mxu0
        %v1151 = vadd.f32 %v1106, %v1150
        %v1152 = vpop.f32.mrb[0].mxu0
        %v1153 = vpop.f32.mrb[0].mxu0
        %v1154 = vadd.f32 %v1106, %v1153
        %v1155 = vpop.f32.mrb[0].mxu0
        %1156 = vdwg.mxu0
        %v1157 = vld [vmem:[#allocation6] sm:$0xf]
        %v1158 = vld [vmem:[#allocation6 + $0x4] sm:$0xf]
        %v1159 = vld [vmem:[#allocation6 + $0x8] sm:$0xf]
        %v1160 = vld [vmem:[#allocation6 + $0xc] sm:$0xf]
        %v1161 = vld [vmem:[#allocation6 + $0x10] sm:$0xf]
        %v1162 = vld [vmem:[#allocation6 + $0x14] sm:$0xf]
        %vm1165 = vcmask 1040384
        %v1166 = vrot.slane %v1151, 7
        %v1167 = vrot.slane %v1154, 7
        %v1168 = vsel %vm1165, %v1166, %v1167
        %v1171 = vsel %vm1165, 0.0, %v1166
        %vm1172 = vcmask 1046528
        %v1173 = vrot.slane %v1151, 1
        %v1174 = vrot.slane %v1154, 1
        %v1175 = vsel %vm1172, %v1173, %v1174
        %v1177 = vsel %vm1172, %v1174, 0.0
        %1178 = vrot.lane.b32.xlu0 %v1151, 16
        %v1179 = vpop.permute.xlu0 %1178
        %1180 = vrot.lane.b32.xlu0 %v1154, 16
        %v1181 = vpop.permute.xlu0 %1180
        %1185 = vrot.lane.b32.xlu0 %v1175, 32
        %v1186 = vpop.permute.xlu0 %1185
        %1187 = vrot.lane.b32.xlu0 %v1177, 32
        %v1188 = vpop.permute.xlu0 %1187
        %vm1191 = vcmask 130048
        %v1192 = vsel %vm1191, %v1171, %v1179
        %v1193 = vsel %vm1191, %v1168, %v1181
        %vm1194 = vcmask 261120
        %v1195 = vsel %vm1194, %v1192, %v1186
        %v1196 = vsel %vm1194, %v1193, %v1188
        %v1197 = vpack.c.bf16 %v1196, %v1195
        %v1198 = vld [vmem:[#allocation7] sm:$0x1]
        %v1200 = vlaneseq
        %v1201 = vshrl.u32 %v1200, 7
        %v1202 = vsub.s32 0, %v1201
        %v1203 = vrot.slane %v1198, %v1202
        %v1211 = vunpack.c.l.b16 %v1157
        %v1212 = vunpack.c.l.b16 %v1158
        %v1213 = vunpack.c.l.b16 %v1159
        %v1214 = vunpack.c.l.b16 %v1160
        %v1215 = vunpack.c.l.b16 %v1161
        %v1216 = vunpack.c.l.b16 %v1162
        %v1217 = vpack.c.b16 %v1212, %v1211
        %v1218 = vpack.c.b16 %v1214, %v1213
        %v1219 = vpack.c.b16 %v1216, %v1215
        %vm1223 = vcmask 392192
        %v1225 = vsel %vm1223, %v1197, 0
        %1227 = vmatprep.subr.bf16.mxu0 0
        %1228 = vmatpush1.bf16.msra.mxu0 %v1217
        %1229 = vmatprep.subr.bf16.mxu0 0
        %1230 = vmatpush1.bf16.msra.mxu0 %v1218
        %1231 = vmatprep.subr.bf16.mxu0 0
        %1232 = vmatpush1.bf16.msra.mxu0 %v1219
        %1233 = vmatprep.subr.bf16.mxu0 0
        %1234 = vmatpush1.bf16.msra.mxu0 0
        %1235 = vmatprep.subr.bf16.mxu0 0
        %1236 = vmatpush1.bf16.msra.mxu0 0
        %1237 = vmatprep.subr.bf16.mxu0 0
        %1238 = vmatpush1.bf16.msra.mxu0 0
        %1239 = vmatprep.subr.bf16.mxu0 0
        %1240 = vmatpush1.bf16.msra.mxu0 0
        %1241 = vmatprep.subr.bf16.mxu0 0
        %1242 = vmatpush1.bf16.msra.mxu0 0
        %1243 = vmatprep.subr.bf16.mxu0 0
        %1244 = vmatpush1.bf16.msra.mxu0 0
        %1245 = vmatprep.subr.bf16.mxu0 0
        %1246 = vmatpush1.bf16.msra.mxu0 0
        %1247 = vmatprep.subr.bf16.mxu0 0
        %1248 = vmatpush1.bf16.msra.mxu0 0
        %1249 = vmatprep.subr.bf16.mxu0 0
        %1250 = vmatpush1.bf16.msra.mxu0 0
        %1251 = vmatprep.subr.bf16.mxu0 0
        %1252 = vmatpush1.bf16.msra.mxu0 0
        %1253 = vmatprep.subr.bf16.mxu0 0
        %1254 = vmatpush1.bf16.msra.mxu0 0
        %1255 = vmatprep.subr.bf16.mxu0 0
        %1256 = vmatpush1.bf16.msra.mxu0 0
        %1257 = vmatprep.subr.bf16.mxu0 0
        %1258 = vmatpush1.bf16.msra.mxu0 0
        %1259 = vmatprep.mubr.bf16.mxu0 0
        %1260 = vmatmul.mubr.bf16.gmra.mrb[0].mxu0 %v1225
        %v1261 = vpop.f32.mrb[0].mxu0
        %v1262 = vadd.f32 %v1203, %v1261
        %v1263 = vpop.f32.mrb[0].mxu0
        %v1264 = vpop.f32.mrb[0].mxu0
        %v1265 = vadd.f32 %v1203, %v1264
        %v1266 = vpop.f32.mrb[0].mxu0
        %1267 = vdwg.mxu0
        %v1268 = vtanh.pop %v1262
        %v1269 = vtanh.pop %v1265
        %v1270 = vxor.u32 %v1262, 2147483648
        %v1271 = vxor.u32 %v1265, 2147483648
        %v1272 = vmul.f32 %v1270, 1.442695
        %v1273 = vpow.pop %v1272
        %v1274 = vmul.f32 %v1271, 1.442695
        %v1275 = vpow.pop %v1274
        %v1276 = vadd.f32 %v1273, 1.0
        %v1277 = vadd.f32 %v1275, 1.0
        %v1278 = vrcp.pop %v1276
        %v1279 = vmul.f32 1.0, %v1278
        %v1280 = vrcp.pop %v1277
        %v1281 = vmul.f32 1.0, %v1280
        %1284 = vrot.lane.b32.xlu0 %v1279, 112
        %v1285 = vpop.permute.xlu0 %1284
        %1286 = vrot.lane.b32.xlu0 %v1281, 112
        %v1287 = vpop.permute.xlu0 %1286
        %v1290 = vmul.f32 %v1268, %v1285
        %v1291 = vmul.f32 %v1269, %v1287
        %v1292 = vpack.c.bf16 %v1291, %v1290
        %v1293 = vld [vmem:[#allocation9] sm:$0xf]
        %v1294 = vld [vmem:[#allocation9 + $0x4] sm:$0xf]
        %v1297 = vunpack.c.l.b16 %v1293
        %v1298 = vunpack.c.l.b16 %v1294
        %v1299 = vpack.c.b16 %v1298, %v1297
        %v1302 = vsel %vm1191, %v1292, 0
        %1304 = vmatprep.subr.bf16.mxu0 0
        %1305 = vmatpush1.bf16.msra.mxu0 %v1299
        %1306 = vmatprep.subr.bf16.mxu0 0
        %1307 = vmatpush1.bf16.msra.mxu0 0
        %1308 = vmatprep.subr.bf16.mxu0 0
        %1309 = vmatpush1.bf16.msra.mxu0 0
        %1310 = vmatprep.subr.bf16.mxu0 0
        %1311 = vmatpush1.bf16.msra.mxu0 0
        %1312 = vmatprep.subr.bf16.mxu0 0
        %1313 = vmatpush1.bf16.msra.mxu0 0
        %1314 = vmatprep.subr.bf16.mxu0 0
        %1315 = vmatpush1.bf16.msra.mxu0 0
        %1316 = vmatprep.subr.bf16.mxu0 0
        %1317 = vmatpush1.bf16.msra.mxu0 0
        %1318 = vmatprep.subr.bf16.mxu0 0
        %1319 = vmatpush1.bf16.msra.mxu0 0
        %1320 = vmatprep.subr.bf16.mxu0 0
        %1321 = vmatpush1.bf16.msra.mxu0 0
        %1322 = vmatprep.subr.bf16.mxu0 0
        %1323 = vmatpush1.bf16.msra.mxu0 0
        %1324 = vmatprep.subr.bf16.mxu0 0
        %1325 = vmatpush1.bf16.msra.mxu0 0
        %1326 = vmatprep.subr.bf16.mxu0 0
        %1327 = vmatpush1.bf16.msra.mxu0 0
        %1328 = vmatprep.subr.bf16.mxu0 0
        %1329 = vmatpush1.bf16.msra.mxu0 0
        %1330 = vmatprep.subr.bf16.mxu0 0
        %1331 = vmatpush1.bf16.msra.mxu0 0
        %1332 = vmatprep.subr.bf16.mxu0 0
        %1333 = vmatpush1.bf16.msra.mxu0 0
        %1334 = vmatprep.subr.bf16.mxu0 0
        %1335 = vmatpush1.bf16.msra.mxu0 0
        %1336 = vmatprep.mubr.bf16.mxu0 0
        %1337 = vmatmul.mubr.bf16.gmra.mrb[0].mxu0 %v1302
        %v1338 = vpop.f32.mrb[0].mxu0
        %v1339 = vadd.f32 0.0, %v1338
        %v1340 = vpop.f32.mrb[0].mxu0
        %v1341 = vpop.f32.mrb[0].mxu0
        %v1342 = vadd.f32 0.0, %v1341
        %v1343 = vpop.f32.mrb[0].mxu0
        %1344 = vdwg.mxu0
        %v1345 = vadd.f32 %v1151, %v1339
        %v1346 = vadd.f32 %v1154, %v1342
        %v1347 = vld [vmem:[#allocation10] sm:$0x1]
        %v1349 = vlaneseq
        %v1350 = vshrl.u32 %v1349, 7
        %v1351 = vsub.s32 0, %v1350
        %v1352 = vrot.slane %v1347, %v1351
        %v1354 = vadd.f32 %v1345, %v1352
        %v1355 = vadd.f32 %v1346, %v1352
        %s1356 = scalar_lea.vmem [#allocation6], 24
        %v1357 = vld [vmem:[%s1356] sm:$0xf]
        %v1358 = vld [vmem:[%s1356 + $0x4] sm:$0xf]
        %v1359 = vld [vmem:[%s1356 + $0x8] sm:$0xf]
        %v1360 = vld [vmem:[%s1356 + $0xc] sm:$0xf]
        %v1361 = vld [vmem:[%s1356 + $0x10] sm:$0xf]
        %v1362 = vld [vmem:[%s1356 + $0x14] sm:$0xf]
        %vm1365 = vcmask 1041408
        %v1366 = vrot.slane %v1354, 6
        %v1367 = vrot.slane %v1355, 6
        %v1368 = vsel %vm1365, %v1366, %v1367
        %v1371 = vsel %vm1365, 0.0, %v1366
        %vm1372 = vcmask 1045504
        %v1373 = vrot.slane %v1354, 2
        %v1374 = vrot.slane %v1355, 2
        %v1375 = vsel %vm1372, %v1373, %v1374
        %v1377 = vsel %vm1372, %v1374, 0.0
        %1378 = vrot.lane.b32.xlu0 %v1354, 16
        %v1379 = vpop.permute.xlu0 %1378
        %1380 = vrot.lane.b32.xlu0 %v1355, 16
        %v1381 = vpop.permute.xlu0 %1380
        %1385 = vrot.lane.b32.xlu0 %v1375, 32
        %v1386 = vpop.permute.xlu0 %1385
        %1387 = vrot.lane.b32.xlu0 %v1377, 32
        %v1388 = vpop.permute.xlu0 %1387
        %v1391 = vsel %vm1191, %v1371, %v1379
        %v1392 = vsel %vm1191, %v1368, %v1381
        %v1393 = vsel %vm1194, %v1391, %v1386
        %v1394 = vsel %vm1194, %v1392, %v1388
        %v1395 = vpack.c.bf16 %v1394, %v1393
        %s1396 = scalar_lea.vmem [#allocation7], 1
        %v1397 = vld [vmem:[%s1396] sm:$0x1]
        %v1399 = vlaneseq
        %v1400 = vshrl.u32 %v1399, 7
        %v1401 = vsub.s32 0, %v1400
        %v1402 = vrot.slane %v1397, %v1401
        %v1410 = vunpack.c.l.b16 %v1357
        %v1411 = vunpack.c.l.b16 %v1358
        %v1412 = vunpack.c.l.b16 %v1359
        %v1413 = vunpack.c.l.b16 %v1360
        %v1414 = vunpack.c.l.b16 %v1361
        %v1415 = vunpack.c.l.b16 %v1362
        %v1416 = vpack.c.b16 %v1411, %v1410
        %v1417 = vpack.c.b16 %v1413, %v1412
        %v1418 = vpack.c.b16 %v1415, %v1414
        %v1423 = vsel %vm1223, %v1395, 0
        %1425 = vmatprep.subr.bf16.mxu0 0
        %1426 = vmatpush1.bf16.msra.mxu0 %v1416
        %1427 = vmatprep.subr.bf16.mxu0 0
        %1428 = vmatpush1.bf16.msra.mxu0 %v1417
        %1429 = vmatprep.subr.bf16.mxu0 0
        %1430 = vmatpush1.bf16.msra.mxu0 %v1418
        %1431 = vmatprep.subr.bf16.mxu0 0
        %1432 = vmatpush1.bf16.msra.mxu0 0
        %1433 = vmatprep.subr.bf16.mxu0 0
        %1434 = vmatpush1.bf16.msra.mxu0 0
        %1435 = vmatprep.subr.bf16.mxu0 0
        %1436 = vmatpush1.bf16.msra.mxu0 0
        %1437 = vmatprep.subr.bf16.mxu0 0
        %1438 = vmatpush1.bf16.msra.mxu0 0
        %1439 = vmatprep.subr.bf16.mxu0 0
        %1440 = vmatpush1.bf16.msra.mxu0 0
        %1441 = vmatprep.subr.bf16.mxu0 0
        %1442 = vmatpush1.bf16.msra.mxu0 0
        %1443 = vmatprep.subr.bf16.mxu0 0
        %1444 = vmatpush1.bf16.msra.mxu0 0
        %1445 = vmatprep.subr.bf16.mxu0 0
        %1446 = vmatpush1.bf16.msra.mxu0 0
        %1447 = vmatprep.subr.bf16.mxu0 0
        %1448 = vmatpush1.bf16.msra.mxu0 0
        %1449 = vmatprep.subr.bf16.mxu0 0
        %1450 = vmatpush1.bf16.msra.mxu0 0
        %1451 = vmatprep.subr.bf16.mxu0 0
        %1452 = vmatpush1.bf16.msra.mxu0 0
        %1453 = vmatprep.subr.bf16.mxu0 0
        %1454 = vmatpush1.bf16.msra.mxu0 0
        %1455 = vmatprep.subr.bf16.mxu0 0
        %1456 = vmatpush1.bf16.msra.mxu0 0
        %1457 = vmatprep.mubr.bf16.mxu0 0
        %1458 = vmatmul.mubr.bf16.gmra.mrb[0].mxu0 %v1423
        %v1459 = vpop.f32.mrb[0].mxu0
        %v1460 = vadd.f32 %v1402, %v1459
        %v1461 = vpop.f32.mrb[0].mxu0
        %v1462 = vpop.f32.mrb[0].mxu0
        %v1463 = vadd.f32 %v1402, %v1462
        %v1464 = vpop.f32.mrb[0].mxu0
        %1465 = vdwg.mxu0
        %v1466 = vtanh.pop %v1460
        %v1467 = vtanh.pop %v1463
        %v1468 = vxor.u32 %v1460, 2147483648
        %v1469 = vxor.u32 %v1463, 2147483648
        %v1470 = vmul.f32 %v1468, 1.442695
        %v1471 = vpow.pop %v1470
        %v1472 = vmul.f32 %v1469, 1.442695
        %v1473 = vpow.pop %v1472
        %v1474 = vadd.f32 %v1471, 1.0
        %v1475 = vadd.f32 %v1473, 1.0
        %v1476 = vrcp.pop %v1474
        %v1477 = vmul.f32 1.0, %v1476
        %v1478 = vrcp.pop %v1475
        %v1479 = vmul.f32 1.0, %v1478
        %1482 = vrot.lane.b32.xlu0 %v1477, 112
        %v1483 = vpop.permute.xlu0 %1482
        %1484 = vrot.lane.b32.xlu0 %v1479, 112
        %v1485 = vpop.permute.xlu0 %1484
        %v1488 = vmul.f32 %v1466, %v1483
        %v1489 = vmul.f32 %v1467, %v1485
        %v1490 = vpack.c.bf16 %v1489, %v1488
        %s1491 = scalar_lea.vmem [#allocation9], 8
        %v1492 = vld [vmem:[%s1491] sm:$0xf]
        %v1493 = vld [vmem:[%s1491 + $0x4] sm:$0xf]
        %v1496 = vunpack.c.l.b16 %v1492
        %v1497 = vunpack.c.l.b16 %v1493
        %v1498 = vpack.c.b16 %v1497, %v1496
        %v1501 = vsel %vm1191, %v1490, 0
        %1503 = vmatprep.subr.bf16.mxu0 0
        %1504 = vmatpush1.bf16.msra.mxu0 %v1498
        %1505 = vmatprep.subr.bf16.mxu0 0
        %1506 = vmatpush1.bf16.msra.mxu0 0
        %1507 = vmatprep.subr.bf16.mxu0 0
        %1508 = vmatpush1.bf16.msra.mxu0 0
        %1509 = vmatprep.subr.bf16.mxu0 0
        %1510 = vmatpush1.bf16.msra.mxu0 0
        %1511 = vmatprep.subr.bf16.mxu0 0
        %1512 = vmatpush1.bf16.msra.mxu0 0
        %1513 = vmatprep.subr.bf16.mxu0 0
        %1514 = vmatpush1.bf16.msra.mxu0 0
        %1515 = vmatprep.subr.bf16.mxu0 0
        %1516 = vmatpush1.bf16.msra.mxu0 0
        %1517 = vmatprep.subr.bf16.mxu0 0
        %1518 = vmatpush1.bf16.msra.mxu0 0
        %1519 = vmatprep.subr.bf16.mxu0 0
        %1520 = vmatpush1.bf16.msra.mxu0 0
        %1521 = vmatprep.subr.bf16.mxu0 0
        %1522 = vmatpush1.bf16.msra.mxu0 0
        %1523 = vmatprep.subr.bf16.mxu0 0
        %1524 = vmatpush1.bf16.msra.mxu0 0
        %1525 = vmatprep.subr.bf16.mxu0 0
        %1526 = vmatpush1.bf16.msra.mxu0 0
        %1527 = vmatprep.subr.bf16.mxu0 0
        %1528 = vmatpush1.bf16.msra.mxu0 0
        %1529 = vmatprep.subr.bf16.mxu0 0
        %1530 = vmatpush1.bf16.msra.mxu0 0
        %1531 = vmatprep.subr.bf16.mxu0 0
        %1532 = vmatpush1.bf16.msra.mxu0 0
        %1533 = vmatprep.subr.bf16.mxu0 0
        %1534 = vmatpush1.bf16.msra.mxu0 0
        %1535 = vmatprep.mubr.bf16.mxu0 0
        %1536 = vmatmul.mubr.bf16.gmra.mrb[0].mxu0 %v1501
        %v1537 = vpop.f32.mrb[0].mxu0
        %v1538 = vadd.f32 0.0, %v1537
        %v1539 = vpop.f32.mrb[0].mxu0
        %v1540 = vpop.f32.mrb[0].mxu0
        %v1541 = vadd.f32 0.0, %v1540
        %v1542 = vpop.f32.mrb[0].mxu0
        %1543 = vdwg.mxu0
        %v1544 = vadd.f32 %v1354, %v1538
        %v1545 = vadd.f32 %v1355, %v1541
        %s1546 = scalar_lea.vmem [#allocation10], 1
        %v1547 = vld [vmem:[%s1546] sm:$0x1]
        %v1549 = vlaneseq
        %v1550 = vshrl.u32 %v1549, 7
        %v1551 = vsub.s32 0, %v1550
        %v1552 = vrot.slane %v1547, %v1551
        %v1554 = vadd.f32 %v1544, %v1552
        %v1555 = vadd.f32 %v1545, %v1552
        %s1556 = scalar_lea.vmem [#allocation6], 48
        %v1557 = vld [vmem:[%s1556] sm:$0xf]
        %v1558 = vld [vmem:[%s1556 + $0x4] sm:$0xf]
        %v1559 = vld [vmem:[%s1556 + $0x8] sm:$0xf]
        %v1560 = vld [vmem:[%s1556 + $0xc] sm:$0xf]
        %v1561 = vld [vmem:[%s1556 + $0x10] sm:$0xf]
        %v1562 = vld [vmem:[%s1556 + $0x14] sm:$0xf]
        %v1565 = vrot.slane %v1554, 4
        %v1566 = vrot.slane %v1555, 4
        %v1567 = vsel %vm1112, %v1565, %v1566
        %v1570 = vsel %vm1112, 0.0, %v1565
        %v1572 = vsel %vm1112, %v1566, 0.0
        %1573 = vrot.lane.b32.xlu0 %v1554, 16
        %v1574 = vpop.permute.xlu0 %1573
        %1575 = vrot.lane.b32.xlu0 %v1555, 16
        %v1576 = vpop.permute.xlu0 %1575
        %1580 = vrot.lane.b32.xlu0 %v1567, 32
        %v1581 = vpop.permute.xlu0 %1580
        %1582 = vrot.lane.b32.xlu0 %v1572, 32
        %v1583 = vpop.permute.xlu0 %1582
        %v1586 = vsel %vm1191, %v1570, %v1574
        %v1587 = vsel %vm1191, %v1567, %v1576
        %v1588 = vsel %vm1194, %v1586, %v1581
        %v1589 = vsel %vm1194, %v1587, %v1583
        %v1590 = vpack.c.bf16 %v1589, %v1588
        %s1591 = scalar_lea.vmem [#allocation7], 2
        %v1592 = vld [vmem:[%s1591] sm:$0x1]
        %v1594 = vlaneseq
        %v1595 = vshrl.u32 %v1594, 7
        %v1596 = vsub.s32 0, %v1595
        %v1597 = vrot.slane %v1592, %v1596
        %v1605 = vunpack.c.l.b16 %v1557
        %v1606 = vunpack.c.l.b16 %v1558
        %v1607 = vunpack.c.l.b16 %v1559
        %v1608 = vunpack.c.l.b16 %v1560
        %v1609 = vunpack.c.l.b16 %v1561
        %v1610 = vunpack.c.l.b16 %v1562
        %v1611 = vpack.c.b16 %v1606, %v1605
        %v1612 = vpack.c.b16 %v1608, %v1607
        %v1613 = vpack.c.b16 %v1610, %v1609
        %v1618 = vsel %vm1223, %v1590, 0
        %1620 = vmatprep.subr.bf16.mxu0 0
        %1621 = vmatpush1.bf16.msra.mxu0 %v1611
        %1622 = vmatprep.subr.bf16.mxu0 0
        %1623 = vmatpush1.bf16.msra.mxu0 %v1612
        %1624 = vmatprep.subr.bf16.mxu0 0
        %1625 = vmatpush1.bf16.msra.mxu0 %v1613
        %1626 = vmatprep.subr.bf16.mxu0 0
        %1627 = vmatpush1.bf16.msra.mxu0 0
        %1628 = vmatprep.subr.bf16.mxu0 0
        %1629 = vmatpush1.bf16.msra.mxu0 0
        %1630 = vmatprep.subr.bf16.mxu0 0
        %1631 = vmatpush1.bf16.msra.mxu0 0
        %1632 = vmatprep.subr.bf16.mxu0 0
        %1633 = vmatpush1.bf16.msra.mxu0 0
        %1634 = vmatprep.subr.bf16.mxu0 0
        %1635 = vmatpush1.bf16.msra.mxu0 0
        %1636 = vmatprep.subr.bf16.mxu0 0
        %1637 = vmatpush1.bf16.msra.mxu0 0
        %1638 = vmatprep.subr.bf16.mxu0 0
        %1639 = vmatpush1.bf16.msra.mxu0 0
        %1640 = vmatprep.subr.bf16.mxu0 0
        %1641 = vmatpush1.bf16.msra.mxu0 0
        %1642 = vmatprep.subr.bf16.mxu0 0
        %1643 = vmatpush1.bf16.msra.mxu0 0
        %1644 = vmatprep.subr.bf16.mxu0 0
        %1645 = vmatpush1.bf16.msra.mxu0 0
        %1646 = vmatprep.subr.bf16.mxu0 0
        %1647 = vmatpush1.bf16.msra.mxu0 0
        %1648 = vmatprep.subr.bf16.mxu0 0
        %1649 = vmatpush1.bf16.msra.mxu0 0
        %1650 = vmatprep.subr.bf16.mxu0 0
        %1651 = vmatpush1.bf16.msra.mxu0 0
        %1652 = vmatprep.mubr.bf16.mxu0 0
        %1653 = vmatmul.mubr.bf16.gmra.mrb[0].mxu0 %v1618
        %v1654 = vpop.f32.mrb[0].mxu0
        %v1655 = vadd.f32 %v1597, %v1654
        %v1656 = vpop.f32.mrb[0].mxu0
        %v1657 = vpop.f32.mrb[0].mxu0
        %v1658 = vadd.f32 %v1597, %v1657
        %v1659 = vpop.f32.mrb[0].mxu0
        %1660 = vdwg.mxu0
        %v1661 = vtanh.pop %v1655
        %v1662 = vtanh.pop %v1658
        %v1663 = vxor.u32 %v1655, 2147483648
        %v1664 = vxor.u32 %v1658, 2147483648
        %v1665 = vmul.f32 %v1663, 1.442695
        %v1666 = vpow.pop %v1665
        %v1667 = vmul.f32 %v1664, 1.442695
        %v1668 = vpow.pop %v1667
        %v1669 = vadd.f32 %v1666, 1.0
        %v1670 = vadd.f32 %v1668, 1.0
        %v1671 = vrcp.pop %v1669
        %v1672 = vmul.f32 1.0, %v1671
        %v1673 = vrcp.pop %v1670
        %v1674 = vmul.f32 1.0, %v1673
        %1677 = vrot.lane.b32.xlu0 %v1672, 112
        %v1678 = vpop.permute.xlu0 %1677
        %1679 = vrot.lane.b32.xlu0 %v1674, 112
        %v1680 = vpop.permute.xlu0 %1679
        %v1683 = vmul.f32 %v1661, %v1678
        %v1684 = vmul.f32 %v1662, %v1680
        %v1685 = vpack.c.bf16 %v1684, %v1683
        %s1686 = scalar_lea.vmem [#allocation9], 16
        %v1687 = vld [vmem:[%s1686] sm:$0xf]
        %v1688 = vld [vmem:[%s1686 + $0x4] sm:$0xf]
        %v1691 = vunpack.c.l.b16 %v1687
        %v1692 = vunpack.c.l.b16 %v1688
        %v1693 = vpack.c.b16 %v1692, %v1691
        %v1696 = vsel %vm1191, %v1685, 0
        %1698 = vmatprep.subr.bf16.mxu0 0
        %1699 = vmatpush1.bf16.msra.mxu0 %v1693
        %1700 = vmatprep.subr.bf16.mxu0 0
        %1701 = vmatpush1.bf16.msra.mxu0 0
        %1702 = vmatprep.subr.bf16.mxu0 0
        %1703 = vmatpush1.bf16.msra.mxu0 0
        %1704 = vmatprep.subr.bf16.mxu0 0
        %1705 = vmatpush1.bf16.msra.mxu0 0
        %1706 = vmatprep.subr.bf16.mxu0 0
        %1707 = vmatpush1.bf16.msra.mxu0 0
        %1708 = vmatprep.subr.bf16.mxu0 0
        %1709 = vmatpush1.bf16.msra.mxu0 0
        %1710 = vmatprep.subr.bf16.mxu0 0
        %1711 = vmatpush1.bf16.msra.mxu0 0
        %1712 = vmatprep.subr.bf16.mxu0 0
        %1713 = vmatpush1.bf16.msra.mxu0 0
        %1714 = vmatprep.subr.bf16.mxu0 0
        %1715 = vmatpush1.bf16.msra.mxu0 0
        %1716 = vmatprep.subr.bf16.mxu0 0
        %1717 = vmatpush1.bf16.msra.mxu0 0
        %1718 = vmatprep.subr.bf16.mxu0 0
        %1719 = vmatpush1.bf16.msra.mxu0 0
        %1720 = vmatprep.subr.bf16.mxu0 0
        %1721 = vmatpush1.bf16.msra.mxu0 0
        %1722 = vmatprep.subr.bf16.mxu0 0
        %1723 = vmatpush1.bf16.msra.mxu0 0
        %1724 = vmatprep.subr.bf16.mxu0 0
        %1725 = vmatpush1.bf16.msra.mxu0 0
        %1726 = vmatprep.subr.bf16.mxu0 0
        %1727 = vmatpush1.bf16.msra.mxu0 0
        %1728 = vmatprep.subr.bf16.mxu0 0
        %1729 = vmatpush1.bf16.msra.mxu0 0
        %1730 = vmatprep.mubr.bf16.mxu0 0
        %1731 = vmatmul.mubr.bf16.gmra.mrb[0].mxu0 %v1696
        %v1732 = vpop.f32.mrb[0].mxu0
        %v1733 = vadd.f32 0.0, %v1732
        %v1734 = vpop.f32.mrb[0].mxu0
        %v1735 = vpop.f32.mrb[0].mxu0
        %v1736 = vadd.f32 0.0, %v1735
        %v1737 = vpop.f32.mrb[0].mxu0
        %1738 = vdwg.mxu0
        %v1739 = vadd.f32 %v1554, %v1733
        %v1740 = vadd.f32 %v1555, %v1736
        %s1741 = scalar_lea.vmem [#allocation10], 2
        %v1742 = vld [vmem:[%s1741] sm:$0x1]
        %v1744 = vlaneseq
        %v1745 = vshrl.u32 %v1744, 7
        %v1746 = vsub.s32 0, %v1745
        %v1747 = vrot.slane %v1742, %v1746
        %v1749 = vadd.f32 %v1739, %v1747
        %v1750 = vadd.f32 %v1740, %v1747
        %s1751 = scalar_lea.vmem [#allocation6], 72
        %v1752 = vld [vmem:[%s1751] sm:$0xf]
        %v1753 = vld [vmem:[%s1751 + $0x4] sm:$0xf]
        %v1754 = vld [vmem:[%s1751 + $0x8] sm:$0xf]
        %v1755 = vld [vmem:[%s1751 + $0xc] sm:$0xf]
        %v1756 = vld [vmem:[%s1751 + $0x10] sm:$0xf]
        %v1757 = vld [vmem:[%s1751 + $0x14] sm:$0xf]
        %1760 = vrot.lane.b32.xlu0 %v1749, 16
        %v1761 = vpop.permute.xlu0 %1760
        %1762 = vrot.lane.b32.xlu0 %v1750, 16
        %v1763 = vpop.permute.xlu0 %1762
        %1767 = vrot.lane.b32.xlu0 %v1750, 32
        %v1768 = vpop.permute.xlu0 %1767
        %1769 = vrot.lane.b32.xlu0 0.0, 32
        %v1770 = vpop.permute.xlu0 %1769
        %v1773 = vsel %vm1191, 0.0, %v1761
        %v1774 = vsel %vm1191, %v1749, %v1763
        %v1775 = vsel %vm1194, %v1773, %v1768
        %v1776 = vsel %vm1194, %v1774, %v1770
        %v1777 = vpack.c.bf16 %v1776, %v1775
        %s1778 = scalar_lea.vmem [#allocation7], 3
        %v1779 = vld [vmem:[%s1778] sm:$0x1]
        %v1781 = vlaneseq
        %v1782 = vshrl.u32 %v1781, 7
        %v1783 = vsub.s32 0, %v1782
        %v1784 = vrot.slane %v1779, %v1783
        %v1792 = vunpack.c.l.b16 %v1752
        %v1793 = vunpack.c.l.b16 %v1753
        %v1794 = vunpack.c.l.b16 %v1754
        %v1795 = vunpack.c.l.b16 %v1755
        %v1796 = vunpack.c.l.b16 %v1756
        %v1797 = vunpack.c.l.b16 %v1757
        %v1798 = vpack.c.b16 %v1793, %v1792
        %v1799 = vpack.c.b16 %v1795, %v1794
        %v1800 = vpack.c.b16 %v1797, %v1796
        %v1805 = vsel %vm1223, %v1777, 0
        %1807 = vmatprep.subr.bf16.mxu0 0
        %1808 = vmatpush1.bf16.msra.mxu0 %v1798
        %1809 = vmatprep.subr.bf16.mxu0 0
        %1810 = vmatpush1.bf16.msra.mxu0 %v1799
        %1811 = vmatprep.subr.bf16.mxu0 0
        %1812 = vmatpush1.bf16.msra.mxu0 %v1800
        %1813 = vmatprep.subr.bf16.mxu0 0
        %1814 = vmatpush1.bf16.msra.mxu0 0
        %1815 = vmatprep.subr.bf16.mxu0 0
        %1816 = vmatpush1.bf16.msra.mxu0 0
        %1817 = vmatprep.subr.bf16.mxu0 0
        %1818 = vmatpush1.bf16.msra.mxu0 0
        %1819 = vmatprep.subr.bf16.mxu0 0
        %1820 = vmatpush1.bf16.msra.mxu0 0
        %1821 = vmatprep.subr.bf16.mxu0 0
        %1822 = vmatpush1.bf16.msra.mxu0 0
        %1823 = vmatprep.subr.bf16.mxu0 0
        %1824 = vmatpush1.bf16.msra.mxu0 0
        %1825 = vmatprep.subr.bf16.mxu0 0
        %1826 = vmatpush1.bf16.msra.mxu0 0
        %1827 = vmatprep.subr.bf16.mxu0 0
        %1828 = vmatpush1.bf16.msra.mxu0 0
        %1829 = vmatprep.subr.bf16.mxu0 0
        %1830 = vmatpush1.bf16.msra.mxu0 0
        %1831 = vmatprep.subr.bf16.mxu0 0
        %1832 = vmatpush1.bf16.msra.mxu0 0
        %1833 = vmatprep.subr.bf16.mxu0 0
        %1834 = vmatpush1.bf16.msra.mxu0 0
        %1835 = vmatprep.subr.bf16.mxu0 0
        %1836 = vmatpush1.bf16.msra.mxu0 0
        %1837 = vmatprep.subr.bf16.mxu0 0
        %1838 = vmatpush1.bf16.msra.mxu0 0
        %1839 = vmatprep.mubr.bf16.mxu0 0
        %1840 = vmatmul.mubr.bf16.gmra.mrb[0].mxu0 %v1805
        %v1841 = vpop.f32.mrb[0].mxu0
        %v1842 = vadd.f32 %v1784, %v1841
        %v1843 = vpop.f32.mrb[0].mxu0
        %v1844 = vpop.f32.mrb[0].mxu0
        %v1845 = vadd.f32 %v1784, %v1844
        %v1846 = vpop.f32.mrb[0].mxu0
        %1847 = vdwg.mxu0
        %v1848 = vtanh.pop %v1842
        %v1849 = vtanh.pop %v1845
        %v1850 = vxor.u32 %v1842, 2147483648
        %v1851 = vxor.u32 %v1845, 2147483648
        %v1852 = vmul.f32 %v1850, 1.442695
        %v1853 = vpow.pop %v1852
        %v1854 = vmul.f32 %v1851, 1.442695
        %v1855 = vpow.pop %v1854
        %v1856 = vadd.f32 %v1853, 1.0
        %v1857 = vadd.f32 %v1855, 1.0
        %v1858 = vrcp.pop %v1856
        %v1859 = vmul.f32 1.0, %v1858
        %v1860 = vrcp.pop %v1857
        %v1861 = vmul.f32 1.0, %v1860
        %1864 = vrot.lane.b32.xlu0 %v1859, 112
        %v1865 = vpop.permute.xlu0 %1864
        %1866 = vrot.lane.b32.xlu0 %v1861, 112
        %v1867 = vpop.permute.xlu0 %1866
        %v1870 = vmul.f32 %v1848, %v1865
        %v1871 = vmul.f32 %v1849, %v1867
        %v1872 = vpack.c.bf16 %v1871, %v1870
        %s1873 = scalar_lea.vmem [#allocation9], 24
        %v1874 = vld [vmem:[%s1873] sm:$0xf]
        %v1875 = vld [vmem:[%s1873 + $0x4] sm:$0xf]
        %v1878 = vunpack.c.l.b16 %v1874
        %v1879 = vunpack.c.l.b16 %v1875
        %v1880 = vpack.c.b16 %v1879, %v1878
        %v1883 = vsel %vm1191, %v1872, 0
        %1885 = vmatprep.subr.bf16.mxu0 0
        %1886 = vmatpush1.bf16.msra.mxu0 %v1880
        %1887 = vmatprep.subr.bf16.mxu0 0
        %1888 = vmatpush1.bf16.msra.mxu0 0
        %1889 = vmatprep.subr.bf16.mxu0 0
        %1890 = vmatpush1.bf16.msra.mxu0 0
        %1891 = vmatprep.subr.bf16.mxu0 0
        %1892 = vmatpush1.bf16.msra.mxu0 0
        %1893 = vmatprep.subr.bf16.mxu0 0
        %1894 = vmatpush1.bf16.msra.mxu0 0
        %1895 = vmatprep.subr.bf16.mxu0 0
        %1896 = vmatpush1.bf16.msra.mxu0 0
        %1897 = vmatprep.subr.bf16.mxu0 0
        %1898 = vmatpush1.bf16.msra.mxu0 0
        %1899 = vmatprep.subr.bf16.mxu0 0
        %1900 = vmatpush1.bf16.msra.mxu0 0
        %1901 = vmatprep.subr.bf16.mxu0 0
        %1902 = vmatpush1.bf16.msra.mxu0 0
        %1903 = vmatprep.subr.bf16.mxu0 0
        %1904 = vmatpush1.bf16.msra.mxu0 0
        %1905 = vmatprep.subr.bf16.mxu0 0
        %1906 = vmatpush1.bf16.msra.mxu0 0
        %1907 = vmatprep.subr.bf16.mxu0 0
        %1908 = vmatpush1.bf16.msra.mxu0 0
        %1909 = vmatprep.subr.bf16.mxu0 0
        %1910 = vmatpush1.bf16.msra.mxu0 0
        %1911 = vmatprep.subr.bf16.mxu0 0
        %1912 = vmatpush1.bf16.msra.mxu0 0
        %1913 = vmatprep.subr.bf16.mxu0 0
        %1914 = vmatpush1.bf16.msra.mxu0 0
        %1915 = vmatprep.subr.bf16.mxu0 0
        %1916 = vmatpush1.bf16.msra.mxu0 0
        %1917 = vmatprep.mubr.bf16.mxu0 0
        %1918 = vmatmul.mubr.bf16.gmra.mrb[0].mxu0 %v1883
        %v1919 = vpop.f32.mrb[0].mxu0
        %v1920 = vadd.f32 0.0, %v1919
        %v1921 = vpop.f32.mrb[0].mxu0
        %v1922 = vpop.f32.mrb[0].mxu0
        %v1923 = vadd.f32 0.0, %v1922
        %v1924 = vpop.f32.mrb[0].mxu0
        %1925 = vdwg.mxu0
        %v1926 = vadd.f32 %v1749, %v1920
        %v1927 = vadd.f32 %v1750, %v1923
        %s1928 = scalar_lea.vmem [#allocation10], 3
        %v1929 = vld [vmem:[%s1928] sm:$0x1]
        %v1931 = vlaneseq
        %v1932 = vshrl.u32 %v1931, 7
        %v1933 = vsub.s32 0, %v1932
        %v1934 = vrot.slane %v1929, %v1933
        %v1936 = vadd.f32 %v1926, %v1934
        %v1937 = vadd.f32 %v1927, %v1934
        %s1938 = scalar_lea.vmem [#allocation6], 96
        %v1939 = vld [vmem:[%s1938 + $0x8] sm:$0xf]
        %v1940 = vld [vmem:[%s1938 + $0xc] sm:$0xf]
        %v1941 = vpack.c.bf16 %v1937, %v1936
        %s1942 = scalar_lea.vmem [#allocation7], 4
        %v1943 = vld [vmem:[%s1942] sm:$0x1]
        %v1945 = vlaneseq
        %v1946 = vshrl.u32 %v1945, 7
        %v1947 = vsub.s32 0, %v1946
        %v1948 = vrot.slane %v1943, %v1947
        %v1952 = vunpack.c.l.b16 %v1939
        %v1953 = vunpack.c.l.b16 %v1940
        %v1954 = vpack.c.b16 %v1953, %v1952
        %v1957 = vsel %vm1191, %v1941, 0
        %1959 = vmatprep.subr.bf16.mxu0 0
        %1960 = vmatpush1.bf16.msra.mxu0 %v1954
        %1961 = vmatprep.subr.bf16.mxu0 0
        %1962 = vmatpush1.bf16.msra.mxu0 0
        %1963 = vmatprep.subr.bf16.mxu0 0
        %1964 = vmatpush1.bf16.msra.mxu0 0
        %1965 = vmatprep.subr.bf16.mxu0 0
        %1966 = vmatpush1.bf16.msra.mxu0 0
        %1967 = vmatprep.subr.bf16.mxu0 0
        %1968 = vmatpush1.bf16.msra.mxu0 0
        %1969 = vmatprep.subr.bf16.mxu0 0
        %1970 = vmatpush1.bf16.msra.mxu0 0
        %1971 = vmatprep.subr.bf16.mxu0 0
        %1972 = vmatpush1.bf16.msra.mxu0 0
        %1973 = vmatprep.subr.bf16.mxu0 0
        %1974 = vmatpush1.bf16.msra.mxu0 0
        %1975 = vmatprep.subr.bf16.mxu0 0
        %1976 = vmatpush1.bf16.msra.mxu0 0
        %1977 = vmatprep.subr.bf16.mxu0 0
        %1978 = vmatpush1.bf16.msra.mxu0 0
        %1979 = vmatprep.subr.bf16.mxu0 0
        %1980 = vmatpush1.bf16.msra.mxu0 0
        %1981 = vmatprep.subr.bf16.mxu0 0
        %1982 = vmatpush1.bf16.msra.mxu0 0
        %1983 = vmatprep.subr.bf16.mxu0 0
        %1984 = vmatpush1.bf16.msra.mxu0 0
        %1985 = vmatprep.subr.bf16.mxu0 0
        %1986 = vmatpush1.bf16.msra.mxu0 0
        %1987 = vmatprep.subr.bf16.mxu0 0
        %1988 = vmatpush1.bf16.msra.mxu0 0
        %1989 = vmatprep.subr.bf16.mxu0 0
        %1990 = vmatpush1.bf16.msra.mxu0 0
        %1991 = vmatprep.mubr.bf16.mxu0 0
        %1992 = vmatmul.mubr.bf16.gmra.mrb[0].mxu0 %v1957
        %v1993 = vpop.f32.mrb[0].mxu0
        %v1994 = vadd.f32 %v1948, %v1993
        %v1995 = vpop.f32.mrb[0].mxu0
        %v1996 = vpop.f32.mrb[0].mxu0
        %v1997 = vadd.f32 %v1948, %v1996
        %v1998 = vpop.f32.mrb[0].mxu0
        %1999 = vdwg.mxu0
        %v2000 = vtanh.pop %v1994
        %v2001 = vtanh.pop %v1997
        %v2002 = vxor.u32 %v1994, 2147483648
        %v2003 = vxor.u32 %v1997, 2147483648
        %v2004 = vmul.f32 %v2002, 1.442695
        %v2005 = vpow.pop %v2004
        %v2006 = vmul.f32 %v2003, 1.442695
        %v2007 = vpow.pop %v2006
        %v2008 = vadd.f32 %v2005, 1.0
        %v2009 = vadd.f32 %v2007, 1.0
        %v2010 = vrcp.pop %v2008
        %v2011 = vmul.f32 1.0, %v2010
        %v2012 = vrcp.pop %v2009
        %v2013 = vmul.f32 1.0, %v2012
        %2016 = vrot.lane.b32.xlu0 %v2011, 112
        %v2017 = vpop.permute.xlu0 %2016
        %2018 = vrot.lane.b32.xlu0 %v2013, 112
        %v2019 = vpop.permute.xlu0 %2018
        %v2022 = vmul.f32 %v2000, %v2017
        %v2023 = vmul.f32 %v2001, %v2019
        %v2024 = vpack.c.bf16 %v2023, %v2022
        %s2025 = scalar_lea.vmem [#allocation9], 32
        %v2026 = vld [vmem:[%s2025] sm:$0xf]
        %v2027 = vld [vmem:[%s2025 + $0x4] sm:$0xf]
        %v2030 = vunpack.c.l.b16 %v2026
        %v2031 = vunpack.c.l.b16 %v2027
        %v2032 = vpack.c.b16 %v2031, %v2030
        %v2035 = vsel %vm1191, %v2024, 0
        %2037 = vmatprep.subr.bf16.mxu0 0
        %2038 = vmatpush1.bf16.msra.mxu0 %v2032
        %2039 = vmatprep.subr.bf16.mxu0 0
        %2040 = vmatpush1.bf16.msra.mxu0 0
        %2041 = vmatprep.subr.bf16.mxu0 0
        %2042 = vmatpush1.bf16.msra.mxu0 0
        %2043 = vmatprep.subr.bf16.mxu0 0
        %2044 = vmatpush1.bf16.msra.mxu0 0
        %2045 = vmatprep.subr.bf16.mxu0 0
        %2046 = vmatpush1.bf16.msra.mxu0 0
        %2047 = vmatprep.subr.bf16.mxu0 0
        %2048 = vmatpush1.bf16.msra.mxu0 0
        %2049 = vmatprep.subr.bf16.mxu0 0
        %2050 = vmatpush1.bf16.msra.mxu0 0
        %2051 = vmatprep.subr.bf16.mxu0 0
        %2052 = vmatpush1.bf16.msra.mxu0 0
        %2053 = vmatprep.subr.bf16.mxu0 0
        %2054 = vmatpush1.bf16.msra.mxu0 0
        %2055 = vmatprep.subr.bf16.mxu0 0
        %2056 = vmatpush1.bf16.msra.mxu0 0
        %2057 = vmatprep.subr.bf16.mxu0 0
        %2058 = vmatpush1.bf16.msra.mxu0 0
        %2059 = vmatprep.subr.bf16.mxu0 0
        %2060 = vmatpush1.bf16.msra.mxu0 0
        %2061 = vmatprep.subr.bf16.mxu0 0
        %2062 = vmatpush1.bf16.msra.mxu0 0
        %2063 = vmatprep.subr.bf16.mxu0 0
        %2064 = vmatpush1.bf16.msra.mxu0 0
        %2065 = vmatprep.subr.bf16.mxu0 0
        %2066 = vmatpush1.bf16.msra.mxu0 0
        %2067 = vmatprep.subr.bf16.mxu0 0
        %2068 = vmatpush1.bf16.msra.mxu0 0
        %2069 = vmatprep.mubr.bf16.mxu0 0
        %2070 = vmatmul.mubr.bf16.gmra.mrb[0].mxu0 %v2035
        %v2071 = vpop.f32.mrb[0].mxu0
        %v2072 = vadd.f32 0.0, %v2071
        %v2073 = vpop.f32.mrb[0].mxu0
        %v2074 = vpop.f32.mrb[0].mxu0
        %v2075 = vadd.f32 0.0, %v2074
        %v2076 = vpop.f32.mrb[0].mxu0
        %2077 = vdwg.mxu0
        %v2078 = vadd.f32 %v1936, %v2072
        %v2079 = vadd.f32 %v1937, %v2075
        %s2080 = scalar_lea.vmem [#allocation10], 4
        %v2081 = vld [vmem:[%s2080] sm:$0x1]
        %v2083 = vlaneseq
        %v2084 = vshrl.u32 %v2083, 7
        %v2085 = vsub.s32 0, %v2084
        %v2086 = vrot.slane %v2081, %v2085
        %v2088 = vadd.f32 %v2078, %v2086
        %v2089 = vadd.f32 %v2079, %v2086
        %s2090 = scalar_lea.vmem [#allocation6], 120
        %v2091 = vld [vmem:[%s2090 + $0x8] sm:$0xf]
        %v2092 = vld [vmem:[%s2090 + $0xc] sm:$0xf]
        %v2093 = vpack.c.bf16 %v2089, %v2088
        %s2094 = scalar_lea.vmem [#allocation7], 5
        %v2095 = vld [vmem:[%s2094] sm:$0x1]
        %v2097 = vlaneseq
        %v2098 = vshrl.u32 %v2097, 7
        %v2099 = vsub.s32 0, %v2098
        %v2100 = vrot.slane %v2095, %v2099
        %v2104 = vunpack.c.l.b16 %v2091
        %v2105 = vunpack.c.l.b16 %v2092
        %v2106 = vpack.c.b16 %v2105, %v2104
        %v2109 = vsel %vm1191, %v2093, 0
        %2111 = vmatprep.subr.bf16.mxu0 0
        %2112 = vmatpush1.bf16.msra.mxu0 %v2106
        %2113 = vmatprep.subr.bf16.mxu0 0
        %2114 = vmatpush1.bf16.msra.mxu0 0
        %2115 = vmatprep.subr.bf16.mxu0 0
        %2116 = vmatpush1.bf16.msra.mxu0 0
        %2117 = vmatprep.subr.bf16.mxu0 0
        %2118 = vmatpush1.bf16.msra.mxu0 0
        %2119 = vmatprep.subr.bf16.mxu0 0
        %2120 = vmatpush1.bf16.msra.mxu0 0
        %2121 = vmatprep.subr.bf16.mxu0 0
        %2122 = vmatpush1.bf16.msra.mxu0 0
        %2123 = vmatprep.subr.bf16.mxu0 0
        %2124 = vmatpush1.bf16.msra.mxu0 0
        %2125 = vmatprep.subr.bf16.mxu0 0
        %2126 = vmatpush1.bf16.msra.mxu0 0
        %2127 = vmatprep.subr.bf16.mxu0 0
        %2128 = vmatpush1.bf16.msra.mxu0 0
        %2129 = vmatprep.subr.bf16.mxu0 0
        %2130 = vmatpush1.bf16.msra.mxu0 0
        %2131 = vmatprep.subr.bf16.mxu0 0
        %2132 = vmatpush1.bf16.msra.mxu0 0
        %2133 = vmatprep.subr.bf16.mxu0 0
        %2134 = vmatpush1.bf16.msra.mxu0 0
        %2135 = vmatprep.subr.bf16.mxu0 0
        %2136 = vmatpush1.bf16.msra.mxu0 0
        %2137 = vmatprep.subr.bf16.mxu0 0
        %2138 = vmatpush1.bf16.msra.mxu0 0
        %2139 = vmatprep.subr.bf16.mxu0 0
        %2140 = vmatpush1.bf16.msra.mxu0 0
        %2141 = vmatprep.subr.bf16.mxu0 0
        %2142 = vmatpush1.bf16.msra.mxu0 0
        %2143 = vmatprep.mubr.bf16.mxu0 0
        %2144 = vmatmul.mubr.bf16.gmra.mrb[0].mxu0 %v2109
        %v2145 = vpop.f32.mrb[0].mxu0
        %v2146 = vadd.f32 %v2100, %v2145
        %v2147 = vpop.f32.mrb[0].mxu0
        %v2148 = vpop.f32.mrb[0].mxu0
        %v2149 = vadd.f32 %v2100, %v2148
        %v2150 = vpop.f32.mrb[0].mxu0
        %2151 = vdwg.mxu0
        %v2152 = vtanh.pop %v2146
        %v2153 = vtanh.pop %v2149
        %v2154 = vxor.u32 %v2146, 2147483648
        %v2155 = vxor.u32 %v2149, 2147483648
        %v2156 = vmul.f32 %v2154, 1.442695
        %v2157 = vpow.pop %v2156
        %v2158 = vmul.f32 %v2155, 1.442695
        %v2159 = vpow.pop %v2158
        %v2160 = vadd.f32 %v2157, 1.0
        %v2161 = vadd.f32 %v2159, 1.0
        %v2162 = vrcp.pop %v2160
        %v2163 = vmul.f32 1.0, %v2162
        %v2164 = vrcp.pop %v2161
        %v2165 = vmul.f32 1.0, %v2164
        %2168 = vrot.lane.b32.xlu0 %v2163, 112
        %v2169 = vpop.permute.xlu0 %2168
        %2170 = vrot.lane.b32.xlu0 %v2165, 112
        %v2171 = vpop.permute.xlu0 %2170
        %v2174 = vmul.f32 %v2152, %v2169
        %v2175 = vmul.f32 %v2153, %v2171
        %v2176 = vpack.c.bf16 %v2175, %v2174
        %s2177 = scalar_lea.vmem [#allocation9], 40
        %v2178 = vld [vmem:[%s2177] sm:$0xf]
        %v2179 = vld [vmem:[%s2177 + $0x4] sm:$0xf]
        %v2182 = vunpack.c.l.b16 %v2178
        %v2183 = vunpack.c.l.b16 %v2179
        %v2184 = vpack.c.b16 %v2183, %v2182
        %v2187 = vsel %vm1191, %v2176, 0
        %2189 = vmatprep.subr.bf16.mxu0 0
        %2190 = vmatpush1.bf16.msra.mxu0 %v2184
        %2191 = vmatprep.subr.bf16.mxu0 0
        %2192 = vmatpush1.bf16.msra.mxu0 0
        %2193 = vmatprep.subr.bf16.mxu0 0
        %2194 = vmatpush1.bf16.msra.mxu0 0
        %2195 = vmatprep.subr.bf16.mxu0 0
        %2196 = vmatpush1.bf16.msra.mxu0 0
        %2197 = vmatprep.subr.bf16.mxu0 0
        %2198 = vmatpush1.bf16.msra.mxu0 0
        %2199 = vmatprep.subr.bf16.mxu0 0
        %2200 = vmatpush1.bf16.msra.mxu0 0
        %2201 = vmatprep.subr.bf16.mxu0 0
        %2202 = vmatpush1.bf16.msra.mxu0 0
        %2203 = vmatprep.subr.bf16.mxu0 0
        %2204 = vmatpush1.bf16.msra.mxu0 0
        %2205 = vmatprep.subr.bf16.mxu0 0
        %2206 = vmatpush1.bf16.msra.mxu0 0
        %2207 = vmatprep.subr.bf16.mxu0 0
        %2208 = vmatpush1.bf16.msra.mxu0 0
        %2209 = vmatprep.subr.bf16.mxu0 0
        %2210 = vmatpush1.bf16.msra.mxu0 0
        %2211 = vmatprep.subr.bf16.mxu0 0
        %2212 = vmatpush1.bf16.msra.mxu0 0
        %2213 = vmatprep.subr.bf16.mxu0 0
        %2214 = vmatpush1.bf16.msra.mxu0 0
        %2215 = vmatprep.subr.bf16.mxu0 0
        %2216 = vmatpush1.bf16.msra.mxu0 0
        %2217 = vmatprep.subr.bf16.mxu0 0
        %2218 = vmatpush1.bf16.msra.mxu0 0
        %2219 = vmatprep.subr.bf16.mxu0 0
        %2220 = vmatpush1.bf16.msra.mxu0 0
        %2221 = vmatprep.mubr.bf16.mxu0 0
        %2222 = vmatmul.mubr.bf16.gmra.mrb[0].mxu0 %v2187
        %v2223 = vpop.f32.mrb[0].mxu0
        %v2224 = vadd.f32 0.0, %v2223
        %v2225 = vpop.f32.mrb[0].mxu0
        %v2226 = vpop.f32.mrb[0].mxu0
        %v2227 = vadd.f32 0.0, %v2226
        %v2228 = vpop.f32.mrb[0].mxu0
        %2229 = vdwg.mxu0
        %v2230 = vadd.f32 %v2088, %v2224
        %v2231 = vadd.f32 %v2089, %v2227
        %s2232 = scalar_lea.vmem [#allocation10], 5
        %v2233 = vld [vmem:[%s2232] sm:$0x1]
        %v2235 = vlaneseq
        %v2236 = vshrl.u32 %v2235, 7
        %v2237 = vsub.s32 0, %v2236
        %v2238 = vrot.slane %v2233, %v2237
        %v2240 = vadd.f32 %v2230, %v2238
        %v2241 = vadd.f32 %v2231, %v2238
        %s2242 = scalar_lea.vmem [#allocation6], 144
        %v2243 = vld [vmem:[%s2242 + $0x8] sm:$0xf]
        %v2244 = vld [vmem:[%s2242 + $0xc] sm:$0xf]
        %v2245 = vpack.c.bf16 %v2241, %v2240
        %s2246 = scalar_lea.vmem [#allocation7], 6
        %v2247 = vld [vmem:[%s2246] sm:$0x1]
        %v2249 = vlaneseq
        %v2250 = vshrl.u32 %v2249, 7
        %v2251 = vsub.s32 0, %v2250
        %v2252 = vrot.slane %v2247, %v2251
        %v2256 = vunpack.c.l.b16 %v2243
        %v2257 = vunpack.c.l.b16 %v2244
        %v2258 = vpack.c.b16 %v2257, %v2256
        %v2261 = vsel %vm1191, %v2245, 0
        %2263 = vmatprep.subr.bf16.mxu0 0
        %2264 = vmatpush1.bf16.msra.mxu0 %v2258
        %2265 = vmatprep.subr.bf16.mxu0 0
        %2266 = vmatpush1.bf16.msra.mxu0 0
        %2267 = vmatprep.subr.bf16.mxu0 0
        %2268 = vmatpush1.bf16.msra.mxu0 0
        %2269 = vmatprep.subr.bf16.mxu0 0
        %2270 = vmatpush1.bf16.msra.mxu0 0
        %2271 = vmatprep.subr.bf16.mxu0 0
        %2272 = vmatpush1.bf16.msra.mxu0 0
        %2273 = vmatprep.subr.bf16.mxu0 0
        %2274 = vmatpush1.bf16.msra.mxu0 0
        %2275 = vmatprep.subr.bf16.mxu0 0
        %2276 = vmatpush1.bf16.msra.mxu0 0
        %2277 = vmatprep.subr.bf16.mxu0 0
        %2278 = vmatpush1.bf16.msra.mxu0 0
        %2279 = vmatprep.subr.bf16.mxu0 0
        %2280 = vmatpush1.bf16.msra.mxu0 0
        %2281 = vmatprep.subr.bf16.mxu0 0
        %2282 = vmatpush1.bf16.msra.mxu0 0
        %2283 = vmatprep.subr.bf16.mxu0 0
        %2284 = vmatpush1.bf16.msra.mxu0 0
        %2285 = vmatprep.subr.bf16.mxu0 0
        %2286 = vmatpush1.bf16.msra.mxu0 0
        %2287 = vmatprep.subr.bf16.mxu0 0
        %2288 = vmatpush1.bf16.msra.mxu0 0
        %2289 = vmatprep.subr.bf16.mxu0 0
        %2290 = vmatpush1.bf16.msra.mxu0 0
        %2291 = vmatprep.subr.bf16.mxu0 0
        %2292 = vmatpush1.bf16.msra.mxu0 0
        %2293 = vmatprep.subr.bf16.mxu0 0
        %2294 = vmatpush1.bf16.msra.mxu0 0
        %2295 = vmatprep.mubr.bf16.mxu0 0
        %2296 = vmatmul.mubr.bf16.gmra.mrb[0].mxu0 %v2261
        %v2297 = vpop.f32.mrb[0].mxu0
        %v2298 = vadd.f32 %v2252, %v2297
        %v2299 = vpop.f32.mrb[0].mxu0
        %v2300 = vpop.f32.mrb[0].mxu0
        %v2301 = vadd.f32 %v2252, %v2300
        %v2302 = vpop.f32.mrb[0].mxu0
        %2303 = vdwg.mxu0
        %v2304 = vtanh.pop %v2298
        %v2305 = vtanh.pop %v2301
        %v2306 = vxor.u32 %v2298, 2147483648
        %v2307 = vxor.u32 %v2301, 2147483648
        %v2308 = vmul.f32 %v2306, 1.442695
        %v2309 = vpow.pop %v2308
        %v2310 = vmul.f32 %v2307, 1.442695
        %v2311 = vpow.pop %v2310
        %v2312 = vadd.f32 %v2309, 1.0
        %v2313 = vadd.f32 %v2311, 1.0
        %v2314 = vrcp.pop %v2312
        %v2315 = vmul.f32 1.0, %v2314
        %v2316 = vrcp.pop %v2313
        %v2317 = vmul.f32 1.0, %v2316
        %2320 = vrot.lane.b32.xlu0 %v2315, 112
        %v2321 = vpop.permute.xlu0 %2320
        %2322 = vrot.lane.b32.xlu0 %v2317, 112
        %v2323 = vpop.permute.xlu0 %2322
        %v2326 = vmul.f32 %v2304, %v2321
        %v2327 = vmul.f32 %v2305, %v2323
        %v2328 = vpack.c.bf16 %v2327, %v2326
        %s2329 = scalar_lea.vmem [#allocation9], 48
        %v2330 = vld [vmem:[%s2329] sm:$0xf]
        %v2331 = vld [vmem:[%s2329 + $0x4] sm:$0xf]
        %v2334 = vunpack.c.l.b16 %v2330
        %v2335 = vunpack.c.l.b16 %v2331
        %v2336 = vpack.c.b16 %v2335, %v2334
        %v2339 = vsel %vm1191, %v2328, 0
        %2341 = vmatprep.subr.bf16.mxu0 0
        %2342 = vmatpush1.bf16.msra.mxu0 %v2336
        %2343 = vmatprep.subr.bf16.mxu0 0
        %2344 = vmatpush1.bf16.msra.mxu0 0
        %2345 = vmatprep.subr.bf16.mxu0 0
        %2346 = vmatpush1.bf16.msra.mxu0 0
        %2347 = vmatprep.subr.bf16.mxu0 0
        %2348 = vmatpush1.bf16.msra.mxu0 0
        %2349 = vmatprep.subr.bf16.mxu0 0
        %2350 = vmatpush1.bf16.msra.mxu0 0
        %2351 = vmatprep.subr.bf16.mxu0 0
        %2352 = vmatpush1.bf16.msra.mxu0 0
        %2353 = vmatprep.subr.bf16.mxu0 0
        %2354 = vmatpush1.bf16.msra.mxu0 0
        %2355 = vmatprep.subr.bf16.mxu0 0
        %2356 = vmatpush1.bf16.msra.mxu0 0
        %2357 = vmatprep.subr.bf16.mxu0 0
        %2358 = vmatpush1.bf16.msra.mxu0 0
        %2359 = vmatprep.subr.bf16.mxu0 0
        %2360 = vmatpush1.bf16.msra.mxu0 0
        %2361 = vmatprep.subr.bf16.mxu0 0
        %2362 = vmatpush1.bf16.msra.mxu0 0
        %2363 = vmatprep.subr.bf16.mxu0 0
        %2364 = vmatpush1.bf16.msra.mxu0 0
        %2365 = vmatprep.subr.bf16.mxu0 0
        %2366 = vmatpush1.bf16.msra.mxu0 0
        %2367 = vmatprep.subr.bf16.mxu0 0
        %2368 = vmatpush1.bf16.msra.mxu0 0
        %2369 = vmatprep.subr.bf16.mxu0 0
        %2370 = vmatpush1.bf16.msra.mxu0 0
        %2371 = vmatprep.subr.bf16.mxu0 0
        %2372 = vmatpush1.bf16.msra.mxu0 0
        %2373 = vmatprep.mubr.bf16.mxu0 0
        %2374 = vmatmul.mubr.bf16.gmra.mrb[0].mxu0 %v2339
        %v2375 = vpop.f32.mrb[0].mxu0
        %v2376 = vadd.f32 0.0, %v2375
        %v2377 = vpop.f32.mrb[0].mxu0
        %v2378 = vpop.f32.mrb[0].mxu0
        %v2379 = vadd.f32 0.0, %v2378
        %v2380 = vpop.f32.mrb[0].mxu0
        %2381 = vdwg.mxu0
        %v2382 = vadd.f32 %v2240, %v2376
        %v2383 = vadd.f32 %v2241, %v2379
        %s2384 = scalar_lea.vmem [#allocation10], 6
        %v2385 = vld [vmem:[%s2384] sm:$0x1]
        %v2387 = vlaneseq
        %v2388 = vshrl.u32 %v2387, 7
        %v2389 = vsub.s32 0, %v2388
        %v2390 = vrot.slane %v2385, %v2389
        %v2392 = vadd.f32 %v2382, %v2390
        %v2393 = vadd.f32 %v2383, %v2390
        %s2394 = scalar_lea.vmem [#allocation6], 168
        %v2395 = vld [vmem:[%s2394 + $0x8] sm:$0xf]
        %v2396 = vld [vmem:[%s2394 + $0xc] sm:$0xf]
        %v2397 = vpack.c.bf16 %v2393, %v2392
        %s2398 = scalar_lea.vmem [#allocation7], 7
        %v2399 = vld [vmem:[%s2398] sm:$0x1]
        %v2401 = vlaneseq
        %v2402 = vshrl.u32 %v2401, 7
        %v2403 = vsub.s32 0, %v2402
        %v2404 = vrot.slane %v2399, %v2403
        %v2408 = vunpack.c.l.b16 %v2395
        %v2409 = vunpack.c.l.b16 %v2396
        %v2410 = vpack.c.b16 %v2409, %v2408
        %v2413 = vsel %vm1191, %v2397, 0
        %2415 = vmatprep.subr.bf16.mxu0 0
        %2416 = vmatpush1.bf16.msra.mxu0 %v2410
        %2417 = vmatprep.subr.bf16.mxu0 0
        %2418 = vmatpush1.bf16.msra.mxu0 0
        %2419 = vmatprep.subr.bf16.mxu0 0
        %2420 = vmatpush1.bf16.msra.mxu0 0
        %2421 = vmatprep.subr.bf16.mxu0 0
        %2422 = vmatpush1.bf16.msra.mxu0 0
        %2423 = vmatprep.subr.bf16.mxu0 0
        %2424 = vmatpush1.bf16.msra.mxu0 0
        %2425 = vmatprep.subr.bf16.mxu0 0
        %2426 = vmatpush1.bf16.msra.mxu0 0
        %2427 = vmatprep.subr.bf16.mxu0 0
        %2428 = vmatpush1.bf16.msra.mxu0 0
        %2429 = vmatprep.subr.bf16.mxu0 0
        %2430 = vmatpush1.bf16.msra.mxu0 0
        %2431 = vmatprep.subr.bf16.mxu0 0
        %2432 = vmatpush1.bf16.msra.mxu0 0
        %2433 = vmatprep.subr.bf16.mxu0 0
        %2434 = vmatpush1.bf16.msra.mxu0 0
        %2435 = vmatprep.subr.bf16.mxu0 0
        %2436 = vmatpush1.bf16.msra.mxu0 0
        %2437 = vmatprep.subr.bf16.mxu0 0
        %2438 = vmatpush1.bf16.msra.mxu0 0
        %2439 = vmatprep.subr.bf16.mxu0 0
        %2440 = vmatpush1.bf16.msra.mxu0 0
        %2441 = vmatprep.subr.bf16.mxu0 0
        %2442 = vmatpush1.bf16.msra.mxu0 0
        %2443 = vmatprep.subr.bf16.mxu0 0
        %2444 = vmatpush1.bf16.msra.mxu0 0
        %2445 = vmatprep.subr.bf16.mxu0 0
        %2446 = vmatpush1.bf16.msra.mxu0 0
        %2447 = vmatprep.mubr.bf16.mxu0 0
        %2448 = vmatmul.mubr.bf16.gmra.mrb[0].mxu0 %v2413
        %v2449 = vpop.f32.mrb[0].mxu0
        %v2450 = vadd.f32 %v2404, %v2449
        %v2451 = vpop.f32.mrb[0].mxu0
        %v2452 = vpop.f32.mrb[0].mxu0
        %v2453 = vadd.f32 %v2404, %v2452
        %v2454 = vpop.f32.mrb[0].mxu0
        %2455 = vdwg.mxu0
        %v2456 = vtanh.pop %v2450
        %v2457 = vtanh.pop %v2453
        %v2458 = vxor.u32 %v2450, 2147483648
        %v2459 = vxor.u32 %v2453, 2147483648
        %v2460 = vmul.f32 %v2458, 1.442695
        %v2461 = vpow.pop %v2460
        %v2462 = vmul.f32 %v2459, 1.442695
        %v2463 = vpow.pop %v2462
        %v2464 = vadd.f32 %v2461, 1.0
        %v2465 = vadd.f32 %v2463, 1.0
        %v2466 = vrcp.pop %v2464
        %v2467 = vmul.f32 1.0, %v2466
        %v2468 = vrcp.pop %v2465
        %v2469 = vmul.f32 1.0, %v2468
        %2472 = vrot.lane.b32.xlu0 %v2467, 112
        %v2473 = vpop.permute.xlu0 %2472
        %2474 = vrot.lane.b32.xlu0 %v2469, 112
        %v2475 = vpop.permute.xlu0 %2474
        %v2478 = vmul.f32 %v2456, %v2473
        %v2479 = vmul.f32 %v2457, %v2475
        %v2480 = vpack.c.bf16 %v2479, %v2478
        %s2481 = scalar_lea.vmem [#allocation9], 56
        %v2482 = vld [vmem:[%s2481] sm:$0xf]
        %v2483 = vld [vmem:[%s2481 + $0x4] sm:$0xf]
        %v2486 = vunpack.c.l.b16 %v2482
        %v2487 = vunpack.c.l.b16 %v2483
        %v2488 = vpack.c.b16 %v2487, %v2486
        %v2491 = vsel %vm1191, %v2480, 0
        %2493 = vmatprep.subr.bf16.mxu0 0
        %2494 = vmatpush1.bf16.msra.mxu0 %v2488
        %2495 = vmatprep.subr.bf16.mxu0 0
        %2496 = vmatpush1.bf16.msra.mxu0 0
        %2497 = vmatprep.subr.bf16.mxu0 0
        %2498 = vmatpush1.bf16.msra.mxu0 0
        %2499 = vmatprep.subr.bf16.mxu0 0
        %2500 = vmatpush1.bf16.msra.mxu0 0
        %2501 = vmatprep.subr.bf16.mxu0 0
        %2502 = vmatpush1.bf16.msra.mxu0 0
        %2503 = vmatprep.subr.bf16.mxu0 0
        %2504 = vmatpush1.bf16.msra.mxu0 0
        %2505 = vmatprep.subr.bf16.mxu0 0
        %2506 = vmatpush1.bf16.msra.mxu0 0
        %2507 = vmatprep.subr.bf16.mxu0 0
        %2508 = vmatpush1.bf16.msra.mxu0 0
        %2509 = vmatprep.subr.bf16.mxu0 0
        %2510 = vmatpush1.bf16.msra.mxu0 0
        %2511 = vmatprep.subr.bf16.mxu0 0
        %2512 = vmatpush1.bf16.msra.mxu0 0
        %2513 = vmatprep.subr.bf16.mxu0 0
        %2514 = vmatpush1.bf16.msra.mxu0 0
        %2515 = vmatprep.subr.bf16.mxu0 0
        %2516 = vmatpush1.bf16.msra.mxu0 0
        %2517 = vmatprep.subr.bf16.mxu0 0
        %2518 = vmatpush1.bf16.msra.mxu0 0
        %2519 = vmatprep.subr.bf16.mxu0 0
        %2520 = vmatpush1.bf16.msra.mxu0 0
        %2521 = vmatprep.subr.bf16.mxu0 0
        %2522 = vmatpush1.bf16.msra.mxu0 0
        %2523 = vmatprep.subr.bf16.mxu0 0
        %2524 = vmatpush1.bf16.msra.mxu0 0
        %2525 = vmatprep.mubr.bf16.mxu0 0
        %2526 = vmatmul.mubr.bf16.gmra.mrb[0].mxu0 %v2491
        %v2527 = vpop.f32.mrb[0].mxu0
        %v2528 = vadd.f32 0.0, %v2527
        %v2529 = vpop.f32.mrb[0].mxu0
        %v2530 = vpop.f32.mrb[0].mxu0
        %v2531 = vadd.f32 0.0, %v2530
        %v2532 = vpop.f32.mrb[0].mxu0
        %2533 = vdwg.mxu0
        %v2534 = vadd.f32 %v2392, %v2528
        %v2535 = vadd.f32 %v2393, %v2531
        %s2536 = scalar_lea.vmem [#allocation10], 7
        %v2537 = vld [vmem:[%s2536] sm:$0x1]
        %v2539 = vlaneseq
        %v2540 = vshrl.u32 %v2539, 7
        %v2541 = vsub.s32 0, %v2540
        %v2542 = vrot.slane %v2537, %v2541
        %v2544 = vadd.f32 %v2534, %v2542
        %v2545 = vadd.f32 %v2535, %v2542
        %s2546 = scalar_lea.vmem [#allocation6], 192
        %v2547 = vld [vmem:[%s2546 + $0x8] sm:$0xf]
        %v2548 = vld [vmem:[%s2546 + $0xc] sm:$0xf]
        %v2549 = vpack.c.bf16 %v2545, %v2544
        %s2550 = scalar_lea.vmem [#allocation7], 8
        %v2551 = vld [vmem:[%s2550] sm:$0x1]
        %v2553 = vlaneseq
        %v2554 = vshrl.u32 %v2553, 7
        %v2555 = vsub.s32 0, %v2554
        %v2556 = vrot.slane %v2551, %v2555
        %v2560 = vunpack.c.l.b16 %v2547
        %v2561 = vunpack.c.l.b16 %v2548
        %v2562 = vpack.c.b16 %v2561, %v2560
        %v2565 = vsel %vm1191, %v2549, 0
        %2567 = vmatprep.subr.bf16.mxu0 0
        %2568 = vmatpush1.bf16.msra.mxu0 %v2562
        %2569 = vmatprep.subr.bf16.mxu0 0
        %2570 = vmatpush1.bf16.msra.mxu0 0
        %2571 = vmatprep.subr.bf16.mxu0 0
        %2572 = vmatpush1.bf16.msra.mxu0 0
        %2573 = vmatprep.subr.bf16.mxu0 0
        %2574 = vmatpush1.bf16.msra.mxu0 0
        %2575 = vmatprep.subr.bf16.mxu0 0
        %2576 = vmatpush1.bf16.msra.mxu0 0
        %2577 = vmatprep.subr.bf16.mxu0 0
        %2578 = vmatpush1.bf16.msra.mxu0 0
        %2579 = vmatprep.subr.bf16.mxu0 0
        %2580 = vmatpush1.bf16.msra.mxu0 0
        %2581 = vmatprep.subr.bf16.mxu0 0
        %2582 = vmatpush1.bf16.msra.mxu0 0
        %2583 = vmatprep.subr.bf16.mxu0 0
        %2584 = vmatpush1.bf16.msra.mxu0 0
        %2585 = vmatprep.subr.bf16.mxu0 0
        %2586 = vmatpush1.bf16.msra.mxu0 0
        %2587 = vmatprep.subr.bf16.mxu0 0
        %2588 = vmatpush1.bf16.msra.mxu0 0
        %2589 = vmatprep.subr.bf16.mxu0 0
        %2590 = vmatpush1.bf16.msra.mxu0 0
        %2591 = vmatprep.subr.bf16.mxu0 0
        %2592 = vmatpush1.bf16.msra.mxu0 0
        %2593 = vmatprep.subr.bf16.mxu0 0
        %2594 = vmatpush1.bf16.msra.mxu0 0
        %2595 = vmatprep.subr.bf16.mxu0 0
        %2596 = vmatpush1.bf16.msra.mxu0 0
        %2597 = vmatprep.subr.bf16.mxu0 0
        %2598 = vmatpush1.bf16.msra.mxu0 0
        %2599 = vmatprep.mubr.bf16.mxu0 0
        %2600 = vmatmul.mubr.bf16.gmra.mrb[0].mxu0 %v2565
        %v2601 = vpop.f32.mrb[0].mxu0
        %v2602 = vadd.f32 %v2556, %v2601
        %v2603 = vpop.f32.mrb[0].mxu0
        %v2604 = vpop.f32.mrb[0].mxu0
        %v2605 = vadd.f32 %v2556, %v2604
        %v2606 = vpop.f32.mrb[0].mxu0
        %2607 = vdwg.mxu0
        %v2608 = vtanh.pop %v2602
        %v2609 = vtanh.pop %v2605
        %v2610 = vxor.u32 %v2602, 2147483648
        %v2611 = vxor.u32 %v2605, 2147483648
        %v2612 = vmul.f32 %v2610, 1.442695
        %v2613 = vpow.pop %v2612
        %v2614 = vmul.f32 %v2611, 1.442695
        %v2615 = vpow.pop %v2614
        %v2616 = vadd.f32 %v2613, 1.0
        %v2617 = vadd.f32 %v2615, 1.0
        %v2618 = vrcp.pop %v2616
        %v2619 = vmul.f32 1.0, %v2618
        %v2620 = vrcp.pop %v2617
        %v2621 = vmul.f32 1.0, %v2620
        %2624 = vrot.lane.b32.xlu0 %v2619, 112
        %v2625 = vpop.permute.xlu0 %2624
        %2626 = vrot.lane.b32.xlu0 %v2621, 112
        %v2627 = vpop.permute.xlu0 %2626
        %v2630 = vmul.f32 %v2608, %v2625
        %v2631 = vmul.f32 %v2609, %v2627
        %v2632 = vpack.c.bf16 %v2631, %v2630
        %s2633 = scalar_lea.vmem [#allocation9], 64
        %v2634 = vld [vmem:[%s2633] sm:$0xf]
        %v2635 = vld [vmem:[%s2633 + $0x4] sm:$0xf]
        %v2638 = vunpack.c.l.b16 %v2634
        %v2639 = vunpack.c.l.b16 %v2635
        %v2640 = vpack.c.b16 %v2639, %v2638
        %v2643 = vsel %vm1191, %v2632, 0
        %2645 = vmatprep.subr.bf16.mxu0 0
        %2646 = vmatpush1.bf16.msra.mxu0 %v2640
        %2647 = vmatprep.subr.bf16.mxu0 0
        %2648 = vmatpush1.bf16.msra.mxu0 0
        %2649 = vmatprep.subr.bf16.mxu0 0
        %2650 = vmatpush1.bf16.msra.mxu0 0
        %2651 = vmatprep.subr.bf16.mxu0 0
        %2652 = vmatpush1.bf16.msra.mxu0 0
        %2653 = vmatprep.subr.bf16.mxu0 0
        %2654 = vmatpush1.bf16.msra.mxu0 0
        %2655 = vmatprep.subr.bf16.mxu0 0
        %2656 = vmatpush1.bf16.msra.mxu0 0
        %2657 = vmatprep.subr.bf16.mxu0 0
        %2658 = vmatpush1.bf16.msra.mxu0 0
        %2659 = vmatprep.subr.bf16.mxu0 0
        %2660 = vmatpush1.bf16.msra.mxu0 0
        %2661 = vmatprep.subr.bf16.mxu0 0
        %2662 = vmatpush1.bf16.msra.mxu0 0
        %2663 = vmatprep.subr.bf16.mxu0 0
        %2664 = vmatpush1.bf16.msra.mxu0 0
        %2665 = vmatprep.subr.bf16.mxu0 0
        %2666 = vmatpush1.bf16.msra.mxu0 0
        %2667 = vmatprep.subr.bf16.mxu0 0
        %2668 = vmatpush1.bf16.msra.mxu0 0
        %2669 = vmatprep.subr.bf16.mxu0 0
        %2670 = vmatpush1.bf16.msra.mxu0 0
        %2671 = vmatprep.subr.bf16.mxu0 0
        %2672 = vmatpush1.bf16.msra.mxu0 0
        %2673 = vmatprep.subr.bf16.mxu0 0
        %2674 = vmatpush1.bf16.msra.mxu0 0
        %2675 = vmatprep.subr.bf16.mxu0 0
        %2676 = vmatpush1.bf16.msra.mxu0 0
        %2677 = vmatprep.mubr.bf16.mxu0 0
        %2678 = vmatmul.mubr.bf16.gmra.mrb[0].mxu0 %v2643
        %v2679 = vpop.f32.mrb[0].mxu0
        %v2680 = vadd.f32 0.0, %v2679
        %v2681 = vpop.f32.mrb[0].mxu0
        %v2682 = vpop.f32.mrb[0].mxu0
        %v2683 = vadd.f32 0.0, %v2682
        %v2684 = vpop.f32.mrb[0].mxu0
        %2685 = vdwg.mxu0
        %v2686 = vadd.f32 %v2544, %v2680
        %v2687 = vadd.f32 %v2545, %v2683
        %s2688 = scalar_lea.vmem [#allocation10], 8
        %v2689 = vld [vmem:[%s2688] sm:$0x1]
        %v2691 = vlaneseq
        %v2692 = vshrl.u32 %v2691, 7
        %v2693 = vsub.s32 0, %v2692
        %v2694 = vrot.slane %v2689, %v2693
        %v2696 = vadd.f32 %v2686, %v2694
        %v2697 = vadd.f32 %v2687, %v2694
        %s2698 = scalar_lea.vmem [#allocation6], 216
        %v2699 = vld [vmem:[%s2698 + $0x8] sm:$0xf]
        %v2700 = vld [vmem:[%s2698 + $0xc] sm:$0xf]
        %v2701 = vpack.c.bf16 %v2697, %v2696
        %s2702 = scalar_lea.vmem [#allocation7], 9
        %v2703 = vld [vmem:[%s2702] sm:$0x1]
        %v2705 = vlaneseq
        %v2706 = vshrl.u32 %v2705, 7
        %v2707 = vsub.s32 0, %v2706
        %v2708 = vrot.slane %v2703, %v2707
        %v2712 = vunpack.c.l.b16 %v2699
        %v2713 = vunpack.c.l.b16 %v2700
        %v2714 = vpack.c.b16 %v2713, %v2712
        %v2717 = vsel %vm1191, %v2701, 0
        %2719 = vmatprep.subr.bf16.mxu0 0
        %2720 = vmatpush1.bf16.msra.mxu0 %v2714
        %2721 = vmatprep.subr.bf16.mxu0 0
        %2722 = vmatpush1.bf16.msra.mxu0 0
        %2723 = vmatprep.subr.bf16.mxu0 0
        %2724 = vmatpush1.bf16.msra.mxu0 0
        %2725 = vmatprep.subr.bf16.mxu0 0
        %2726 = vmatpush1.bf16.msra.mxu0 0
        %2727 = vmatprep.subr.bf16.mxu0 0
        %2728 = vmatpush1.bf16.msra.mxu0 0
        %2729 = vmatprep.subr.bf16.mxu0 0
        %2730 = vmatpush1.bf16.msra.mxu0 0
        %2731 = vmatprep.subr.bf16.mxu0 0
        %2732 = vmatpush1.bf16.msra.mxu0 0
        %2733 = vmatprep.subr.bf16.mxu0 0
        %2734 = vmatpush1.bf16.msra.mxu0 0
        %2735 = vmatprep.subr.bf16.mxu0 0
        %2736 = vmatpush1.bf16.msra.mxu0 0
        %2737 = vmatprep.subr.bf16.mxu0 0
        %2738 = vmatpush1.bf16.msra.mxu0 0
        %2739 = vmatprep.subr.bf16.mxu0 0
        %2740 = vmatpush1.bf16.msra.mxu0 0
        %2741 = vmatprep.subr.bf16.mxu0 0
        %2742 = vmatpush1.bf16.msra.mxu0 0
        %2743 = vmatprep.subr.bf16.mxu0 0
        %2744 = vmatpush1.bf16.msra.mxu0 0
        %2745 = vmatprep.subr.bf16.mxu0 0
        %2746 = vmatpush1.bf16.msra.mxu0 0
        %2747 = vmatprep.subr.bf16.mxu0 0
        %2748 = vmatpush1.bf16.msra.mxu0 0
        %2749 = vmatprep.subr.bf16.mxu0 0
        %2750 = vmatpush1.bf16.msra.mxu0 0
        %2751 = vmatprep.mubr.bf16.mxu0 0
        %2752 = vmatmul.mubr.bf16.gmra.mrb[0].mxu0 %v2717
        %v2753 = vpop.f32.mrb[0].mxu0
        %v2754 = vadd.f32 %v2708, %v2753
        %v2755 = vpop.f32.mrb[0].mxu0
        %v2756 = vpop.f32.mrb[0].mxu0
        %v2757 = vadd.f32 %v2708, %v2756
        %v2758 = vpop.f32.mrb[0].mxu0
        %2759 = vdwg.mxu0
        %v2760 = vtanh.pop %v2754
        %v2761 = vtanh.pop %v2757
        %v2762 = vxor.u32 %v2754, 2147483648
        %v2763 = vxor.u32 %v2757, 2147483648
        %v2764 = vmul.f32 %v2762, 1.442695
        %v2765 = vpow.pop %v2764
        %v2766 = vmul.f32 %v2763, 1.442695
        %v2767 = vpow.pop %v2766
        %v2768 = vadd.f32 %v2765, 1.0
        %v2769 = vadd.f32 %v2767, 1.0
        %v2770 = vrcp.pop %v2768
        %v2771 = vmul.f32 1.0, %v2770
        %v2772 = vrcp.pop %v2769
        %v2773 = vmul.f32 1.0, %v2772
        %2776 = vrot.lane.b32.xlu0 %v2771, 112
        %v2777 = vpop.permute.xlu0 %2776
        %2778 = vrot.lane.b32.xlu0 %v2773, 112
        %v2779 = vpop.permute.xlu0 %2778
        %v2782 = vmul.f32 %v2760, %v2777
        %v2783 = vmul.f32 %v2761, %v2779
        %v2784 = vpack.c.bf16 %v2783, %v2782
        %s2785 = scalar_lea.vmem [#allocation9], 72
        %v2786 = vld [vmem:[%s2785] sm:$0xf]
        %v2787 = vld [vmem:[%s2785 + $0x4] sm:$0xf]
        %v2790 = vunpack.c.l.b16 %v2786
        %v2791 = vunpack.c.l.b16 %v2787
        %v2792 = vpack.c.b16 %v2791, %v2790
        %v2795 = vsel %vm1191, %v2784, 0
        %2797 = vmatprep.subr.bf16.mxu0 0
        %2798 = vmatpush1.bf16.msra.mxu0 %v2792
        %2799 = vmatprep.subr.bf16.mxu0 0
        %2800 = vmatpush1.bf16.msra.mxu0 0
        %2801 = vmatprep.subr.bf16.mxu0 0
        %2802 = vmatpush1.bf16.msra.mxu0 0
        %2803 = vmatprep.subr.bf16.mxu0 0
        %2804 = vmatpush1.bf16.msra.mxu0 0
        %2805 = vmatprep.subr.bf16.mxu0 0
        %2806 = vmatpush1.bf16.msra.mxu0 0
        %2807 = vmatprep.subr.bf16.mxu0 0
        %2808 = vmatpush1.bf16.msra.mxu0 0
        %2809 = vmatprep.subr.bf16.mxu0 0
        %2810 = vmatpush1.bf16.msra.mxu0 0
        %2811 = vmatprep.subr.bf16.mxu0 0
        %2812 = vmatpush1.bf16.msra.mxu0 0
        %2813 = vmatprep.subr.bf16.mxu0 0
        %2814 = vmatpush1.bf16.msra.mxu0 0
        %2815 = vmatprep.subr.bf16.mxu0 0
        %2816 = vmatpush1.bf16.msra.mxu0 0
        %2817 = vmatprep.subr.bf16.mxu0 0
        %2818 = vmatpush1.bf16.msra.mxu0 0
        %2819 = vmatprep.subr.bf16.mxu0 0
        %2820 = vmatpush1.bf16.msra.mxu0 0
        %2821 = vmatprep.subr.bf16.mxu0 0
        %2822 = vmatpush1.bf16.msra.mxu0 0
        %2823 = vmatprep.subr.bf16.mxu0 0
        %2824 = vmatpush1.bf16.msra.mxu0 0
        %2825 = vmatprep.subr.bf16.mxu0 0
        %2826 = vmatpush1.bf16.msra.mxu0 0
        %2827 = vmatprep.subr.bf16.mxu0 0
        %2828 = vmatpush1.bf16.msra.mxu0 0
        %2829 = vmatprep.mubr.bf16.mxu0 0
        %2830 = vmatmul.mubr.bf16.gmra.mrb[0].mxu0 %v2795
        %v2831 = vpop.f32.mrb[0].mxu0
        %v2832 = vadd.f32 0.0, %v2831
        %v2833 = vpop.f32.mrb[0].mxu0
        %v2834 = vpop.f32.mrb[0].mxu0
        %v2835 = vadd.f32 0.0, %v2834
        %v2836 = vpop.f32.mrb[0].mxu0
        %2837 = vdwg.mxu0
        %v2838 = vadd.f32 %v2696, %v2832
        %v2839 = vadd.f32 %v2697, %v2835
        %s2840 = scalar_lea.vmem [#allocation10], 9
        %v2841 = vld [vmem:[%s2840] sm:$0x1]
        %v2843 = vlaneseq
        %v2844 = vshrl.u32 %v2843, 7
        %v2845 = vsub.s32 0, %v2844
        %v2846 = vrot.slane %v2841, %v2845
        %v2848 = vadd.f32 %v2838, %v2846
        %v2849 = vadd.f32 %v2839, %v2846
        %s2850 = scalar_lea.vmem [#allocation6], 240
        %v2851 = vld [vmem:[%s2850 + $0x8] sm:$0xf]
        %v2852 = vld [vmem:[%s2850 + $0xc] sm:$0xf]
        %v2853 = vpack.c.bf16 %v2849, %v2848
        %s2854 = scalar_lea.vmem [#allocation7], 10
        %v2855 = vld [vmem:[%s2854] sm:$0x1]
        %v2857 = vlaneseq
        %v2858 = vshrl.u32 %v2857, 7
        %v2859 = vsub.s32 0, %v2858
        %v2860 = vrot.slane %v2855, %v2859
        %v2864 = vunpack.c.l.b16 %v2851
        %v2865 = vunpack.c.l.b16 %v2852
        %v2866 = vpack.c.b16 %v2865, %v2864
        %v2869 = vsel %vm1191, %v2853, 0
        %2871 = vmatprep.subr.bf16.mxu0 0
        %2872 = vmatpush1.bf16.msra.mxu0 %v2866
        %2873 = vmatprep.subr.bf16.mxu0 0
        %2874 = vmatpush1.bf16.msra.mxu0 0
        %2875 = vmatprep.subr.bf16.mxu0 0
        %2876 = vmatpush1.bf16.msra.mxu0 0
        %2877 = vmatprep.subr.bf16.mxu0 0
        %2878 = vmatpush1.bf16.msra.mxu0 0
        %2879 = vmatprep.subr.bf16.mxu0 0
        %2880 = vmatpush1.bf16.msra.mxu0 0
        %2881 = vmatprep.subr.bf16.mxu0 0
        %2882 = vmatpush1.bf16.msra.mxu0 0
        %2883 = vmatprep.subr.bf16.mxu0 0
        %2884 = vmatpush1.bf16.msra.mxu0 0
        %2885 = vmatprep.subr.bf16.mxu0 0
        %2886 = vmatpush1.bf16.msra.mxu0 0
        %2887 = vmatprep.subr.bf16.mxu0 0
        %2888 = vmatpush1.bf16.msra.mxu0 0
        %2889 = vmatprep.subr.bf16.mxu0 0
        %2890 = vmatpush1.bf16.msra.mxu0 0
        %2891 = vmatprep.subr.bf16.mxu0 0
        %2892 = vmatpush1.bf16.msra.mxu0 0
        %2893 = vmatprep.subr.bf16.mxu0 0
        %2894 = vmatpush1.bf16.msra.mxu0 0
        %2895 = vmatprep.subr.bf16.mxu0 0
        %2896 = vmatpush1.bf16.msra.mxu0 0
        %2897 = vmatprep.subr.bf16.mxu0 0
        %2898 = vmatpush1.bf16.msra.mxu0 0
        %2899 = vmatprep.subr.bf16.mxu0 0
        %2900 = vmatpush1.bf16.msra.mxu0 0
        %2901 = vmatprep.subr.bf16.mxu0 0
        %2902 = vmatpush1.bf16.msra.mxu0 0
        %2903 = vmatprep.mubr.bf16.mxu0 0
        %2904 = vmatmul.mubr.bf16.gmra.mrb[0].mxu0 %v2869
        %v2905 = vpop.f32.mrb[0].mxu0
        %v2906 = vadd.f32 %v2860, %v2905
        %v2907 = vpop.f32.mrb[0].mxu0
        %v2908 = vpop.f32.mrb[0].mxu0
        %v2909 = vadd.f32 %v2860, %v2908
        %v2910 = vpop.f32.mrb[0].mxu0
        %2911 = vdwg.mxu0
        %v2912 = vtanh.pop %v2906
        %v2913 = vtanh.pop %v2909
        %v2914 = vxor.u32 %v2906, 2147483648
        %v2915 = vxor.u32 %v2909, 2147483648
        %v2916 = vmul.f32 %v2914, 1.442695
        %v2917 = vpow.pop %v2916
        %v2918 = vmul.f32 %v2915, 1.442695
        %v2919 = vpow.pop %v2918
        %v2920 = vadd.f32 %v2917, 1.0
        %v2921 = vadd.f32 %v2919, 1.0
        %v2922 = vrcp.pop %v2920
        %v2923 = vmul.f32 1.0, %v2922
        %v2924 = vrcp.pop %v2921
        %v2925 = vmul.f32 1.0, %v2924
        %2928 = vrot.lane.b32.xlu0 %v2923, 112
        %v2929 = vpop.permute.xlu0 %2928
        %2930 = vrot.lane.b32.xlu0 %v2925, 112
        %v2931 = vpop.permute.xlu0 %2930
        %v2934 = vmul.f32 %v2912, %v2929
        %v2935 = vmul.f32 %v2913, %v2931
        %v2936 = vpack.c.bf16 %v2935, %v2934
        %s2937 = scalar_lea.vmem [#allocation9], 80
        %v2938 = vld [vmem:[%s2937] sm:$0xf]
        %v2939 = vld [vmem:[%s2937 + $0x4] sm:$0xf]
        %v2942 = vunpack.c.l.b16 %v2938
        %v2943 = vunpack.c.l.b16 %v2939
        %v2944 = vpack.c.b16 %v2943, %v2942
        %v2947 = vsel %vm1191, %v2936, 0
        %2949 = vmatprep.subr.bf16.mxu0 0
        %2950 = vmatpush1.bf16.msra.mxu0 %v2944
        %2951 = vmatprep.subr.bf16.mxu0 0
        %2952 = vmatpush1.bf16.msra.mxu0 0
        %2953 = vmatprep.subr.bf16.mxu0 0
        %2954 = vmatpush1.bf16.msra.mxu0 0
        %2955 = vmatprep.subr.bf16.mxu0 0
        %2956 = vmatpush1.bf16.msra.mxu0 0
        %2957 = vmatprep.subr.bf16.mxu0 0
        %2958 = vmatpush1.bf16.msra.mxu0 0
        %2959 = vmatprep.subr.bf16.mxu0 0
        %2960 = vmatpush1.bf16.msra.mxu0 0
        %2961 = vmatprep.subr.bf16.mxu0 0
        %2962 = vmatpush1.bf16.msra.mxu0 0
        %2963 = vmatprep.subr.bf16.mxu0 0
        %2964 = vmatpush1.bf16.msra.mxu0 0
        %2965 = vmatprep.subr.bf16.mxu0 0
        %2966 = vmatpush1.bf16.msra.mxu0 0
        %2967 = vmatprep.subr.bf16.mxu0 0
        %2968 = vmatpush1.bf16.msra.mxu0 0
        %2969 = vmatprep.subr.bf16.mxu0 0
        %2970 = vmatpush1.bf16.msra.mxu0 0
        %2971 = vmatprep.subr.bf16.mxu0 0
        %2972 = vmatpush1.bf16.msra.mxu0 0
        %2973 = vmatprep.subr.bf16.mxu0 0
        %2974 = vmatpush1.bf16.msra.mxu0 0
        %2975 = vmatprep.subr.bf16.mxu0 0
        %2976 = vmatpush1.bf16.msra.mxu0 0
        %2977 = vmatprep.subr.bf16.mxu0 0
        %2978 = vmatpush1.bf16.msra.mxu0 0
        %2979 = vmatprep.subr.bf16.mxu0 0
        %2980 = vmatpush1.bf16.msra.mxu0 0
        %2981 = vmatprep.mubr.bf16.mxu0 0
        %2982 = vmatmul.mubr.bf16.gmra.mrb[0].mxu0 %v2947
        %v2983 = vpop.f32.mrb[0].mxu0
        %v2984 = vadd.f32 0.0, %v2983
        %v2985 = vpop.f32.mrb[0].mxu0
        %v2986 = vpop.f32.mrb[0].mxu0
        %v2987 = vadd.f32 0.0, %v2986
        %v2988 = vpop.f32.mrb[0].mxu0
        %2989 = vdwg.mxu0
        %v2990 = vadd.f32 %v2848, %v2984
        %v2991 = vadd.f32 %v2849, %v2987
        %s2992 = scalar_lea.vmem [#allocation10], 10
        %v2993 = vld [vmem:[%s2992] sm:$0x1]
        %v2995 = vlaneseq
        %v2996 = vshrl.u32 %v2995, 7
        %v2997 = vsub.s32 0, %v2996
        %v2998 = vrot.slane %v2993, %v2997
        %v3000 = vadd.f32 %v2990, %v2998
        %v3001 = vadd.f32 %v2991, %v2998
        %s3002 = scalar_lea.vmem [#allocation6], 264
        %v3003 = vld [vmem:[%s3002 + $0x8] sm:$0xf]
        %v3004 = vld [vmem:[%s3002 + $0xc] sm:$0xf]
        %v3005 = vpack.c.bf16 %v3001, %v3000
        %s3006 = scalar_lea.vmem [#allocation7], 11
        %v3007 = vld [vmem:[%s3006] sm:$0x1]
        %v3009 = vlaneseq
        %v3010 = vshrl.u32 %v3009, 7
        %v3011 = vsub.s32 0, %v3010
        %v3012 = vrot.slane %v3007, %v3011
        %v3016 = vunpack.c.l.b16 %v3003
        %v3017 = vunpack.c.l.b16 %v3004
        %v3018 = vpack.c.b16 %v3017, %v3016
        %v3021 = vsel %vm1191, %v3005, 0
        %3023 = vmatprep.subr.bf16.mxu0 0
        %3024 = vmatpush1.bf16.msra.mxu0 %v3018
        %3025 = vmatprep.subr.bf16.mxu0 0
        %3026 = vmatpush1.bf16.msra.mxu0 0
        %3027 = vmatprep.subr.bf16.mxu0 0
        %3028 = vmatpush1.bf16.msra.mxu0 0
        %3029 = vmatprep.subr.bf16.mxu0 0
        %3030 = vmatpush1.bf16.msra.mxu0 0
        %3031 = vmatprep.subr.bf16.mxu0 0
        %3032 = vmatpush1.bf16.msra.mxu0 0
        %3033 = vmatprep.subr.bf16.mxu0 0
        %3034 = vmatpush1.bf16.msra.mxu0 0
        %3035 = vmatprep.subr.bf16.mxu0 0
        %3036 = vmatpush1.bf16.msra.mxu0 0
        %3037 = vmatprep.subr.bf16.mxu0 0
        %3038 = vmatpush1.bf16.msra.mxu0 0
        %3039 = vmatprep.subr.bf16.mxu0 0
        %3040 = vmatpush1.bf16.msra.mxu0 0
        %3041 = vmatprep.subr.bf16.mxu0 0
        %3042 = vmatpush1.bf16.msra.mxu0 0
        %3043 = vmatprep.subr.bf16.mxu0 0
        %3044 = vmatpush1.bf16.msra.mxu0 0
        %3045 = vmatprep.subr.bf16.mxu0 0
        %3046 = vmatpush1.bf16.msra.mxu0 0
        %3047 = vmatprep.subr.bf16.mxu0 0
        %3048 = vmatpush1.bf16.msra.mxu0 0
        %3049 = vmatprep.subr.bf16.mxu0 0
        %3050 = vmatpush1.bf16.msra.mxu0 0
        %3051 = vmatprep.subr.bf16.mxu0 0
        %3052 = vmatpush1.bf16.msra.mxu0 0
        %3053 = vmatprep.subr.bf16.mxu0 0
        %3054 = vmatpush1.bf16.msra.mxu0 0
        %3055 = vmatprep.mubr.bf16.mxu0 0
        %3056 = vmatmul.mubr.bf16.gmra.mrb[0].mxu0 %v3021
        %v3057 = vpop.f32.mrb[0].mxu0
        %v3058 = vadd.f32 %v3012, %v3057
        %v3059 = vpop.f32.mrb[0].mxu0
        %v3060 = vpop.f32.mrb[0].mxu0
        %v3061 = vadd.f32 %v3012, %v3060
        %v3062 = vpop.f32.mrb[0].mxu0
        %3063 = vdwg.mxu0
        %v3064 = vtanh.pop %v3058
        %v3065 = vtanh.pop %v3061
        %v3066 = vxor.u32 %v3058, 2147483648
        %v3067 = vxor.u32 %v3061, 2147483648
        %v3068 = vmul.f32 %v3066, 1.442695
        %v3069 = vpow.pop %v3068
        %v3070 = vmul.f32 %v3067, 1.442695
        %v3071 = vpow.pop %v3070
        %v3072 = vadd.f32 %v3069, 1.0
        %v3073 = vadd.f32 %v3071, 1.0
        %v3074 = vrcp.pop %v3072
        %v3075 = vmul.f32 1.0, %v3074
        %v3076 = vrcp.pop %v3073
        %v3077 = vmul.f32 1.0, %v3076
        %3080 = vrot.lane.b32.xlu0 %v3075, 112
        %v3081 = vpop.permute.xlu0 %3080
        %3082 = vrot.lane.b32.xlu0 %v3077, 112
        %v3083 = vpop.permute.xlu0 %3082
        %v3086 = vmul.f32 %v3064, %v3081
        %v3087 = vmul.f32 %v3065, %v3083
        %v3088 = vpack.c.bf16 %v3087, %v3086
        %s3089 = scalar_lea.vmem [#allocation9], 88
        %v3090 = vld [vmem:[%s3089] sm:$0xf]
        %v3091 = vld [vmem:[%s3089 + $0x4] sm:$0xf]
        %v3094 = vunpack.c.l.b16 %v3090
        %v3095 = vunpack.c.l.b16 %v3091
        %v3096 = vpack.c.b16 %v3095, %v3094
        %v3099 = vsel %vm1191, %v3088, 0
        %3101 = vmatprep.subr.bf16.mxu0 0
        %3102 = vmatpush1.bf16.msra.mxu0 %v3096
        %3103 = vmatprep.subr.bf16.mxu0 0
        %3104 = vmatpush1.bf16.msra.mxu0 0
        %3105 = vmatprep.subr.bf16.mxu0 0
        %3106 = vmatpush1.bf16.msra.mxu0 0
        %3107 = vmatprep.subr.bf16.mxu0 0
        %3108 = vmatpush1.bf16.msra.mxu0 0
        %3109 = vmatprep.subr.bf16.mxu0 0
        %3110 = vmatpush1.bf16.msra.mxu0 0
        %3111 = vmatprep.subr.bf16.mxu0 0
        %3112 = vmatpush1.bf16.msra.mxu0 0
        %3113 = vmatprep.subr.bf16.mxu0 0
        %3114 = vmatpush1.bf16.msra.mxu0 0
        %3115 = vmatprep.subr.bf16.mxu0 0
        %3116 = vmatpush1.bf16.msra.mxu0 0
        %3117 = vmatprep.subr.bf16.mxu0 0
        %3118 = vmatpush1.bf16.msra.mxu0 0
        %3119 = vmatprep.subr.bf16.mxu0 0
        %3120 = vmatpush1.bf16.msra.mxu0 0
        %3121 = vmatprep.subr.bf16.mxu0 0
        %3122 = vmatpush1.bf16.msra.mxu0 0
        %3123 = vmatprep.subr.bf16.mxu0 0
        %3124 = vmatpush1.bf16.msra.mxu0 0
        %3125 = vmatprep.subr.bf16.mxu0 0
        %3126 = vmatpush1.bf16.msra.mxu0 0
        %3127 = vmatprep.subr.bf16.mxu0 0
        %3128 = vmatpush1.bf16.msra.mxu0 0
        %3129 = vmatprep.subr.bf16.mxu0 0
        %3130 = vmatpush1.bf16.msra.mxu0 0
        %3131 = vmatprep.subr.bf16.mxu0 0
        %3132 = vmatpush1.bf16.msra.mxu0 0
        %3133 = vmatprep.mubr.bf16.mxu0 0
        %3134 = vmatmul.mubr.bf16.gmra.mrb[0].mxu0 %v3099
        %v3135 = vpop.f32.mrb[0].mxu0
        %v3136 = vadd.f32 0.0, %v3135
        %v3137 = vpop.f32.mrb[0].mxu0
        %v3138 = vpop.f32.mrb[0].mxu0
        %v3139 = vadd.f32 0.0, %v3138
        %v3140 = vpop.f32.mrb[0].mxu0
        %3141 = vdwg.mxu0
        %v3142 = vadd.f32 %v3000, %v3136
        %v3143 = vadd.f32 %v3001, %v3139
        %s3144 = scalar_lea.vmem [#allocation10], 11
        %v3145 = vld [vmem:[%s3144] sm:$0x1]
        %v3147 = vlaneseq
        %v3148 = vshrl.u32 %v3147, 7
        %v3149 = vsub.s32 0, %v3148
        %v3150 = vrot.slane %v3145, %v3149
        %v3152 = vadd.f32 %v3142, %v3150
        %v3153 = vadd.f32 %v3143, %v3150
        %v3154 = vpack.c.bf16 %v3153, %v3152
        %v3155 = vld [vmem:[#allocation12] sm:$0xf]
        %v3156 = vld [vmem:[#allocation12 + $0x4] sm:$0xf]
        %v3157 = vld [vmem:[#allocation13] sm:$0x1]
        %v3159 = vlaneseq
        %v3160 = vshrl.u32 %v3159, 7
        %v3161 = vsub.s32 0, %v3160
        %v3162 = vrot.slane %v3157, %v3161
        %v3166 = vunpack.c.l.b16 %v3155
        %v3167 = vunpack.c.l.b16 %v3156
        %v3168 = vpack.c.b16 %v3167, %v3166
        %v3171 = vsel %vm1191, %v3154, 0
        %3173 = vmatprep.subr.bf16.mxu0 0
        %3174 = vmatpush1.bf16.msra.mxu0 %v3168
        %3175 = vmatprep.subr.bf16.mxu0 0
        %3176 = vmatpush1.bf16.msra.mxu0 0
        %3177 = vmatprep.subr.bf16.mxu0 0
        %3178 = vmatpush1.bf16.msra.mxu0 0
        %3179 = vmatprep.subr.bf16.mxu0 0
        %3180 = vmatpush1.bf16.msra.mxu0 0
        %3181 = vmatprep.subr.bf16.mxu0 0
        %3182 = vmatpush1.bf16.msra.mxu0 0
        %3183 = vmatprep.subr.bf16.mxu0 0
        %3184 = vmatpush1.bf16.msra.mxu0 0
        %3185 = vmatprep.subr.bf16.mxu0 0
        %3186 = vmatpush1.bf16.msra.mxu0 0
        %3187 = vmatprep.subr.bf16.mxu0 0
        %3188 = vmatpush1.bf16.msra.mxu0 0
        %3189 = vmatprep.subr.bf16.mxu0 0
        %3190 = vmatpush1.bf16.msra.mxu0 0
        %3191 = vmatprep.subr.bf16.mxu0 0
        %3192 = vmatpush1.bf16.msra.mxu0 0
        %3193 = vmatprep.subr.bf16.mxu0 0
        %3194 = vmatpush1.bf16.msra.mxu0 0
        %3195 = vmatprep.subr.bf16.mxu0 0
        %3196 = vmatpush1.bf16.msra.mxu0 0
        %3197 = vmatprep.subr.bf16.mxu0 0
        %3198 = vmatpush1.bf16.msra.mxu0 0
        %3199 = vmatprep.subr.bf16.mxu0 0
        %3200 = vmatpush1.bf16.msra.mxu0 0
        %3201 = vmatprep.subr.bf16.mxu0 0
        %3202 = vmatpush1.bf16.msra.mxu0 0
        %3203 = vmatprep.subr.bf16.mxu0 0
        %3204 = vmatpush1.bf16.msra.mxu0 0
        %3205 = vmatprep.mubr.bf16.mxu0 0
        %3206 = vmatmul.mubr.bf16.gmra.mrb[0].mxu0 %v3171
        %v3207 = vpop.f32.mrb[0].mxu0
        %v3208 = vadd.f32 %v3162, %v3207
        %v3209 = vpop.f32.mrb[0].mxu0
        %v3210 = vpop.f32.mrb[0].mxu0
        %v3211 = vadd.f32 %v3162, %v3210
        %v3212 = vpop.f32.mrb[0].mxu0
        %3213 = vdwg.mxu0
        %v3214 = vld [vmem:[%s9] sm:$0xf]
        %v3215 = vld [vmem:[%s9 + $0x4] sm:$0xf]
        %v3216 = vld [vmem:[%s9 + $0x8] sm:$0xf]
        %v3217 = vld [vmem:[%s9 + $0xc] sm:$0xf]
        %v3218 = vld [vmem:[%s9 + $0x10] sm:$0xf]
        %v3219 = vld [vmem:[%s9 + $0x14] sm:$0xf]
        %v3220 = vld [vmem:[%s9 + $0x18] sm:$0xf]
        %v3221 = vld [vmem:[%s9 + $0x1c] sm:$0xf]
        %v3222 = vld [vmem:[%s9 + $0x20] sm:$0xf]
        %v3223 = vld [vmem:[%s9 + $0x24] sm:$0xf]
        %v3224 = vld [vmem:[%s9 + $0x28] sm:$0xf]
        %v3225 = vld [vmem:[%s9 + $0x2c] sm:$0xf]
        %v3228 = vrot.slane %v3208, 7
        %v3229 = vrot.slane %v3211, 7
        %v3230 = vsel %vm1165, %v3228, %v3229
        %v3233 = vsel %vm1165, 0.0, %v3228
        %v3234 = vrot.slane %v3208, 1
        %v3235 = vrot.slane %v3211, 1
        %v3236 = vsel %vm1172, %v3234, %v3235
        %v3238 = vsel %vm1172, %v3235, 0.0
        %3239 = vrot.lane.b32.xlu0 %v3208, 32
        %v3240 = vpop.permute.xlu0 %3239
        %3241 = vrot.lane.b32.xlu0 %v3211, 32
        %v3242 = vpop.permute.xlu0 %3241
        %3246 = vrot.lane.b32.xlu0 %v3236, 64
        %v3247 = vpop.permute.xlu0 %3246
        %3248 = vrot.lane.b32.xlu0 %v3238, 64
        %v3249 = vpop.permute.xlu0 %3248
        %v3252 = vsel %vm1194, %v3233, %v3240
        %v3253 = vsel %vm1194, %v3230, %v3242
        %vm3254 = vcmask 523264
        %v3255 = vsel %vm3254, %v3252, %v3247
        %v3256 = vsel %vm3254, %v3253, %v3249
        %v3257 = vpack.c.bf16 %v3256, %v3255
        %v3258 = vld [vmem:[#allocation15] sm:$0x1]
        %v3260 = vlaneseq
        %v3261 = vshrl.u32 %v3260, 7
        %v3262 = vsub.s32 0, %v3261
        %v3263 = vrot.slane %v3258, %v3262
        %v3277 = vunpack.c.l.b16 %v3214
        %v3278 = vunpack.c.l.b16 %v3215
        %v3279 = vunpack.c.l.b16 %v3216
        %v3280 = vunpack.c.l.b16 %v3217
        %v3281 = vunpack.c.l.b16 %v3218
        %v3282 = vunpack.c.l.b16 %v3219
        %v3283 = vunpack.c.l.b16 %v3220
        %v3284 = vunpack.c.l.b16 %v3221
        %v3285 = vunpack.c.l.b16 %v3222
        %v3286 = vunpack.c.l.b16 %v3223
        %v3287 = vunpack.c.l.b16 %v3224
        %v3288 = vunpack.c.l.b16 %v3225
        %v3289 = vpack.c.b16 %v3278, %v3277
        %v3290 = vpack.c.b16 %v3280, %v3279
        %v3291 = vpack.c.b16 %v3282, %v3281
        %v3292 = vpack.c.b16 %v3284, %v3283
        %v3293 = vpack.c.b16 %v3286, %v3285
        %v3294 = vpack.c.b16 %v3288, %v3287
        %vm3301 = vcmask 785408
        %v3303 = vsel %vm3301, %v3257, 0
        %3305 = vmatprep.subr.bf16.mxu0 0
        %3306 = vmatpush1.bf16.msra.mxu0 %v3289
        %3307 = vmatprep.subr.bf16.mxu0 0
        %3308 = vmatpush1.bf16.msra.mxu0 %v3290
        %3309 = vmatprep.subr.bf16.mxu0 0
        %3310 = vmatpush1.bf16.msra.mxu0 %v3291
        %3311 = vmatprep.subr.bf16.mxu0 0
        %3312 = vmatpush1.bf16.msra.mxu0 %v3292
        %3313 = vmatprep.subr.bf16.mxu0 0
        %3314 = vmatpush1.bf16.msra.mxu0 %v3293
        %3315 = vmatprep.subr.bf16.mxu0 0
        %3316 = vmatpush1.bf16.msra.mxu0 %v3294
        %3317 = vmatprep.subr.bf16.mxu0 0
        %3318 = vmatpush1.bf16.msra.mxu0 0
        %3319 = vmatprep.subr.bf16.mxu0 0
        %3320 = vmatpush1.bf16.msra.mxu0 0
        %3321 = vmatprep.subr.bf16.mxu0 0
        %3322 = vmatpush1.bf16.msra.mxu0 0
        %3323 = vmatprep.subr.bf16.mxu0 0
        %3324 = vmatpush1.bf16.msra.mxu0 0
        %3325 = vmatprep.subr.bf16.mxu0 0
        %3326 = vmatpush1.bf16.msra.mxu0 0
        %3327 = vmatprep.subr.bf16.mxu0 0
        %3328 = vmatpush1.bf16.msra.mxu0 0
        %3329 = vmatprep.subr.bf16.mxu0 0
        %3330 = vmatpush1.bf16.msra.mxu0 0
        %3331 = vmatprep.subr.bf16.mxu0 0
        %3332 = vmatpush1.bf16.msra.mxu0 0
        %3333 = vmatprep.subr.bf16.mxu0 0
        %3334 = vmatpush1.bf16.msra.mxu0 0
        %3335 = vmatprep.subr.bf16.mxu0 0
        %3336 = vmatpush1.bf16.msra.mxu0 0
        %3337 = vmatprep.mubr.bf16.mxu0 0
        %3338 = vmatmul.mubr.bf16.gmra.mrb[0].mxu0 %v3303
        %v3339 = vpop.f32.mrb[0].mxu0
        %v3340 = vadd.f32 %v3263, %v3339
        %v3341 = vpop.f32.mrb[0].mxu0
        %v3342 = vpop.f32.mrb[0].mxu0
        %v3343 = vadd.f32 %v3263, %v3342
        %v3344 = vpop.f32.mrb[0].mxu0
        %3345 = vdwg.mxu0
        %v3346 = vtanh.pop %v3340
        %v3347 = vtanh.pop %v3343
        %v3348 = vxor.u32 %v3340, 2147483648
        %v3349 = vxor.u32 %v3343, 2147483648
        %v3350 = vmul.f32 %v3348, 1.442695
        %v3351 = vpow.pop %v3350
        %v3352 = vmul.f32 %v3349, 1.442695
        %v3353 = vpow.pop %v3352
        %v3354 = vadd.f32 %v3351, 1.0
        %v3355 = vadd.f32 %v3353, 1.0
        %v3356 = vrcp.pop %v3354
        %v3357 = vmul.f32 1.0, %v3356
        %v3358 = vrcp.pop %v3355
        %v3359 = vmul.f32 1.0, %v3358
        %3362 = vrot.lane.b32.xlu0 %v3357, 96
        %v3363 = vpop.permute.xlu0 %3362
        %3364 = vrot.lane.b32.xlu0 %v3359, 96
        %v3365 = vpop.permute.xlu0 %3364
        %v3368 = vmul.f32 %v3346, %v3363
        %v3369 = vmul.f32 %v3347, %v3365
        %v3370 = vpack.c.bf16 %v3369, %v3368
        %v3371 = vld [vmem:[#allocation16] sm:$0xf]
        %v3372 = vld [vmem:[#allocation16 + $0x4] sm:$0xf]
        %v3373 = vld [vmem:[#allocation16 + $0x8] sm:$0xf]
        %v3374 = vld [vmem:[#allocation16 + $0xc] sm:$0xf]
        %v3379 = vunpack.c.l.b16 %v3371
        %v3380 = vunpack.c.l.b16 %v3372
        %v3381 = vunpack.c.l.b16 %v3373
        %v3382 = vunpack.c.l.b16 %v3374
        %v3383 = vpack.c.b16 %v3380, %v3379
        %v3384 = vpack.c.b16 %v3382, %v3381
        %v3388 = vsel %vm1194, %v3370, 0
        %3390 = vmatprep.subr.bf16.mxu0 0
        %3391 = vmatpush1.bf16.msra.mxu0 %v3383
        %3392 = vmatprep.subr.bf16.mxu0 0
        %3393 = vmatpush1.bf16.msra.mxu0 %v3384
        %3394 = vmatprep.subr.bf16.mxu0 0
        %3395 = vmatpush1.bf16.msra.mxu0 0
        %3396 = vmatprep.subr.bf16.mxu0 0
        %3397 = vmatpush1.bf16.msra.mxu0 0
        %3398 = vmatprep.subr.bf16.mxu0 0
        %3399 = vmatpush1.bf16.msra.mxu0 0
        %3400 = vmatprep.subr.bf16.mxu0 0
        %3401 = vmatpush1.bf16.msra.mxu0 0
        %3402 = vmatprep.subr.bf16.mxu0 0
        %3403 = vmatpush1.bf16.msra.mxu0 0
        %3404 = vmatprep.subr.bf16.mxu0 0
        %3405 = vmatpush1.bf16.msra.mxu0 0
        %3406 = vmatprep.subr.bf16.mxu0 0
        %3407 = vmatpush1.bf16.msra.mxu0 0
        %3408 = vmatprep.subr.bf16.mxu0 0
        %3409 = vmatpush1.bf16.msra.mxu0 0
        %3410 = vmatprep.subr.bf16.mxu0 0
        %3411 = vmatpush1.bf16.msra.mxu0 0
        %3412 = vmatprep.subr.bf16.mxu0 0
        %3413 = vmatpush1.bf16.msra.mxu0 0
        %3414 = vmatprep.subr.bf16.mxu0 0
        %3415 = vmatpush1.bf16.msra.mxu0 0
        %3416 = vmatprep.subr.bf16.mxu0 0
        %3417 = vmatpush1.bf16.msra.mxu0 0
        %3418 = vmatprep.subr.bf16.mxu0 0
        %3419 = vmatpush1.bf16.msra.mxu0 0
        %3420 = vmatprep.subr.bf16.mxu0 0
        %3421 = vmatpush1.bf16.msra.mxu0 0
        %3422 = vmatprep.mubr.bf16.mxu0 0
        %3423 = vmatmul.mubr.bf16.gmra.mrb[0].mxu0 %v3388
        %v3424 = vpop.f32.mrb[0].mxu0
        %v3425 = vadd.f32 0.0, %v3424
        %v3426 = vpop.f32.mrb[0].mxu0
        %v3427 = vpop.f32.mrb[0].mxu0
        %v3428 = vadd.f32 0.0, %v3427
        %v3429 = vpop.f32.mrb[0].mxu0
        %3430 = vdwg.mxu0
        %v3431 = vadd.f32 %v3208, %v3425
        %v3432 = vadd.f32 %v3211, %v3428
        %v3433 = vld [vmem:[#allocation18] sm:$0x1]
        %v3435 = vlaneseq
        %v3436 = vshrl.u32 %v3435, 7
        %v3437 = vsub.s32 0, %v3436
        %v3438 = vrot.slane %v3433, %v3437
        %v3440 = vadd.f32 %v3431, %v3438
        %v3441 = vadd.f32 %v3432, %v3438
        %s3442 = scalar_lea.vmem %s9, 48
        %v3443 = vld [vmem:[%s3442] sm:$0xf]
        %v3444 = vld [vmem:[%s3442 + $0x4] sm:$0xf]
        %v3445 = vld [vmem:[%s3442 + $0x8] sm:$0xf]
        %v3446 = vld [vmem:[%s3442 + $0xc] sm:$0xf]
        %v3447 = vld [vmem:[%s3442 + $0x10] sm:$0xf]
        %v3448 = vld [vmem:[%s3442 + $0x14] sm:$0xf]
        %v3449 = vld [vmem:[%s3442 + $0x18] sm:$0xf]
        %v3450 = vld [vmem:[%s3442 + $0x1c] sm:$0xf]
        %v3451 = vld [vmem:[%s3442 + $0x20] sm:$0xf]
        %v3452 = vld [vmem:[%s3442 + $0x24] sm:$0xf]
        %v3453 = vld [vmem:[%s3442 + $0x28] sm:$0xf]
        %v3454 = vld [vmem:[%s3442 + $0x2c] sm:$0xf]
        %v3457 = vrot.slane %v3440, 6
        %v3458 = vrot.slane %v3441, 6
        %v3459 = vsel %vm1365, %v3457, %v3458
        %v3462 = vsel %vm1365, 0.0, %v3457
        %v3463 = vrot.slane %v3440, 2
        %v3464 = vrot.slane %v3441, 2
        %v3465 = vsel %vm1372, %v3463, %v3464
        %v3467 = vsel %vm1372, %v3464, 0.0
        %3468 = vrot.lane.b32.xlu0 %v3440, 32
        %v3469 = vpop.permute.xlu0 %3468
        %3470 = vrot.lane.b32.xlu0 %v3441, 32
        %v3471 = vpop.permute.xlu0 %3470
        %3475 = vrot.lane.b32.xlu0 %v3465, 64
        %v3476 = vpop.permute.xlu0 %3475
        %3477 = vrot.lane.b32.xlu0 %v3467, 64
        %v3478 = vpop.permute.xlu0 %3477
        %v3481 = vsel %vm1194, %v3462, %v3469
        %v3482 = vsel %vm1194, %v3459, %v3471
        %v3483 = vsel %vm3254, %v3481, %v3476
        %v3484 = vsel %vm3254, %v3482, %v3478
        %v3485 = vpack.c.bf16 %v3484, %v3483
        %s3486 = scalar_lea.vmem [#allocation15], 1
        %v3487 = vld [vmem:[%s3486] sm:$0x1]
        %v3489 = vlaneseq
        %v3490 = vshrl.u32 %v3489, 7
        %v3491 = vsub.s32 0, %v3490
        %v3492 = vrot.slane %v3487, %v3491
        %v3506 = vunpack.c.l.b16 %v3443
        %v3507 = vunpack.c.l.b16 %v3444
        %v3508 = vunpack.c.l.b16 %v3445
        %v3509 = vunpack.c.l.b16 %v3446
        %v3510 = vunpack.c.l.b16 %v3447
        %v3511 = vunpack.c.l.b16 %v3448
        %v3512 = vunpack.c.l.b16 %v3449
        %v3513 = vunpack.c.l.b16 %v3450
        %v3514 = vunpack.c.l.b16 %v3451
        %v3515 = vunpack.c.l.b16 %v3452
        %v3516 = vunpack.c.l.b16 %v3453
        %v3517 = vunpack.c.l.b16 %v3454
        %v3518 = vpack.c.b16 %v3507, %v3506
        %v3519 = vpack.c.b16 %v3509, %v3508
        %v3520 = vpack.c.b16 %v3511, %v3510
        %v3521 = vpack.c.b16 %v3513, %v3512
        %v3522 = vpack.c.b16 %v3515, %v3514
        %v3523 = vpack.c.b16 %v3517, %v3516
        %v3531 = vsel %vm3301, %v3485, 0
        %3533 = vmatprep.subr.bf16.mxu0 0
        %3534 = vmatpush1.bf16.msra.mxu0 %v3518
        %3535 = vmatprep.subr.bf16.mxu0 0
        %3536 = vmatpush1.bf16.msra.mxu0 %v3519
        %3537 = vmatprep.subr.bf16.mxu0 0
        %3538 = vmatpush1.bf16.msra.mxu0 %v3520
        %3539 = vmatprep.subr.bf16.mxu0 0
        %3540 = vmatpush1.bf16.msra.mxu0 %v3521
        %3541 = vmatprep.subr.bf16.mxu0 0
        %3542 = vmatpush1.bf16.msra.mxu0 %v3522
        %3543 = vmatprep.subr.bf16.mxu0 0
        %3544 = vmatpush1.bf16.msra.mxu0 %v3523
        %3545 = vmatprep.subr.bf16.mxu0 0
        %3546 = vmatpush1.bf16.msra.mxu0 0
        %3547 = vmatprep.subr.bf16.mxu0 0
        %3548 = vmatpush1.bf16.msra.mxu0 0
        %3549 = vmatprep.subr.bf16.mxu0 0
        %3550 = vmatpush1.bf16.msra.mxu0 0
        %3551 = vmatprep.subr.bf16.mxu0 0
        %3552 = vmatpush1.bf16.msra.mxu0 0
        %3553 = vmatprep.subr.bf16.mxu0 0
        %3554 = vmatpush1.bf16.msra.mxu0 0
        %3555 = vmatprep.subr.bf16.mxu0 0
        %3556 = vmatpush1.bf16.msra.mxu0 0
        %3557 = vmatprep.subr.bf16.mxu0 0
        %3558 = vmatpush1.bf16.msra.mxu0 0
        %3559 = vmatprep.subr.bf16.mxu0 0
        %3560 = vmatpush1.bf16.msra.mxu0 0
        %3561 = vmatprep.subr.bf16.mxu0 0
        %3562 = vmatpush1.bf16.msra.mxu0 0
        %3563 = vmatprep.subr.bf16.mxu0 0
        %3564 = vmatpush1.bf16.msra.mxu0 0
        %3565 = vmatprep.mubr.bf16.mxu0 0
        %3566 = vmatmul.mubr.bf16.gmra.mrb[0].mxu0 %v3531
        %v3567 = vpop.f32.mrb[0].mxu0
        %v3568 = vadd.f32 %v3492, %v3567
        %v3569 = vpop.f32.mrb[0].mxu0
        %v3570 = vpop.f32.mrb[0].mxu0
        %v3571 = vadd.f32 %v3492, %v3570
        %v3572 = vpop.f32.mrb[0].mxu0
        %3573 = vdwg.mxu0
        %v3574 = vtanh.pop %v3568
        %v3575 = vtanh.pop %v3571
        %v3576 = vxor.u32 %v3568, 2147483648
        %v3577 = vxor.u32 %v3571, 2147483648
        %v3578 = vmul.f32 %v3576, 1.442695
        %v3579 = vpow.pop %v3578
        %v3580 = vmul.f32 %v3577, 1.442695
        %v3581 = vpow.pop %v3580
        %v3582 = vadd.f32 %v3579, 1.0
        %v3583 = vadd.f32 %v3581, 1.0
        %v3584 = vrcp.pop %v3582
        %v3585 = vmul.f32 1.0, %v3584
        %v3586 = vrcp.pop %v3583
        %v3587 = vmul.f32 1.0, %v3586
        %3590 = vrot.lane.b32.xlu0 %v3585, 96
        %v3591 = vpop.permute.xlu0 %3590
        %3592 = vrot.lane.b32.xlu0 %v3587, 96
        %v3593 = vpop.permute.xlu0 %3592
        %v3596 = vmul.f32 %v3574, %v3591
        %v3597 = vmul.f32 %v3575, %v3593
        %v3598 = vpack.c.bf16 %v3597, %v3596
        %s3599 = scalar_lea.vmem [#allocation16], 16
        %v3600 = vld [vmem:[%s3599] sm:$0xf]
        %v3601 = vld [vmem:[%s3599 + $0x4] sm:$0xf]
        %v3602 = vld [vmem:[%s3599 + $0x8] sm:$0xf]
        %v3603 = vld [vmem:[%s3599 + $0xc] sm:$0xf]
        %v3608 = vunpack.c.l.b16 %v3600
        %v3609 = vunpack.c.l.b16 %v3601
        %v3610 = vunpack.c.l.b16 %v3602
        %v3611 = vunpack.c.l.b16 %v3603
        %v3612 = vpack.c.b16 %v3609, %v3608
        %v3613 = vpack.c.b16 %v3611, %v3610
        %v3617 = vsel %vm1194, %v3598, 0
        %3619 = vmatprep.subr.bf16.mxu0 0
        %3620 = vmatpush1.bf16.msra.mxu0 %v3612
        %3621 = vmatprep.subr.bf16.mxu0 0
        %3622 = vmatpush1.bf16.msra.mxu0 %v3613
        %3623 = vmatprep.subr.bf16.mxu0 0
        %3624 = vmatpush1.bf16.msra.mxu0 0
        %3625 = vmatprep.subr.bf16.mxu0 0
        %3626 = vmatpush1.bf16.msra.mxu0 0
        %3627 = vmatprep.subr.bf16.mxu0 0
        %3628 = vmatpush1.bf16.msra.mxu0 0
        %3629 = vmatprep.subr.bf16.mxu0 0
        %3630 = vmatpush1.bf16.msra.mxu0 0
        %3631 = vmatprep.subr.bf16.mxu0 0
        %3632 = vmatpush1.bf16.msra.mxu0 0
        %3633 = vmatprep.subr.bf16.mxu0 0
        %3634 = vmatpush1.bf16.msra.mxu0 0
        %3635 = vmatprep.subr.bf16.mxu0 0
        %3636 = vmatpush1.bf16.msra.mxu0 0
        %3637 = vmatprep.subr.bf16.mxu0 0
        %3638 = vmatpush1.bf16.msra.mxu0 0
        %3639 = vmatprep.subr.bf16.mxu0 0
        %3640 = vmatpush1.bf16.msra.mxu0 0
        %3641 = vmatprep.subr.bf16.mxu0 0
        %3642 = vmatpush1.bf16.msra.mxu0 0
        %3643 = vmatprep.subr.bf16.mxu0 0
        %3644 = vmatpush1.bf16.msra.mxu0 0
        %3645 = vmatprep.subr.bf16.mxu0 0
        %3646 = vmatpush1.bf16.msra.mxu0 0
        %3647 = vmatprep.subr.bf16.mxu0 0
        %3648 = vmatpush1.bf16.msra.mxu0 0
        %3649 = vmatprep.subr.bf16.mxu0 0
        %3650 = vmatpush1.bf16.msra.mxu0 0
        %3651 = vmatprep.mubr.bf16.mxu0 0
        %3652 = vmatmul.mubr.bf16.gmra.mrb[0].mxu0 %v3617
        %v3653 = vpop.f32.mrb[0].mxu0
        %v3654 = vadd.f32 0.0, %v3653
        %v3655 = vpop.f32.mrb[0].mxu0
        %v3656 = vpop.f32.mrb[0].mxu0
        %v3657 = vadd.f32 0.0, %v3656
        %v3658 = vpop.f32.mrb[0].mxu0
        %3659 = vdwg.mxu0
        %v3660 = vadd.f32 %v3440, %v3654
        %v3661 = vadd.f32 %v3441, %v3657
        %s3662 = scalar_lea.vmem [#allocation18], 1
        %v3663 = vld [vmem:[%s3662] sm:$0x1]
        %v3665 = vlaneseq
        %v3666 = vshrl.u32 %v3665, 7
        %v3667 = vsub.s32 0, %v3666
        %v3668 = vrot.slane %v3663, %v3667
        %v3670 = vadd.f32 %v3660, %v3668
        %v3671 = vadd.f32 %v3661, %v3668
        %s3672 = scalar_lea.vmem %s9, 96
        %v3673 = vld [vmem:[%s3672] sm:$0xf]
        %v3674 = vld [vmem:[%s3672 + $0x4] sm:$0xf]
        %v3675 = vld [vmem:[%s3672 + $0x8] sm:$0xf]
        %v3676 = vld [vmem:[%s3672 + $0xc] sm:$0xf]
        %v3677 = vld [vmem:[%s3672 + $0x10] sm:$0xf]
        %v3678 = vld [vmem:[%s3672 + $0x14] sm:$0xf]
        %v3679 = vld [vmem:[%s3672 + $0x18] sm:$0xf]
        %v3680 = vld [vmem:[%s3672 + $0x1c] sm:$0xf]
        %v3681 = vld [vmem:[%s3672 + $0x20] sm:$0xf]
        %v3682 = vld [vmem:[%s3672 + $0x24] sm:$0xf]
        %v3683 = vld [vmem:[%s3672 + $0x28] sm:$0xf]
        %v3684 = vld [vmem:[%s3672 + $0x2c] sm:$0xf]
        %v3687 = vrot.slane %v3670, 4
        %v3688 = vrot.slane %v3671, 4
        %v3689 = vsel %vm1112, %v3687, %v3688
        %v3692 = vsel %vm1112, 0.0, %v3687
        %v3694 = vsel %vm1112, %v3688, 0.0
        %3695 = vrot.lane.b32.xlu0 %v3670, 32
        %v3696 = vpop.permute.xlu0 %3695
        %3697 = vrot.lane.b32.xlu0 %v3671, 32
        %v3698 = vpop.permute.xlu0 %3697
        %3702 = vrot.lane.b32.xlu0 %v3689, 64
        %v3703 = vpop.permute.xlu0 %3702
        %3704 = vrot.lane.b32.xlu0 %v3694, 64
        %v3705 = vpop.permute.xlu0 %3704
        %v3708 = vsel %vm1194, %v3692, %v3696
        %v3709 = vsel %vm1194, %v3689, %v3698
        %v3710 = vsel %vm3254, %v3708, %v3703
        %v3711 = vsel %vm3254, %v3709, %v3705
        %v3712 = vpack.c.bf16 %v3711, %v3710
        %s3713 = scalar_lea.vmem [#allocation15], 2
        %v3714 = vld [vmem:[%s3713] sm:$0x1]
        %v3716 = vlaneseq
        %v3717 = vshrl.u32 %v3716, 7
        %v3718 = vsub.s32 0, %v3717
        %v3719 = vrot.slane %v3714, %v3718
        %v3733 = vunpack.c.l.b16 %v3673
        %v3734 = vunpack.c.l.b16 %v3674
        %v3735 = vunpack.c.l.b16 %v3675
        %v3736 = vunpack.c.l.b16 %v3676
        %v3737 = vunpack.c.l.b16 %v3677
        %v3738 = vunpack.c.l.b16 %v3678
        %v3739 = vunpack.c.l.b16 %v3679
        %v3740 = vunpack.c.l.b16 %v3680
        %v3741 = vunpack.c.l.b16 %v3681
        %v3742 = vunpack.c.l.b16 %v3682
        %v3743 = vunpack.c.l.b16 %v3683
        %v3744 = vunpack.c.l.b16 %v3684
        %v3745 = vpack.c.b16 %v3734, %v3733
        %v3746 = vpack.c.b16 %v3736, %v3735
        %v3747 = vpack.c.b16 %v3738, %v3737
        %v3748 = vpack.c.b16 %v3740, %v3739
        %v3749 = vpack.c.b16 %v3742, %v3741
        %v3750 = vpack.c.b16 %v3744, %v3743
        %v3758 = vsel %vm3301, %v3712, 0
        %3760 = vmatprep.subr.bf16.mxu0 0
        %3761 = vmatpush1.bf16.msra.mxu0 %v3745
        %3762 = vmatprep.subr.bf16.mxu0 0
        %3763 = vmatpush1.bf16.msra.mxu0 %v3746
        %3764 = vmatprep.subr.bf16.mxu0 0
        %3765 = vmatpush1.bf16.msra.mxu0 %v3747
        %3766 = vmatprep.subr.bf16.mxu0 0
        %3767 = vmatpush1.bf16.msra.mxu0 %v3748
        %3768 = vmatprep.subr.bf16.mxu0 0
        %3769 = vmatpush1.bf16.msra.mxu0 %v3749
        %3770 = vmatprep.subr.bf16.mxu0 0
        %3771 = vmatpush1.bf16.msra.mxu0 %v3750
        %3772 = vmatprep.subr.bf16.mxu0 0
        %3773 = vmatpush1.bf16.msra.mxu0 0
        %3774 = vmatprep.subr.bf16.mxu0 0
        %3775 = vmatpush1.bf16.msra.mxu0 0
        %3776 = vmatprep.subr.bf16.mxu0 0
        %3777 = vmatpush1.bf16.msra.mxu0 0
        %3778 = vmatprep.subr.bf16.mxu0 0
        %3779 = vmatpush1.bf16.msra.mxu0 0
        %3780 = vmatprep.subr.bf16.mxu0 0
        %3781 = vmatpush1.bf16.msra.mxu0 0
        %3782 = vmatprep.subr.bf16.mxu0 0
        %3783 = vmatpush1.bf16.msra.mxu0 0
        %3784 = vmatprep.subr.bf16.mxu0 0
        %3785 = vmatpush1.bf16.msra.mxu0 0
        %3786 = vmatprep.subr.bf16.mxu0 0
        %3787 = vmatpush1.bf16.msra.mxu0 0
        %3788 = vmatprep.subr.bf16.mxu0 0
        %3789 = vmatpush1.bf16.msra.mxu0 0
        %3790 = vmatprep.subr.bf16.mxu0 0
        %3791 = vmatpush1.bf16.msra.mxu0 0
        %3792 = vmatprep.mubr.bf16.mxu0 0
        %3793 = vmatmul.mubr.bf16.gmra.mrb[0].mxu0 %v3758
        %v3794 = vpop.f32.mrb[0].mxu0
        %v3795 = vadd.f32 %v3719, %v3794
        %v3796 = vpop.f32.mrb[0].mxu0
        %v3797 = vpop.f32.mrb[0].mxu0
        %v3798 = vadd.f32 %v3719, %v3797
        %v3799 = vpop.f32.mrb[0].mxu0
        %3800 = vdwg.mxu0
        %v3801 = vtanh.pop %v3795
        %v3802 = vtanh.pop %v3798
        %v3803 = vxor.u32 %v3795, 2147483648
        %v3804 = vxor.u32 %v3798, 2147483648
        %v3805 = vmul.f32 %v3803, 1.442695
        %v3806 = vpow.pop %v3805
        %v3807 = vmul.f32 %v3804, 1.442695
        %v3808 = vpow.pop %v3807
        %v3809 = vadd.f32 %v3806, 1.0
        %v3810 = vadd.f32 %v3808, 1.0
        %v3811 = vrcp.pop %v3809
        %v3812 = vmul.f32 1.0, %v3811
        %v3813 = vrcp.pop %v3810
        %v3814 = vmul.f32 1.0, %v3813
        %3817 = vrot.lane.b32.xlu0 %v3812, 96
        %v3818 = vpop.permute.xlu0 %3817
        %3819 = vrot.lane.b32.xlu0 %v3814, 96
        %v3820 = vpop.permute.xlu0 %3819
        %v3823 = vmul.f32 %v3801, %v3818
        %v3824 = vmul.f32 %v3802, %v3820
        %v3825 = vpack.c.bf16 %v3824, %v3823
        %s3826 = scalar_lea.vmem [#allocation16], 32
        %v3827 = vld [vmem:[%s3826] sm:$0xf]
        %v3828 = vld [vmem:[%s3826 + $0x4] sm:$0xf]
        %v3829 = vld [vmem:[%s3826 + $0x8] sm:$0xf]
        %v3830 = vld [vmem:[%s3826 + $0xc] sm:$0xf]
        %v3835 = vunpack.c.l.b16 %v3827
        %v3836 = vunpack.c.l.b16 %v3828
        %v3837 = vunpack.c.l.b16 %v3829
        %v3838 = vunpack.c.l.b16 %v3830
        %v3839 = vpack.c.b16 %v3836, %v3835
        %v3840 = vpack.c.b16 %v3838, %v3837
        %v3844 = vsel %vm1194, %v3825, 0
        %3846 = vmatprep.subr.bf16.mxu0 0
        %3847 = vmatpush1.bf16.msra.mxu0 %v3839
        %3848 = vmatprep.subr.bf16.mxu0 0
        %3849 = vmatpush1.bf16.msra.mxu0 %v3840
        %3850 = vmatprep.subr.bf16.mxu0 0
        %3851 = vmatpush1.bf16.msra.mxu0 0
        %3852 = vmatprep.subr.bf16.mxu0 0
        %3853 = vmatpush1.bf16.msra.mxu0 0
        %3854 = vmatprep.subr.bf16.mxu0 0
        %3855 = vmatpush1.bf16.msra.mxu0 0
        %3856 = vmatprep.subr.bf16.mxu0 0
        %3857 = vmatpush1.bf16.msra.mxu0 0
        %3858 = vmatprep.subr.bf16.mxu0 0
        %3859 = vmatpush1.bf16.msra.mxu0 0
        %3860 = vmatprep.subr.bf16.mxu0 0
        %3861 = vmatpush1.bf16.msra.mxu0 0
        %3862 = vmatprep.subr.bf16.mxu0 0
        %3863 = vmatpush1.bf16.msra.mxu0 0
        %3864 = vmatprep.subr.bf16.mxu0 0
        %3865 = vmatpush1.bf16.msra.mxu0 0
        %3866 = vmatprep.subr.bf16.mxu0 0
        %3867 = vmatpush1.bf16.msra.mxu0 0
        %3868 = vmatprep.subr.bf16.mxu0 0
        %3869 = vmatpush1.bf16.msra.mxu0 0
        %3870 = vmatprep.subr.bf16.mxu0 0
        %3871 = vmatpush1.bf16.msra.mxu0 0
        %3872 = vmatprep.subr.bf16.mxu0 0
        %3873 = vmatpush1.bf16.msra.mxu0 0
        %3874 = vmatprep.subr.bf16.mxu0 0
        %3875 = vmatpush1.bf16.msra.mxu0 0
        %3876 = vmatprep.subr.bf16.mxu0 0
        %3877 = vmatpush1.bf16.msra.mxu0 0
        %3878 = vmatprep.mubr.bf16.mxu0 0
        %3879 = vmatmul.mubr.bf16.gmra.mrb[0].mxu0 %v3844
        %v3880 = vpop.f32.mrb[0].mxu0
        %v3881 = vadd.f32 0.0, %v3880
        %v3882 = vpop.f32.mrb[0].mxu0
        %v3883 = vpop.f32.mrb[0].mxu0
        %v3884 = vadd.f32 0.0, %v3883
        %v3885 = vpop.f32.mrb[0].mxu0
        %3886 = vdwg.mxu0
        %v3887 = vadd.f32 %v3670, %v3881
        %v3888 = vadd.f32 %v3671, %v3884
        %s3889 = scalar_lea.vmem [#allocation18], 2
        %v3890 = vld [vmem:[%s3889] sm:$0x1]
        %v3892 = vlaneseq
        %v3893 = vshrl.u32 %v3892, 7
        %v3894 = vsub.s32 0, %v3893
        %v3895 = vrot.slane %v3890, %v3894
        %v3897 = vadd.f32 %v3887, %v3895
        %v3898 = vadd.f32 %v3888, %v3895
        %s3899 = scalar_lea.vmem %s9, 144
        %v3900 = vld [vmem:[%s3899] sm:$0xf]
        %v3901 = vld [vmem:[%s3899 + $0x4] sm:$0xf]
        %v3902 = vld [vmem:[%s3899 + $0x8] sm:$0xf]
        %v3903 = vld [vmem:[%s3899 + $0xc] sm:$0xf]
        %v3904 = vld [vmem:[%s3899 + $0x10] sm:$0xf]
        %v3905 = vld [vmem:[%s3899 + $0x14] sm:$0xf]
        %v3906 = vld [vmem:[%s3899 + $0x18] sm:$0xf]
        %v3907 = vld [vmem:[%s3899 + $0x1c] sm:$0xf]
        %v3908 = vld [vmem:[%s3899 + $0x20] sm:$0xf]
        %v3909 = vld [vmem:[%s3899 + $0x24] sm:$0xf]
        %v3910 = vld [vmem:[%s3899 + $0x28] sm:$0xf]
        %v3911 = vld [vmem:[%s3899 + $0x2c] sm:$0xf]
        %3914 = vrot.lane.b32.xlu0 %v3897, 32
        %v3915 = vpop.permute.xlu0 %3914
        %3916 = vrot.lane.b32.xlu0 %v3898, 32
        %v3917 = vpop.permute.xlu0 %3916
        %3920 = vrot.lane.b32.xlu0 %v3898, 64
        %v3921 = vpop.permute.xlu0 %3920
        %3922 = vrot.lane.b32.xlu0 0.0, 64
        %v3923 = vpop.permute.xlu0 %3922
        %v3926 = vsel %vm1194, 0.0, %v3915
        %v3927 = vsel %vm1194, %v3897, %v3917
        %v3928 = vsel %vm3254, %v3926, %v3921
        %v3929 = vsel %vm3254, %v3927, %v3923
        %v3930 = vpack.c.bf16 %v3929, %v3928
        %s3931 = scalar_lea.vmem [#allocation15], 3
        %v3932 = vld [vmem:[%s3931] sm:$0x1]
        %v3934 = vlaneseq
        %v3935 = vshrl.u32 %v3934, 7
        %v3936 = vsub.s32 0, %v3935
        %v3937 = vrot.slane %v3932, %v3936
        %v3951 = vunpack.c.l.b16 %v3900
        %v3952 = vunpack.c.l.b16 %v3901
        %v3953 = vunpack.c.l.b16 %v3902
        %v3954 = vunpack.c.l.b16 %v3903
        %v3955 = vunpack.c.l.b16 %v3904
        %v3956 = vunpack.c.l.b16 %v3905
        %v3957 = vunpack.c.l.b16 %v3906
        %v3958 = vunpack.c.l.b16 %v3907
        %v3959 = vunpack.c.l.b16 %v3908
        %v3960 = vunpack.c.l.b16 %v3909
        %v3961 = vunpack.c.l.b16 %v3910
        %v3962 = vunpack.c.l.b16 %v3911
        %v3963 = vpack.c.b16 %v3952, %v3951
        %v3964 = vpack.c.b16 %v3954, %v3953
        %v3965 = vpack.c.b16 %v3956, %v3955
        %v3966 = vpack.c.b16 %v3958, %v3957
        %v3967 = vpack.c.b16 %v3960, %v3959
        %v3968 = vpack.c.b16 %v3962, %v3961
        %v3976 = vsel %vm3301, %v3930, 0
        %3978 = vmatprep.subr.bf16.mxu0 0
        %3979 = vmatpush1.bf16.msra.mxu0 %v3963
        %3980 = vmatprep.subr.bf16.mxu0 0
        %3981 = vmatpush1.bf16.msra.mxu0 %v3964
        %3982 = vmatprep.subr.bf16.mxu0 0
        %3983 = vmatpush1.bf16.msra.mxu0 %v3965
        %3984 = vmatprep.subr.bf16.mxu0 0
        %3985 = vmatpush1.bf16.msra.mxu0 %v3966
        %3986 = vmatprep.subr.bf16.mxu0 0
        %3987 = vmatpush1.bf16.msra.mxu0 %v3967
        %3988 = vmatprep.subr.bf16.mxu0 0
        %3989 = vmatpush1.bf16.msra.mxu0 %v3968
        %3990 = vmatprep.subr.bf16.mxu0 0
        %3991 = vmatpush1.bf16.msra.mxu0 0
        %3992 = vmatprep.subr.bf16.mxu0 0
        %3993 = vmatpush1.bf16.msra.mxu0 0
        %3994 = vmatprep.subr.bf16.mxu0 0
        %3995 = vmatpush1.bf16.msra.mxu0 0
        %3996 = vmatprep.subr.bf16.mxu0 0
        %3997 = vmatpush1.bf16.msra.mxu0 0
        %3998 = vmatprep.subr.bf16.mxu0 0
        %3999 = vmatpush1.bf16.msra.mxu0 0
        %4000 = vmatprep.subr.bf16.mxu0 0
        %4001 = vmatpush1.bf16.msra.mxu0 0
        %4002 = vmatprep.subr.bf16.mxu0 0
        %4003 = vmatpush1.bf16.msra.mxu0 0
        %4004 = vmatprep.subr.bf16.mxu0 0
        %4005 = vmatpush1.bf16.msra.mxu0 0
        %4006 = vmatprep.subr.bf16.mxu0 0
        %4007 = vmatpush1.bf16.msra.mxu0 0
        %4008 = vmatprep.subr.bf16.mxu0 0
        %4009 = vmatpush1.bf16.msra.mxu0 0
        %4010 = vmatprep.mubr.bf16.mxu0 0
        %4011 = vmatmul.mubr.bf16.gmra.mrb[0].mxu0 %v3976
        %v4012 = vpop.f32.mrb[0].mxu0
        %v4013 = vadd.f32 %v3937, %v4012
        %v4014 = vpop.f32.mrb[0].mxu0
        %v4015 = vpop.f32.mrb[0].mxu0
        %v4016 = vadd.f32 %v3937, %v4015
        %v4017 = vpop.f32.mrb[0].mxu0
        %4018 = vdwg.mxu0
        %v4019 = vtanh.pop %v4013
        %v4020 = vtanh.pop %v4016
        %v4021 = vxor.u32 %v4013, 2147483648
        %v4022 = vxor.u32 %v4016, 2147483648
        %v4023 = vmul.f32 %v4021, 1.442695
        %v4024 = vpow.pop %v4023
        %v4025 = vmul.f32 %v4022, 1.442695
        %v4026 = vpow.pop %v4025
        %v4027 = vadd.f32 %v4024, 1.0
        %v4028 = vadd.f32 %v4026, 1.0
        %v4029 = vrcp.pop %v4027
        %v4030 = vmul.f32 1.0, %v4029
        %v4031 = vrcp.pop %v4028
        %v4032 = vmul.f32 1.0, %v4031
        %4035 = vrot.lane.b32.xlu0 %v4030, 96
        %v4036 = vpop.permute.xlu0 %4035
        %4037 = vrot.lane.b32.xlu0 %v4032, 96
        %v4038 = vpop.permute.xlu0 %4037
        %v4041 = vmul.f32 %v4019, %v4036
        %v4042 = vmul.f32 %v4020, %v4038
        %v4043 = vpack.c.bf16 %v4042, %v4041
        %s4044 = scalar_lea.vmem [#allocation16], 48
        %v4045 = vld [vmem:[%s4044] sm:$0xf]
        %v4046 = vld [vmem:[%s4044 + $0x4] sm:$0xf]
        %v4047 = vld [vmem:[%s4044 + $0x8] sm:$0xf]
        %v4048 = vld [vmem:[%s4044 + $0xc] sm:$0xf]
        %v4053 = vunpack.c.l.b16 %v4045
        %v4054 = vunpack.c.l.b16 %v4046
        %v4055 = vunpack.c.l.b16 %v4047
        %v4056 = vunpack.c.l.b16 %v4048
        %v4057 = vpack.c.b16 %v4054, %v4053
        %v4058 = vpack.c.b16 %v4056, %v4055
        %v4062 = vsel %vm1194, %v4043, 0
        %4064 = vmatprep.subr.bf16.mxu0 0
        %4065 = vmatpush1.bf16.msra.mxu0 %v4057
        %4066 = vmatprep.subr.bf16.mxu0 0
        %4067 = vmatpush1.bf16.msra.mxu0 %v4058
        %4068 = vmatprep.subr.bf16.mxu0 0
        %4069 = vmatpush1.bf16.msra.mxu0 0
        %4070 = vmatprep.subr.bf16.mxu0 0
        %4071 = vmatpush1.bf16.msra.mxu0 0
        %4072 = vmatprep.subr.bf16.mxu0 0
        %4073 = vmatpush1.bf16.msra.mxu0 0
        %4074 = vmatprep.subr.bf16.mxu0 0
        %4075 = vmatpush1.bf16.msra.mxu0 0
        %4076 = vmatprep.subr.bf16.mxu0 0
        %4077 = vmatpush1.bf16.msra.mxu0 0
        %4078 = vmatprep.subr.bf16.mxu0 0
        %4079 = vmatpush1.bf16.msra.mxu0 0
        %4080 = vmatprep.subr.bf16.mxu0 0
        %4081 = vmatpush1.bf16.msra.mxu0 0
        %4082 = vmatprep.subr.bf16.mxu0 0
        %4083 = vmatpush1.bf16.msra.mxu0 0
        %4084 = vmatprep.subr.bf16.mxu0 0
        %4085 = vmatpush1.bf16.msra.mxu0 0
        %4086 = vmatprep.subr.bf16.mxu0 0
        %4087 = vmatpush1.bf16.msra.mxu0 0
        %4088 = vmatprep.subr.bf16.mxu0 0
        %4089 = vmatpush1.bf16.msra.mxu0 0
        %4090 = vmatprep.subr.bf16.mxu0 0
        %4091 = vmatpush1.bf16.msra.mxu0 0
        %4092 = vmatprep.subr.bf16.mxu0 0
        %4093 = vmatpush1.bf16.msra.mxu0 0
        %4094 = vmatprep.subr.bf16.mxu0 0
        %4095 = vmatpush1.bf16.msra.mxu0 0
        %4096 = vmatprep.mubr.bf16.mxu0 0
        %4097 = vmatmul.mubr.bf16.gmra.mrb[0].mxu0 %v4062
        %v4098 = vpop.f32.mrb[0].mxu0
        %v4099 = vadd.f32 0.0, %v4098
        %v4100 = vpop.f32.mrb[0].mxu0
        %v4101 = vpop.f32.mrb[0].mxu0
        %v4102 = vadd.f32 0.0, %v4101
        %v4103 = vpop.f32.mrb[0].mxu0
        %4104 = vdwg.mxu0
        %v4105 = vadd.f32 %v3897, %v4099
        %v4106 = vadd.f32 %v3898, %v4102
        %s4107 = scalar_lea.vmem [#allocation18], 3
        %v4108 = vld [vmem:[%s4107] sm:$0x1]
        %v4110 = vlaneseq
        %v4111 = vshrl.u32 %v4110, 7
        %v4112 = vsub.s32 0, %v4111
        %v4113 = vrot.slane %v4108, %v4112
        %v4115 = vadd.f32 %v4105, %v4113
        %v4116 = vadd.f32 %v4106, %v4113
        %s4117 = scalar_lea.vmem %s9, 192
        %v4118 = vld [vmem:[%s4117 + $0x10] sm:$0xf]
        %v4119 = vld [vmem:[%s4117 + $0x14] sm:$0xf]
        %v4120 = vld [vmem:[%s4117 + $0x18] sm:$0xf]
        %v4121 = vld [vmem:[%s4117 + $0x1c] sm:$0xf]
        %v4122 = vpack.c.bf16 %v4116, %v4115
        %s4123 = scalar_lea.vmem [#allocation15], 4
        %v4124 = vld [vmem:[%s4123] sm:$0x1]
        %v4126 = vlaneseq
        %v4127 = vshrl.u32 %v4126, 7
        %v4128 = vsub.s32 0, %v4127
        %v4129 = vrot.slane %v4124, %v4128
        %v4135 = vunpack.c.l.b16 %v4118
        %v4136 = vunpack.c.l.b16 %v4119
        %v4137 = vunpack.c.l.b16 %v4120
        %v4138 = vunpack.c.l.b16 %v4121
        %v4139 = vpack.c.b16 %v4136, %v4135
        %v4140 = vpack.c.b16 %v4138, %v4137
        %v4144 = vsel %vm1194, %v4122, 0
        %4146 = vmatprep.subr.bf16.mxu0 0
        %4147 = vmatpush1.bf16.msra.mxu0 %v4139
        %4148 = vmatprep.subr.bf16.mxu0 0
        %4149 = vmatpush1.bf16.msra.mxu0 %v4140
        %4150 = vmatprep.subr.bf16.mxu0 0
        %4151 = vmatpush1.bf16.msra.mxu0 0
        %4152 = vmatprep.subr.bf16.mxu0 0
        %4153 = vmatpush1.bf16.msra.mxu0 0
        %4154 = vmatprep.subr.bf16.mxu0 0
        %4155 = vmatpush1.bf16.msra.mxu0 0
        %4156 = vmatprep.subr.bf16.mxu0 0
        %4157 = vmatpush1.bf16.msra.mxu0 0
        %4158 = vmatprep.subr.bf16.mxu0 0
        %4159 = vmatpush1.bf16.msra.mxu0 0
        %4160 = vmatprep.subr.bf16.mxu0 0
        %4161 = vmatpush1.bf16.msra.mxu0 0
        %4162 = vmatprep.subr.bf16.mxu0 0
        %4163 = vmatpush1.bf16.msra.mxu0 0
        %4164 = vmatprep.subr.bf16.mxu0 0
        %4165 = vmatpush1.bf16.msra.mxu0 0
        %4166 = vmatprep.subr.bf16.mxu0 0
        %4167 = vmatpush1.bf16.msra.mxu0 0
        %4168 = vmatprep.subr.bf16.mxu0 0
        %4169 = vmatpush1.bf16.msra.mxu0 0
        %4170 = vmatprep.subr.bf16.mxu0 0
        %4171 = vmatpush1.bf16.msra.mxu0 0
        %4172 = vmatprep.subr.bf16.mxu0 0
        %4173 = vmatpush1.bf16.msra.mxu0 0
        %4174 = vmatprep.subr.bf16.mxu0 0
        %4175 = vmatpush1.bf16.msra.mxu0 0
        %4176 = vmatprep.subr.bf16.mxu0 0
        %4177 = vmatpush1.bf16.msra.mxu0 0
        %4178 = vmatprep.mubr.bf16.mxu0 0
        %4179 = vmatmul.mubr.bf16.gmra.mrb[0].mxu0 %v4144
        %v4180 = vpop.f32.mrb[0].mxu0
        %v4181 = vadd.f32 %v4129, %v4180
        %v4182 = vpop.f32.mrb[0].mxu0
        %v4183 = vpop.f32.mrb[0].mxu0
        %v4184 = vadd.f32 %v4129, %v4183
        %v4185 = vpop.f32.mrb[0].mxu0
        %4186 = vdwg.mxu0
        %v4187 = vtanh.pop %v4181
        %v4188 = vtanh.pop %v4184
        %v4189 = vxor.u32 %v4181, 2147483648
        %v4190 = vxor.u32 %v4184, 2147483648
        %v4191 = vmul.f32 %v4189, 1.442695
        %v4192 = vpow.pop %v4191
        %v4193 = vmul.f32 %v4190, 1.442695
        %v4194 = vpow.pop %v4193
        %v4195 = vadd.f32 %v4192, 1.0
        %v4196 = vadd.f32 %v4194, 1.0
        %v4197 = vrcp.pop %v4195
        %v4198 = vmul.f32 1.0, %v4197
        %v4199 = vrcp.pop %v4196
        %v4200 = vmul.f32 1.0, %v4199
        %4203 = vrot.lane.b32.xlu0 %v4198, 96
        %v4204 = vpop.permute.xlu0 %4203
        %4205 = vrot.lane.b32.xlu0 %v4200, 96
        %v4206 = vpop.permute.xlu0 %4205
        %v4209 = vmul.f32 %v4187, %v4204
        %v4210 = vmul.f32 %v4188, %v4206
        %v4211 = vpack.c.bf16 %v4210, %v4209
        %s4212 = scalar_lea.vmem [#allocation16], 64
        %v4213 = vld [vmem:[%s4212] sm:$0xf]
        %v4214 = vld [vmem:[%s4212 + $0x4] sm:$0xf]
        %v4215 = vld [vmem:[%s4212 + $0x8] sm:$0xf]
        %v4216 = vld [vmem:[%s4212 + $0xc] sm:$0xf]
        %v4221 = vunpack.c.l.b16 %v4213
        %v4222 = vunpack.c.l.b16 %v4214
        %v4223 = vunpack.c.l.b16 %v4215
        %v4224 = vunpack.c.l.b16 %v4216
        %v4225 = vpack.c.b16 %v4222, %v4221
        %v4226 = vpack.c.b16 %v4224, %v4223
        %v4230 = vsel %vm1194, %v4211, 0
        %4232 = vmatprep.subr.bf16.mxu0 0
        %4233 = vmatpush1.bf16.msra.mxu0 %v4225
        %4234 = vmatprep.subr.bf16.mxu0 0
        %4235 = vmatpush1.bf16.msra.mxu0 %v4226
        %4236 = vmatprep.subr.bf16.mxu0 0
        %4237 = vmatpush1.bf16.msra.mxu0 0
        %4238 = vmatprep.subr.bf16.mxu0 0
        %4239 = vmatpush1.bf16.msra.mxu0 0
        %4240 = vmatprep.subr.bf16.mxu0 0
        %4241 = vmatpush1.bf16.msra.mxu0 0
        %4242 = vmatprep.subr.bf16.mxu0 0
        %4243 = vmatpush1.bf16.msra.mxu0 0
        %4244 = vmatprep.subr.bf16.mxu0 0
        %4245 = vmatpush1.bf16.msra.mxu0 0
        %4246 = vmatprep.subr.bf16.mxu0 0
        %4247 = vmatpush1.bf16.msra.mxu0 0
        %4248 = vmatprep.subr.bf16.mxu0 0
        %4249 = vmatpush1.bf16.msra.mxu0 0
        %4250 = vmatprep.subr.bf16.mxu0 0
        %4251 = vmatpush1.bf16.msra.mxu0 0
        %4252 = vmatprep.subr.bf16.mxu0 0
        %4253 = vmatpush1.bf16.msra.mxu0 0
        %4254 = vmatprep.subr.bf16.mxu0 0
        %4255 = vmatpush1.bf16.msra.mxu0 0
        %4256 = vmatprep.subr.bf16.mxu0 0
        %4257 = vmatpush1.bf16.msra.mxu0 0
        %4258 = vmatprep.subr.bf16.mxu0 0
        %4259 = vmatpush1.bf16.msra.mxu0 0
        %4260 = vmatprep.subr.bf16.mxu0 0
        %4261 = vmatpush1.bf16.msra.mxu0 0
        %4262 = vmatprep.subr.bf16.mxu0 0
        %4263 = vmatpush1.bf16.msra.mxu0 0
        %4264 = vmatprep.mubr.bf16.mxu0 0
        %4265 = vmatmul.mubr.bf16.gmra.mrb[0].mxu0 %v4230
        %v4266 = vpop.f32.mrb[0].mxu0
        %v4267 = vadd.f32 0.0, %v4266
        %v4268 = vpop.f32.mrb[0].mxu0
        %v4269 = vpop.f32.mrb[0].mxu0
        %v4270 = vadd.f32 0.0, %v4269
        %v4271 = vpop.f32.mrb[0].mxu0
        %4272 = vdwg.mxu0
        %v4273 = vadd.f32 %v4115, %v4267
        %v4274 = vadd.f32 %v4116, %v4270
        %s4275 = scalar_lea.vmem [#allocation18], 4
        %v4276 = vld [vmem:[%s4275] sm:$0x1]
        %v4278 = vlaneseq
        %v4279 = vshrl.u32 %v4278, 7
        %v4280 = vsub.s32 0, %v4279
        %v4281 = vrot.slane %v4276, %v4280
        %v4283 = vadd.f32 %v4273, %v4281
        %v4284 = vadd.f32 %v4274, %v4281
        %s4285 = scalar_lea.vmem %s9, 240
        %v4286 = vld [vmem:[%s4285 + $0x10] sm:$0xf]
        %v4287 = vld [vmem:[%s4285 + $0x14] sm:$0xf]
        %v4288 = vld [vmem:[%s4285 + $0x18] sm:$0xf]
        %v4289 = vld [vmem:[%s4285 + $0x1c] sm:$0xf]
        %v4290 = vpack.c.bf16 %v4284, %v4283
        %s4291 = scalar_lea.vmem [#allocation15], 5
        %v4292 = vld [vmem:[%s4291] sm:$0x1]
        %v4294 = vlaneseq
        %v4295 = vshrl.u32 %v4294, 7
        %v4296 = vsub.s32 0, %v4295
        %v4297 = vrot.slane %v4292, %v4296
        %v4303 = vunpack.c.l.b16 %v4286
        %v4304 = vunpack.c.l.b16 %v4287
        %v4305 = vunpack.c.l.b16 %v4288
        %v4306 = vunpack.c.l.b16 %v4289
        %v4307 = vpack.c.b16 %v4304, %v4303
        %v4308 = vpack.c.b16 %v4306, %v4305
        %v4312 = vsel %vm1194, %v4290, 0
        %4314 = vmatprep.subr.bf16.mxu0 0
        %4315 = vmatpush1.bf16.msra.mxu0 %v4307
        %4316 = vmatprep.subr.bf16.mxu0 0
        %4317 = vmatpush1.bf16.msra.mxu0 %v4308
        %4318 = vmatprep.subr.bf16.mxu0 0
        %4319 = vmatpush1.bf16.msra.mxu0 0
        %4320 = vmatprep.subr.bf16.mxu0 0
        %4321 = vmatpush1.bf16.msra.mxu0 0
        %4322 = vmatprep.subr.bf16.mxu0 0
        %4323 = vmatpush1.bf16.msra.mxu0 0
        %4324 = vmatprep.subr.bf16.mxu0 0
        %4325 = vmatpush1.bf16.msra.mxu0 0
        %4326 = vmatprep.subr.bf16.mxu0 0
        %4327 = vmatpush1.bf16.msra.mxu0 0
        %4328 = vmatprep.subr.bf16.mxu0 0
        %4329 = vmatpush1.bf16.msra.mxu0 0
        %4330 = vmatprep.subr.bf16.mxu0 0
        %4331 = vmatpush1.bf16.msra.mxu0 0
        %4332 = vmatprep.subr.bf16.mxu0 0
        %4333 = vmatpush1.bf16.msra.mxu0 0
        %4334 = vmatprep.subr.bf16.mxu0 0
        %4335 = vmatpush1.bf16.msra.mxu0 0
        %4336 = vmatprep.subr.bf16.mxu0 0
        %4337 = vmatpush1.bf16.msra.mxu0 0
        %4338 = vmatprep.subr.bf16.mxu0 0
        %4339 = vmatpush1.bf16.msra.mxu0 0
        %4340 = vmatprep.subr.bf16.mxu0 0
        %4341 = vmatpush1.bf16.msra.mxu0 0
        %4342 = vmatprep.subr.bf16.mxu0 0
        %4343 = vmatpush1.bf16.msra.mxu0 0
        %4344 = vmatprep.subr.bf16.mxu0 0
        %4345 = vmatpush1.bf16.msra.mxu0 0
        %4346 = vmatprep.mubr.bf16.mxu0 0
        %4347 = vmatmul.mubr.bf16.gmra.mrb[0].mxu0 %v4312
        %v4348 = vpop.f32.mrb[0].mxu0
        %v4349 = vadd.f32 %v4297, %v4348
        %v4350 = vpop.f32.mrb[0].mxu0
        %v4351 = vpop.f32.mrb[0].mxu0
        %v4352 = vadd.f32 %v4297, %v4351
        %v4353 = vpop.f32.mrb[0].mxu0
        %4354 = vdwg.mxu0
        %v4355 = vtanh.pop %v4349
        %v4356 = vtanh.pop %v4352
        %v4357 = vxor.u32 %v4349, 2147483648
        %v4358 = vxor.u32 %v4352, 2147483648
        %v4359 = vmul.f32 %v4357, 1.442695
        %v4360 = vpow.pop %v4359
        %v4361 = vmul.f32 %v4358, 1.442695
        %v4362 = vpow.pop %v4361
        %v4363 = vadd.f32 %v4360, 1.0
        %v4364 = vadd.f32 %v4362, 1.0
        %v4365 = vrcp.pop %v4363
        %v4366 = vmul.f32 1.0, %v4365
        %v4367 = vrcp.pop %v4364
        %v4368 = vmul.f32 1.0, %v4367
        %4371 = vrot.lane.b32.xlu0 %v4366, 96
        %v4372 = vpop.permute.xlu0 %4371
        %4373 = vrot.lane.b32.xlu0 %v4368, 96
        %v4374 = vpop.permute.xlu0 %4373
        %v4377 = vmul.f32 %v4355, %v4372
        %v4378 = vmul.f32 %v4356, %v4374
        %v4379 = vpack.c.bf16 %v4378, %v4377
        %s4380 = scalar_lea.vmem [#allocation16], 80
        %v4381 = vld [vmem:[%s4380] sm:$0xf]
        %v4382 = vld [vmem:[%s4380 + $0x4] sm:$0xf]
        %v4383 = vld [vmem:[%s4380 + $0x8] sm:$0xf]
        %v4384 = vld [vmem:[%s4380 + $0xc] sm:$0xf]
        %v4389 = vunpack.c.l.b16 %v4381
        %v4390 = vunpack.c.l.b16 %v4382
        %v4391 = vunpack.c.l.b16 %v4383
        %v4392 = vunpack.c.l.b16 %v4384
        %v4393 = vpack.c.b16 %v4390, %v4389
        %v4394 = vpack.c.b16 %v4392, %v4391
        %v4398 = vsel %vm1194, %v4379, 0
        %4400 = vmatprep.subr.bf16.mxu0 0
        %4401 = vmatpush1.bf16.msra.mxu0 %v4393
        %4402 = vmatprep.subr.bf16.mxu0 0
        %4403 = vmatpush1.bf16.msra.mxu0 %v4394
        %4404 = vmatprep.subr.bf16.mxu0 0
        %4405 = vmatpush1.bf16.msra.mxu0 0
        %4406 = vmatprep.subr.bf16.mxu0 0
        %4407 = vmatpush1.bf16.msra.mxu0 0
        %4408 = vmatprep.subr.bf16.mxu0 0
        %4409 = vmatpush1.bf16.msra.mxu0 0
        %4410 = vmatprep.subr.bf16.mxu0 0
        %4411 = vmatpush1.bf16.msra.mxu0 0
        %4412 = vmatprep.subr.bf16.mxu0 0
        %4413 = vmatpush1.bf16.msra.mxu0 0
        %4414 = vmatprep.subr.bf16.mxu0 0
        %4415 = vmatpush1.bf16.msra.mxu0 0
        %4416 = vmatprep.subr.bf16.mxu0 0
        %4417 = vmatpush1.bf16.msra.mxu0 0
        %4418 = vmatprep.subr.bf16.mxu0 0
        %4419 = vmatpush1.bf16.msra.mxu0 0
        %4420 = vmatprep.subr.bf16.mxu0 0
        %4421 = vmatpush1.bf16.msra.mxu0 0
        %4422 = vmatprep.subr.bf16.mxu0 0
        %4423 = vmatpush1.bf16.msra.mxu0 0
        %4424 = vmatprep.subr.bf16.mxu0 0
        %4425 = vmatpush1.bf16.msra.mxu0 0
        %4426 = vmatprep.subr.bf16.mxu0 0
        %4427 = vmatpush1.bf16.msra.mxu0 0
        %4428 = vmatprep.subr.bf16.mxu0 0
        %4429 = vmatpush1.bf16.msra.mxu0 0
        %4430 = vmatprep.subr.bf16.mxu0 0
        %4431 = vmatpush1.bf16.msra.mxu0 0
        %4432 = vmatprep.mubr.bf16.mxu0 0
        %4433 = vmatmul.mubr.bf16.gmra.mrb[0].mxu0 %v4398
        %v4434 = vpop.f32.mrb[0].mxu0
        %v4435 = vadd.f32 0.0, %v4434
        %v4436 = vpop.f32.mrb[0].mxu0
        %v4437 = vpop.f32.mrb[0].mxu0
        %v4438 = vadd.f32 0.0, %v4437
        %v4439 = vpop.f32.mrb[0].mxu0
        %4440 = vdwg.mxu0
        %v4441 = vadd.f32 %v4283, %v4435
        %v4442 = vadd.f32 %v4284, %v4438
        %s4443 = scalar_lea.vmem [#allocation18], 5
        %v4444 = vld [vmem:[%s4443] sm:$0x1]
        %v4446 = vlaneseq
        %v4447 = vshrl.u32 %v4446, 7
        %v4448 = vsub.s32 0, %v4447
        %v4449 = vrot.slane %v4444, %v4448
        %v4451 = vadd.f32 %v4441, %v4449
        %v4452 = vadd.f32 %v4442, %v4449
        %s4453 = scalar_lea.vmem %s9, 288
        %v4454 = vld [vmem:[%s4453 + $0x10] sm:$0xf]
        %v4455 = vld [vmem:[%s4453 + $0x14] sm:$0xf]
        %v4456 = vld [vmem:[%s4453 + $0x18] sm:$0xf]
        %v4457 = vld [vmem:[%s4453 + $0x1c] sm:$0xf]
        %v4458 = vpack.c.bf16 %v4452, %v4451
        %s4459 = scalar_lea.vmem [#allocation15], 6
        %v4460 = vld [vmem:[%s4459] sm:$0x1]
        %v4462 = vlaneseq
        %v4463 = vshrl.u32 %v4462, 7
        %v4464 = vsub.s32 0, %v4463
        %v4465 = vrot.slane %v4460, %v4464
        %v4471 = vunpack.c.l.b16 %v4454
        %v4472 = vunpack.c.l.b16 %v4455
        %v4473 = vunpack.c.l.b16 %v4456
        %v4474 = vunpack.c.l.b16 %v4457
        %v4475 = vpack.c.b16 %v4472, %v4471
        %v4476 = vpack.c.b16 %v4474, %v4473
        %v4480 = vsel %vm1194, %v4458, 0
        %4482 = vmatprep.subr.bf16.mxu0 0
        %4483 = vmatpush1.bf16.msra.mxu0 %v4475
        %4484 = vmatprep.subr.bf16.mxu0 0
        %4485 = vmatpush1.bf16.msra.mxu0 %v4476
        %4486 = vmatprep.subr.bf16.mxu0 0
        %4487 = vmatpush1.bf16.msra.mxu0 0
        %4488 = vmatprep.subr.bf16.mxu0 0
        %4489 = vmatpush1.bf16.msra.mxu0 0
        %4490 = vmatprep.subr.bf16.mxu0 0
        %4491 = vmatpush1.bf16.msra.mxu0 0
        %4492 = vmatprep.subr.bf16.mxu0 0
        %4493 = vmatpush1.bf16.msra.mxu0 0
        %4494 = vmatprep.subr.bf16.mxu0 0
        %4495 = vmatpush1.bf16.msra.mxu0 0
        %4496 = vmatprep.subr.bf16.mxu0 0
        %4497 = vmatpush1.bf16.msra.mxu0 0
        %4498 = vmatprep.subr.bf16.mxu0 0
        %4499 = vmatpush1.bf16.msra.mxu0 0
        %4500 = vmatprep.subr.bf16.mxu0 0
        %4501 = vmatpush1.bf16.msra.mxu0 0
        %4502 = vmatprep.subr.bf16.mxu0 0
        %4503 = vmatpush1.bf16.msra.mxu0 0
        %4504 = vmatprep.subr.bf16.mxu0 0
        %4505 = vmatpush1.bf16.msra.mxu0 0
        %4506 = vmatprep.subr.bf16.mxu0 0
        %4507 = vmatpush1.bf16.msra.mxu0 0
        %4508 = vmatprep.subr.bf16.mxu0 0
        %4509 = vmatpush1.bf16.msra.mxu0 0
        %4510 = vmatprep.subr.bf16.mxu0 0
        %4511 = vmatpush1.bf16.msra.mxu0 0
        %4512 = vmatprep.subr.bf16.mxu0 0
        %4513 = vmatpush1.bf16.msra.mxu0 0
        %4514 = vmatprep.mubr.bf16.mxu0 0
        %4515 = vmatmul.mubr.bf16.gmra.mrb[0].mxu0 %v4480
        %v4516 = vpop.f32.mrb[0].mxu0
        %v4517 = vadd.f32 %v4465, %v4516
        %v4518 = vpop.f32.mrb[0].mxu0
        %v4519 = vpop.f32.mrb[0].mxu0
        %v4520 = vadd.f32 %v4465, %v4519
        %v4521 = vpop.f32.mrb[0].mxu0
        %4522 = vdwg.mxu0
        %v4523 = vtanh.pop %v4517
        %v4524 = vtanh.pop %v4520
        %v4525 = vxor.u32 %v4517, 2147483648
        %v4526 = vxor.u32 %v4520, 2147483648
        %v4527 = vmul.f32 %v4525, 1.442695
        %v4528 = vpow.pop %v4527
        %v4529 = vmul.f32 %v4526, 1.442695
        %v4530 = vpow.pop %v4529
        %v4531 = vadd.f32 %v4528, 1.0
        %v4532 = vadd.f32 %v4530, 1.0
        %v4533 = vrcp.pop %v4531
        %v4534 = vmul.f32 1.0, %v4533
        %v4535 = vrcp.pop %v4532
        %v4536 = vmul.f32 1.0, %v4535
        %4539 = vrot.lane.b32.xlu0 %v4534, 96
        %v4540 = vpop.permute.xlu0 %4539
        %4541 = vrot.lane.b32.xlu0 %v4536, 96
        %v4542 = vpop.permute.xlu0 %4541
        %v4545 = vmul.f32 %v4523, %v4540
        %v4546 = vmul.f32 %v4524, %v4542
        %v4547 = vpack.c.bf16 %v4546, %v4545
        %s4548 = scalar_lea.vmem [#allocation16], 96
        %v4549 = vld [vmem:[%s4548] sm:$0xf]
        %v4550 = vld [vmem:[%s4548 + $0x4] sm:$0xf]
        %v4551 = vld [vmem:[%s4548 + $0x8] sm:$0xf]
        %v4552 = vld [vmem:[%s4548 + $0xc] sm:$0xf]
        %v4557 = vunpack.c.l.b16 %v4549
        %v4558 = vunpack.c.l.b16 %v4550
        %v4559 = vunpack.c.l.b16 %v4551
        %v4560 = vunpack.c.l.b16 %v4552
        %v4561 = vpack.c.b16 %v4558, %v4557
        %v4562 = vpack.c.b16 %v4560, %v4559
        %v4566 = vsel %vm1194, %v4547, 0
        %4568 = vmatprep.subr.bf16.mxu0 0
        %4569 = vmatpush1.bf16.msra.mxu0 %v4561
        %4570 = vmatprep.subr.bf16.mxu0 0
        %4571 = vmatpush1.bf16.msra.mxu0 %v4562
        %4572 = vmatprep.subr.bf16.mxu0 0
        %4573 = vmatpush1.bf16.msra.mxu0 0
        %4574 = vmatprep.subr.bf16.mxu0 0
        %4575 = vmatpush1.bf16.msra.mxu0 0
        %4576 = vmatprep.subr.bf16.mxu0 0
        %4577 = vmatpush1.bf16.msra.mxu0 0
        %4578 = vmatprep.subr.bf16.mxu0 0
        %4579 = vmatpush1.bf16.msra.mxu0 0
        %4580 = vmatprep.subr.bf16.mxu0 0
        %4581 = vmatpush1.bf16.msra.mxu0 0
        %4582 = vmatprep.subr.bf16.mxu0 0
        %4583 = vmatpush1.bf16.msra.mxu0 0
        %4584 = vmatprep.subr.bf16.mxu0 0
        %4585 = vmatpush1.bf16.msra.mxu0 0
        %4586 = vmatprep.subr.bf16.mxu0 0
        %4587 = vmatpush1.bf16.msra.mxu0 0
        %4588 = vmatprep.subr.bf16.mxu0 0
        %4589 = vmatpush1.bf16.msra.mxu0 0
        %4590 = vmatprep.subr.bf16.mxu0 0
        %4591 = vmatpush1.bf16.msra.mxu0 0
        %4592 = vmatprep.subr.bf16.mxu0 0
        %4593 = vmatpush1.bf16.msra.mxu0 0
        %4594 = vmatprep.subr.bf16.mxu0 0
        %4595 = vmatpush1.bf16.msra.mxu0 0
        %4596 = vmatprep.subr.bf16.mxu0 0
        %4597 = vmatpush1.bf16.msra.mxu0 0
        %4598 = vmatprep.subr.bf16.mxu0 0
        %4599 = vmatpush1.bf16.msra.mxu0 0
        %4600 = vmatprep.mubr.bf16.mxu0 0
        %4601 = vmatmul.mubr.bf16.gmra.mrb[0].mxu0 %v4566
        %v4602 = vpop.f32.mrb[0].mxu0
        %v4603 = vadd.f32 0.0, %v4602
        %v4604 = vpop.f32.mrb[0].mxu0
        %v4605 = vpop.f32.mrb[0].mxu0
        %v4606 = vadd.f32 0.0, %v4605
        %v4607 = vpop.f32.mrb[0].mxu0
        %4608 = vdwg.mxu0
        %v4609 = vadd.f32 %v4451, %v4603
        %v4610 = vadd.f32 %v4452, %v4606
        %s4611 = scalar_lea.vmem [#allocation18], 6
        %v4612 = vld [vmem:[%s4611] sm:$0x1]
        %v4614 = vlaneseq
        %v4615 = vshrl.u32 %v4614, 7
        %v4616 = vsub.s32 0, %v4615
        %v4617 = vrot.slane %v4612, %v4616
        %v4619 = vadd.f32 %v4609, %v4617
        %v4620 = vadd.f32 %v4610, %v4617
        %s4621 = scalar_lea.vmem %s9, 336
        %v4622 = vld [vmem:[%s4621 + $0x10] sm:$0xf]
        %v4623 = vld [vmem:[%s4621 + $0x14] sm:$0xf]
        %v4624 = vld [vmem:[%s4621 + $0x18] sm:$0xf]
        %v4625 = vld [vmem:[%s4621 + $0x1c] sm:$0xf]
        %v4626 = vpack.c.bf16 %v4620, %v4619
        %s4627 = scalar_lea.vmem [#allocation15], 7
        %v4628 = vld [vmem:[%s4627] sm:$0x1]
        %v4630 = vlaneseq
        %v4631 = vshrl.u32 %v4630, 7
        %v4632 = vsub.s32 0, %v4631
        %v4633 = vrot.slane %v4628, %v4632
        %v4639 = vunpack.c.l.b16 %v4622
        %v4640 = vunpack.c.l.b16 %v4623
        %v4641 = vunpack.c.l.b16 %v4624
        %v4642 = vunpack.c.l.b16 %v4625
        %v4643 = vpack.c.b16 %v4640, %v4639
        %v4644 = vpack.c.b16 %v4642, %v4641
        %v4648 = vsel %vm1194, %v4626, 0
        %4650 = vmatprep.subr.bf16.mxu0 0
        %4651 = vmatpush1.bf16.msra.mxu0 %v4643
        %4652 = vmatprep.subr.bf16.mxu0 0
        %4653 = vmatpush1.bf16.msra.mxu0 %v4644
        %4654 = vmatprep.subr.bf16.mxu0 0
        %4655 = vmatpush1.bf16.msra.mxu0 0
        %4656 = vmatprep.subr.bf16.mxu0 0
        %4657 = vmatpush1.bf16.msra.mxu0 0
        %4658 = vmatprep.subr.bf16.mxu0 0
        %4659 = vmatpush1.bf16.msra.mxu0 0
        %4660 = vmatprep.subr.bf16.mxu0 0
        %4661 = vmatpush1.bf16.msra.mxu0 0
        %4662 = vmatprep.subr.bf16.mxu0 0
        %4663 = vmatpush1.bf16.msra.mxu0 0
        %4664 = vmatprep.subr.bf16.mxu0 0
        %4665 = vmatpush1.bf16.msra.mxu0 0
        %4666 = vmatprep.subr.bf16.mxu0 0
        %4667 = vmatpush1.bf16.msra.mxu0 0
        %4668 = vmatprep.subr.bf16.mxu0 0
        %4669 = vmatpush1.bf16.msra.mxu0 0
        %4670 = vmatprep.subr.bf16.mxu0 0
        %4671 = vmatpush1.bf16.msra.mxu0 0
        %4672 = vmatprep.subr.bf16.mxu0 0
        %4673 = vmatpush1.bf16.msra.mxu0 0
        %4674 = vmatprep.subr.bf16.mxu0 0
        %4675 = vmatpush1.bf16.msra.mxu0 0
        %4676 = vmatprep.subr.bf16.mxu0 0
        %4677 = vmatpush1.bf16.msra.mxu0 0
        %4678 = vmatprep.subr.bf16.mxu0 0
        %4679 = vmatpush1.bf16.msra.mxu0 0
        %4680 = vmatprep.subr.bf16.mxu0 0
        %4681 = vmatpush1.bf16.msra.mxu0 0
        %4682 = vmatprep.mubr.bf16.mxu0 0
        %4683 = vmatmul.mubr.bf16.gmra.mrb[0].mxu0 %v4648
        %v4684 = vpop.f32.mrb[0].mxu0
        %v4685 = vadd.f32 %v4633, %v4684
        %v4686 = vpop.f32.mrb[0].mxu0
        %v4687 = vpop.f32.mrb[0].mxu0
        %v4688 = vadd.f32 %v4633, %v4687
        %v4689 = vpop.f32.mrb[0].mxu0
        %4690 = vdwg.mxu0
        %v4691 = vtanh.pop %v4685
        %v4692 = vtanh.pop %v4688
        %v4693 = vxor.u32 %v4685, 2147483648
        %v4694 = vxor.u32 %v4688, 2147483648
        %v4695 = vmul.f32 %v4693, 1.442695
        %v4696 = vpow.pop %v4695
        %v4697 = vmul.f32 %v4694, 1.442695
        %v4698 = vpow.pop %v4697
        %v4699 = vadd.f32 %v4696, 1.0
        %v4700 = vadd.f32 %v4698, 1.0
        %v4701 = vrcp.pop %v4699
        %v4702 = vmul.f32 1.0, %v4701
        %v4703 = vrcp.pop %v4700
        %v4704 = vmul.f32 1.0, %v4703
        %4707 = vrot.lane.b32.xlu0 %v4702, 96
        %v4708 = vpop.permute.xlu0 %4707
        %4709 = vrot.lane.b32.xlu0 %v4704, 96
        %v4710 = vpop.permute.xlu0 %4709
        %v4713 = vmul.f32 %v4691, %v4708
        %v4714 = vmul.f32 %v4692, %v4710
        %v4715 = vpack.c.bf16 %v4714, %v4713
        %s4716 = scalar_lea.vmem [#allocation16], 112
        %v4717 = vld [vmem:[%s4716] sm:$0xf]
        %v4718 = vld [vmem:[%s4716 + $0x4] sm:$0xf]
        %v4719 = vld [vmem:[%s4716 + $0x8] sm:$0xf]
        %v4720 = vld [vmem:[%s4716 + $0xc] sm:$0xf]
        %v4725 = vunpack.c.l.b16 %v4717
        %v4726 = vunpack.c.l.b16 %v4718
        %v4727 = vunpack.c.l.b16 %v4719
        %v4728 = vunpack.c.l.b16 %v4720
        %v4729 = vpack.c.b16 %v4726, %v4725
        %v4730 = vpack.c.b16 %v4728, %v4727
        %v4734 = vsel %vm1194, %v4715, 0
        %4736 = vmatprep.subr.bf16.mxu0 0
        %4737 = vmatpush1.bf16.msra.mxu0 %v4729
        %4738 = vmatprep.subr.bf16.mxu0 0
        %4739 = vmatpush1.bf16.msra.mxu0 %v4730
        %4740 = vmatprep.subr.bf16.mxu0 0
        %4741 = vmatpush1.bf16.msra.mxu0 0
        %4742 = vmatprep.subr.bf16.mxu0 0
        %4743 = vmatpush1.bf16.msra.mxu0 0
        %4744 = vmatprep.subr.bf16.mxu0 0
        %4745 = vmatpush1.bf16.msra.mxu0 0
        %4746 = vmatprep.subr.bf16.mxu0 0
        %4747 = vmatpush1.bf16.msra.mxu0 0
        %4748 = vmatprep.subr.bf16.mxu0 0
        %4749 = vmatpush1.bf16.msra.mxu0 0
        %4750 = vmatprep.subr.bf16.mxu0 0
        %4751 = vmatpush1.bf16.msra.mxu0 0
        %4752 = vmatprep.subr.bf16.mxu0 0
        %4753 = vmatpush1.bf16.msra.mxu0 0
        %4754 = vmatprep.subr.bf16.mxu0 0
        %4755 = vmatpush1.bf16.msra.mxu0 0
        %4756 = vmatprep.subr.bf16.mxu0 0
        %4757 = vmatpush1.bf16.msra.mxu0 0
        %4758 = vmatprep.subr.bf16.mxu0 0
        %4759 = vmatpush1.bf16.msra.mxu0 0
        %4760 = vmatprep.subr.bf16.mxu0 0
        %4761 = vmatpush1.bf16.msra.mxu0 0
        %4762 = vmatprep.subr.bf16.mxu0 0
        %4763 = vmatpush1.bf16.msra.mxu0 0
        %4764 = vmatprep.subr.bf16.mxu0 0
        %4765 = vmatpush1.bf16.msra.mxu0 0
        %4766 = vmatprep.subr.bf16.mxu0 0
        %4767 = vmatpush1.bf16.msra.mxu0 0
        %4768 = vmatprep.mubr.bf16.mxu0 0
        %4769 = vmatmul.mubr.bf16.gmra.mrb[0].mxu0 %v4734
        %v4770 = vpop.f32.mrb[0].mxu0
        %v4771 = vadd.f32 0.0, %v4770
        %v4772 = vpop.f32.mrb[0].mxu0
        %v4773 = vpop.f32.mrb[0].mxu0
        %v4774 = vadd.f32 0.0, %v4773
        %v4775 = vpop.f32.mrb[0].mxu0
        %4776 = vdwg.mxu0
        %v4777 = vadd.f32 %v4619, %v4771
        %v4778 = vadd.f32 %v4620, %v4774
        %s4779 = scalar_lea.vmem [#allocation18], 7
        %v4780 = vld [vmem:[%s4779] sm:$0x1]
        %v4782 = vlaneseq
        %v4783 = vshrl.u32 %v4782, 7
        %v4784 = vsub.s32 0, %v4783
        %v4785 = vrot.slane %v4780, %v4784
        %v4787 = vadd.f32 %v4777, %v4785
        %v4788 = vadd.f32 %v4778, %v4785
        %v4789 = vpack.c.bf16 %v4788, %v4787
        %v4790 = vld [vmem:[#allocation19] sm:$0xf]
        %v4791 = vld [vmem:[#allocation19 + $0x4] sm:$0xf]
        %v4792 = vld [vmem:[#allocation19 + $0x8] sm:$0xf]
        %v4793 = vld [vmem:[#allocation19 + $0xc] sm:$0xf]
        %v4794 = vld [vmem:[#allocation21] sm:$0x1]
        %v4796 = vlaneseq
        %v4797 = vshrl.u32 %v4796, 7
        %v4798 = vsub.s32 0, %v4797
        %v4799 = vrot.slane %v4794, %v4798
        %v4805 = vunpack.c.l.b16 %v4790
        %v4806 = vunpack.c.l.b16 %v4791
        %v4807 = vunpack.c.l.b16 %v4792
        %v4808 = vunpack.c.l.b16 %v4793
        %v4809 = vpack.c.b16 %v4806, %v4805
        %v4810 = vpack.c.b16 %v4808, %v4807
        %v4814 = vsel %vm1194, %v4789, 0
        %4816 = vmatprep.subr.bf16.mxu0 0
        %4817 = vmatpush1.bf16.msra.mxu0 %v4809
        %4818 = vmatprep.subr.bf16.mxu0 0
        %4819 = vmatpush1.bf16.msra.mxu0 %v4810
        %4820 = vmatprep.subr.bf16.mxu0 0
        %4821 = vmatpush1.bf16.msra.mxu0 0
        %4822 = vmatprep.subr.bf16.mxu0 0
        %4823 = vmatpush1.bf16.msra.mxu0 0
        %4824 = vmatprep.subr.bf16.mxu0 0
        %4825 = vmatpush1.bf16.msra.mxu0 0
        %4826 = vmatprep.subr.bf16.mxu0 0
        %4827 = vmatpush1.bf16.msra.mxu0 0
        %4828 = vmatprep.subr.bf16.mxu0 0
        %4829 = vmatpush1.bf16.msra.mxu0 0
        %4830 = vmatprep.subr.bf16.mxu0 0
        %4831 = vmatpush1.bf16.msra.mxu0 0
        %4832 = vmatprep.subr.bf16.mxu0 0
        %4833 = vmatpush1.bf16.msra.mxu0 0
        %4834 = vmatprep.subr.bf16.mxu0 0
        %4835 = vmatpush1.bf16.msra.mxu0 0
        %4836 = vmatprep.subr.bf16.mxu0 0
        %4837 = vmatpush1.bf16.msra.mxu0 0
        %4838 = vmatprep.subr.bf16.mxu0 0
        %4839 = vmatpush1.bf16.msra.mxu0 0
        %4840 = vmatprep.subr.bf16.mxu0 0
        %4841 = vmatpush1.bf16.msra.mxu0 0
        %4842 = vmatprep.subr.bf16.mxu0 0
        %4843 = vmatpush1.bf16.msra.mxu0 0
        %4844 = vmatprep.subr.bf16.mxu0 0
        %4845 = vmatpush1.bf16.msra.mxu0 0
        %4846 = vmatprep.subr.bf16.mxu0 0
        %4847 = vmatpush1.bf16.msra.mxu0 0
        %4848 = vmatprep.mubr.bf16.mxu0 0
        %4849 = vmatmul.mubr.bf16.gmra.mrb[0].mxu0 %v4814
        %v4850 = vpop.f32.mrb[0].mxu0
        %v4851 = vadd.f32 %v4799, %v4850
        %v4852 = vpop.f32.mrb[0].mxu0
        %v4853 = vpop.f32.mrb[0].mxu0
        %v4854 = vadd.f32 %v4799, %v4853
        %v4855 = vpop.f32.mrb[0].mxu0
        %4856 = vdwg.mxu0
        %v4857 = vld [vmem:[%s15] sm:$0xf]
        %v4858 = vld [vmem:[%s15 + $0x4] sm:$0xf]
        %v4859 = vld [vmem:[%s15 + $0x8] sm:$0xf]
        %v4860 = vld [vmem:[%s15 + $0xc] sm:$0xf]
        %v4861 = vld [vmem:[%s15 + $0x10] sm:$0xf]
        %v4862 = vld [vmem:[%s15 + $0x14] sm:$0xf]
        %v4863 = vld [vmem:[%s15 + $0x18] sm:$0xf]
        %v4864 = vld [vmem:[%s15 + $0x1c] sm:$0xf]
        %v4865 = vld [vmem:[%s15 + $0x20] sm:$0xf]
        %v4866 = vld [vmem:[%s15 + $0x24] sm:$0xf]
        %v4867 = vld [vmem:[%s15 + $0x28] sm:$0xf]
        %v4868 = vld [vmem:[%s15 + $0x2c] sm:$0xf]
        %v4869 = vld [vmem:[%s15 + $0x30] sm:$0xf]
        %v4870 = vld [vmem:[%s15 + $0x34] sm:$0xf]
        %v4871 = vld [vmem:[%s15 + $0x38] sm:$0xf]
        %v4872 = vld [vmem:[%s15 + $0x3c] sm:$0xf]
        %v4873 = vld [vmem:[%s15 + $0x40] sm:$0xf]
        %v4874 = vld [vmem:[%s15 + $0x44] sm:$0xf]
        %v4875 = vld [vmem:[%s15 + $0x48] sm:$0xf]
        %v4876 = vld [vmem:[%s15 + $0x4c] sm:$0xf]
        %v4877 = vld [vmem:[%s15 + $0x50] sm:$0xf]
        %v4878 = vld [vmem:[%s15 + $0x54] sm:$0xf]
        %v4879 = vld [vmem:[%s15 + $0x58] sm:$0xf]
        %v4880 = vld [vmem:[%s15 + $0x5c] sm:$0xf]
        %v4883 = vrot.slane %v4851, 7
        %v4884 = vrot.slane %v4854, 7
        %v4885 = vsel %vm1165, %v4883, %v4884
        %v4888 = vsel %vm1165, 0.0, %v4883
        %v4889 = vrot.slane %v4851, 1
        %v4890 = vrot.slane %v4854, 1
        %v4891 = vsel %vm1172, %v4889, %v4890
        %v4894 = vsel %vm1172, %v4890, 0.0
        %4895 = vrot.lane.b32.xlu0 %v4851, 64
        %v4896 = vpop.permute.xlu0 %4895
        %4897 = vrot.lane.b32.xlu0 %v4854, 64
        %v4898 = vpop.permute.xlu0 %4897
        %v4901 = vsel %vm3254, %v4888, %v4896
        %v4902 = vsel %vm3254, %v4885, %v4898
        %v4903 = vpack.c.bf16 %v4902, %v4901
        %v4904 = vpack.c.bf16 %v4894, %v4891
        %v4905 = vld [vmem:[#allocation22] sm:$0x1]
        %v4907 = vlaneseq
        %v4908 = vshrl.u32 %v4907, 7
        %v4909 = vsub.s32 0, %v4908
        %v4910 = vrot.slane %v4905, %v4909
        %v4936 = vunpack.c.l.b16 %v4857
        %v4937 = vunpack.c.l.b16 %v4858
        %v4938 = vunpack.c.l.b16 %v4859
        %v4939 = vunpack.c.l.b16 %v4860
        %v4940 = vunpack.c.l.b16 %v4861
        %v4941 = vunpack.c.l.b16 %v4862
        %v4942 = vunpack.c.l.b16 %v4863
        %v4943 = vunpack.c.l.b16 %v4864
        %v4944 = vunpack.c.l.b16 %v4865
        %v4945 = vunpack.c.l.b16 %v4866
        %v4946 = vunpack.c.l.b16 %v4867
        %v4947 = vunpack.c.l.b16 %v4868
        %v4948 = vunpack.c.l.b16 %v4869
        %v4949 = vunpack.c.l.b16 %v4870
        %v4950 = vunpack.c.l.b16 %v4871
        %v4951 = vunpack.c.l.b16 %v4872
        %v4952 = vunpack.c.l.b16 %v4873
        %v4953 = vunpack.c.l.b16 %v4874
        %v4954 = vunpack.c.l.b16 %v4875
        %v4955 = vunpack.c.l.b16 %v4876
        %v4956 = vunpack.c.l.b16 %v4877
        %v4957 = vunpack.c.l.b16 %v4878
        %v4958 = vunpack.c.l.b16 %v4879
        %v4959 = vunpack.c.l.b16 %v4880
        %v4960 = vpack.c.b16 %v4937, %v4936
        %v4961 = vpack.c.b16 %v4939, %v4938
        %v4962 = vpack.c.b16 %v4941, %v4940
        %v4963 = vpack.c.b16 %v4943, %v4942
        %v4964 = vpack.c.b16 %v4945, %v4944
        %v4965 = vpack.c.b16 %v4947, %v4946
        %v4966 = vpack.c.b16 %v4949, %v4948
        %v4967 = vpack.c.b16 %v4951, %v4950
        %v4968 = vpack.c.b16 %v4953, %v4952
        %v4969 = vpack.c.b16 %v4955, %v4954
        %v4970 = vpack.c.b16 %v4957, %v4956
        %v4971 = vpack.c.b16 %v4959, %v4958
        %v4985 = vsel %vm3254, %v4904, 0
        %4987 = vmatprep.subr.bf16.mxu0 0
        %4988 = vmatpush1.bf16.msra.mxu0 %v4960
        %4989 = vmatprep.subr.bf16.mxu0 0
        %4990 = vmatpush1.bf16.msra.mxu0 %v4961
        %4991 = vmatprep.subr.bf16.mxu0 0
        %4992 = vmatpush1.bf16.msra.mxu0 %v4962
        %4993 = vmatprep.subr.bf16.mxu0 0
        %4994 = vmatpush1.bf16.msra.mxu0 %v4963
        %4995 = vmatprep.subr.bf16.mxu0 0
        %4996 = vmatpush1.bf16.msra.mxu0 %v4964
        %4997 = vmatprep.subr.bf16.mxu0 0
        %4998 = vmatpush1.bf16.msra.mxu0 %v4965
        %4999 = vmatprep.subr.bf16.mxu0 0
        %5000 = vmatpush1.bf16.msra.mxu0 %v4966
        %5001 = vmatprep.subr.bf16.mxu0 0
        %5002 = vmatpush1.bf16.msra.mxu0 %v4967
        %5003 = vmatprep.subr.bf16.mxu0 0
        %5004 = vmatpush1.bf16.msra.mxu0 %v4968
        %5005 = vmatprep.subr.bf16.mxu0 0
        %5006 = vmatpush1.bf16.msra.mxu0 %v4969
        %5007 = vmatprep.subr.bf16.mxu0 0
        %5008 = vmatpush1.bf16.msra.mxu0 %v4970
        %5009 = vmatprep.subr.bf16.mxu0 0
        %5010 = vmatpush1.bf16.msra.mxu0 %v4971
        %5011 = vmatprep.subr.bf16.mxu0 0
        %5012 = vmatpush1.bf16.msra.mxu0 0
        %5013 = vmatprep.subr.bf16.mxu0 0
        %5014 = vmatpush1.bf16.msra.mxu0 0
        %5015 = vmatprep.subr.bf16.mxu0 0
        %5016 = vmatpush1.bf16.msra.mxu0 0
        %5017 = vmatprep.subr.bf16.mxu0 0
        %5018 = vmatpush1.bf16.msra.mxu0 0
        %5019 = vmatprep.mubr.bf16.mxu0 %v4985
        %5020 = vmatmul.mubr.bf16.gmra.mrb[0].mxu0 %v4903
        %v5021 = vpop.f32.mrb[0].mxu0
        %v5022 = vadd.f32 %v4910, %v5021
        %v5023 = vpop.f32.mrb[0].mxu0
        %v5024 = vpop.f32.mrb[0].mxu0
        %v5025 = vadd.f32 %v4910, %v5024
        %v5026 = vpop.f32.mrb[0].mxu0
        %5027 = vdwg.mxu0
        %v5028 = vtanh.pop %v5022
        %v5029 = vtanh.pop %v5025
        %v5030 = vxor.u32 %v5022, 2147483648
        %v5031 = vxor.u32 %v5025, 2147483648
        %v5032 = vmul.f32 %v5030, 1.442695
        %v5033 = vpow.pop %v5032
        %v5034 = vmul.f32 %v5031, 1.442695
        %v5035 = vpow.pop %v5034
        %v5036 = vadd.f32 %v5033, 1.0
        %v5037 = vadd.f32 %v5035, 1.0
        %v5038 = vrcp.pop %v5036
        %v5039 = vmul.f32 1.0, %v5038
        %v5040 = vrcp.pop %v5037
        %v5041 = vmul.f32 1.0, %v5040
        %5044 = vrot.lane.b32.xlu0 %v5039, 64
        %v5045 = vpop.permute.xlu0 %5044
        %5046 = vrot.lane.b32.xlu0 %v5041, 64
        %v5047 = vpop.permute.xlu0 %5046
        %v5050 = vmul.f32 %v5028, %v5045
        %v5051 = vmul.f32 %v5029, %v5047
        %v5052 = vpack.c.bf16 %v5051, %v5050
        %v5053 = vld [vmem:[%s17] sm:$0xf]
        %v5054 = vld [vmem:[%s17 + $0x4] sm:$0xf]
        %v5055 = vld [vmem:[%s17 + $0x8] sm:$0xf]
        %v5056 = vld [vmem:[%s17 + $0xc] sm:$0xf]
        %v5057 = vld [vmem:[%s17 + $0x10] sm:$0xf]
        %v5058 = vld [vmem:[%s17 + $0x14] sm:$0xf]
        %v5059 = vld [vmem:[%s17 + $0x18] sm:$0xf]
        %v5060 = vld [vmem:[%s17 + $0x1c] sm:$0xf]
        %v5069 = vunpack.c.l.b16 %v5053
        %v5070 = vunpack.c.l.b16 %v5054
        %v5071 = vunpack.c.l.b16 %v5055
        %v5072 = vunpack.c.l.b16 %v5056
        %v5073 = vunpack.c.l.b16 %v5057
        %v5074 = vunpack.c.l.b16 %v5058
        %v5075 = vunpack.c.l.b16 %v5059
        %v5076 = vunpack.c.l.b16 %v5060
        %v5077 = vpack.c.b16 %v5070, %v5069
        %v5078 = vpack.c.b16 %v5072, %v5071
        %v5079 = vpack.c.b16 %v5074, %v5073
        %v5080 = vpack.c.b16 %v5076, %v5075
        %v5086 = vsel %vm3254, %v5052, 0
        %5088 = vmatprep.subr.bf16.mxu0 0
        %5089 = vmatpush1.bf16.msra.mxu0 %v5077
        %5090 = vmatprep.subr.bf16.mxu0 0
        %5091 = vmatpush1.bf16.msra.mxu0 %v5078
        %5092 = vmatprep.subr.bf16.mxu0 0
        %5093 = vmatpush1.bf16.msra.mxu0 %v5079
        %5094 = vmatprep.subr.bf16.mxu0 0
        %5095 = vmatpush1.bf16.msra.mxu0 %v5080
        %5096 = vmatprep.subr.bf16.mxu0 0
        %5097 = vmatpush1.bf16.msra.mxu0 0
        %5098 = vmatprep.subr.bf16.mxu0 0
        %5099 = vmatpush1.bf16.msra.mxu0 0
        %5100 = vmatprep.subr.bf16.mxu0 0
        %5101 = vmatpush1.bf16.msra.mxu0 0
        %5102 = vmatprep.subr.bf16.mxu0 0
        %5103 = vmatpush1.bf16.msra.mxu0 0
        %5104 = vmatprep.subr.bf16.mxu0 0
        %5105 = vmatpush1.bf16.msra.mxu0 0
        %5106 = vmatprep.subr.bf16.mxu0 0
        %5107 = vmatpush1.bf16.msra.mxu0 0
        %5108 = vmatprep.subr.bf16.mxu0 0
        %5109 = vmatpush1.bf16.msra.mxu0 0
        %5110 = vmatprep.subr.bf16.mxu0 0
        %5111 = vmatpush1.bf16.msra.mxu0 0
        %5112 = vmatprep.subr.bf16.mxu0 0
        %5113 = vmatpush1.bf16.msra.mxu0 0
        %5114 = vmatprep.subr.bf16.mxu0 0
        %5115 = vmatpush1.bf16.msra.mxu0 0
        %5116 = vmatprep.subr.bf16.mxu0 0
        %5117 = vmatpush1.bf16.msra.mxu0 0
        %5118 = vmatprep.subr.bf16.mxu0 0
        %5119 = vmatpush1.bf16.msra.mxu0 0
        %5120 = vmatprep.mubr.bf16.mxu0 0
        %5121 = vmatmul.mubr.bf16.gmra.mrb[0].mxu0 %v5086
        %v5122 = vpop.f32.mrb[0].mxu0
        %v5123 = vadd.f32 0.0, %v5122
        %v5124 = vpop.f32.mrb[0].mxu0
        %v5125 = vpop.f32.mrb[0].mxu0
        %v5126 = vadd.f32 0.0, %v5125
        %v5127 = vpop.f32.mrb[0].mxu0
        %5128 = vdwg.mxu0
        %v5129 = vadd.f32 %v4851, %v5123
        %v5130 = vadd.f32 %v4854, %v5126
        %v5131 = vld [vmem:[#allocation24] sm:$0x1]
        %v5133 = vlaneseq
        %v5134 = vshrl.u32 %v5133, 7
        %v5135 = vsub.s32 0, %v5134
        %v5136 = vrot.slane %v5131, %v5135
        %v5138 = vadd.f32 %v5129, %v5136
        %v5139 = vadd.f32 %v5130, %v5136
        %s5140 = scalar_lea.vmem %s15, 96
        %v5141 = vld [vmem:[%s5140] sm:$0xf]
        %v5142 = vld [vmem:[%s5140 + $0x4] sm:$0xf]
        %v5143 = vld [vmem:[%s5140 + $0x8] sm:$0xf]
        %v5144 = vld [vmem:[%s5140 + $0xc] sm:$0xf]
        %v5145 = vld [vmem:[%s5140 + $0x10] sm:$0xf]
        %v5146 = vld [vmem:[%s5140 + $0x14] sm:$0xf]
        %v5147 = vld [vmem:[%s5140 + $0x18] sm:$0xf]
        %v5148 = vld [vmem:[%s5140 + $0x1c] sm:$0xf]
        %v5149 = vld [vmem:[%s5140 + $0x20] sm:$0xf]
        %v5150 = vld [vmem:[%s5140 + $0x24] sm:$0xf]
        %v5151 = vld [vmem:[%s5140 + $0x28] sm:$0xf]
        %v5152 = vld [vmem:[%s5140 + $0x2c] sm:$0xf]
        %v5153 = vld [vmem:[%s5140 + $0x30] sm:$0xf]
        %v5154 = vld [vmem:[%s5140 + $0x34] sm:$0xf]
        %v5155 = vld [vmem:[%s5140 + $0x38] sm:$0xf]
        %v5156 = vld [vmem:[%s5140 + $0x3c] sm:$0xf]
        %v5157 = vld [vmem:[%s5140 + $0x40] sm:$0xf]
        %v5158 = vld [vmem:[%s5140 + $0x44] sm:$0xf]
        %v5159 = vld [vmem:[%s5140 + $0x48] sm:$0xf]
        %v5160 = vld [vmem:[%s5140 + $0x4c] sm:$0xf]
        %v5161 = vld [vmem:[%s5140 + $0x50] sm:$0xf]
        %v5162 = vld [vmem:[%s5140 + $0x54] sm:$0xf]
        %v5163 = vld [vmem:[%s5140 + $0x58] sm:$0xf]
        %v5164 = vld [vmem:[%s5140 + $0x5c] sm:$0xf]
        %v5167 = vrot.slane %v5138, 6
        %v5168 = vrot.slane %v5139, 6
        %v5169 = vsel %vm1365, %v5167, %v5168
        %v5172 = vsel %vm1365, 0.0, %v5167
        %v5173 = vrot.slane %v5138, 2
        %v5174 = vrot.slane %v5139, 2
        %v5175 = vsel %vm1372, %v5173, %v5174
        %v5178 = vsel %vm1372, %v5174, 0.0
        %5179 = vrot.lane.b32.xlu0 %v5138, 64
        %v5180 = vpop.permute.xlu0 %5179
        %5181 = vrot.lane.b32.xlu0 %v5139, 64
        %v5182 = vpop.permute.xlu0 %5181
        %v5185 = vsel %vm3254, %v5172, %v5180
        %v5186 = vsel %vm3254, %v5169, %v5182
        %v5187 = vpack.c.bf16 %v5186, %v5185
        %v5188 = vpack.c.bf16 %v5178, %v5175
        %s5189 = scalar_lea.vmem [#allocation22], 1
        %v5190 = vld [vmem:[%s5189] sm:$0x1]
        %v5192 = vlaneseq
        %v5193 = vshrl.u32 %v5192, 7
        %v5194 = vsub.s32 0, %v5193
        %v5195 = vrot.slane %v5190, %v5194
        %v5221 = vunpack.c.l.b16 %v5141
        %v5222 = vunpack.c.l.b16 %v5142
        %v5223 = vunpack.c.l.b16 %v5143
        %v5224 = vunpack.c.l.b16 %v5144
        %v5225 = vunpack.c.l.b16 %v5145
        %v5226 = vunpack.c.l.b16 %v5146
        %v5227 = vunpack.c.l.b16 %v5147
        %v5228 = vunpack.c.l.b16 %v5148
        %v5229 = vunpack.c.l.b16 %v5149
        %v5230 = vunpack.c.l.b16 %v5150
        %v5231 = vunpack.c.l.b16 %v5151
        %v5232 = vunpack.c.l.b16 %v5152
        %v5233 = vunpack.c.l.b16 %v5153
        %v5234 = vunpack.c.l.b16 %v5154
        %v5235 = vunpack.c.l.b16 %v5155
        %v5236 = vunpack.c.l.b16 %v5156
        %v5237 = vunpack.c.l.b16 %v5157
        %v5238 = vunpack.c.l.b16 %v5158
        %v5239 = vunpack.c.l.b16 %v5159
        %v5240 = vunpack.c.l.b16 %v5160
        %v5241 = vunpack.c.l.b16 %v5161
        %v5242 = vunpack.c.l.b16 %v5162
        %v5243 = vunpack.c.l.b16 %v5163
        %v5244 = vunpack.c.l.b16 %v5164
        %v5245 = vpack.c.b16 %v5222, %v5221
        %v5246 = vpack.c.b16 %v5224, %v5223
        %v5247 = vpack.c.b16 %v5226, %v5225
        %v5248 = vpack.c.b16 %v5228, %v5227
        %v5249 = vpack.c.b16 %v5230, %v5229
        %v5250 = vpack.c.b16 %v5232, %v5231
        %v5251 = vpack.c.b16 %v5234, %v5233
        %v5252 = vpack.c.b16 %v5236, %v5235
        %v5253 = vpack.c.b16 %v5238, %v5237
        %v5254 = vpack.c.b16 %v5240, %v5239
        %v5255 = vpack.c.b16 %v5242, %v5241
        %v5256 = vpack.c.b16 %v5244, %v5243
        %v5270 = vsel %vm3254, %v5188, 0
        %5272 = vmatprep.subr.bf16.mxu0 0
        %5273 = vmatpush1.bf16.msra.mxu0 %v5245
        %5274 = vmatprep.subr.bf16.mxu0 0
        %5275 = vmatpush1.bf16.msra.mxu0 %v5246
        %5276 = vmatprep.subr.bf16.mxu0 0
        %5277 = vmatpush1.bf16.msra.mxu0 %v5247
        %5278 = vmatprep.subr.bf16.mxu0 0
        %5279 = vmatpush1.bf16.msra.mxu0 %v5248
        %5280 = vmatprep.subr.bf16.mxu0 0
        %5281 = vmatpush1.bf16.msra.mxu0 %v5249
        %5282 = vmatprep.subr.bf16.mxu0 0
        %5283 = vmatpush1.bf16.msra.mxu0 %v5250
        %5284 = vmatprep.subr.bf16.mxu0 0
        %5285 = vmatpush1.bf16.msra.mxu0 %v5251
        %5286 = vmatprep.subr.bf16.mxu0 0
        %5287 = vmatpush1.bf16.msra.mxu0 %v5252
        %5288 = vmatprep.subr.bf16.mxu0 0
        %5289 = vmatpush1.bf16.msra.mxu0 %v5253
        %5290 = vmatprep.subr.bf16.mxu0 0
        %5291 = vmatpush1.bf16.msra.mxu0 %v5254
        %5292 = vmatprep.subr.bf16.mxu0 0
        %5293 = vmatpush1.bf16.msra.mxu0 %v5255
        %5294 = vmatprep.subr.bf16.mxu0 0
        %5295 = vmatpush1.bf16.msra.mxu0 %v5256
        %5296 = vmatprep.subr.bf16.mxu0 0
        %5297 = vmatpush1.bf16.msra.mxu0 0
        %5298 = vmatprep.subr.bf16.mxu0 0
        %5299 = vmatpush1.bf16.msra.mxu0 0
        %5300 = vmatprep.subr.bf16.mxu0 0
        %5301 = vmatpush1.bf16.msra.mxu0 0
        %5302 = vmatprep.subr.bf16.mxu0 0
        %5303 = vmatpush1.bf16.msra.mxu0 0
        %5304 = vmatprep.mubr.bf16.mxu0 %v5270
        %5305 = vmatmul.mubr.bf16.gmra.mrb[0].mxu0 %v5187
        %v5306 = vpop.f32.mrb[0].mxu0
        %v5307 = vadd.f32 %v5195, %v5306
        %v5308 = vpop.f32.mrb[0].mxu0
        %v5309 = vpop.f32.mrb[0].mxu0
        %v5310 = vadd.f32 %v5195, %v5309
        %v5311 = vpop.f32.mrb[0].mxu0
        %5312 = vdwg.mxu0
        %v5313 = vtanh.pop %v5307
        %v5314 = vtanh.pop %v5310
        %v5315 = vxor.u32 %v5307, 2147483648
        %v5316 = vxor.u32 %v5310, 2147483648
        %v5317 = vmul.f32 %v5315, 1.442695
        %v5318 = vpow.pop %v5317
        %v5319 = vmul.f32 %v5316, 1.442695
        %v5320 = vpow.pop %v5319
        %v5321 = vadd.f32 %v5318, 1.0
        %v5322 = vadd.f32 %v5320, 1.0
        %v5323 = vrcp.pop %v5321
        %v5324 = vmul.f32 1.0, %v5323
        %v5325 = vrcp.pop %v5322
        %v5326 = vmul.f32 1.0, %v5325
        %5329 = vrot.lane.b32.xlu0 %v5324, 64
        %v5330 = vpop.permute.xlu0 %5329
        %5331 = vrot.lane.b32.xlu0 %v5326, 64
        %v5332 = vpop.permute.xlu0 %5331
        %v5335 = vmul.f32 %v5313, %v5330
        %v5336 = vmul.f32 %v5314, %v5332
        %v5337 = vpack.c.bf16 %v5336, %v5335
        %s5338 = scalar_lea.vmem %s17, 32
        %v5339 = vld [vmem:[%s5338] sm:$0xf]
        %v5340 = vld [vmem:[%s5338 + $0x4] sm:$0xf]
        %v5341 = vld [vmem:[%s5338 + $0x8] sm:$0xf]
        %v5342 = vld [vmem:[%s5338 + $0xc] sm:$0xf]
        %v5343 = vld [vmem:[%s5338 + $0x10] sm:$0xf]
        %v5344 = vld [vmem:[%s5338 + $0x14] sm:$0xf]
        %v5345 = vld [vmem:[%s5338 + $0x18] sm:$0xf]
        %v5346 = vld [vmem:[%s5338 + $0x1c] sm:$0xf]
        %v5355 = vunpack.c.l.b16 %v5339
        %v5356 = vunpack.c.l.b16 %v5340
        %v5357 = vunpack.c.l.b16 %v5341
        %v5358 = vunpack.c.l.b16 %v5342
        %v5359 = vunpack.c.l.b16 %v5343
        %v5360 = vunpack.c.l.b16 %v5344
        %v5361 = vunpack.c.l.b16 %v5345
        %v5362 = vunpack.c.l.b16 %v5346
        %v5363 = vpack.c.b16 %v5356, %v5355
        %v5364 = vpack.c.b16 %v5358, %v5357
        %v5365 = vpack.c.b16 %v5360, %v5359
        %v5366 = vpack.c.b16 %v5362, %v5361
        %v5372 = vsel %vm3254, %v5337, 0
        %5374 = vmatprep.subr.bf16.mxu0 0
        %5375 = vmatpush1.bf16.msra.mxu0 %v5363
        %5376 = vmatprep.subr.bf16.mxu0 0
        %5377 = vmatpush1.bf16.msra.mxu0 %v5364
        %5378 = vmatprep.subr.bf16.mxu0 0
        %5379 = vmatpush1.bf16.msra.mxu0 %v5365
        %5380 = vmatprep.subr.bf16.mxu0 0
        %5381 = vmatpush1.bf16.msra.mxu0 %v5366
        %5382 = vmatprep.subr.bf16.mxu0 0
        %5383 = vmatpush1.bf16.msra.mxu0 0
        %5384 = vmatprep.subr.bf16.mxu0 0
        %5385 = vmatpush1.bf16.msra.mxu0 0
        %5386 = vmatprep.subr.bf16.mxu0 0
        %5387 = vmatpush1.bf16.msra.mxu0 0
        %5388 = vmatprep.subr.bf16.mxu0 0
        %5389 = vmatpush1.bf16.msra.mxu0 0
        %5390 = vmatprep.subr.bf16.mxu0 0
        %5391 = vmatpush1.bf16.msra.mxu0 0
        %5392 = vmatprep.subr.bf16.mxu0 0
        %5393 = vmatpush1.bf16.msra.mxu0 0
        %5394 = vmatprep.subr.bf16.mxu0 0
        %5395 = vmatpush1.bf16.msra.mxu0 0
        %5396 = vmatprep.subr.bf16.mxu0 0
        %5397 = vmatpush1.bf16.msra.mxu0 0
        %5398 = vmatprep.subr.bf16.mxu0 0
        %5399 = vmatpush1.bf16.msra.mxu0 0
        %5400 = vmatprep.subr.bf16.mxu0 0
        %5401 = vmatpush1.bf16.msra.mxu0 0
        %5402 = vmatprep.subr.bf16.mxu0 0
        %5403 = vmatpush1.bf16.msra.mxu0 0
        %5404 = vmatprep.subr.bf16.mxu0 0
        %5405 = vmatpush1.bf16.msra.mxu0 0
        %5406 = vmatprep.mubr.bf16.mxu0 0
        %5407 = vmatmul.mubr.bf16.gmra.mrb[0].mxu0 %v5372
        %v5408 = vpop.f32.mrb[0].mxu0
        %v5409 = vadd.f32 0.0, %v5408
        %v5410 = vpop.f32.mrb[0].mxu0
        %v5411 = vpop.f32.mrb[0].mxu0
        %v5412 = vadd.f32 0.0, %v5411
        %v5413 = vpop.f32.mrb[0].mxu0
        %5414 = vdwg.mxu0
        %v5415 = vadd.f32 %v5138, %v5409
        %v5416 = vadd.f32 %v5139, %v5412
        %s5417 = scalar_lea.vmem [#allocation24], 1
        %v5418 = vld [vmem:[%s5417] sm:$0x1]
        %v5420 = vlaneseq
        %v5421 = vshrl.u32 %v5420, 7
        %v5422 = vsub.s32 0, %v5421
        %v5423 = vrot.slane %v5418, %v5422
        %v5425 = vadd.f32 %v5415, %v5423
        %v5426 = vadd.f32 %v5416, %v5423
        %s5427 = scalar_lea.vmem %s15, 192
        %v5428 = vld [vmem:[%s5427] sm:$0xf]
        %v5429 = vld [vmem:[%s5427 + $0x4] sm:$0xf]
        %v5430 = vld [vmem:[%s5427 + $0x8] sm:$0xf]
        %v5431 = vld [vmem:[%s5427 + $0xc] sm:$0xf]
        %v5432 = vld [vmem:[%s5427 + $0x10] sm:$0xf]
        %v5433 = vld [vmem:[%s5427 + $0x14] sm:$0xf]
        %v5434 = vld [vmem:[%s5427 + $0x18] sm:$0xf]
        %v5435 = vld [vmem:[%s5427 + $0x1c] sm:$0xf]
        %v5436 = vld [vmem:[%s5427 + $0x20] sm:$0xf]
        %v5437 = vld [vmem:[%s5427 + $0x24] sm:$0xf]
        %v5438 = vld [vmem:[%s5427 + $0x28] sm:$0xf]
        %v5439 = vld [vmem:[%s5427 + $0x2c] sm:$0xf]
        %v5440 = vld [vmem:[%s5427 + $0x30] sm:$0xf]
        %v5441 = vld [vmem:[%s5427 + $0x34] sm:$0xf]
        %v5442 = vld [vmem:[%s5427 + $0x38] sm:$0xf]
        %v5443 = vld [vmem:[%s5427 + $0x3c] sm:$0xf]
        %v5444 = vld [vmem:[%s5427 + $0x40] sm:$0xf]
        %v5445 = vld [vmem:[%s5427 + $0x44] sm:$0xf]
        %v5446 = vld [vmem:[%s5427 + $0x48] sm:$0xf]
        %v5447 = vld [vmem:[%s5427 + $0x4c] sm:$0xf]
        %v5448 = vld [vmem:[%s5427 + $0x50] sm:$0xf]
        %v5449 = vld [vmem:[%s5427 + $0x54] sm:$0xf]
        %v5450 = vld [vmem:[%s5427 + $0x58] sm:$0xf]
        %v5451 = vld [vmem:[%s5427 + $0x5c] sm:$0xf]
        %v5454 = vrot.slane %v5425, 4
        %v5455 = vrot.slane %v5426, 4
        %v5456 = vsel %vm1112, %v5454, %v5455
        %v5459 = vsel %vm1112, 0.0, %v5454
        %v5461 = vsel %vm1112, %v5455, 0.0
        %5462 = vrot.lane.b32.xlu0 %v5425, 64
        %v5463 = vpop.permute.xlu0 %5462
        %5464 = vrot.lane.b32.xlu0 %v5426, 64
        %v5465 = vpop.permute.xlu0 %5464
        %v5468 = vsel %vm3254, %v5459, %v5463
        %v5469 = vsel %vm3254, %v5456, %v5465
        %v5470 = vpack.c.bf16 %v5469, %v5468
        %v5471 = vpack.c.bf16 %v5461, %v5456
        %s5472 = scalar_lea.vmem [#allocation22], 2
        %v5473 = vld [vmem:[%s5472] sm:$0x1]
        %v5475 = vlaneseq
        %v5476 = vshrl.u32 %v5475, 7
        %v5477 = vsub.s32 0, %v5476
        %v5478 = vrot.slane %v5473, %v5477
        %v5504 = vunpack.c.l.b16 %v5428
        %v5505 = vunpack.c.l.b16 %v5429
        %v5506 = vunpack.c.l.b16 %v5430
        %v5507 = vunpack.c.l.b16 %v5431
        %v5508 = vunpack.c.l.b16 %v5432
        %v5509 = vunpack.c.l.b16 %v5433
        %v5510 = vunpack.c.l.b16 %v5434
        %v5511 = vunpack.c.l.b16 %v5435
        %v5512 = vunpack.c.l.b16 %v5436
        %v5513 = vunpack.c.l.b16 %v5437
        %v5514 = vunpack.c.l.b16 %v5438
        %v5515 = vunpack.c.l.b16 %v5439
        %v5516 = vunpack.c.l.b16 %v5440
        %v5517 = vunpack.c.l.b16 %v5441
        %v5518 = vunpack.c.l.b16 %v5442
        %v5519 = vunpack.c.l.b16 %v5443
        %v5520 = vunpack.c.l.b16 %v5444
        %v5521 = vunpack.c.l.b16 %v5445
        %v5522 = vunpack.c.l.b16 %v5446
        %v5523 = vunpack.c.l.b16 %v5447
        %v5524 = vunpack.c.l.b16 %v5448
        %v5525 = vunpack.c.l.b16 %v5449
        %v5526 = vunpack.c.l.b16 %v5450
        %v5527 = vunpack.c.l.b16 %v5451
        %v5528 = vpack.c.b16 %v5505, %v5504
        %v5529 = vpack.c.b16 %v5507, %v5506
        %v5530 = vpack.c.b16 %v5509, %v5508
        %v5531 = vpack.c.b16 %v5511, %v5510
        %v5532 = vpack.c.b16 %v5513, %v5512
        %v5533 = vpack.c.b16 %v5515, %v5514
        %v5534 = vpack.c.b16 %v5517, %v5516
        %v5535 = vpack.c.b16 %v5519, %v5518
        %v5536 = vpack.c.b16 %v5521, %v5520
        %v5537 = vpack.c.b16 %v5523, %v5522
        %v5538 = vpack.c.b16 %v5525, %v5524
        %v5539 = vpack.c.b16 %v5527, %v5526
        %v5553 = vsel %vm3254, %v5471, 0
        %5555 = vmatprep.subr.bf16.mxu0 0
        %5556 = vmatpush1.bf16.msra.mxu0 %v5528
        %5557 = vmatprep.subr.bf16.mxu0 0
        %5558 = vmatpush1.bf16.msra.mxu0 %v5529
        %5559 = vmatprep.subr.bf16.mxu0 0
        %5560 = vmatpush1.bf16.msra.mxu0 %v5530
        %5561 = vmatprep.subr.bf16.mxu0 0
        %5562 = vmatpush1.bf16.msra.mxu0 %v5531
        %5563 = vmatprep.subr.bf16.mxu0 0
        %5564 = vmatpush1.bf16.msra.mxu0 %v5532
        %5565 = vmatprep.subr.bf16.mxu0 0
        %5566 = vmatpush1.bf16.msra.mxu0 %v5533
        %5567 = vmatprep.subr.bf16.mxu0 0
        %5568 = vmatpush1.bf16.msra.mxu0 %v5534
        %5569 = vmatprep.subr.bf16.mxu0 0
        %5570 = vmatpush1.bf16.msra.mxu0 %v5535
        %5571 = vmatprep.subr.bf16.mxu0 0
        %5572 = vmatpush1.bf16.msra.mxu0 %v5536
        %5573 = vmatprep.subr.bf16.mxu0 0
        %5574 = vmatpush1.bf16.msra.mxu0 %v5537
        %5575 = vmatprep.subr.bf16.mxu0 0
        %5576 = vmatpush1.bf16.msra.mxu0 %v5538
        %5577 = vmatprep.subr.bf16.mxu0 0
        %5578 = vmatpush1.bf16.msra.mxu0 %v5539
        %5579 = vmatprep.subr.bf16.mxu0 0
        %5580 = vmatpush1.bf16.msra.mxu0 0
        %5581 = vmatprep.subr.bf16.mxu0 0
        %5582 = vmatpush1.bf16.msra.mxu0 0
        %5583 = vmatprep.subr.bf16.mxu0 0
        %5584 = vmatpush1.bf16.msra.mxu0 0
        %5585 = vmatprep.subr.bf16.mxu0 0
        %5586 = vmatpush1.bf16.msra.mxu0 0
        %5587 = vmatprep.mubr.bf16.mxu0 %v5553
        %5588 = vmatmul.mubr.bf16.gmra.mrb[0].mxu0 %v5470
        %v5589 = vpop.f32.mrb[0].mxu0
        %v5590 = vadd.f32 %v5478, %v5589
        %v5591 = vpop.f32.mrb[0].mxu0
        %v5592 = vpop.f32.mrb[0].mxu0
        %v5593 = vadd.f32 %v5478, %v5592
        %v5594 = vpop.f32.mrb[0].mxu0
        %5595 = vdwg.mxu0
        %v5596 = vtanh.pop %v5590
        %v5597 = vtanh.pop %v5593
        %v5598 = vxor.u32 %v5590, 2147483648
        %v5599 = vxor.u32 %v5593, 2147483648
        %v5600 = vmul.f32 %v5598, 1.442695
        %v5601 = vpow.pop %v5600
        %v5602 = vmul.f32 %v5599, 1.442695
        %v5603 = vpow.pop %v5602
        %v5604 = vadd.f32 %v5601, 1.0
        %v5605 = vadd.f32 %v5603, 1.0
        %v5606 = vrcp.pop %v5604
        %v5607 = vmul.f32 1.0, %v5606
        %v5608 = vrcp.pop %v5605
        %v5609 = vmul.f32 1.0, %v5608
        %5612 = vrot.lane.b32.xlu0 %v5607, 64
        %v5613 = vpop.permute.xlu0 %5612
        %5614 = vrot.lane.b32.xlu0 %v5609, 64
        %v5615 = vpop.permute.xlu0 %5614
        %v5618 = vmul.f32 %v5596, %v5613
        %v5619 = vmul.f32 %v5597, %v5615
        %v5620 = vpack.c.bf16 %v5619, %v5618
        %s5621 = scalar_lea.vmem %s17, 64
        %v5622 = vld [vmem:[%s5621] sm:$0xf]
        %v5623 = vld [vmem:[%s5621 + $0x4] sm:$0xf]
        %v5624 = vld [vmem:[%s5621 + $0x8] sm:$0xf]
        %v5625 = vld [vmem:[%s5621 + $0xc] sm:$0xf]
        %v5626 = vld [vmem:[%s5621 + $0x10] sm:$0xf]
        %v5627 = vld [vmem:[%s5621 + $0x14] sm:$0xf]
        %v5628 = vld [vmem:[%s5621 + $0x18] sm:$0xf]
        %v5629 = vld [vmem:[%s5621 + $0x1c] sm:$0xf]
        %v5638 = vunpack.c.l.b16 %v5622
        %v5639 = vunpack.c.l.b16 %v5623
        %v5640 = vunpack.c.l.b16 %v5624
        %v5641 = vunpack.c.l.b16 %v5625
        %v5642 = vunpack.c.l.b16 %v5626
        %v5643 = vunpack.c.l.b16 %v5627
        %v5644 = vunpack.c.l.b16 %v5628
        %v5645 = vunpack.c.l.b16 %v5629
        %v5646 = vpack.c.b16 %v5639, %v5638
        %v5647 = vpack.c.b16 %v5641, %v5640
        %v5648 = vpack.c.b16 %v5643, %v5642
        %v5649 = vpack.c.b16 %v5645, %v5644
        %v5655 = vsel %vm3254, %v5620, 0
        %5657 = vmatprep.subr.bf16.mxu0 0
        %5658 = vmatpush1.bf16.msra.mxu0 %v5646
        %5659 = vmatprep.subr.bf16.mxu0 0
        %5660 = vmatpush1.bf16.msra.mxu0 %v5647
        %5661 = vmatprep.subr.bf16.mxu0 0
        %5662 = vmatpush1.bf16.msra.mxu0 %v5648
        %5663 = vmatprep.subr.bf16.mxu0 0
        %5664 = vmatpush1.bf16.msra.mxu0 %v5649
        %5665 = vmatprep.subr.bf16.mxu0 0
        %5666 = vmatpush1.bf16.msra.mxu0 0
        %5667 = vmatprep.subr.bf16.mxu0 0
        %5668 = vmatpush1.bf16.msra.mxu0 0
        %5669 = vmatprep.subr.bf16.mxu0 0
        %5670 = vmatpush1.bf16.msra.mxu0 0
        %5671 = vmatprep.subr.bf16.mxu0 0
        %5672 = vmatpush1.bf16.msra.mxu0 0
        %5673 = vmatprep.subr.bf16.mxu0 0
        %5674 = vmatpush1.bf16.msra.mxu0 0
        %5675 = vmatprep.subr.bf16.mxu0 0
        %5676 = vmatpush1.bf16.msra.mxu0 0
        %5677 = vmatprep.subr.bf16.mxu0 0
        %5678 = vmatpush1.bf16.msra.mxu0 0
        %5679 = vmatprep.subr.bf16.mxu0 0
        %5680 = vmatpush1.bf16.msra.mxu0 0
        %5681 = vmatprep.subr.bf16.mxu0 0
        %5682 = vmatpush1.bf16.msra.mxu0 0
        %5683 = vmatprep.subr.bf16.mxu0 0
        %5684 = vmatpush1.bf16.msra.mxu0 0
        %5685 = vmatprep.subr.bf16.mxu0 0
        %5686 = vmatpush1.bf16.msra.mxu0 0
        %5687 = vmatprep.subr.bf16.mxu0 0
        %5688 = vmatpush1.bf16.msra.mxu0 0
        %5689 = vmatprep.mubr.bf16.mxu0 0
        %5690 = vmatmul.mubr.bf16.gmra.mrb[0].mxu0 %v5655
        %v5691 = vpop.f32.mrb[0].mxu0
        %v5692 = vadd.f32 0.0, %v5691
        %v5693 = vpop.f32.mrb[0].mxu0
        %v5694 = vpop.f32.mrb[0].mxu0
        %v5695 = vadd.f32 0.0, %v5694
        %v5696 = vpop.f32.mrb[0].mxu0
        %5697 = vdwg.mxu0
        %v5698 = vadd.f32 %v5425, %v5692
        %v5699 = vadd.f32 %v5426, %v5695
        %s5700 = scalar_lea.vmem [#allocation24], 2
        %v5701 = vld [vmem:[%s5700] sm:$0x1]
        %v5703 = vlaneseq
        %v5704 = vshrl.u32 %v5703, 7
        %v5705 = vsub.s32 0, %v5704
        %v5706 = vrot.slane %v5701, %v5705
        %v5708 = vadd.f32 %v5698, %v5706
        %v5709 = vadd.f32 %v5699, %v5706
        %s5710 = scalar_lea.vmem %s15, 288
        %v5711 = vld [vmem:[%s5710] sm:$0xf]
        %v5712 = vld [vmem:[%s5710 + $0x4] sm:$0xf]
        %v5713 = vld [vmem:[%s5710 + $0x8] sm:$0xf]
        %v5714 = vld [vmem:[%s5710 + $0xc] sm:$0xf]
        %v5715 = vld [vmem:[%s5710 + $0x10] sm:$0xf]
        %v5716 = vld [vmem:[%s5710 + $0x14] sm:$0xf]
        %v5717 = vld [vmem:[%s5710 + $0x18] sm:$0xf]
        %v5718 = vld [vmem:[%s5710 + $0x1c] sm:$0xf]
        %v5719 = vld [vmem:[%s5710 + $0x20] sm:$0xf]
        %v5720 = vld [vmem:[%s5710 + $0x24] sm:$0xf]
        %v5721 = vld [vmem:[%s5710 + $0x28] sm:$0xf]
        %v5722 = vld [vmem:[%s5710 + $0x2c] sm:$0xf]
        %v5723 = vld [vmem:[%s5710 + $0x30] sm:$0xf]
        %v5724 = vld [vmem:[%s5710 + $0x34] sm:$0xf]
        %v5725 = vld [vmem:[%s5710 + $0x38] sm:$0xf]
        %v5726 = vld [vmem:[%s5710 + $0x3c] sm:$0xf]
        %v5727 = vld [vmem:[%s5710 + $0x40] sm:$0xf]
        %v5728 = vld [vmem:[%s5710 + $0x44] sm:$0xf]
        %v5729 = vld [vmem:[%s5710 + $0x48] sm:$0xf]
        %v5730 = vld [vmem:[%s5710 + $0x4c] sm:$0xf]
        %v5731 = vld [vmem:[%s5710 + $0x50] sm:$0xf]
        %v5732 = vld [vmem:[%s5710 + $0x54] sm:$0xf]
        %v5733 = vld [vmem:[%s5710 + $0x58] sm:$0xf]
        %v5734 = vld [vmem:[%s5710 + $0x5c] sm:$0xf]
        %5737 = vrot.lane.b32.xlu0 %v5708, 64
        %v5738 = vpop.permute.xlu0 %5737
        %5739 = vrot.lane.b32.xlu0 %v5709, 64
        %v5740 = vpop.permute.xlu0 %5739
        %v5743 = vsel %vm3254, 0.0, %v5738
        %v5744 = vsel %vm3254, %v5708, %v5740
        %v5745 = vpack.c.bf16 %v5744, %v5743
        %v5746 = vpack.c.bf16 0.0, %v5709
        %s5747 = scalar_lea.vmem [#allocation22], 3
        %v5748 = vld [vmem:[%s5747] sm:$0x1]
        %v5750 = vlaneseq
        %v5751 = vshrl.u32 %v5750, 7
        %v5752 = vsub.s32 0, %v5751
        %v5753 = vrot.slane %v5748, %v5752
        %v5779 = vunpack.c.l.b16 %v5711
        %v5780 = vunpack.c.l.b16 %v5712
        %v5781 = vunpack.c.l.b16 %v5713
        %v5782 = vunpack.c.l.b16 %v5714
        %v5783 = vunpack.c.l.b16 %v5715
        %v5784 = vunpack.c.l.b16 %v5716
        %v5785 = vunpack.c.l.b16 %v5717
        %v5786 = vunpack.c.l.b16 %v5718
        %v5787 = vunpack.c.l.b16 %v5719
        %v5788 = vunpack.c.l.b16 %v5720
        %v5789 = vunpack.c.l.b16 %v5721
        %v5790 = vunpack.c.l.b16 %v5722
        %v5791 = vunpack.c.l.b16 %v5723
        %v5792 = vunpack.c.l.b16 %v5724
        %v5793 = vunpack.c.l.b16 %v5725
        %v5794 = vunpack.c.l.b16 %v5726
        %v5795 = vunpack.c.l.b16 %v5727
        %v5796 = vunpack.c.l.b16 %v5728
        %v5797 = vunpack.c.l.b16 %v5729
        %v5798 = vunpack.c.l.b16 %v5730
        %v5799 = vunpack.c.l.b16 %v5731
        %v5800 = vunpack.c.l.b16 %v5732
        %v5801 = vunpack.c.l.b16 %v5733
        %v5802 = vunpack.c.l.b16 %v5734
        %v5803 = vpack.c.b16 %v5780, %v5779
        %v5804 = vpack.c.b16 %v5782, %v5781
        %v5805 = vpack.c.b16 %v5784, %v5783
        %v5806 = vpack.c.b16 %v5786, %v5785
        %v5807 = vpack.c.b16 %v5788, %v5787
        %v5808 = vpack.c.b16 %v5790, %v5789
        %v5809 = vpack.c.b16 %v5792, %v5791
        %v5810 = vpack.c.b16 %v5794, %v5793
        %v5811 = vpack.c.b16 %v5796, %v5795
        %v5812 = vpack.c.b16 %v5798, %v5797
        %v5813 = vpack.c.b16 %v5800, %v5799
        %v5814 = vpack.c.b16 %v5802, %v5801
        %v5828 = vsel %vm3254, %v5746, 0
        %5830 = vmatprep.subr.bf16.mxu0 0
        %5831 = vmatpush1.bf16.msra.mxu0 %v5803
        %5832 = vmatprep.subr.bf16.mxu0 0
        %5833 = vmatpush1.bf16.msra.mxu0 %v5804
        %5834 = vmatprep.subr.bf16.mxu0 0
        %5835 = vmatpush1.bf16.msra.mxu0 %v5805
        %5836 = vmatprep.subr.bf16.mxu0 0
        %5837 = vmatpush1.bf16.msra.mxu0 %v5806
        %5838 = vmatprep.subr.bf16.mxu0 0
        %5839 = vmatpush1.bf16.msra.mxu0 %v5807
        %5840 = vmatprep.subr.bf16.mxu0 0
        %5841 = vmatpush1.bf16.msra.mxu0 %v5808
        %5842 = vmatprep.subr.bf16.mxu0 0
        %5843 = vmatpush1.bf16.msra.mxu0 %v5809
        %5844 = vmatprep.subr.bf16.mxu0 0
        %5845 = vmatpush1.bf16.msra.mxu0 %v5810
        %5846 = vmatprep.subr.bf16.mxu0 0
        %5847 = vmatpush1.bf16.msra.mxu0 %v5811
        %5848 = vmatprep.subr.bf16.mxu0 0
        %5849 = vmatpush1.bf16.msra.mxu0 %v5812
        %5850 = vmatprep.subr.bf16.mxu0 0
        %5851 = vmatpush1.bf16.msra.mxu0 %v5813
        %5852 = vmatprep.subr.bf16.mxu0 0
        %5853 = vmatpush1.bf16.msra.mxu0 %v5814
        %5854 = vmatprep.subr.bf16.mxu0 0
        %5855 = vmatpush1.bf16.msra.mxu0 0
        %5856 = vmatprep.subr.bf16.mxu0 0
        %5857 = vmatpush1.bf16.msra.mxu0 0
        %5858 = vmatprep.subr.bf16.mxu0 0
        %5859 = vmatpush1.bf16.msra.mxu0 0
        %5860 = vmatprep.subr.bf16.mxu0 0
        %5861 = vmatpush1.bf16.msra.mxu0 0
        %5862 = vmatprep.mubr.bf16.mxu0 %v5828
        %5863 = vmatmul.mubr.bf16.gmra.mrb[0].mxu0 %v5745
        %v5864 = vpop.f32.mrb[0].mxu0
        %v5865 = vadd.f32 %v5753, %v5864
        %v5866 = vpop.f32.mrb[0].mxu0
        %v5867 = vpop.f32.mrb[0].mxu0
        %v5868 = vadd.f32 %v5753, %v5867
        %v5869 = vpop.f32.mrb[0].mxu0
        %5870 = vdwg.mxu0
        %v5871 = vtanh.pop %v5865
        %v5872 = vtanh.pop %v5868
        %v5873 = vxor.u32 %v5865, 2147483648
        %v5874 = vxor.u32 %v5868, 2147483648
        %v5875 = vmul.f32 %v5873, 1.442695
        %v5876 = vpow.pop %v5875
        %v5877 = vmul.f32 %v5874, 1.442695
        %v5878 = vpow.pop %v5877
        %v5879 = vadd.f32 %v5876, 1.0
        %v5880 = vadd.f32 %v5878, 1.0
        %v5881 = vrcp.pop %v5879
        %v5882 = vmul.f32 1.0, %v5881
        %v5883 = vrcp.pop %v5880
        %v5884 = vmul.f32 1.0, %v5883
        %5887 = vrot.lane.b32.xlu0 %v5882, 64
        %v5888 = vpop.permute.xlu0 %5887
        %5889 = vrot.lane.b32.xlu0 %v5884, 64
        %v5890 = vpop.permute.xlu0 %5889
        %v5893 = vmul.f32 %v5871, %v5888
        %v5894 = vmul.f32 %v5872, %v5890
        %v5895 = vpack.c.bf16 %v5894, %v5893
        %s5896 = scalar_lea.vmem %s17, 96
        %v5897 = vld [vmem:[%s5896] sm:$0xf]
        %v5898 = vld [vmem:[%s5896 + $0x4] sm:$0xf]
        %v5899 = vld [vmem:[%s5896 + $0x8] sm:$0xf]
        %v5900 = vld [vmem:[%s5896 + $0xc] sm:$0xf]
        %v5901 = vld [vmem:[%s5896 + $0x10] sm:$0xf]
        %v5902 = vld [vmem:[%s5896 + $0x14] sm:$0xf]
        %v5903 = vld [vmem:[%s5896 + $0x18] sm:$0xf]
        %v5904 = vld [vmem:[%s5896 + $0x1c] sm:$0xf]
        %v5913 = vunpack.c.l.b16 %v5897
        %v5914 = vunpack.c.l.b16 %v5898
        %v5915 = vunpack.c.l.b16 %v5899
        %v5916 = vunpack.c.l.b16 %v5900
        %v5917 = vunpack.c.l.b16 %v5901
        %v5918 = vunpack.c.l.b16 %v5902
        %v5919 = vunpack.c.l.b16 %v5903
        %v5920 = vunpack.c.l.b16 %v5904
        %v5921 = vpack.c.b16 %v5914, %v5913
        %v5922 = vpack.c.b16 %v5916, %v5915
        %v5923 = vpack.c.b16 %v5918, %v5917
        %v5924 = vpack.c.b16 %v5920, %v5919
        %v5930 = vsel %vm3254, %v5895, 0
        %5932 = vmatprep.subr.bf16.mxu0 0
        %5933 = vmatpush1.bf16.msra.mxu0 %v5921
        %5934 = vmatprep.subr.bf16.mxu0 0
        %5935 = vmatpush1.bf16.msra.mxu0 %v5922
        %5936 = vmatprep.subr.bf16.mxu0 0
        %5937 = vmatpush1.bf16.msra.mxu0 %v5923
        %5938 = vmatprep.subr.bf16.mxu0 0
        %5939 = vmatpush1.bf16.msra.mxu0 %v5924
        %5940 = vmatprep.subr.bf16.mxu0 0
        %5941 = vmatpush1.bf16.msra.mxu0 0
        %5942 = vmatprep.subr.bf16.mxu0 0
        %5943 = vmatpush1.bf16.msra.mxu0 0
        %5944 = vmatprep.subr.bf16.mxu0 0
        %5945 = vmatpush1.bf16.msra.mxu0 0
        %5946 = vmatprep.subr.bf16.mxu0 0
        %5947 = vmatpush1.bf16.msra.mxu0 0
        %5948 = vmatprep.subr.bf16.mxu0 0
        %5949 = vmatpush1.bf16.msra.mxu0 0
        %5950 = vmatprep.subr.bf16.mxu0 0
        %5951 = vmatpush1.bf16.msra.mxu0 0
        %5952 = vmatprep.subr.bf16.mxu0 0
        %5953 = vmatpush1.bf16.msra.mxu0 0
        %5954 = vmatprep.subr.bf16.mxu0 0
        %5955 = vmatpush1.bf16.msra.mxu0 0
        %5956 = vmatprep.subr.bf16.mxu0 0
        %5957 = vmatpush1.bf16.msra.mxu0 0
        %5958 = vmatprep.subr.bf16.mxu0 0
        %5959 = vmatpush1.bf16.msra.mxu0 0
        %5960 = vmatprep.subr.bf16.mxu0 0
        %5961 = vmatpush1.bf16.msra.mxu0 0
        %5962 = vmatprep.subr.bf16.mxu0 0
        %5963 = vmatpush1.bf16.msra.mxu0 0
        %5964 = vmatprep.mubr.bf16.mxu0 0
        %5965 = vmatmul.mubr.bf16.gmra.mrb[0].mxu0 %v5930
        %v5966 = vpop.f32.mrb[0].mxu0
        %v5967 = vadd.f32 0.0, %v5966
        %v5968 = vpop.f32.mrb[0].mxu0
        %v5969 = vpop.f32.mrb[0].mxu0
        %v5970 = vadd.f32 0.0, %v5969
        %v5971 = vpop.f32.mrb[0].mxu0
        %5972 = vdwg.mxu0
        %v5973 = vadd.f32 %v5708, %v5967
        %v5974 = vadd.f32 %v5709, %v5970
        %s5975 = scalar_lea.vmem [#allocation24], 3
        %v5976 = vld [vmem:[%s5975] sm:$0x1]
        %v5978 = vlaneseq
        %v5979 = vshrl.u32 %v5978, 7
        %v5980 = vsub.s32 0, %v5979
        %v5981 = vrot.slane %v5976, %v5980
        %v5983 = vadd.f32 %v5973, %v5981
        %v5984 = vadd.f32 %v5974, %v5981
        %v5985 = vpack.c.bf16 %v5984, %v5983
        %v5986 = vld [vmem:[%s19] sm:$0xf]
        %v5987 = vld [vmem:[%s19 + $0x4] sm:$0xf]
        %v5988 = vld [vmem:[%s19 + $0x8] sm:$0xf]
        %v5989 = vld [vmem:[%s19 + $0xc] sm:$0xf]
        %v5990 = vld [vmem:[%s19 + $0x10] sm:$0xf]
        %v5991 = vld [vmem:[%s19 + $0x14] sm:$0xf]
        %v5992 = vld [vmem:[%s19 + $0x18] sm:$0xf]
        %v5993 = vld [vmem:[%s19 + $0x1c] sm:$0xf]
        %v5994 = vld [vmem:[#allocation25] sm:$0x1]
        %v5996 = vlaneseq
        %v5997 = vshrl.u32 %v5996, 7
        %v5998 = vsub.s32 0, %v5997
        %v5999 = vrot.slane %v5994, %v5998
        %v6009 = vunpack.c.l.b16 %v5986
        %v6010 = vunpack.c.l.b16 %v5987
        %v6011 = vunpack.c.l.b16 %v5988
        %v6012 = vunpack.c.l.b16 %v5989
        %v6013 = vunpack.c.l.b16 %v5990
        %v6014 = vunpack.c.l.b16 %v5991
        %v6015 = vunpack.c.l.b16 %v5992
        %v6016 = vunpack.c.l.b16 %v5993
        %v6017 = vpack.c.b16 %v6010, %v6009
        %v6018 = vpack.c.b16 %v6012, %v6011
        %v6019 = vpack.c.b16 %v6014, %v6013
        %v6020 = vpack.c.b16 %v6016, %v6015
        %v6026 = vsel %vm3254, %v5985, 0
        %6028 = vmatprep.subr.bf16.mxu0 0
        %6029 = vmatpush1.bf16.msra.mxu0 %v6017
        %6030 = vmatprep.subr.bf16.mxu0 0
        %6031 = vmatpush1.bf16.msra.mxu0 %v6018
        %6032 = vmatprep.subr.bf16.mxu0 0
        %6033 = vmatpush1.bf16.msra.mxu0 %v6019
        %6034 = vmatprep.subr.bf16.mxu0 0
        %6035 = vmatpush1.bf16.msra.mxu0 %v6020
        %6036 = vmatprep.subr.bf16.mxu0 0
        %6037 = vmatpush1.bf16.msra.mxu0 0
        %6038 = vmatprep.subr.bf16.mxu0 0
        %6039 = vmatpush1.bf16.msra.mxu0 0
        %6040 = vmatprep.subr.bf16.mxu0 0
        %6041 = vmatpush1.bf16.msra.mxu0 0
        %6042 = vmatprep.subr.bf16.mxu0 0
        %6043 = vmatpush1.bf16.msra.mxu0 0
        %6044 = vmatprep.subr.bf16.mxu0 0
        %6045 = vmatpush1.bf16.msra.mxu0 0
        %6046 = vmatprep.subr.bf16.mxu0 0
        %6047 = vmatpush1.bf16.msra.mxu0 0
        %6048 = vmatprep.subr.bf16.mxu0 0
        %6049 = vmatpush1.bf16.msra.mxu0 0
        %6050 = vmatprep.subr.bf16.mxu0 0
        %6051 = vmatpush1.bf16.msra.mxu0 0
        %6052 = vmatprep.subr.bf16.mxu0 0
        %6053 = vmatpush1.bf16.msra.mxu0 0
        %6054 = vmatprep.subr.bf16.mxu0 0
        %6055 = vmatpush1.bf16.msra.mxu0 0
        %6056 = vmatprep.subr.bf16.mxu0 0
        %6057 = vmatpush1.bf16.msra.mxu0 0
        %6058 = vmatprep.subr.bf16.mxu0 0
        %6059 = vmatpush1.bf16.msra.mxu0 0
        %6060 = vmatprep.mubr.bf16.mxu0 0
        %6061 = vmatmul.mubr.bf16.gmra.mrb[0].mxu0 %v6026
        %v6062 = vpop.f32.mrb[0].mxu0
        %v6063 = vadd.f32 %v5999, %v6062
        %v6064 = vpop.f32.mrb[0].mxu0
        %v6065 = vpop.f32.mrb[0].mxu0
        %v6066 = vadd.f32 %v5999, %v6065
        %v6067 = vpop.f32.mrb[0].mxu0
        %6068 = vdwg.mxu0
        %v6069 = vld [vmem:[%s21] sm:$0xff]
        %v6070 = vld [vmem:[%s21 + $0x8] sm:$0xff]
        %v6071 = vld [vmem:[%s21 + $0x10] sm:$0xff]
        %v6072 = vld [vmem:[%s21 + $0x18] sm:$0xff]
        %v6073 = vld [vmem:[%s21 + $0x20] sm:$0xff]
        %v6074 = vld [vmem:[%s21 + $0x28] sm:$0xff]
        %v6075 = vld [vmem:[%s21 + $0x30] sm:$0xff]
        %v6076 = vld [vmem:[%s21 + $0x38] sm:$0xff]
        %v6077 = vld [vmem:[%s21 + $0x40] sm:$0xff]
        %v6078 = vld [vmem:[%s21 + $0x48] sm:$0xff]
        %v6079 = vld [vmem:[%s21 + $0x50] sm:$0xff]
        %v6080 = vld [vmem:[%s21 + $0x58] sm:$0xff]
        %v6081 = vld [vmem:[%s21 + $0x60] sm:$0xff]
        %v6082 = vld [vmem:[%s21 + $0x68] sm:$0xff]
        %v6083 = vld [vmem:[%s21 + $0x70] sm:$0xff]
        %v6084 = vld [vmem:[%s21 + $0x78] sm:$0xff]
        %v6085 = vld [vmem:[%s21 + $0x80] sm:$0xff]
        %v6086 = vld [vmem:[%s21 + $0x88] sm:$0xff]
        %v6087 = vld [vmem:[%s21 + $0x90] sm:$0xff]
        %v6088 = vld [vmem:[%s21 + $0x98] sm:$0xff]
        %v6089 = vld [vmem:[%s21 + $0xa0] sm:$0xff]
        %v6090 = vld [vmem:[%s21 + $0xa8] sm:$0xff]
        %v6091 = vld [vmem:[%s21 + $0xb0] sm:$0xff]
        %v6092 = vld [vmem:[%s21 + $0xb8] sm:$0xff]
        %v6093 = vld [vmem:[%s21 + $0xc0] sm:$0xff]
        %v6094 = vld [vmem:[%s21 + $0xc8] sm:$0xff]
        %v6095 = vld [vmem:[%s21 + $0xd0] sm:$0xff]
        %v6096 = vld [vmem:[%s21 + $0xd8] sm:$0xff]
        %v6097 = vld [vmem:[%s21 + $0xe0] sm:$0xff]
        %v6098 = vld [vmem:[%s21 + $0xe8] sm:$0xff]
        %v6099 = vld [vmem:[%s21 + $0xf0] sm:$0xff]
        %v6100 = vld [vmem:[%s21 + $0xf8] sm:$0xff]
        %v6101 = vld [vmem:[%s21 + $0x100] sm:$0xff]
        %v6102 = vld [vmem:[%s21 + $0x108] sm:$0xff]
        %v6103 = vld [vmem:[%s21 + $0x110] sm:$0xff]
        %v6104 = vld [vmem:[%s21 + $0x118] sm:$0xff]
        %v6105 = vld [vmem:[%s21 + $0x120] sm:$0xff]
        %v6106 = vld [vmem:[%s21 + $0x128] sm:$0xff]
        %v6107 = vld [vmem:[%s21 + $0x130] sm:$0xff]
        %v6108 = vld [vmem:[%s21 + $0x138] sm:$0xff]
        %v6109 = vld [vmem:[%s21 + $0x140] sm:$0xff]
        %v6110 = vld [vmem:[%s21 + $0x148] sm:$0xff]
        %v6111 = vld [vmem:[%s21 + $0x150] sm:$0xff]
        %v6112 = vld [vmem:[%s21 + $0x158] sm:$0xff]
        %v6113 = vld [vmem:[%s21 + $0x160] sm:$0xff]
        %v6114 = vld [vmem:[%s21 + $0x168] sm:$0xff]
        %v6115 = vld [vmem:[%s21 + $0x170] sm:$0xff]
        %v6116 = vld [vmem:[%s21 + $0x178] sm:$0xff]
        %v6119 = vrot.slane %v6063, 7
        %v6120 = vrot.slane %v6066, 7
        %v6121 = vsel %vm1165, %v6119, %v6120
        %v6124 = vsel %vm1165, 0.0, %v6119
        %v6125 = vrot.slane %v6063, 1
        %v6126 = vrot.slane %v6066, 1
        %v6127 = vsel %vm1172, %v6125, %v6126
        %v6130 = vsel %vm1172, %v6126, 0.0
        %v6131 = vpack.c.bf16 %v6121, %v6124
        %v6132 = vpack.c.bf16 %v6066, %v6063
        %v6133 = vpack.c.bf16 %v6130, %v6127
        %v6134 = vld [vmem:[#allocation27] sm:$0x3]
        %v6136 = vlaneseq
        %v6137 = vshrl.u32 %v6136, 7
        %v6138 = vsub.s32 0, %v6137
        %v6139 = vrot.slane %v6134, %v6138
        %v6140 = vlaneseq
        %v6141 = vshrl.u32 %v6140, 7
        %v6142 = vsub.s32 1, %v6141
        %v6143 = vrot.slane %v6134, %v6142
        %v6194 = vunpack.c.l.b16 %v6069
        %v6195 = vunpack.c.h.b16 %v6069
        %v6196 = vunpack.c.l.b16 %v6070
        %v6197 = vunpack.c.h.b16 %v6070
        %v6198 = vunpack.c.l.b16 %v6071
        %v6199 = vunpack.c.h.b16 %v6071
        %v6200 = vunpack.c.l.b16 %v6072
        %v6201 = vunpack.c.h.b16 %v6072
        %v6202 = vunpack.c.l.b16 %v6073
        %v6203 = vunpack.c.h.b16 %v6073
        %v6204 = vunpack.c.l.b16 %v6074
        %v6205 = vunpack.c.h.b16 %v6074
        %v6206 = vunpack.c.l.b16 %v6075
        %v6207 = vunpack.c.h.b16 %v6075
        %v6208 = vunpack.c.l.b16 %v6076
        %v6209 = vunpack.c.h.b16 %v6076
        %v6210 = vunpack.c.l.b16 %v6077
        %v6211 = vunpack.c.h.b16 %v6077
        %v6212 = vunpack.c.l.b16 %v6078
        %v6213 = vunpack.c.h.b16 %v6078
        %v6214 = vunpack.c.l.b16 %v6079
        %v6215 = vunpack.c.h.b16 %v6079
        %v6216 = vunpack.c.l.b16 %v6080
        %v6217 = vunpack.c.h.b16 %v6080
        %v6218 = vunpack.c.l.b16 %v6081
        %v6219 = vunpack.c.h.b16 %v6081
        %v6220 = vunpack.c.l.b16 %v6082
        %v6221 = vunpack.c.h.b16 %v6082
        %v6222 = vunpack.c.l.b16 %v6083
        %v6223 = vunpack.c.h.b16 %v6083
        %v6224 = vunpack.c.l.b16 %v6084
        %v6225 = vunpack.c.h.b16 %v6084
        %v6226 = vunpack.c.l.b16 %v6085
        %v6227 = vunpack.c.h.b16 %v6085
        %v6228 = vunpack.c.l.b16 %v6086
        %v6229 = vunpack.c.h.b16 %v6086
        %v6230 = vunpack.c.l.b16 %v6087
        %v6231 = vunpack.c.h.b16 %v6087
        %v6232 = vunpack.c.l.b16 %v6088
        %v6233 = vunpack.c.h.b16 %v6088
        %v6234 = vunpack.c.l.b16 %v6089
        %v6235 = vunpack.c.h.b16 %v6089
        %v6236 = vunpack.c.l.b16 %v6090
        %v6237 = vunpack.c.h.b16 %v6090
        %v6238 = vunpack.c.l.b16 %v6091
        %v6239 = vunpack.c.h.b16 %v6091
        %v6240 = vunpack.c.l.b16 %v6092
        %v6241 = vunpack.c.h.b16 %v6092
        %v6242 = vunpack.c.l.b16 %v6093
        %v6243 = vunpack.c.h.b16 %v6093
        %v6244 = vunpack.c.l.b16 %v6094
        %v6245 = vunpack.c.h.b16 %v6094
        %v6246 = vunpack.c.l.b16 %v6095
        %v6247 = vunpack.c.h.b16 %v6095
        %v6248 = vunpack.c.l.b16 %v6096
        %v6249 = vunpack.c.h.b16 %v6096
        %v6250 = vunpack.c.l.b16 %v6097
        %v6251 = vunpack.c.h.b16 %v6097
        %v6252 = vunpack.c.l.b16 %v6098
        %v6253 = vunpack.c.h.b16 %v6098
        %v6254 = vunpack.c.l.b16 %v6099
        %v6255 = vunpack.c.h.b16 %v6099
        %v6256 = vunpack.c.l.b16 %v6100
        %v6257 = vunpack.c.h.b16 %v6100
        %v6258 = vunpack.c.l.b16 %v6101
        %v6259 = vunpack.c.h.b16 %v6101
        %v6260 = vunpack.c.l.b16 %v6102
        %v6261 = vunpack.c.h.b16 %v6102
        %v6262 = vunpack.c.l.b16 %v6103
        %v6263 = vunpack.c.h.b16 %v6103
        %v6264 = vunpack.c.l.b16 %v6104
        %v6265 = vunpack.c.h.b16 %v6104
        %v6266 = vunpack.c.l.b16 %v6105
        %v6267 = vunpack.c.h.b16 %v6105
        %v6268 = vunpack.c.l.b16 %v6106
        %v6269 = vunpack.c.h.b16 %v6106
        %v6270 = vunpack.c.l.b16 %v6107
        %v6271 = vunpack.c.h.b16 %v6107
        %v6272 = vunpack.c.l.b16 %v6108
        %v6273 = vunpack.c.h.b16 %v6108
        %v6274 = vunpack.c.l.b16 %v6109
        %v6275 = vunpack.c.h.b16 %v6109
        %v6276 = vunpack.c.l.b16 %v6110
        %v6277 = vunpack.c.h.b16 %v6110
        %v6278 = vunpack.c.l.b16 %v6111
        %v6279 = vunpack.c.h.b16 %v6111
        %v6280 = vunpack.c.l.b16 %v6112
        %v6281 = vunpack.c.h.b16 %v6112
        %v6282 = vunpack.c.l.b16 %v6113
        %v6283 = vunpack.c.h.b16 %v6113
        %v6284 = vunpack.c.l.b16 %v6114
        %v6285 = vunpack.c.h.b16 %v6114
        %v6286 = vunpack.c.l.b16 %v6115
        %v6287 = vunpack.c.h.b16 %v6115
        %v6288 = vunpack.c.l.b16 %v6116
        %v6289 = vunpack.c.h.b16 %v6116
        %v6290 = vpack.c.b16 %v6196, %v6194
        %v6291 = vpack.c.b16 %v6197, %v6195
        %v6292 = vpack.c.b16 %v6200, %v6198
        %v6293 = vpack.c.b16 %v6201, %v6199
        %v6294 = vpack.c.b16 %v6204, %v6202
        %v6295 = vpack.c.b16 %v6205, %v6203
        %v6296 = vpack.c.b16 %v6208, %v6206
        %v6297 = vpack.c.b16 %v6209, %v6207
        %v6298 = vpack.c.b16 %v6212, %v6210
        %v6299 = vpack.c.b16 %v6213, %v6211
        %v6300 = vpack.c.b16 %v6216, %v6214
        %v6301 = vpack.c.b16 %v6217, %v6215
        %v6302 = vpack.c.b16 %v6220, %v6218
        %v6303 = vpack.c.b16 %v6221, %v6219
        %v6304 = vpack.c.b16 %v6224, %v6222
        %v6305 = vpack.c.b16 %v6225, %v6223
        %v6306 = vpack.c.b16 %v6228, %v6226
        %v6307 = vpack.c.b16 %v6229, %v6227
        %v6308 = vpack.c.b16 %v6232, %v6230
        %v6309 = vpack.c.b16 %v6233, %v6231
        %v6310 = vpack.c.b16 %v6236, %v6234
        %v6311 = vpack.c.b16 %v6237, %v6235
        %v6312 = vpack.c.b16 %v6240, %v6238
        %v6313 = vpack.c.b16 %v6241, %v6239
        %v6314 = vpack.c.b16 %v6244, %v6242
        %v6315 = vpack.c.b16 %v6245, %v6243
        %v6316 = vpack.c.b16 %v6248, %v6246
        %v6317 = vpack.c.b16 %v6249, %v6247
        %v6318 = vpack.c.b16 %v6252, %v6250
        %v6319 = vpack.c.b16 %v6253, %v6251
        %v6320 = vpack.c.b16 %v6256, %v6254
        %v6321 = vpack.c.b16 %v6257, %v6255
        %v6322 = vpack.c.b16 %v6260, %v6258
        %v6323 = vpack.c.b16 %v6261, %v6259
        %v6324 = vpack.c.b16 %v6264, %v6262
        %v6325 = vpack.c.b16 %v6265, %v6263
        %v6326 = vpack.c.b16 %v6268, %v6266
        %v6327 = vpack.c.b16 %v6269, %v6267
        %v6328 = vpack.c.b16 %v6272, %v6270
        %v6329 = vpack.c.b16 %v6273, %v6271
        %v6330 = vpack.c.b16 %v6276, %v6274
        %v6331 = vpack.c.b16 %v6277, %v6275
        %v6332 = vpack.c.b16 %v6280, %v6278
        %v6333 = vpack.c.b16 %v6281, %v6279
        %v6334 = vpack.c.b16 %v6284, %v6282
        %v6335 = vpack.c.b16 %v6285, %v6283
        %v6336 = vpack.c.b16 %v6288, %v6286
        %v6337 = vpack.c.b16 %v6289, %v6287
        %6386 = vmatprep.subr.bf16.mxu0 %v6291
        %6387 = vmatpush1.bf16.msra.mxu0 %v6290
        %6388 = vmatprep.subr.bf16.mxu0 %v6293
        %6389 = vmatpush1.bf16.msra.mxu0 %v6292
        %6390 = vmatprep.subr.bf16.mxu0 %v6295
        %6391 = vmatpush1.bf16.msra.mxu0 %v6294
        %6392 = vmatprep.subr.bf16.mxu0 %v6297
        %6393 = vmatpush1.bf16.msra.mxu0 %v6296
        %6394 = vmatprep.subr.bf16.mxu0 %v6299
        %6395 = vmatpush1.bf16.msra.mxu0 %v6298
        %6396 = vmatprep.subr.bf16.mxu0 %v6301
        %6397 = vmatpush1.bf16.msra.mxu0 %v6300
        %6398 = vmatprep.subr.bf16.mxu0 %v6303
        %6399 = vmatpush1.bf16.msra.mxu0 %v6302
        %6400 = vmatprep.subr.bf16.mxu0 %v6305
        %6401 = vmatpush1.bf16.msra.mxu0 %v6304
        %6402 = vmatprep.subr.bf16.mxu0 %v6307
        %6403 = vmatpush1.bf16.msra.mxu0 %v6306
        %6404 = vmatprep.subr.bf16.mxu0 %v6309
        %6405 = vmatpush1.bf16.msra.mxu0 %v6308
        %6406 = vmatprep.subr.bf16.mxu0 %v6311
        %6407 = vmatpush1.bf16.msra.mxu0 %v6310
        %6408 = vmatprep.subr.bf16.mxu0 %v6313
        %6409 = vmatpush1.bf16.msra.mxu0 %v6312
        %6410 = vmatprep.subr.bf16.mxu0 %v6315
        %6411 = vmatpush1.bf16.msra.mxu0 %v6314
        %6412 = vmatprep.subr.bf16.mxu0 %v6317
        %6413 = vmatpush1.bf16.msra.mxu0 %v6316
        %6414 = vmatprep.subr.bf16.mxu0 %v6319
        %6415 = vmatpush1.bf16.msra.mxu0 %v6318
        %6416 = vmatprep.subr.bf16.mxu0 %v6321
        %6417 = vmatpush1.bf16.msra.mxu0 %v6320
        %6418 = vmatprep.mubr.bf16.mxu0 %v6132
        %6419 = vmatmul.mubr.bf16.gmra.mrb[0].mxu0 %v6131
        %v6420 = vpop.f32.mrb[0].mxu0
        %v6421 = vadd.f32 %v6139, %v6420
        %v6422 = vpop.f32.mrb[0].mxu0
        %v6423 = vadd.f32 %v6143, %v6422
        %v6424 = vpop.f32.mrb[0].mxu0
        %v6425 = vadd.f32 %v6139, %v6424
        %v6426 = vpop.f32.mrb[0].mxu0
        %v6427 = vadd.f32 %v6143, %v6426
        %6428 = vdwg.mxu0
        %6429 = vmatprep.subr.bf16.mxu0 %v6323
        %6430 = vmatpush1.bf16.msra.mxu0 %v6322
        %6431 = vmatprep.subr.bf16.mxu0 %v6325
        %6432 = vmatpush1.bf16.msra.mxu0 %v6324
        %6433 = vmatprep.subr.bf16.mxu0 %v6327
        %6434 = vmatpush1.bf16.msra.mxu0 %v6326
        %6435 = vmatprep.subr.bf16.mxu0 %v6329
        %6436 = vmatpush1.bf16.msra.mxu0 %v6328
        %6437 = vmatprep.subr.bf16.mxu0 %v6331
        %6438 = vmatpush1.bf16.msra.mxu0 %v6330
        %6439 = vmatprep.subr.bf16.mxu0 %v6333
        %6440 = vmatpush1.bf16.msra.mxu0 %v6332
        %6441 = vmatprep.subr.bf16.mxu0 %v6335
        %6442 = vmatpush1.bf16.msra.mxu0 %v6334
        %6443 = vmatprep.subr.bf16.mxu0 %v6337
        %6444 = vmatpush1.bf16.msra.mxu0 %v6336
        %6445 = vmatprep.subr.bf16.mxu0 0
        %6446 = vmatpush1.bf16.msra.mxu0 0
        %6447 = vmatprep.subr.bf16.mxu0 0
        %6448 = vmatpush1.bf16.msra.mxu0 0
        %6449 = vmatprep.subr.bf16.mxu0 0
        %6450 = vmatpush1.bf16.msra.mxu0 0
        %6451 = vmatprep.subr.bf16.mxu0 0
        %6452 = vmatpush1.bf16.msra.mxu0 0
        %6453 = vmatprep.subr.bf16.mxu0 0
        %6454 = vmatpush1.bf16.msra.mxu0 0
        %6455 = vmatprep.subr.bf16.mxu0 0
        %6456 = vmatpush1.bf16.msra.mxu0 0
        %6457 = vmatprep.subr.bf16.mxu0 0
        %6458 = vmatpush1.bf16.msra.mxu0 0
        %6459 = vmatprep.subr.bf16.mxu0 0
        %6460 = vmatpush1.bf16.msra.mxu0 0
        %6461 = vmatprep.mubr.bf16.mxu0 0
        %6462 = vmatmul.mubr.bf16.gmra.mrb[0].mxu0 %v6133
        %v6463 = vpop.f32.mrb[0].mxu0
        %v6464 = vadd.f32 %v6421, %v6463
        %v6465 = vpop.f32.mrb[0].mxu0
        %v6466 = vadd.f32 %v6423, %v6465
        %v6467 = vpop.f32.mrb[0].mxu0
        %v6468 = vadd.f32 %v6425, %v6467
        %v6469 = vpop.f32.mrb[0].mxu0
        %v6470 = vadd.f32 %v6427, %v6469
        %6471 = vdwg.mxu0
        %v6472 = vtanh.pop %v6464
        %v6473 = vtanh.pop %v6468
        %v6474 = vxor.u32 %v6466, 2147483648
        %v6475 = vxor.u32 %v6470, 2147483648
        %v6476 = vmul.f32 %v6474, 1.442695
        %v6477 = vpow.pop %v6476
        %v6478 = vmul.f32 %v6475, 1.442695
        %v6479 = vpow.pop %v6478
        %v6480 = vadd.f32 %v6477, 1.0
        %v6481 = vadd.f32 %v6479, 1.0
        %v6482 = vrcp.pop %v6480
        %v6483 = vmul.f32 1.0, %v6482
        %v6484 = vrcp.pop %v6481
        %v6485 = vmul.f32 1.0, %v6484
        %v6486 = vmul.f32 %v6472, %v6483
        %v6487 = vmul.f32 %v6473, %v6485
        %v6488 = vpack.c.bf16 %v6487, %v6486
        %v6489 = vld [vmem:[#allocation28] sm:$0xf]
        %v6490 = vld [vmem:[#allocation28 + $0x4] sm:$0xf]
        %v6491 = vld [vmem:[#allocation28 + $0x8] sm:$0xf]
        %v6492 = vld [vmem:[#allocation28 + $0xc] sm:$0xf]
        %v6493 = vld [vmem:[#allocation28 + $0x10] sm:$0xf]
        %v6494 = vld [vmem:[#allocation28 + $0x14] sm:$0xf]
        %v6495 = vld [vmem:[#allocation28 + $0x18] sm:$0xf]
        %v6496 = vld [vmem:[#allocation28 + $0x1c] sm:$0xf]
        %v6497 = vld [vmem:[#allocation28 + $0x20] sm:$0xf]
        %v6498 = vld [vmem:[#allocation28 + $0x24] sm:$0xf]
        %v6499 = vld [vmem:[#allocation28 + $0x28] sm:$0xf]
        %v6500 = vld [vmem:[#allocation28 + $0x2c] sm:$0xf]
        %v6501 = vld [vmem:[#allocation28 + $0x30] sm:$0xf]
        %v6502 = vld [vmem:[#allocation28 + $0x34] sm:$0xf]
        %v6503 = vld [vmem:[#allocation28 + $0x38] sm:$0xf]
        %v6504 = vld [vmem:[#allocation28 + $0x3c] sm:$0xf]
        %v6521 = vunpack.c.l.b16 %v6489
        %v6522 = vunpack.c.l.b16 %v6490
        %v6523 = vunpack.c.l.b16 %v6491
        %v6524 = vunpack.c.l.b16 %v6492
        %v6525 = vunpack.c.l.b16 %v6493
        %v6526 = vunpack.c.l.b16 %v6494
        %v6527 = vunpack.c.l.b16 %v6495
        %v6528 = vunpack.c.l.b16 %v6496
        %v6529 = vunpack.c.l.b16 %v6497
        %v6530 = vunpack.c.l.b16 %v6498
        %v6531 = vunpack.c.l.b16 %v6499
        %v6532 = vunpack.c.l.b16 %v6500
        %v6533 = vunpack.c.l.b16 %v6501
        %v6534 = vunpack.c.l.b16 %v6502
        %v6535 = vunpack.c.l.b16 %v6503
        %v6536 = vunpack.c.l.b16 %v6504
        %v6537 = vpack.c.b16 %v6522, %v6521
        %v6538 = vpack.c.b16 %v6524, %v6523
        %v6539 = vpack.c.b16 %v6526, %v6525
        %v6540 = vpack.c.b16 %v6528, %v6527
        %v6541 = vpack.c.b16 %v6530, %v6529
        %v6542 = vpack.c.b16 %v6532, %v6531
        %v6543 = vpack.c.b16 %v6534, %v6533
        %v6544 = vpack.c.b16 %v6536, %v6535
        %6553 = vmatprep.subr.bf16.mxu0 0
        %6554 = vmatpush1.bf16.msra.mxu0 %v6537
        %6555 = vmatprep.subr.bf16.mxu0 0
        %6556 = vmatpush1.bf16.msra.mxu0 %v6538
        %6557 = vmatprep.subr.bf16.mxu0 0
        %6558 = vmatpush1.bf16.msra.mxu0 %v6539
        %6559 = vmatprep.subr.bf16.mxu0 0
        %6560 = vmatpush1.bf16.msra.mxu0 %v6540
        %6561 = vmatprep.subr.bf16.mxu0 0
        %6562 = vmatpush1.bf16.msra.mxu0 %v6541
        %6563 = vmatprep.subr.bf16.mxu0 0
        %6564 = vmatpush1.bf16.msra.mxu0 %v6542
        %6565 = vmatprep.subr.bf16.mxu0 0
        %6566 = vmatpush1.bf16.msra.mxu0 %v6543
        %6567 = vmatprep.subr.bf16.mxu0 0
        %6568 = vmatpush1.bf16.msra.mxu0 %v6544
        %6569 = vmatprep.subr.bf16.mxu0 0
        %6570 = vmatpush1.bf16.msra.mxu0 0
        %6571 = vmatprep.subr.bf16.mxu0 0
        %6572 = vmatpush1.bf16.msra.mxu0 0
        %6573 = vmatprep.subr.bf16.mxu0 0
        %6574 = vmatpush1.bf16.msra.mxu0 0
        %6575 = vmatprep.subr.bf16.mxu0 0
        %6576 = vmatpush1.bf16.msra.mxu0 0
        %6577 = vmatprep.subr.bf16.mxu0 0
        %6578 = vmatpush1.bf16.msra.mxu0 0
        %6579 = vmatprep.subr.bf16.mxu0 0
        %6580 = vmatpush1.bf16.msra.mxu0 0
        %6581 = vmatprep.subr.bf16.mxu0 0
        %6582 = vmatpush1.bf16.msra.mxu0 0
        %6583 = vmatprep.subr.bf16.mxu0 0
        %6584 = vmatpush1.bf16.msra.mxu0 0
        %6585 = vmatprep.mubr.bf16.mxu0 0
        %6586 = vmatmul.mubr.bf16.gmra.mrb[0].mxu0 %v6488
        %v6587 = vpop.f32.mrb[0].mxu0
        %v6588 = vadd.f32 0.0, %v6587
        %v6589 = vpop.f32.mrb[0].mxu0
        %v6590 = vpop.f32.mrb[0].mxu0
        %v6591 = vadd.f32 0.0, %v6590
        %v6592 = vpop.f32.mrb[0].mxu0
        %6593 = vdwg.mxu0
        %v6594 = vadd.f32 %v6063, %v6588
        %v6595 = vadd.f32 %v6066, %v6591
        %v6596 = vld [vmem:[#allocation30] sm:$0x1]
        %v6598 = vlaneseq
        %v6599 = vshrl.u32 %v6598, 7
        %v6600 = vsub.s32 0, %v6599
        %v6601 = vrot.slane %v6596, %v6600
        %v6603 = vadd.f32 %v6594, %v6601
        %v6604 = vadd.f32 %v6595, %v6601
        %v6605 = vpack.c.bf16 %v6604, %v6603
        %v6606 = vld [vmem:[#allocation31] sm:$0xf]
        %v6607 = vld [vmem:[#allocation31 + $0x4] sm:$0xf]
        %v6608 = vld [vmem:[#allocation31 + $0x8] sm:$0xf]
        %v6609 = vld [vmem:[#allocation31 + $0xc] sm:$0xf]
        %v6610 = vld [vmem:[#allocation31 + $0x10] sm:$0xf]
        %v6611 = vld [vmem:[#allocation31 + $0x14] sm:$0xf]
        %v6612 = vld [vmem:[#allocation31 + $0x18] sm:$0xf]
        %v6613 = vld [vmem:[#allocation31 + $0x1c] sm:$0xf]
        %v6614 = vld [vmem:[#allocation31 + $0x20] sm:$0xf]
        %v6615 = vld [vmem:[#allocation31 + $0x24] sm:$0xf]
        %v6616 = vld [vmem:[#allocation31 + $0x28] sm:$0xf]
        %v6617 = vld [vmem:[#allocation31 + $0x2c] sm:$0xf]
        %v6618 = vld [vmem:[#allocation31 + $0x30] sm:$0xf]
        %v6619 = vld [vmem:[#allocation31 + $0x34] sm:$0xf]
        %v6620 = vld [vmem:[#allocation31 + $0x38] sm:$0xf]
        %v6621 = vld [vmem:[#allocation31 + $0x3c] sm:$0xf]
        %v6622 = vld [vmem:[%s26] sm:$0x1]
        %v6624 = vlaneseq
        %v6625 = vshrl.u32 %v6624, 7
        %v6626 = vsub.s32 0, %v6625
        %v6627 = vrot.slane %v6622, %v6626
        %v6645 = vunpack.c.l.b16 %v6606
        %v6646 = vunpack.c.l.b16 %v6607
        %v6647 = vunpack.c.l.b16 %v6608
        %v6648 = vunpack.c.l.b16 %v6609
        %v6649 = vunpack.c.l.b16 %v6610
        %v6650 = vunpack.c.l.b16 %v6611
        %v6651 = vunpack.c.l.b16 %v6612
        %v6652 = vunpack.c.l.b16 %v6613
        %v6653 = vunpack.c.l.b16 %v6614
        %v6654 = vunpack.c.l.b16 %v6615
        %v6655 = vunpack.c.l.b16 %v6616
        %v6656 = vunpack.c.l.b16 %v6617
        %v6657 = vunpack.c.l.b16 %v6618
        %v6658 = vunpack.c.l.b16 %v6619
        %v6659 = vunpack.c.l.b16 %v6620
        %v6660 = vunpack.c.l.b16 %v6621
        %v6661 = vpack.c.b16 %v6646, %v6645
        %v6662 = vpack.c.b16 %v6648, %v6647
        %v6663 = vpack.c.b16 %v6650, %v6649
        %v6664 = vpack.c.b16 %v6652, %v6651
        %v6665 = vpack.c.b16 %v6654, %v6653
        %v6666 = vpack.c.b16 %v6656, %v6655
        %v6667 = vpack.c.b16 %v6658, %v6657
        %v6668 = vpack.c.b16 %v6660, %v6659
        %6677 = vmatprep.subr.bf16.mxu0 0
        %6678 = vmatpush1.bf16.msra.mxu0 %v6661
        %6679 = vmatprep.subr.bf16.mxu0 0
        %6680 = vmatpush1.bf16.msra.mxu0 %v6662
        %6681 = vmatprep.subr.bf16.mxu0 0
        %6682 = vmatpush1.bf16.msra.mxu0 %v6663
        %6683 = vmatprep.subr.bf16.mxu0 0
        %6684 = vmatpush1.bf16.msra.mxu0 %v6664
        %6685 = vmatprep.subr.bf16.mxu0 0
        %6686 = vmatpush1.bf16.msra.mxu0 %v6665
        %6687 = vmatprep.subr.bf16.mxu0 0
        %6688 = vmatpush1.bf16.msra.mxu0 %v6666
        %6689 = vmatprep.subr.bf16.mxu0 0
        %6690 = vmatpush1.bf16.msra.mxu0 %v6667
        %6691 = vmatprep.subr.bf16.mxu0 0
        %6692 = vmatpush1.bf16.msra.mxu0 %v6668
        %6693 = vmatprep.subr.bf16.mxu0 0
        %6694 = vmatpush1.bf16.msra.mxu0 0
        %6695 = vmatprep.subr.bf16.mxu0 0
        %6696 = vmatpush1.bf16.msra.mxu0 0
        %6697 = vmatprep.subr.bf16.mxu0 0
        %6698 = vmatpush1.bf16.msra.mxu0 0
        %6699 = vmatprep.subr.bf16.mxu0 0
        %6700 = vmatpush1.bf16.msra.mxu0 0
        %6701 = vmatprep.subr.bf16.mxu0 0
        %6702 = vmatpush1.bf16.msra.mxu0 0
        %6703 = vmatprep.subr.bf16.mxu0 0
        %6704 = vmatpush1.bf16.msra.mxu0 0
        %6705 = vmatprep.subr.bf16.mxu0 0
        %6706 = vmatpush1.bf16.msra.mxu0 0
        %6707 = vmatprep.subr.bf16.mxu0 0
        %6708 = vmatpush1.bf16.msra.mxu0 0
        %6709 = vmatprep.mubr.bf16.mxu0 0
        %6710 = vmatmul.mubr.bf16.gmra.mrb[0].mxu0 %v6605
        %v6711 = vpop.f32.mrb[0].mxu0
        %v6712 = vadd.f32 %v6627, %v6711
        %v6713 = vpop.f32.mrb[0].mxu0
        %v6714 = vpop.f32.mrb[0].mxu0
        %v6715 = vadd.f32 %v6627, %v6714
        %v6716 = vpop.f32.mrb[0].mxu0
        %6717 = vdwg.mxu0
        %6718 = vst [vmem:[%s1095] sm:$0xff] %v6712
        %6719 = vst [vmem:[%s1095 + $0x8] sm:$0xff] %v6715
        %p6720 = scmp.lt.s32.totalorder %s49, 1
        %s6721 = scalar_select %p6720, %s49, 1
        %s6722 = smul.addr %s6721, 2
        %s6723 = smul.addr %s6722, 8
        %s6724 = scalar_lea.vmem %s27, %s6723
        // Predicated region
        $region209: #{_lambda_.1} parent=127 // pred_check
          %p6725 = pneg %p639
        $region210: #{_lambda_.1} parent=127 // pred_check_branch
          %6727 = sbr.rel (%p6725) target = $region212
        $region211: #{_lambda_.1} parent=127 // pred_region
          _
        $region212: #{_lambda_.1} parent=127 // pred_fallthru
          _
      $region128: #{_lambda_.1} parent=5 // pred_fallthru
        _
      %p6728 = scmp.le.s32.totalorder 2, %s44
      // Predicated region
      $region213: #{_lambda_.1} parent=5 // pred_check
        %p6729 = pneg %p6728
      $region214: #{_lambda_.1} parent=5 // pred_check_branch
        %6731 = sbr.rel (%p6729) target = $region216
      $region215: #{_lambda_.1} parent=5 // pred_region
        %s6732 = ssub.s32 %s44, 2
        // Predicated region
        $region217: #{_lambda_.1} parent=215 // pred_check
          %p6733 = pneg %p645
        $region218: #{_lambda_.1} parent=215 // pred_check_branch
          %6735 = sbr.rel (%p6733) target = $region220
        $region219: #{_lambda_.1} parent=215 // pred_region
          %p6736 = scmp.lt.s32.totalorder %s50, 1
          %s6737 = scalar_select %p6736, %s50, 1
          %s6738 = smul.addr %s6737, 2
          %s6739 = smul.addr %s6738, 8
          %s6740 = scalar_lea.vmem %s27, %s6739
        $region220: #{_lambda_.1} parent=215 // pred_fallthru
          _
      $region216: #{_lambda_.1} parent=5 // pred_fallthru
        _
    $region6: #{_lambda_.1} parent=1 // loop_footer
      %s48 = sadd.s32 1, %s44
    $region7: #{_lambda_.1} parent=1 // loop_footer_branch
      %43 = sbr.rel target = $region3
    $region8: #{_lambda_.1} parent=1 // loop_exit
      _
    %6741 = vsyncpa [#allocation3], 1
    %s6742 = scalar_lea.sflag [#allocation3], 1
    %6743 = vsyncpa %s6742, 1
    %6744 = vsyncpa [#allocation5], 1
    %6745 = vsyncpa [#allocation8], 1
    %6746 = vsyncpa [#allocation11], 1
    %6747 = vsyncpa [#allocation14], 1
    %6748 = vsyncpa [#allocation17], 1
    %6749 = vsyncpa [#allocation20], 1
    %6750 = vsyncpa [#allocation23], 1
    %6751 = vsyncpa [#allocation26], 1
    %6752 = vsyncpa [#allocation29], 1
    %6753 = vsyncpa [#allocation32], 1

</llo_original>
